<compile_context>
chip_gen: v7x
topology: tpu7x:2x2x1
jax: 0.10.0
libtpu: 0.0.40
codegen_flags: <defaults>
</compile_context>

<pallas_src>
import functools

import jax
import jax.numpy as jnp
from jax import lax
from jax.experimental import pallas as pl
from jax.experimental.pallas import tpu as pltpu

_NEG = float(jnp.finfo(jnp.float32).min)   # stands in for -inf maxpool padding
_EPS = 1e-3                                # BatchNorm eps used by BaseConv


def _round_up(x, m):
    return (x + m - 1) // m * m


def _vmem_limit_bytes():
    try:
        cap = int(pltpu.get_tpu_info().vmem_capacity_bytes)
        if cap <= 0:
            cap = 128 * 1024 * 1024
    except Exception:
        cap = 128 * 1024 * 1024
    # ~55% of physical VMEM (v7x: ~35 MiB of 64 MiB), capped at 64 MiB on 128 MiB chips.
    return int(min(64 * 1024 * 1024, (cap * 11) // 20))


_VMEM_LIMIT = _vmem_limit_bytes()


# ------------------------------ fused SPPF kernel ------------------------------
def _sppf_fused_kernel(row_ref, x_ref, w1_ref, b1_ref, wx_ref, wy1_ref, wy2_ref,
                       wy3_ref, waa_ref, b2_ref, o_ref, acc_ref, accb_ref, *, H, W):
    HW = H * W
    ct = pl.program_id(1)

    @pl.when(ct == 0)
    def _():
        acc_ref[...] = jnp.zeros_like(acc_ref)
        accb_ref[...] = jnp.zeros_like(accb_ref)

    # ---- cv1 for this channel tile: (HW, c1) @ (c1, TC) + BN shift -> SiLU (f32) ----
    pre = jnp.dot(x_ref[0], w1_ref[...], preferred_element_type=jnp.float32)
    pre = pre + b1_ref[...]
    x1 = pre * jax.nn.sigmoid(pre)                                   # (HW, TC) f32

    # ---- global-average branch (both identical `aa` concat slices folded into waa) ----
    avg = jnp.sum(x1, axis=0, keepdims=True) * (1.0 / HW)            # (1, TC)
    avg8 = jnp.broadcast_to(avg, (8, avg.shape[1])).astype(jnp.bfloat16)
    accb_ref[...] += jnp.dot(avg8, waa_ref[...], preferred_element_type=jnp.float32)

    # ---- border-validity masks, hoisted: built from the rolled row-index vector ----
    rowf = row_ref[...]                                              # (HW, 1) f32

    def tap(shift, d, vertical):
        rsrc = pltpu.roll(rowf, shift=shift, axis=0)
        ok = (jnp.abs(rsrc - rowf) == d) if vertical else (rsrc == rowf)
        return shift, jnp.where(ok, 0.0, _NEG).astype(jnp.float32)   # 0 / -huge addend

    taps_h, taps_v = [], []
    for d in (1, 2):
        if W > d:
            taps_h.append(tap(d, d, False))
            taps_h.append(tap(HW - d, d, False))
        if H > d:
            taps_v.append(tap(d * W, d, True))
            taps_v.append(tap(HW - d * W, d, True))

    def pool5(r):                                  # MaxPool2d(5, stride=1, padding=2)
        h = r
        for s, m in taps_h:                        # horizontal 1x5 max
            h = jnp.maximum(h, pltpu.roll(r, shift=s, axis=0) + m)
        v = h
        for s, m in taps_v:                        # vertical 5x1 max of the horizontal max
            v = jnp.maximum(v, pltpu.roll(h, shift=s, axis=0) + m)
        return v

    # ---- cv2 over the never-materialized concat, accumulated over channel tiles ----
    acc = acc_ref[...]
    acc = acc + jnp.dot(x1.astype(jnp.bfloat16), wx_ref[...],
                        preferred_element_type=jnp.float32)
    y = pool5(x1)
    acc = acc + jnp.dot(y.astype(jnp.bfloat16), wy1_ref[...],
                        preferred_element_type=jnp.float32)
    y = pool5(y)
    acc = acc + jnp.dot(y.astype(jnp.bfloat16), wy2_ref[...],
                        preferred_element_type=jnp.float32)
    y = pool5(y)
    acc = acc + jnp.dot(y.astype(jnp.bfloat16), wy3_ref[...],
                        preferred_element_type=jnp.float32)
    acc_ref[...] = acc

    @pl.when(ct == pl.num_programs(1) - 1)
    def _():
        z = acc_ref[...] + accb_ref[0:1, :] + b2_ref[...]
        o_ref[0] = (z * jax.nn.sigmoid(z)).astype(o_ref.dtype)       # SiLU


# --------------------------- parameter folding (BN, concat) ---------------------------
def _fold_params(w1, g1, b1, m1, v1, w2, g2, b2, m2, v2):
    """Fold inference BatchNorm into the 1x1-conv weights, pad channels to 128, bf16 weights."""
    c_, c1 = w1.shape[0], w1.shape[1]
    c2 = w2.shape[0]
    cp = _round_up(c_, 128)
    np_ = _round_up(c2, 128)

    s1 = g1 / jnp.sqrt(v1 + _EPS)
    w1m = jnp.pad(w1.reshape(c_, c1).T * s1[None, :], ((0, 0), (0, cp - c_)))
    b1v = jnp.pad(b1 - m1 * s1, (0, cp - c_)).reshape(1, cp).astype(jnp.float32)

    s2 = g2 / jnp.sqrt(v2 + _EPS)
    w2m = jnp.pad(w2.reshape(c2, 6 * c_).T * s2[None, :], ((0, 0), (0, np_ - c2)))
    ch = [w2m[i * c_:(i + 1) * c_] for i in range(6)]
    padc = lambda m: jnp.pad(m, ((0, cp - c_), (0, 0))).astype(jnp.bfloat16)
    # concat order in the reference module: (x, y1, y2, y3, aa, aa) -> fold the aa slices
    wx, wy1, wy2, wy3 = padc(ch[0]), padc(ch[1]), padc(ch[2]), padc(ch[3])
    waa = padc(ch[4] + ch[5])
    b2v = jnp.pad(b2 - m2 * s2, (0, np_ - c2)).reshape(1, np_).astype(jnp.float32)
    return w1m.astype(jnp.bfloat16), b1v, wx, wy1, wy2, wy3, waa, b2v


# ----------------------------------- forward -----------------------------------
@jax.jit
def sppf_improve_forward(x_nchw, w1, g1, b1, m1, v1, w2, g2, b2, m2, v2):
    """SPPF_improve.forward with BatchNorm in inference mode (eps=1e-3 as in BaseConv)."""
    B, c1, H, W = x_nchw.shape
    HW = H * W
    c2 = w2.shape[0]

    w1m, b1v, wx, wy1, wy2, wy3, waa, b2v = _fold_params(
        w1, g1, b1, m1, v1, w2, g2, b2, m2, v2)
    cp = w1m.shape[1]                         # padded intermediate channels (x128)
    np_ = wx.shape[1]                         # padded output channels (x128, lane-dense)
    tc = 256 if cp % 256 == 0 else 128        # channel tile of the reduction grid axis
    n_ct = cp // tc

    x_rows = jnp.transpose(x_nchw, (0, 2, 3, 1)).reshape(B, HW, c1).astype(jnp.bfloat16)
    rowf = (jnp.arange(HW, dtype=jnp.int32) // W).astype(jnp.float32).reshape(HW, 1)

    kern = functools.partial(_sppf_fused_kernel, H=H, W=W)
    wspec = pl.BlockSpec((tc, np_), lambda b, t: (t, 0))
    out_rows = pl.pallas_call(
        kern,
        out_shape=jax.ShapeDtypeStruct((B, HW, np_), jnp.float32),
        grid_spec=pltpu.PrefetchScalarGridSpec(
            num_scalar_prefetch=0,
            grid=(B, n_ct),
            in_specs=[
                pl.BlockSpec((HW, 1), lambda b, t: (0, 0)),          # row index per flat pixel
                pl.BlockSpec((1, HW, c1), lambda b, t: (b, 0, 0)),   # input rows (bf16)
                pl.BlockSpec((c1, tc), lambda b, t: (0, t)),         # cv1 folded weights
                pl.BlockSpec((1, tc), lambda b, t: (0, t)),          # cv1 BN shift
                wspec, wspec, wspec, wspec, wspec,                   # cv2 slices (x,y1,y2,y3,aa)
                pl.BlockSpec((1, np_), lambda b, t: (0, 0)),         # cv2 BN shift
            ],
            out_specs=pl.BlockSpec((1, HW, np_), lambda b, t: (b, 0, 0)),
            scratch_shapes=[pltpu.VMEM((HW, np_), jnp.float32),      # cv2 accumulator
                            pltpu.VMEM((8, np_), jnp.float32)],      # avg-branch accumulator
        ),
        compiler_params=pltpu.CompilerParams(
            dimension_semantics=("parallel", "arbitrary"),
            vmem_limit_bytes=_VMEM_LIMIT,
        ),
    )(rowf, x_rows, w1m, b1v, wx, wy1, wy2, wy3, waa, b2v)

    out = out_rows[:, :, :c2].reshape(B, H, W, c2)
    return jnp.transpose(out, (0, 3, 1, 2))                          # back to NCHW


# ---------------------------------- references ----------------------------------
def _reference_f32(x, w1, g1, b1, m1, v1, w2, g2, b2, m2, v2):
    """Fully independent pure-f32 reference."""
    def conv_bn_silu(t, w, g, b, m, v):
        y = lax.conv_general_dilated(t, w, (1, 1), "VALID",
                                     dimension_numbers=("NCHW", "OIHW", "NCHW"))
        s = (g / jnp.sqrt(v + _EPS)).reshape(1, -1, 1, 1)
        y = y * s + (b - m * g / jnp.sqrt(v + _EPS)).reshape(1, -1, 1, 1)
        return y * jax.nn.sigmoid(y)

    x1 = conv_bn_silu(x, w1, g1, b1, m1, v1)

    def mp(t):
        return lax.reduce_window(t, -jnp.inf, lax.max, (1, 1, 5, 5), (1, 1, 1, 1),
                                 padding=((0, 0), (0, 0), (2, 2), (2, 2)))

    y1 = mp(x1)
    y2 = mp(y1)
    y3 = mp(y2)
    aa = jnp.broadcast_to(jnp.mean(x1, axis=(2, 3), keepdims=True), x1.shape)
    cat = jnp.concatenate([x1, y1, y2, y3, aa, aa], axis=1)
    return conv_bn_silu(cat, w2, g2, b2, m2, v2)


def _reference_mixed(x, w1, g1, b1, m1, v1, w2, g2, b2, m2, v2):
    """bf16-operand / f32-accumulate reference matching the kernel's numerics."""
    B, c1, H, W = x.shape
    HW = H * W
    c2 = w2.shape[0]
    w1m, b1v, wx, wy1, wy2, wy3, waa, b2v = _fold_params(
        w1, g1, b1, m1, v1, w2, g2, b2, m2, v2)
    cp = w1m.shape[1]

    xr = jnp.transpose(x, (0, 2, 3, 1)).reshape(B, HW, c1).astype(jnp.bfloat16)
    pre = jnp.einsum("bmc,cn->bmn", xr, w1m, preferred_element_type=jnp.float32) + b1v
    x1 = (pre * jax.nn.sigmoid(pre)).reshape(B, H, W, cp)

    def mp(t):
        return lax.reduce_window(t, -jnp.inf, lax.max, (1, 5, 5, 1), (1, 1, 1, 1),
                                 padding=((0, 0), (2, 2), (2, 2), (0, 0)))

    y1 = mp(x1)
    y2 = mp(y1)
    y3 = mp(y2)
    avg = jnp.sum(x1, axis=(1, 2)) * (1.0 / HW)                      # (B, cp)

    def mm(a, w):
        return jnp.einsum("bmc,cn->bmn", a.reshape(B, HW, cp).astype(jnp.bfloat16),
                          w, preferred_element_type=jnp.float32)

    z = mm(x1, wx) + mm(y1, wy1) + mm(y2, wy2) + mm(y3, wy3)
    z = z + jnp.einsum("bc,cn->bn", avg.astype(jnp.bfloat16), waa,
                       preferred_element_type=jnp.float32)[:, None, :]
    z = z + b2v
    out = z * jax.nn.sigmoid(z)
    return jnp.transpose(out[:, :, :c2].reshape(B, H, W, c2), (0, 3, 1, 2))


if __name__ == "__main__":
    # SPPF_improve(c1=4, c2=8, k=5) -> cv1: 4 -> 2, cv2: 12 -> 8
    B, c1, H, W = 2, 4, 16, 16
    c2 = 8
    c_ = c1 // 2

    key = jax.random.PRNGKey(0)
    ks = jax.random.split(key, 11)

    x = jax.random.normal(ks[0], (B, c1, H, W), dtype=jnp.float32)

    w1 = 0.3 * jax.random.normal(ks[1], (c_, c1, 1, 1), dtype=jnp.float32)
    g1 = 1.0 + 0.1 * jax.random.normal(ks[2], (c_,), dtype=jnp.float32)
    b1 = 0.1 * jax.random.normal(ks[3], (c_,), dtype=jnp.float32)
    m1 = 0.1 * jax.random.normal(ks[4], (c_,), dtype=jnp.float32)
    v1 = jnp.abs(jax.random.normal(ks[5], (c_,), dtype=jnp.float32)) + 0.5

    w2 = 0.3 * jax.random.normal(ks[6], (c2, 6 * c_, 1, 1), dtype=jnp.float32)
    g2 = 1.0 + 0.1 * jax.random.normal(ks[7], (c2,), dtype=jnp.float32)
    b2 = 0.1 * jax.random.normal(ks[8], (c2,), dtype=jnp.float32)
    m2 = 0.1 * jax.random.normal(ks[9], (c2,), dtype=jnp.float32)
    v2 = jnp.abs(jax.random.normal(ks[10], (c2,), dtype=jnp.float32)) + 0.5

    args = (x, w1, g1, b1, m1, v1, w2, g2, b2, m2, v2)
    out = jax.block_until_ready(sppf_improve_forward(*args))
    assert out.shape == (B, c2, H, W), out.shape

    # bf16-matched reference (tight-ish: only accumulation-order / transcendental deltas,
    # plus headroom for a rare 1-ulp bf16 rounding flip) and a pure-f32 sanity check.
    ref_mixed = _reference_mixed(*args)
    ref_f32 = _reference_f32(*args)
    err_mixed_max = float(jnp.max(jnp.abs(out - ref_mixed)))
    err_mixed_mean = float(jnp.mean(jnp.abs(out - ref_mixed)))
    err_f32_max = float(jnp.max(jnp.abs(out - ref_f32)))
    assert err_mixed_max < 5e-2, f"mixed-precision max err {err_mixed_max}"
    assert err_mixed_mean < 2e-3, f"mixed-precision mean err {err_mixed_mean}"
    assert err_f32_max < 0.3, f"f32 sanity max err {err_f32_max}"

    print("KERNEL_OK")
</pallas_src>

<mosaic_0001>
module attributes {stable_mosaic.version = 11 : i64} {
  func.func @_sppf_fused_kernel(%arg0: i32, %arg1: i32, %arg2: memref<256x1xf32, #tpu.memory_space<vmem>>, %arg3: memref<1x256x4xbf16, #tpu.memory_space<vmem>>, %arg4: memref<4x128xbf16, #tpu.memory_space<vmem>>, %arg5: memref<1x128xf32, #tpu.memory_space<vmem>>, %arg6: memref<128x128xbf16, #tpu.memory_space<vmem>>, %arg7: memref<128x128xbf16, #tpu.memory_space<vmem>>, %arg8: memref<128x128xbf16, #tpu.memory_space<vmem>>, %arg9: memref<128x128xbf16, #tpu.memory_space<vmem>>, %arg10: memref<128x128xbf16, #tpu.memory_space<vmem>>, %arg11: memref<1x128xf32, #tpu.memory_space<vmem>>, %arg12: memref<1x256x128xf32, #tpu.memory_space<vmem>>, %arg13: memref<256x128xf32, #tpu.memory_space<vmem>>, %arg14: memref<8x128xf32, #tpu.memory_space<vmem>>) attributes {dimension_semantics = [#tpu.dimension_semantics<parallel>, #tpu.dimension_semantics<arbitrary>], iteration_bounds = array<i64: 2, 1>, scalar_prefetch = 0 : i64, scratch_operands = 2 : i64, tpu.core_type = #tpu.core_type<tc>, window_params = [{pipeline_mode = #tpu.pipeline_mode<synchronous>, transform_indices = @transform_0, window_bounds = array<i64: 256, 1>}, {transform_indices = @transform_1, window_bounds = array<i64: 1, 256, 4>}, {transform_indices = @transform_2, window_bounds = array<i64: 4, 128>}, {transform_indices = @transform_3, window_bounds = array<i64: 1, 128>}, {transform_indices = @transform_4, window_bounds = array<i64: 128, 128>}, {transform_indices = @transform_5, window_bounds = array<i64: 128, 128>}, {transform_indices = @transform_6, window_bounds = array<i64: 128, 128>}, {transform_indices = @transform_7, window_bounds = array<i64: 128, 128>}, {transform_indices = @transform_8, window_bounds = array<i64: 128, 128>}, {pipeline_mode = #tpu.pipeline_mode<synchronous>, transform_indices = @transform_9, window_bounds = array<i64: 1, 128>}, {transform_indices = @transform_10, window_bounds = array<i64: 1, 256, 128>}]} {
    %c0_i32 = arith.constant 0 : i32
    %0 = arith.cmpi eq, %arg1, %c0_i32 : i32
    %1 = arith.extui %0 : i1 to i32
    %c0_i32_0 = arith.constant 0 : i32
    %2 = arith.cmpi ne, %1, %c0_i32_0 : i32
    scf.if %2 {
      %cst_81 = arith.constant 0.000000e+00 : f32
      %198 = vector.broadcast %cst_81 : f32 to vector<256x128xf32>
      %c0_82 = arith.constant 0 : index
      %c0_83 = arith.constant 0 : index
      %199 = vector.load %arg13[%c0_82, %c0_83] : memref<256x128xf32, #tpu.memory_space<vmem>>, vector<256x128xf32>
      tpu.vector_store %arg13[%c0_82, %c0_83], %198 {strides = array<i32>} : memref<256x128xf32, #tpu.memory_space<vmem>>, vector<256x128xf32>,
      %cst_84 = arith.constant 0.000000e+00 : f32
      %200 = vector.broadcast %cst_84 : f32 to vector<8x128xf32>
      %c0_85 = arith.constant 0 : index
      %c0_86 = arith.constant 0 : index
      %201 = vector.load %arg14[%c0_85, %c0_86] : memref<8x128xf32, #tpu.memory_space<vmem>>, vector<8x128xf32>
      tpu.vector_store %arg14[%c0_85, %c0_86], %200 {strides = array<i32>} : memref<8x128xf32, #tpu.memory_space<vmem>>, vector<8x128xf32>,
    } else {
    }
    %c0 = arith.constant 0 : index
    %c0_1 = arith.constant 0 : index
    %c0_2 = arith.constant 0 : index
    %3 = vector.load %arg3[%c0, %c0_1, %c0_2] : memref<1x256x4xbf16, #tpu.memory_space<vmem>>, vector<1x256x4xbf16>
    %4 = vector.shape_cast %3 : vector<1x256x4xbf16> to vector<256x4xbf16>
    %c0_3 = arith.constant 0 : index
    %c0_4 = arith.constant 0 : index
    %5 = vector.load %arg4[%c0_3, %c0_4] : memref<4x128xbf16, #tpu.memory_space<vmem>>, vector<4x128xbf16>
    %cst = arith.constant dense<0.000000e+00> : vector<256x128xf32>
    %6 = tpu.matmul %4, %5, %cst {dimension_numbers = #tpu.dot_dimension_numbers<[1], [0], [0], [1], [0, 0, 1, 1], [], []>} : vector<256x4xbf16>, vector<4x128xbf16>, vector<256x128xf32> -> vector<256x128xf32>
    %c0_5 = arith.constant 0 : index
    %c0_6 = arith.constant 0 : index
    %7 = vector.load %arg5[%c0_5, %c0_6] : memref<1x128xf32, #tpu.memory_space<vmem>>, vector<1x128xf32>
    %8 = vector.broadcast %7 : vector<1x128xf32> to vector<256x128xf32>
    %9 = arith.addf %6, %8 : vector<256x128xf32>
    %10 = arith.negf %9 : vector<256x128xf32>
    %11 = math.exp %10 : vector<256x128xf32>
    %cst_7 = arith.constant 1.000000e+00 : f32
    %12 = vector.broadcast %cst_7 : f32 to vector<256x128xf32>
    %13 = arith.addf %12, %11 : vector<256x128xf32>
    %14 = arith.divf %12, %13 : vector<256x128xf32>
    %15 = arith.mulf %9, %14 : vector<256x128xf32>
    %cst_8 = arith.constant dense<0.000000e+00> : vector<128xf32>
    %16 = vector.multi_reduction <add>, %15, %cst_8 [0] : vector<256x128xf32> to vector<128xf32>
    %17 = vector.shape_cast %16 : vector<128xf32> to vector<1x128xf32>
    %cst_9 = arith.constant 3.906250e-03 : f32
    %18 = vector.broadcast %cst_9 : f32 to vector<1x128xf32>
    %19 = arith.mulf %17, %18 : vector<1x128xf32>
    %20 = vector.shape_cast %19 : vector<1x128xf32> to vector<1x128xf32>
    %21 = vector.broadcast %20 : vector<1x128xf32> to vector<8x128xf32>
    %22 = arith.truncf %21 : vector<8x128xf32> to vector<8x128xbf16>
    %c0_10 = arith.constant 0 : index
    %c0_11 = arith.constant 0 : index
    %23 = vector.load %arg14[%c0_10, %c0_11] : memref<8x128xf32, #tpu.memory_space<vmem>>, vector<8x128xf32>
    %c0_12 = arith.constant 0 : index
    %c0_13 = arith.constant 0 : index
    %24 = vector.load %arg10[%c0_12, %c0_13] : memref<128x128xbf16, #tpu.memory_space<vmem>>, vector<128x128xbf16>
    %cst_14 = arith.constant dense<0.000000e+00> : vector<8x128xf32>
    %25 = tpu.matmul %22, %24, %cst_14 {dimension_numbers = #tpu.dot_dimension_numbers<[1], [0], [0], [1], [0, 0, 1, 1], [], []>} : vector<8x128xbf16>, vector<128x128xbf16>, vector<8x128xf32> -> vector<8x128xf32>
    %26 = arith.addf %23, %25 : vector<8x128xf32>
    %c0_15 = arith.constant 0 : index
    %c0_16 = arith.constant 0 : index
    %27 = vector.load %arg14[%c0_15, %c0_16] : memref<8x128xf32, #tpu.memory_space<vmem>>, vector<8x128xf32>
    tpu.vector_store %arg14[%c0_15, %c0_16], %26 {strides = array<i32>} : memref<8x128xf32, #tpu.memory_space<vmem>>, vector<8x128xf32>,
    %c0_17 = arith.constant 0 : index
    %c0_18 = arith.constant 0 : index
    %28 = vector.load %arg2[%c0_17, %c0_18] : memref<256x1xf32, #tpu.memory_space<vmem>>, vector<256x1xf32>
    %c1_i32 = arith.constant 1 : i32
    %29 = tpu.dynamic_rotate %28 by %c1_i32 dim 0 : vector<256x1xf32>, i32 -> vector<256x1xf32>
    %30 = arith.cmpf oeq, %29, %28 : vector<256x1xf32>
    %cst_19 = arith.constant 0.000000e+00 : f32
    %cst_20 = arith.constant -3.40282347E+38 : f32
    %31 = vector.broadcast %cst_19 : f32 to vector<256x1xf32>
    %32 = vector.broadcast %cst_20 : f32 to vector<256x1xf32>
    %33 = arith.select %30, %31, %32 : vector<256x1xi1>, vector<256x1xf32>
    %c255_i32 = arith.constant 255 : i32
    %34 = tpu.dynamic_rotate %28 by %c255_i32 dim 0 : vector<256x1xf32>, i32 -> vector<256x1xf32>
    %35 = arith.cmpf oeq, %34, %28 : vector<256x1xf32>
    %cst_21 = arith.constant 0.000000e+00 : f32
    %cst_22 = arith.constant -3.40282347E+38 : f32
    %36 = vector.broadcast %cst_21 : f32 to vector<256x1xf32>
    %37 = vector.broadcast %cst_22 : f32 to vector<256x1xf32>
    %38 = arith.select %35, %36, %37 : vector<256x1xi1>, vector<256x1xf32>
    %c16_i32 = arith.constant 16 : i32
    %39 = tpu.dynamic_rotate %28 by %c16_i32 dim 0 : vector<256x1xf32>, i32 -> vector<256x1xf32>
    %40 = arith.subf %39, %28 : vector<256x1xf32>
    %41 = math.absf %40 : vector<256x1xf32>
    %cst_23 = arith.constant 1.000000e+00 : f32
    %42 = vector.broadcast %cst_23 : f32 to vector<256x1xf32>
    %43 = arith.cmpf oeq, %41, %42 : vector<256x1xf32>
    %cst_24 = arith.constant 0.000000e+00 : f32
    %cst_25 = arith.constant -3.40282347E+38 : f32
    %44 = vector.broadcast %cst_24 : f32 to vector<256x1xf32>
    %45 = vector.broadcast %cst_25 : f32 to vector<256x1xf32>
    %46 = arith.select %43, %44, %45 : vector<256x1xi1>, vector<256x1xf32>
    %c240_i32 = arith.constant 240 : i32
    %47 = tpu.dynamic_rotate %28 by %c240_i32 dim 0 : vector<256x1xf32>, i32 -> vector<256x1xf32>
    %48 = arith.subf %47, %28 : vector<256x1xf32>
    %49 = math.absf %48 : vector<256x1xf32>
    %cst_26 = arith.constant 1.000000e+00 : f32
    %50 = vector.broadcast %cst_26 : f32 to vector<256x1xf32>
    %51 = arith.cmpf oeq, %49, %50 : vector<256x1xf32>
    %cst_27 = arith.constant 0.000000e+00 : f32
    %cst_28 = arith.constant -3.40282347E+38 : f32
    %52 = vector.broadcast %cst_27 : f32 to vector<256x1xf32>
    %53 = vector.broadcast %cst_28 : f32 to vector<256x1xf32>
    %54 = arith.select %51, %52, %53 : vector<256x1xi1>, vector<256x1xf32>
    %c2_i32 = arith.constant 2 : i32
    %55 = tpu.dynamic_rotate %28 by %c2_i32 dim 0 : vector<256x1xf32>, i32 -> vector<256x1xf32>
    %56 = arith.cmpf oeq, %55, %28 : vector<256x1xf32>
    %cst_29 = arith.constant 0.000000e+00 : f32
    %cst_30 = arith.constant -3.40282347E+38 : f32
    %57 = vector.broadcast %cst_29 : f32 to vector<256x1xf32>
    %58 = vector.broadcast %cst_30 : f32 to vector<256x1xf32>
    %59 = arith.select %56, %57, %58 : vector<256x1xi1>, vector<256x1xf32>
    %c254_i32 = arith.constant 254 : i32
    %60 = tpu.dynamic_rotate %28 by %c254_i32 dim 0 : vector<256x1xf32>, i32 -> vector<256x1xf32>
    %61 = arith.cmpf oeq, %60, %28 : vector<256x1xf32>
    %cst_31 = arith.constant 0.000000e+00 : f32
    %cst_32 = arith.constant -3.40282347E+38 : f32
    %62 = vector.broadcast %cst_31 : f32 to vector<256x1xf32>
    %63 = vector.broadcast %cst_32 : f32 to vector<256x1xf32>
    %64 = arith.select %61, %62, %63 : vector<256x1xi1>, vector<256x1xf32>
    %c32_i32 = arith.constant 32 : i32
    %65 = tpu.dynamic_rotate %28 by %c32_i32 dim 0 : vector<256x1xf32>, i32 -> vector<256x1xf32>
    %66 = arith.subf %65, %28 : vector<256x1xf32>
    %67 = math.absf %66 : vector<256x1xf32>
    %cst_33 = arith.constant 2.000000e+00 : f32
    %68 = vector.broadcast %cst_33 : f32 to vector<256x1xf32>
    %69 = arith.cmpf oeq, %67, %68 : vector<256x1xf32>
    %cst_34 = arith.constant 0.000000e+00 : f32
    %cst_35 = arith.constant -3.40282347E+38 : f32
    %70 = vector.broadcast %cst_34 : f32 to vector<256x1xf32>
    %71 = vector.broadcast %cst_35 : f32 to vector<256x1xf32>
    %72 = arith.select %69, %70, %71 : vector<256x1xi1>, vector<256x1xf32>
    %c224_i32 = arith.constant 224 : i32
    %73 = tpu.dynamic_rotate %28 by %c224_i32 dim 0 : vector<256x1xf32>, i32 -> vector<256x1xf32>
    %74 = arith.subf %73, %28 : vector<256x1xf32>
    %75 = math.absf %74 : vector<256x1xf32>
    %cst_36 = arith.constant 2.000000e+00 : f32
    %76 = vector.broadcast %cst_36 : f32 to vector<256x1xf32>
    %77 = arith.cmpf oeq, %75, %76 : vector<256x1xf32>
    %cst_37 = arith.constant 0.000000e+00 : f32
    %cst_38 = arith.constant -3.40282347E+38 : f32
    %78 = vector.broadcast %cst_37 : f32 to vector<256x1xf32>
    %79 = vector.broadcast %cst_38 : f32 to vector<256x1xf32>
    %80 = arith.select %77, %78, %79 : vector<256x1xi1>, vector<256x1xf32>
    %c0_39 = arith.constant 0 : index
    %c0_40 = arith.constant 0 : index
    %81 = vector.load %arg13[%c0_39, %c0_40] : memref<256x128xf32, #tpu.memory_space<vmem>>, vector<256x128xf32>
    %82 = arith.truncf %15 : vector<256x128xf32> to vector<256x128xbf16>
    %c0_41 = arith.constant 0 : index
    %c0_42 = arith.constant 0 : index
    %83 = vector.load %arg6[%c0_41, %c0_42] : memref<128x128xbf16, #tpu.memory_space<vmem>>, vector<128x128xbf16>
    %cst_43 = arith.constant dense<0.000000e+00> : vector<256x128xf32>
    %84 = tpu.matmul %82, %83, %cst_43 {dimension_numbers = #tpu.dot_dimension_numbers<[1], [0], [0], [1], [0, 0, 1, 1], [], []>} : vector<256x128xbf16>, vector<128x128xbf16>, vector<256x128xf32> -> vector<256x128xf32>
    %85 = arith.addf %81, %84 : vector<256x128xf32>
    %c1_i32_44 = arith.constant 1 : i32
    %86 = tpu.dynamic_rotate %15 by %c1_i32_44 dim 0 : vector<256x128xf32>, i32 -> vector<256x128xf32>
    %87 = vector.broadcast %33 : vector<256x1xf32> to vector<256x128xf32>
    %88 = arith.addf %86, %87 : vector<256x128xf32>
    %89 = arith.maximumf %15, %88 : vector<256x128xf32>
    %c255_i32_45 = arith.constant 255 : i32
    %90 = tpu.dynamic_rotate %15 by %c255_i32_45 dim 0 : vector<256x128xf32>, i32 -> vector<256x128xf32>
    %91 = vector.broadcast %38 : vector<256x1xf32> to vector<256x128xf32>
    %92 = arith.addf %90, %91 : vector<256x128xf32>
    %93 = arith.maximumf %89, %92 : vector<256x128xf32>
    %c2_i32_46 = arith.constant 2 : i32
    %94 = tpu.dynamic_rotate %15 by %c2_i32_46 dim 0 : vector<256x128xf32>, i32 -> vector<256x128xf32>
    %95 = vector.broadcast %59 : vector<256x1xf32> to vector<256x128xf32>
    %96 = arith.addf %94, %95 : vector<256x128xf32>
    %97 = arith.maximumf %93, %96 : vector<256x128xf32>
    %c254_i32_47 = arith.constant 254 : i32
    %98 = tpu.dynamic_rotate %15 by %c254_i32_47 dim 0 : vector<256x128xf32>, i32 -> vector<256x128xf32>
    %99 = vector.broadcast %64 : vector<256x1xf32> to vector<256x128xf32>
    %100 = arith.addf %98, %99 : vector<256x128xf32>
    %101 = arith.maximumf %97, %100 : vector<256x128xf32>
    %c16_i32_48 = arith.constant 16 : i32
    %102 = tpu.dynamic_rotate %101 by %c16_i32_48 dim 0 : vector<256x128xf32>, i32 -> vector<256x128xf32>
    %103 = vector.broadcast %46 : vector<256x1xf32> to vector<256x128xf32>
    %104 = arith.addf %102, %103 : vector<256x128xf32>
    %105 = arith.maximumf %101, %104 : vector<256x128xf32>
    %c240_i32_49 = arith.constant 240 : i32
    %106 = tpu.dynamic_rotate %101 by %c240_i32_49 dim 0 : vector<256x128xf32>, i32 -> vector<256x128xf32>
    %107 = vector.broadcast %54 : vector<256x1xf32> to vector<256x128xf32>
    %108 = arith.addf %106, %107 : vector<256x128xf32>
    %109 = arith.maximumf %105, %108 : vector<256x128xf32>
    %c32_i32_50 = arith.constant 32 : i32
    %110 = tpu.dynamic_rotate %101 by %c32_i32_50 dim 0 : vector<256x128xf32>, i32 -> vector<256x128xf32>
    %111 = vector.broadcast %72 : vector<256x1xf32> to vector<256x128xf32>
    %112 = arith.addf %110, %111 : vector<256x128xf32>
    %113 = arith.maximumf %109, %112 : vector<256x128xf32>
    %c224_i32_51 = arith.constant 224 : i32
    %114 = tpu.dynamic_rotate %101 by %c224_i32_51 dim 0 : vector<256x128xf32>, i32 -> vector<256x128xf32>
    %115 = vector.broadcast %80 : vector<256x1xf32> to vector<256x128xf32>
    %116 = arith.addf %114, %115 : vector<256x128xf32>
    %117 = arith.maximumf %113, %116 : vector<256x128xf32>
    %118 = arith.truncf %117 : vector<256x128xf32> to vector<256x128xbf16>
    %c0_52 = arith.constant 0 : index
    %c0_53 = arith.constant 0 : index
    %119 = vector.load %arg7[%c0_52, %c0_53] : memref<128x128xbf16, #tpu.memory_space<vmem>>, vector<128x128xbf16>
    %cst_54 = arith.constant dense<0.000000e+00> : vector<256x128xf32>
    %120 = tpu.matmul %118, %119, %cst_54 {dimension_numbers = #tpu.dot_dimension_numbers<[1], [0], [0], [1], [0, 0, 1, 1], [], []>} : vector<256x128xbf16>, vector<128x128xbf16>, vector<256x128xf32> -> vector<256x128xf32>
    %121 = arith.addf %85, %120 : vector<256x128xf32>
    %c1_i32_55 = arith.constant 1 : i32
    %122 = tpu.dynamic_rotate %117 by %c1_i32_55 dim 0 : vector<256x128xf32>, i32 -> vector<256x128xf32>
    %123 = vector.broadcast %33 : vector<256x1xf32> to vector<256x128xf32>
    %124 = arith.addf %122, %123 : vector<256x128xf32>
    %125 = arith.maximumf %117, %124 : vector<256x128xf32>
    %c255_i32_56 = arith.constant 255 : i32
    %126 = tpu.dynamic_rotate %117 by %c255_i32_56 dim 0 : vector<256x128xf32>, i32 -> vector<256x128xf32>
    %127 = vector.broadcast %38 : vector<256x1xf32> to vector<256x128xf32>
    %128 = arith.addf %126, %127 : vector<256x128xf32>
    %129 = arith.maximumf %125, %128 : vector<256x128xf32>
    %c2_i32_57 = arith.constant 2 : i32
    %130 = tpu.dynamic_rotate %117 by %c2_i32_57 dim 0 : vector<256x128xf32>, i32 -> vector<256x128xf32>
    %131 = vector.broadcast %59 : vector<256x1xf32> to vector<256x128xf32>
    %132 = arith.addf %130, %131 : vector<256x128xf32>
    %133 = arith.maximumf %129, %132 : vector<256x128xf32>
    %c254_i32_58 = arith.constant 254 : i32
    %134 = tpu.dynamic_rotate %117 by %c254_i32_58 dim 0 : vector<256x128xf32>, i32 -> vector<256x128xf32>
    %135 = vector.broadcast %64 : vector<256x1xf32> to vector<256x128xf32>
    %136 = arith.addf %134, %135 : vector<256x128xf32>
    %137 = arith.maximumf %133, %136 : vector<256x128xf32>
    %c16_i32_59 = arith.constant 16 : i32
    %138 = tpu.dynamic_rotate %137 by %c16_i32_59 dim 0 : vector<256x128xf32>, i32 -> vector<256x128xf32>
    %139 = vector.broadcast %46 : vector<256x1xf32> to vector<256x128xf32>
    %140 = arith.addf %138, %139 : vector<256x128xf32>
    %141 = arith.maximumf %137, %140 : vector<256x128xf32>
    %c240_i32_60 = arith.constant 240 : i32
    %142 = tpu.dynamic_rotate %137 by %c240_i32_60 dim 0 : vector<256x128xf32>, i32 -> vector<256x128xf32>
    %143 = vector.broadcast %54 : vector<256x1xf32> to vector<256x128xf32>
    %144 = arith.addf %142, %143 : vector<256x128xf32>
    %145 = arith.maximumf %141, %144 : vector<256x128xf32>
    %c32_i32_61 = arith.constant 32 : i32
    %146 = tpu.dynamic_rotate %137 by %c32_i32_61 dim 0 : vector<256x128xf32>, i32 -> vector<256x128xf32>
    %147 = vector.broadcast %72 : vector<256x1xf32> to vector<256x128xf32>
    %148 = arith.addf %146, %147 : vector<256x128xf32>
    %149 = arith.maximumf %145, %148 : vector<256x128xf32>
    %c224_i32_62 = arith.constant 224 : i32
    %150 = tpu.dynamic_rotate %137 by %c224_i32_62 dim 0 : vector<256x128xf32>, i32 -> vector<256x128xf32>
    %151 = vector.broadcast %80 : vector<256x1xf32> to vector<256x128xf32>
    %152 = arith.addf %150, %151 : vector<256x128xf32>
    %153 = arith.maximumf %149, %152 : vector<256x128xf32>
    %154 = arith.truncf %153 : vector<256x128xf32> to vector<256x128xbf16>
    %c0_63 = arith.constant 0 : index
    %c0_64 = arith.constant 0 : index
    %155 = vector.load %arg8[%c0_63, %c0_64] : memref<128x128xbf16, #tpu.memory_space<vmem>>, vector<128x128xbf16>
    %cst_65 = arith.constant dense<0.000000e+00> : vector<256x128xf32>
    %156 = tpu.matmul %154, %155, %cst_65 {dimension_numbers = #tpu.dot_dimension_numbers<[1], [0], [0], [1], [0, 0, 1, 1], [], []>} : vector<256x128xbf16>, vector<128x128xbf16>, vector<256x128xf32> -> vector<256x128xf32>
    %157 = arith.addf %121, %156 : vector<256x128xf32>
    %c1_i32_66 = arith.constant 1 : i32
    %158 = tpu.dynamic_rotate %153 by %c1_i32_66 dim 0 : vector<256x128xf32>, i32 -> vector<256x128xf32>
    %159 = vector.broadcast %33 : vector<256x1xf32> to vector<256x128xf32>
    %160 = arith.addf %158, %159 : vector<256x128xf32>
    %161 = arith.maximumf %153, %160 : vector<256x128xf32>
    %c255_i32_67 = arith.constant 255 : i32
    %162 = tpu.dynamic_rotate %153 by %c255_i32_67 dim 0 : vector<256x128xf32>, i32 -> vector<256x128xf32>
    %163 = vector.broadcast %38 : vector<256x1xf32> to vector<256x128xf32>
    %164 = arith.addf %162, %163 : vector<256x128xf32>
    %165 = arith.maximumf %161, %164 : vector<256x128xf32>
    %c2_i32_68 = arith.constant 2 : i32
    %166 = tpu.dynamic_rotate %153 by %c2_i32_68 dim 0 : vector<256x128xf32>, i32 -> vector<256x128xf32>
    %167 = vector.broadcast %59 : vector<256x1xf32> to vector<256x128xf32>
    %168 = arith.addf %166, %167 : vector<256x128xf32>
    %169 = arith.maximumf %165, %168 : vector<256x128xf32>
    %c254_i32_69 = arith.constant 254 : i32
    %170 = tpu.dynamic_rotate %153 by %c254_i32_69 dim 0 : vector<256x128xf32>, i32 -> vector<256x128xf32>
    %171 = vector.broadcast %64 : vector<256x1xf32> to vector<256x128xf32>
    %172 = arith.addf %170, %171 : vector<256x128xf32>
    %173 = arith.maximumf %169, %172 : vector<256x128xf32>
    %c16_i32_70 = arith.constant 16 : i32
    %174 = tpu.dynamic_rotate %173 by %c16_i32_70 dim 0 : vector<256x128xf32>, i32 -> vector<256x128xf32>
    %175 = vector.broadcast %46 : vector<256x1xf32> to vector<256x128xf32>
    %176 = arith.addf %174, %175 : vector<256x128xf32>
    %177 = arith.maximumf %173, %176 : vector<256x128xf32>
    %c240_i32_71 = arith.constant 240 : i32
    %178 = tpu.dynamic_rotate %173 by %c240_i32_71 dim 0 : vector<256x128xf32>, i32 -> vector<256x128xf32>
    %179 = vector.broadcast %54 : vector<256x1xf32> to vector<256x128xf32>
    %180 = arith.addf %178, %179 : vector<256x128xf32>
    %181 = arith.maximumf %177, %180 : vector<256x128xf32>
    %c32_i32_72 = arith.constant 32 : i32
    %182 = tpu.dynamic_rotate %173 by %c32_i32_72 dim 0 : vector<256x128xf32>, i32 -> vector<256x128xf32>
    %183 = vector.broadcast %72 : vector<256x1xf32> to vector<256x128xf32>
    %184 = arith.addf %182, %183 : vector<256x128xf32>
    %185 = arith.maximumf %181, %184 : vector<256x128xf32>
    %c224_i32_73 = arith.constant 224 : i32
    %186 = tpu.dynamic_rotate %173 by %c224_i32_73 dim 0 : vector<256x128xf32>, i32 -> vector<256x128xf32>
    %187 = vector.broadcast %80 : vector<256x1xf32> to vector<256x128xf32>
    %188 = arith.addf %186, %187 : vector<256x128xf32>
    %189 = arith.maximumf %185, %188 : vector<256x128xf32>
    %190 = arith.truncf %189 : vector<256x128xf32> to vector<256x128xbf16>
    %c0_74 = arith.constant 0 : index
    %c0_75 = arith.constant 0 : index
    %191 = vector.load %arg9[%c0_74, %c0_75] : memref<128x128xbf16, #tpu.memory_space<vmem>>, vector<128x128xbf16>
    %cst_76 = arith.constant dense<0.000000e+00> : vector<256x128xf32>
    %192 = tpu.matmul %190, %191, %cst_76 {dimension_numbers = #tpu.dot_dimension_numbers<[1], [0], [0], [1], [0, 0, 1, 1], [], []>} : vector<256x128xbf16>, vector<128x128xbf16>, vector<256x128xf32> -> vector<256x128xf32>
    %193 = arith.addf %157, %192 : vector<256x128xf32>
    %c0_77 = arith.constant 0 : index
    %c0_78 = arith.constant 0 : index
    %194 = vector.load %arg13[%c0_77, %c0_78] : memref<256x128xf32, #tpu.memory_space<vmem>>, vector<256x128xf32>
    tpu.vector_store %arg13[%c0_77, %c0_78], %193 {strides = array<i32>} : memref<256x128xf32, #tpu.memory_space<vmem>>, vector<256x128xf32>,
    %c0_i32_79 = arith.constant 0 : i32
    %195 = arith.cmpi eq, %arg1, %c0_i32_79 : i32
    %196 = arith.extui %195 : i1 to i32
    %c0_i32_80 = arith.constant 0 : i32
    %197 = arith.cmpi ne, %196, %c0_i32_80 : i32
    scf.if %197 {
      %c0_81 = arith.constant 0 : index
      %c0_82 = arith.constant 0 : index
      %198 = vector.load %arg13[%c0_81, %c0_82] : memref<256x128xf32, #tpu.memory_space<vmem>>, vector<256x128xf32>
      %c0_83 = arith.constant 0 : index
      %c0_84 = arith.constant 0 : index
      %199 = vector.load %arg14[%c0_83, %c0_84] : memref<8x128xf32, #tpu.memory_space<vmem>>, vector<1x128xf32>
      %200 = vector.broadcast %199 : vector<1x128xf32> to vector<256x128xf32>
      %201 = arith.addf %198, %200 : vector<256x128xf32>
      %c0_85 = arith.constant 0 : index
      %c0_86 = arith.constant 0 : index
      %202 = vector.load %arg11[%c0_85, %c0_86] : memref<1x128xf32, #tpu.memory_space<vmem>>, vector<1x128xf32>
      %203 = vector.broadcast %202 : vector<1x128xf32> to vector<256x128xf32>
      %204 = arith.addf %201, %203 : vector<256x128xf32>
      %205 = arith.negf %204 : vector<256x128xf32>
      %206 = math.exp %205 : vector<256x128xf32>
      %cst_87 = arith.constant 1.000000e+00 : f32
      %207 = vector.broadcast %cst_87 : f32 to vector<256x128xf32>
      %208 = arith.addf %207, %206 : vector<256x128xf32>
      %209 = arith.divf %207, %208 : vector<256x128xf32>
      %210 = arith.mulf %204, %209 : vector<256x128xf32>
      %c0_88 = arith.constant 0 : index
      %c0_89 = arith.constant 0 : index
      %c0_90 = arith.constant 0 : index
      %211 = vector.load %arg12[%c0_88, %c0_89, %c0_90] : memref<1x256x128xf32, #tpu.memory_space<vmem>>, vector<1x256x128xf32>
      %212 = vector.shape_cast %211 : vector<1x256x128xf32> to vector<256x128xf32>
      %213 = vector.shape_cast %210 : vector<256x128xf32> to vector<1x256x128xf32>
      tpu.vector_store %arg12[%c0_88, %c0_89, %c0_90], %213 {strides = array<i32>} : memref<1x256x128xf32, #tpu.memory_space<vmem>>, vector<1x256x128xf32>,
    } else {
    }
    return
  }
  func.func @transform_0(%arg0: i32, %arg1: i32) -> (i32, i32) {
    %c0_i32 = arith.constant 0 : i32
    %c0_i32_0 = arith.constant 0 : i32
    %c0_i32_1 = arith.constant 0 : i32
    return %c0_i32, %c0_i32_0 : i32, i32
  }
  func.func @transform_1(%arg0: i32, %arg1: i32) -> (i32, i32, i32) {
    %c0_i32 = arith.constant 0 : i32
    %c0_i32_0 = arith.constant 0 : i32
    %c0_i32_1 = arith.constant 0 : i32
    return %arg0, %c0_i32, %c0_i32_0 : i32, i32, i32
  }
  func.func @transform_2(%arg0: i32, %arg1: i32) -> (i32, i32) {
    %c0_i32 = arith.constant 0 : i32
    %c0_i32_0 = arith.constant 0 : i32
    return %c0_i32, %arg1 : i32, i32
  }
  func.func @transform_3(%arg0: i32, %arg1: i32) -> (i32, i32) {
    %c0_i32 = arith.constant 0 : i32
    %c0_i32_0 = arith.constant 0 : i32
    return %c0_i32, %arg1 : i32, i32
  }
  func.func @transform_4(%arg0: i32, %arg1: i32) -> (i32, i32) {
    %c0_i32 = arith.constant 0 : i32
    %c0_i32_0 = arith.constant 0 : i32
    return %arg1, %c0_i32 : i32, i32
  }
  func.func @transform_5(%arg0: i32, %arg1: i32) -> (i32, i32) {
    %c0_i32 = arith.constant 0 : i32
    %c0_i32_0 = arith.constant 0 : i32
    return %arg1, %c0_i32 : i32, i32
  }
  func.func @transform_6(%arg0: i32, %arg1: i32) -> (i32, i32) {
    %c0_i32 = arith.constant 0 : i32
    %c0_i32_0 = arith.constant 0 : i32
    return %arg1, %c0_i32 : i32, i32
  }
  func.func @transform_7(%arg0: i32, %arg1: i32) -> (i32, i32) {
    %c0_i32 = arith.constant 0 : i32
    %c0_i32_0 = arith.constant 0 : i32
    return %arg1, %c0_i32 : i32, i32
  }
  func.func @transform_8(%arg0: i32, %arg1: i32) -> (i32, i32) {
    %c0_i32 = arith.constant 0 : i32
    %c0_i32_0 = arith.constant 0 : i32
    return %arg1, %c0_i32 : i32, i32
  }
  func.func @transform_9(%arg0: i32, %arg1: i32) -> (i32, i32) {
    %c0_i32 = arith.constant 0 : i32
    %c0_i32_0 = arith.constant 0 : i32
    %c0_i32_1 = arith.constant 0 : i32
    return %c0_i32, %c0_i32_0 : i32, i32
  }
  func.func @transform_10(%arg0: i32, %arg1: i32) -> (i32, i32, i32) {
    %c0_i32 = arith.constant 0 : i32
    %c0_i32_0 = arith.constant 0 : i32
    %c0_i32_1 = arith.constant 0 : i32
    return %arg0, %c0_i32, %c0_i32_0 : i32, i32, i32
  }
}

</mosaic_0001>

<llo_original>
// kernel: sppf_improve_forward.1
$region0: #{sppf_improve_forward.1}
  #allocation0 [shape = 'u32[]', space=smem, size = 0x4, offset = 0x4, fixed_abs, tag = 'smem constant byte address 0x4 - core index']
  #allocation1 [shape = 'u32[144,128]{1,0:T(1,128)}', space=vmem, size = 0x12000, scoped, tag = 'internal scratch']
  #allocation2 [shape = 'f32[256,128]{1,0:T(8,128)}', space=vmem, size = 0x20000, scoped, tag = 'scratch operand']
  #allocation3 [shape = 'f32[8,128]{1,0:T(8,128)}', space=vmem, size = 0x1000, scoped, tag = 'scratch operand']
  %s0 = inlined_call_operand.hbm [shape: f32[256,1], index: 0, kind: input, shape index: {}]
  %s1 = inlined_call_operand.hbm [shape: bf16[2,256,4], index: 1, kind: input, shape index: {}]
  %s2 = inlined_call_operand.hbm [shape: bf16[4,128], index: 2, kind: input, shape index: {}]
  %s3 = inlined_call_operand.hbm [shape: f32[1,128], index: 3, kind: input, shape index: {}]
  %s4 = inlined_call_operand.hbm [shape: bf16[128,128], index: 4, kind: input, shape index: {}]
  %s5 = inlined_call_operand.hbm [shape: bf16[128,128], index: 5, kind: input, shape index: {}]
  %s6 = inlined_call_operand.hbm [shape: bf16[128,128], index: 6, kind: input, shape index: {}]
  %s7 = inlined_call_operand.hbm [shape: bf16[128,128], index: 7, kind: input, shape index: {}]
  %s8 = inlined_call_operand.hbm [shape: bf16[128,128], index: 8, kind: input, shape index: {}]
  %s9 = inlined_call_operand.hbm [shape: f32[1,128], index: 9, kind: input, shape index: {}]
  %s10 = inlined_call_operand.hbm [shape: f32[2,256,128], index: 10, kind: output, shape index: {}]
  %s11 = sld [smem:[#allocation0]]
  $region121: #{sppf_improve_forward.1} parent=0
    _
  %s13 = ssub.s32 1, %s11
  %s14 = scalar_select 0, %s13, %s11
  $region1: #{sppf_improve_forward.1} parent=0
    #allocation4 [shape = 'u8[131072]{0}', space=vmem, size = 0x20000, scoped, tag = 'input window, operand 0, single buffered']
    #allocation5 [shape = 's32[2]{0}', space=sflag, size = 0x8, scoped, tag = 'scoped memory for sppf_improve_forward.1']
    #allocation6 [shape = 's32[2]{0}', space=sflag, size = 0x8, scoped, tag = 'scoped memory for sppf_improve_forward.1']
    #allocation7 [shape = 'u8[131072]{0}', space=vmem, size = 0x20000, scoped, tag = 'input window, operand 1']
    #allocation8 [shape = 's32[2]{0}', space=sflag, size = 0x8, scoped, tag = 'scoped memory for sppf_improve_forward.1']
    #allocation9 [shape = 'u8[1024]{0}', space=vmem, size = 0x400, scoped, tag = 'input window, operand 2, single buffered']
    #allocation10 [shape = 'u8[512]{0}', space=vmem, size = 0x400, scoped, tag = 'input window, operand 3, single buffered']
    #allocation11 [shape = 's32[1]{0}', space=sflag, size = 0x4, scoped, tag = 'scoped memory for sppf_improve_forward.1']
    #allocation12 [shape = 'u8[32768]{0}', space=vmem, size = 0x8000, scoped, tag = 'input window, operand 4, single buffered']
    #allocation13 [shape = 'u8[32768]{0}', space=vmem, size = 0x8000, scoped, tag = 'input window, operand 5, single buffered']
    #allocation14 [shape = 's32[1]{0}', space=sflag, size = 0x4, scoped, tag = 'scoped memory for sppf_improve_forward.1']
    #allocation15 [shape = 'u8[32768]{0}', space=vmem, size = 0x8000, scoped, tag = 'input window, operand 6, single buffered']
    #allocation16 [shape = 'u8[32768]{0}', space=vmem, size = 0x8000, scoped, tag = 'input window, operand 7, single buffered']
    #allocation17 [shape = 's32[1]{0}', space=sflag, size = 0x4, scoped, tag = 'scoped memory for sppf_improve_forward.1']
    #allocation18 [shape = 'u8[32768]{0}', space=vmem, size = 0x8000, scoped, tag = 'input window, operand 8, single buffered']
    #allocation19 [shape = 'u8[512]{0}', space=vmem, size = 0x400, scoped, tag = 'input window, operand 9, single buffered']
    #allocation20 [shape = 's32[1]{0}', space=sflag, size = 0x4, scoped, tag = 'scoped memory for sppf_improve_forward.1']
    #allocation21 [shape = 'u8[262144]{0}', space=vmem, size = 0x40000, scoped, tag = 'output window, operand 0']
    %15 = vsyncpa [#allocation5], 0
    %16 = vsyncpa [#allocation8], 0
    %s17 = scalar_lea.sflag [#allocation8], 1
    %18 = vsyncpa %s17, 0
    %19 = vsyncpa [#allocation11], 0
    %20 = vsyncpa [#allocation14], 0
    %21 = vsyncpa [#allocation17], 0
    %22 = vsyncpa [#allocation20], 0
    %23 = vsyncpa [#allocation6], 0
    %s24 = scalar_lea.sflag [#allocation6], 1
    %25 = vsyncpa %s24, 0
    loop: start=0, step=1, limit=4
    $region2: #{sppf_improve_forward.1} parent=1 // loop_pre_header
      _
    $region3: #{sppf_improve_forward.1} parent=1 // loop_header
      %s27 = sphi 0, %s31
      %p28 = scmp.ge.s32.totalorder %s27, 4
      %s34 = sphi 0, %s46
      %s35 = sphi 0, %s42
      %s36 = sphi 0, %s34
      %s37 = sphi 0, %s35
      %s38 = sphi 0, %s36
      %s39 = sphi 0, %s37
      %s47 = sphi 0, %s47
      %s49 = sphi 0, %s47
      %s50 = sphi 0, %s49
      %s64 = sphi 0, %s50
      %s70 = sphi 0, %s72
      %s73 = sphi 0, %s70
      %s74 = sphi 0, %s73
      %s90 = sphi 0, %s74
      %s96 = sphi 0, %s98
      %s99 = sphi 0, %s96
      %s100 = sphi 0, %s99
      %s116 = sphi 0, %s100
      %s122 = sphi 0, %s124
      %s125 = sphi 0, %s122
      %s126 = sphi 0, %s125
      %s142 = sphi 0, %s126
      %s148 = sphi 0, %s150
      %s151 = sphi 0, %s148
      %s152 = sphi 0, %s151
      %s168 = sphi 0, %s152
      %s174 = sphi 0, %s176
      %s177 = sphi 0, %s174
      %s178 = sphi 0, %s177
      %s194 = sphi 0, %s178
      %s200 = sphi 0, %s202
      %s203 = sphi 0, %s200
      %s204 = sphi 0, %s203
      %s220 = sphi 0, %s204
      %s226 = sphi 0, %s228
      %s229 = sphi 0, %s226
      %s230 = sphi 0, %s229
      %s246 = sphi 0, %s230
      %s252 = sphi 0, %s254
      %s255 = sphi 0, %s252
      %s256 = sphi 0, %s255
      %s272 = sphi 0, %s256
      %s276 = sphi 0, %s276
      %s278 = sphi 0, %s276
      %s279 = sphi 0, %s278
      %s293 = sphi 0, %s279
      %s299 = sphi 0, %s301
      %s302 = sphi 0, %s299
      %s303 = sphi 0, %s302
      %s319 = sphi 0, %s303
    $region4: #{sppf_improve_forward.1} parent=1 // loop_header_branch
      %30 = sbr.rel (%p28) target = $region8
    $region5: #{sppf_improve_forward.1} parent=1 // loop_body
      %s32 = ssub.s32 %s27, 1
      %s33 = ssub.s32 %s27, 2
      %s40 = sadd.s32 1, %s35
      %p41 = scmp.ge.s32.totalorder %s40, 1
      %s42 = scalar_select %p41, 0, %s40
      %s43 = sadd.s32 1, %s34
      %s44 = scalar_select %p41, %s43, %s34
      %p45 = scmp.ge.s32.totalorder %s44, 2
      %s46 = scalar_select %p45, 0, %s44
      %s48 = sadd.s32 %s47, 1
      %p51 = scmp.eq.s32.totalorder %s27, 1
      %p52 = scmp.ne.s32.totalorder %s47, %s49
      %p53 = scmp.eq.s32.totalorder %s27, 0
      %p54 = por %p52, %p53
      %p55 = scmp.ne.s32.totalorder %s47, %s49
      %p56 = scmp.eq.s32.totalorder %s32, 1
      %p57 = por %p55, %p56
      %p58 = scmp.ne.s32.totalorder %s49, %s50
      %p59 = scmp.eq.s32.totalorder %s32, 0
      %p60 = por %p58, %p59
      %p61 = scmp.ne.s32.totalorder %s49, %s50
      %p62 = scmp.eq.s32.totalorder %s33, 1
      %p63 = por %p61, %p62
      %p65 = scmp.ne.s32.totalorder %s50, %s64
      %p66 = scmp.eq.s32.totalorder %s33, 0
      %p67 = por %p65, %p66
      %s68 = ssub.s32 %s34, %s46
      %p69 = scmp.eq.s32.totalorder %s68, 0
      %s71 = sadd.s32 %s70, 1
      %s72 = scalar_select %p69, %s70, %s71
      %p75 = pneg %p69
      %p76 = scmp.eq.s32.totalorder %s27, 1
      %p77 = por %p75, %p76
      %p78 = scmp.ne.s32.totalorder %s70, %s73
      %p79 = scmp.eq.s32.totalorder %s27, 0
      %p80 = por %p78, %p79
      %p81 = scmp.ne.s32.totalorder %s70, %s73
      %p82 = scmp.eq.s32.totalorder %s32, 1
      %p83 = por %p81, %p82
      %p84 = scmp.ne.s32.totalorder %s73, %s74
      %p85 = scmp.eq.s32.totalorder %s32, 0
      %p86 = por %p84, %p85
      %p87 = scmp.ne.s32.totalorder %s73, %s74
      %p88 = scmp.eq.s32.totalorder %s33, 1
      %p89 = por %p87, %p88
      %p91 = scmp.ne.s32.totalorder %s74, %s90
      %p92 = scmp.eq.s32.totalorder %s33, 0
      %p93 = por %p91, %p92
      %s94 = ssub.s32 %s35, %s42
      %p95 = scmp.eq.s32.totalorder %s94, 0
      %s97 = sadd.s32 %s96, 1
      %s98 = scalar_select %p95, %s96, %s97
      %p101 = pneg %p95
      %p102 = scmp.eq.s32.totalorder %s27, 1
      %p103 = por %p101, %p102
      %p104 = scmp.ne.s32.totalorder %s96, %s99
      %p105 = scmp.eq.s32.totalorder %s27, 0
      %p106 = por %p104, %p105
      %p107 = scmp.ne.s32.totalorder %s96, %s99
      %p108 = scmp.eq.s32.totalorder %s32, 1
      %p109 = por %p107, %p108
      %p110 = scmp.ne.s32.totalorder %s99, %s100
      %p111 = scmp.eq.s32.totalorder %s32, 0
      %p112 = por %p110, %p111
      %p113 = scmp.ne.s32.totalorder %s99, %s100
      %p114 = scmp.eq.s32.totalorder %s33, 1
      %p115 = por %p113, %p114
      %p117 = scmp.ne.s32.totalorder %s100, %s116
      %p118 = scmp.eq.s32.totalorder %s33, 0
      %p119 = por %p117, %p118
      %s120 = ssub.s32 %s35, %s42
      %p121 = scmp.eq.s32.totalorder %s120, 0
      %s123 = sadd.s32 %s122, 1
      %s124 = scalar_select %p121, %s122, %s123
      %p127 = pneg %p121
      %p128 = scmp.eq.s32.totalorder %s27, 1
      %p129 = por %p127, %p128
      %p130 = scmp.ne.s32.totalorder %s122, %s125
      %p131 = scmp.eq.s32.totalorder %s27, 0
      %p132 = por %p130, %p131
      %p133 = scmp.ne.s32.totalorder %s122, %s125
      %p134 = scmp.eq.s32.totalorder %s32, 1
      %p135 = por %p133, %p134
      %p136 = scmp.ne.s32.totalorder %s125, %s126
      %p137 = scmp.eq.s32.totalorder %s32, 0
      %p138 = por %p136, %p137
      %p139 = scmp.ne.s32.totalorder %s125, %s126
      %p140 = scmp.eq.s32.totalorder %s33, 1
      %p141 = por %p139, %p140
      %p143 = scmp.ne.s32.totalorder %s126, %s142
      %p144 = scmp.eq.s32.totalorder %s33, 0
      %p145 = por %p143, %p144
      %s146 = ssub.s32 %s35, %s42
      %p147 = scmp.eq.s32.totalorder %s146, 0
      %s149 = sadd.s32 %s148, 1
      %s150 = scalar_select %p147, %s148, %s149
      %p153 = pneg %p147
      %p154 = scmp.eq.s32.totalorder %s27, 1
      %p155 = por %p153, %p154
      %p156 = scmp.ne.s32.totalorder %s148, %s151
      %p157 = scmp.eq.s32.totalorder %s27, 0
      %p158 = por %p156, %p157
      %p159 = scmp.ne.s32.totalorder %s148, %s151
      %p160 = scmp.eq.s32.totalorder %s32, 1
      %p161 = por %p159, %p160
      %p162 = scmp.ne.s32.totalorder %s151, %s152
      %p163 = scmp.eq.s32.totalorder %s32, 0
      %p164 = por %p162, %p163
      %p165 = scmp.ne.s32.totalorder %s151, %s152
      %p166 = scmp.eq.s32.totalorder %s33, 1
      %p167 = por %p165, %p166
      %p169 = scmp.ne.s32.totalorder %s152, %s168
      %p170 = scmp.eq.s32.totalorder %s33, 0
      %p171 = por %p169, %p170
      %s172 = ssub.s32 %s35, %s42
      %p173 = scmp.eq.s32.totalorder %s172, 0
      %s175 = sadd.s32 %s174, 1
      %s176 = scalar_select %p173, %s174, %s175
      %p179 = pneg %p173
      %p180 = scmp.eq.s32.totalorder %s27, 1
      %p181 = por %p179, %p180
      %p182 = scmp.ne.s32.totalorder %s174, %s177
      %p183 = scmp.eq.s32.totalorder %s27, 0
      %p184 = por %p182, %p183
      %p185 = scmp.ne.s32.totalorder %s174, %s177
      %p186 = scmp.eq.s32.totalorder %s32, 1
      %p187 = por %p185, %p186
      %p188 = scmp.ne.s32.totalorder %s177, %s178
      %p189 = scmp.eq.s32.totalorder %s32, 0
      %p190 = por %p188, %p189
      %p191 = scmp.ne.s32.totalorder %s177, %s178
      %p192 = scmp.eq.s32.totalorder %s33, 1
      %p193 = por %p191, %p192
      %p195 = scmp.ne.s32.totalorder %s178, %s194
      %p196 = scmp.eq.s32.totalorder %s33, 0
      %p197 = por %p195, %p196
      %s198 = ssub.s32 %s35, %s42
      %p199 = scmp.eq.s32.totalorder %s198, 0
      %s201 = sadd.s32 %s200, 1
      %s202 = scalar_select %p199, %s200, %s201
      %p205 = pneg %p199
      %p206 = scmp.eq.s32.totalorder %s27, 1
      %p207 = por %p205, %p206
      %p208 = scmp.ne.s32.totalorder %s200, %s203
      %p209 = scmp.eq.s32.totalorder %s27, 0
      %p210 = por %p208, %p209
      %p211 = scmp.ne.s32.totalorder %s200, %s203
      %p212 = scmp.eq.s32.totalorder %s32, 1
      %p213 = por %p211, %p212
      %p214 = scmp.ne.s32.totalorder %s203, %s204
      %p215 = scmp.eq.s32.totalorder %s32, 0
      %p216 = por %p214, %p215
      %p217 = scmp.ne.s32.totalorder %s203, %s204
      %p218 = scmp.eq.s32.totalorder %s33, 1
      %p219 = por %p217, %p218
      %p221 = scmp.ne.s32.totalorder %s204, %s220
      %p222 = scmp.eq.s32.totalorder %s33, 0
      %p223 = por %p221, %p222
      %s224 = ssub.s32 %s35, %s42
      %p225 = scmp.eq.s32.totalorder %s224, 0
      %s227 = sadd.s32 %s226, 1
      %s228 = scalar_select %p225, %s226, %s227
      %p231 = pneg %p225
      %p232 = scmp.eq.s32.totalorder %s27, 1
      %p233 = por %p231, %p232
      %p234 = scmp.ne.s32.totalorder %s226, %s229
      %p235 = scmp.eq.s32.totalorder %s27, 0
      %p236 = por %p234, %p235
      %p237 = scmp.ne.s32.totalorder %s226, %s229
      %p238 = scmp.eq.s32.totalorder %s32, 1
      %p239 = por %p237, %p238
      %p240 = scmp.ne.s32.totalorder %s229, %s230
      %p241 = scmp.eq.s32.totalorder %s32, 0
      %p242 = por %p240, %p241
      %p243 = scmp.ne.s32.totalorder %s229, %s230
      %p244 = scmp.eq.s32.totalorder %s33, 1
      %p245 = por %p243, %p244
      %p247 = scmp.ne.s32.totalorder %s230, %s246
      %p248 = scmp.eq.s32.totalorder %s33, 0
      %p249 = por %p247, %p248
      %s250 = ssub.s32 %s35, %s42
      %p251 = scmp.eq.s32.totalorder %s250, 0
      %s253 = sadd.s32 %s252, 1
      %s254 = scalar_select %p251, %s252, %s253
      %p257 = pneg %p251
      %p258 = scmp.eq.s32.totalorder %s27, 1
      %p259 = por %p257, %p258
      %p260 = scmp.ne.s32.totalorder %s252, %s255
      %p261 = scmp.eq.s32.totalorder %s27, 0
      %p262 = por %p260, %p261
      %p263 = scmp.ne.s32.totalorder %s252, %s255
      %p264 = scmp.eq.s32.totalorder %s32, 1
      %p265 = por %p263, %p264
      %p266 = scmp.ne.s32.totalorder %s255, %s256
      %p267 = scmp.eq.s32.totalorder %s32, 0
      %p268 = por %p266, %p267
      %p269 = scmp.ne.s32.totalorder %s255, %s256
      %p270 = scmp.eq.s32.totalorder %s33, 1
      %p271 = por %p269, %p270
      %p273 = scmp.ne.s32.totalorder %s256, %s272
      %p274 = scmp.eq.s32.totalorder %s33, 0
      %p275 = por %p273, %p274
      %s277 = sadd.s32 %s276, 1
      %p280 = scmp.eq.s32.totalorder %s27, 1
      %p281 = scmp.ne.s32.totalorder %s276, %s278
      %p282 = scmp.eq.s32.totalorder %s27, 0
      %p283 = por %p281, %p282
      %p284 = scmp.ne.s32.totalorder %s276, %s278
      %p285 = scmp.eq.s32.totalorder %s32, 1
      %p286 = por %p284, %p285
      %p287 = scmp.ne.s32.totalorder %s278, %s279
      %p288 = scmp.eq.s32.totalorder %s32, 0
      %p289 = por %p287, %p288
      %p290 = scmp.ne.s32.totalorder %s278, %s279
      %p291 = scmp.eq.s32.totalorder %s33, 1
      %p292 = por %p290, %p291
      %p294 = scmp.ne.s32.totalorder %s279, %s293
      %p295 = scmp.eq.s32.totalorder %s33, 0
      %p296 = por %p294, %p295
      %s297 = ssub.s32 %s34, %s46
      %p298 = scmp.eq.s32.totalorder %s297, 0
      %s300 = sadd.s32 %s299, 1
      %s301 = scalar_select %p298, %s299, %s300
      %p304 = pneg %p298
      %p305 = scmp.eq.s32.totalorder %s27, 1
      %p306 = por %p304, %p305
      %p307 = scmp.ne.s32.totalorder %s299, %s302
      %p308 = scmp.eq.s32.totalorder %s27, 0
      %p309 = por %p307, %p308
      %p310 = scmp.ne.s32.totalorder %s299, %s302
      %p311 = scmp.eq.s32.totalorder %s32, 1
      %p312 = por %p310, %p311
      %p313 = scmp.ne.s32.totalorder %s302, %s303
      %p314 = scmp.eq.s32.totalorder %s32, 0
      %p315 = por %p313, %p314
      %p316 = scmp.ne.s32.totalorder %s302, %s303
      %p317 = scmp.eq.s32.totalorder %s33, 1
      %p318 = por %p316, %p317
      %p320 = scmp.ne.s32.totalorder %s303, %s319
      %p321 = scmp.eq.s32.totalorder %s33, 0
      %p322 = por %p320, %p321
      %p323 = scmp.le.s32.totalorder 1, %s27
      %p324 = scmp.lt.s32.totalorder %s27, 3
      %p325 = pnand %p323, %p324
      %p326 = pneg %p325
      // Predicated region
      $region9: #{sppf_improve_forward.1} parent=5 // pred_check
        _
      $region10: #{sppf_improve_forward.1} parent=5 // pred_check_branch
        %328 = sbr.rel (%p325) target = $region12
      $region11: #{sppf_improve_forward.1} parent=5 // pred_region
        %s329 = ssub.s32 %s27, 1
        // Predicated region
        $region13: #{sppf_improve_forward.1} parent=11 // pred_check
          %p330 = pneg %p60
        $region14: #{sppf_improve_forward.1} parent=11 // pred_check_branch
          %332 = sbr.rel (%p330) target = $region16
        $region15: #{sppf_improve_forward.1} parent=11 // pred_region
          %s334 = ssub.s32 4096, 4096
          %335 = vsyncadd [#allocation5], %s334
          %s336 = sshll.u32 [#allocation4], 4
          %s337 = int_to_ptr.vmem [resolvable:$true] %s336
          %342 = dma.hbm_to_vmem [thread:$0]  %s0, 4096, %s337, [#allocation5], 128, 128, 8
        $region16: #{sppf_improve_forward.1} parent=11 // pred_fallthru
          _
        // Predicated region
        $region17: #{sppf_improve_forward.1} parent=11 // pred_check
          %p343 = pneg %p112
        $region18: #{sppf_improve_forward.1} parent=11 // pred_check_branch
          %345 = sbr.rel (%p343) target = $region20
        $region19: #{sppf_improve_forward.1} parent=11 // pred_region
          %s347 = ssub.s32 32, 32
          %348 = vsyncadd [#allocation8], %s347
          %s349 = smul.addr %s37, 32
          %s350 = scalar_lea.hbm %s2, %s349
          %s352 = sshll.u32 [#allocation9], 4
          %s353 = int_to_ptr.vmem [resolvable:$true] %s352
          %355 = dma.hbm_to_vmem [thread:$0]  %s350, 32, %s353, [#allocation8]
        $region20: #{sppf_improve_forward.1} parent=11 // pred_fallthru
          _
        // Predicated region
        $region21: #{sppf_improve_forward.1} parent=11 // pred_check
          %p356 = pneg %p138
        $region22: #{sppf_improve_forward.1} parent=11 // pred_check_branch
          %358 = sbr.rel (%p356) target = $region24
        $region23: #{sppf_improve_forward.1} parent=11 // pred_region
          %s360 = ssub.s32 16, 16
          %361 = vsyncadd [#allocation11], %s360
          %s362 = smul.addr %s37, 16
          %s363 = scalar_lea.hbm %s3, %s362
          %s365 = sshll.u32 [#allocation10], 4
          %s366 = int_to_ptr.vmem [resolvable:$true] %s365
          %368 = dma.hbm_to_vmem [thread:$0]  %s363, 16, %s366, [#allocation11]
        $region24: #{sppf_improve_forward.1} parent=11 // pred_fallthru
          _
        // Predicated region
        $region25: #{sppf_improve_forward.1} parent=11 // pred_check
          %p369 = pneg %p164
        $region26: #{sppf_improve_forward.1} parent=11 // pred_check_branch
          %371 = sbr.rel (%p369) target = $region28
        $region27: #{sppf_improve_forward.1} parent=11 // pred_region
          %s372 = smul.u32 16, %s37
          %s374 = ssub.s32 1024, 1024
          %375 = vsyncadd [#allocation11], %s374
          %s376 = smul.addr %s372, 64
          %s377 = scalar_lea.hbm %s4, %s376
          %s378 = sshll.u32 [#allocation12], 4
          %s379 = int_to_ptr.vmem [resolvable:$true] %s378
          %384 = dma.hbm_to_vmem [thread:$0]  %s377, 1024, %s379, [#allocation11], 64, 64, 4
        $region28: #{sppf_improve_forward.1} parent=11 // pred_fallthru
          _
        // Predicated region
        $region29: #{sppf_improve_forward.1} parent=11 // pred_check
          %p385 = pneg %p190
        $region30: #{sppf_improve_forward.1} parent=11 // pred_check_branch
          %387 = sbr.rel (%p385) target = $region32
        $region31: #{sppf_improve_forward.1} parent=11 // pred_region
          %s388 = smul.u32 16, %s37
          %s390 = ssub.s32 1024, 1024
          %391 = vsyncadd [#allocation14], %s390
          %s392 = smul.addr %s388, 64
          %s393 = scalar_lea.hbm %s5, %s392
          %s394 = sshll.u32 [#allocation13], 4
          %s395 = int_to_ptr.vmem [resolvable:$true] %s394
          %400 = dma.hbm_to_vmem [thread:$0]  %s393, 1024, %s395, [#allocation14], 64, 64, 4
        $region32: #{sppf_improve_forward.1} parent=11 // pred_fallthru
          _
        // Predicated region
        $region33: #{sppf_improve_forward.1} parent=11 // pred_check
          %p401 = pneg %p216
        $region34: #{sppf_improve_forward.1} parent=11 // pred_check_branch
          %403 = sbr.rel (%p401) target = $region36
        $region35: #{sppf_improve_forward.1} parent=11 // pred_region
          %s404 = smul.u32 16, %s37
          %s406 = ssub.s32 1024, 1024
          %407 = vsyncadd [#allocation14], %s406
          %s408 = smul.addr %s404, 64
          %s409 = scalar_lea.hbm %s6, %s408
          %s410 = sshll.u32 [#allocation15], 4
          %s411 = int_to_ptr.vmem [resolvable:$true] %s410
          %416 = dma.hbm_to_vmem [thread:$0]  %s409, 1024, %s411, [#allocation14], 64, 64, 4
        $region36: #{sppf_improve_forward.1} parent=11 // pred_fallthru
          _
        // Predicated region
        $region37: #{sppf_improve_forward.1} parent=11 // pred_check
          %p417 = pneg %p242
        $region38: #{sppf_improve_forward.1} parent=11 // pred_check_branch
          %419 = sbr.rel (%p417) target = $region40
        $region39: #{sppf_improve_forward.1} parent=11 // pred_region
          %s420 = smul.u32 16, %s37
          %s422 = ssub.s32 1024, 1024
          %423 = vsyncadd [#allocation17], %s422
          %s424 = smul.addr %s420, 64
          %s425 = scalar_lea.hbm %s7, %s424
          %s426 = sshll.u32 [#allocation16], 4
          %s427 = int_to_ptr.vmem [resolvable:$true] %s426
          %432 = dma.hbm_to_vmem [thread:$0]  %s425, 1024, %s427, [#allocation17], 64, 64, 4
        $region40: #{sppf_improve_forward.1} parent=11 // pred_fallthru
          _
        // Predicated region
        $region41: #{sppf_improve_forward.1} parent=11 // pred_check
          %p433 = pneg %p268
        $region42: #{sppf_improve_forward.1} parent=11 // pred_check_branch
          %435 = sbr.rel (%p433) target = $region44
        $region43: #{sppf_improve_forward.1} parent=11 // pred_region
          %s436 = smul.u32 16, %s37
          %s438 = ssub.s32 1024, 1024
          %439 = vsyncadd [#allocation17], %s438
          %s440 = smul.addr %s436, 64
          %s441 = scalar_lea.hbm %s8, %s440
          %s442 = sshll.u32 [#allocation18], 4
          %s443 = int_to_ptr.vmem [resolvable:$true] %s442
          %448 = dma.hbm_to_vmem [thread:$0]  %s441, 1024, %s443, [#allocation17], 64, 64, 4
        $region44: #{sppf_improve_forward.1} parent=11 // pred_fallthru
          _
        // Predicated region
        $region45: #{sppf_improve_forward.1} parent=11 // pred_check
          %p449 = pneg %p289
        $region46: #{sppf_improve_forward.1} parent=11 // pred_check_branch
          %451 = sbr.rel (%p449) target = $region48
        $region47: #{sppf_improve_forward.1} parent=11 // pred_region
          %s453 = ssub.s32 16, 16
          %454 = vsyncadd [#allocation20], %s453
          %s456 = sshll.u32 [#allocation19], 4
          %s457 = int_to_ptr.vmem [resolvable:$true] %s456
          %459 = dma.hbm_to_vmem [thread:$0]  %s9, 16, %s457, [#allocation20]
        $region48: #{sppf_improve_forward.1} parent=11 // pred_fallthru
          _
      $region12: #{sppf_improve_forward.1} parent=5 // pred_fallthru
        _
      %p460 = scmp.lt.s32.totalorder %s27, 2
      // Predicated region
      $region49: #{sppf_improve_forward.1} parent=5 // pred_check
        %p461 = pneg %p460
      $region50: #{sppf_improve_forward.1} parent=5 // pred_check_branch
        %463 = sbr.rel (%p461) target = $region52
      $region51: #{sppf_improve_forward.1} parent=5 // pred_region
        // Predicated region
        $region53: #{sppf_improve_forward.1} parent=51 // pred_check
          %p464 = pneg %p80
        $region54: #{sppf_improve_forward.1} parent=51 // pred_check_branch
          %466 = sbr.rel (%p464) target = $region56
        $region55: #{sppf_improve_forward.1} parent=51 // pred_region
          %s467 = sand.u32 %s27, 1
          %s468 = scalar_lea.sflag [#allocation8], %s467
          %s469 = sand.u32 %s70, 1
          %s470 = smul.addr %s469, 128
          %s471 = scalar_lea.vmem [#allocation7], %s470
          %s473 = ssub.s32 2048, 2048
          %474 = vsyncadd %s468, %s473
          %s475 = smul.addr %s34, 32
          %s476 = smul.addr %s475, 64
          %s477 = scalar_lea.hbm %s1, %s476
          %s478 = sshll.u32 %s471, 4
          %s479 = int_to_ptr.vmem [resolvable:$true] %s478
          %484 = dma.hbm_to_vmem [thread:$0]  %s477, 2048, %s479, %s468, 64, 64, 4
        $region56: #{sppf_improve_forward.1} parent=51 // pred_fallthru
          _
      $region52: #{sppf_improve_forward.1} parent=5 // pred_fallthru
        _
      %p485 = scmp.le.s32.totalorder 1, %s27
      %p486 = scmp.lt.s32.totalorder %s27, 3
      %p487 = pnand %p485, %p486
      %p488 = pneg %p487
      // Predicated region
      $region57: #{sppf_improve_forward.1} parent=5 // pred_check
        _
      $region58: #{sppf_improve_forward.1} parent=5 // pred_check_branch
        %490 = sbr.rel (%p487) target = $region60
      $region59: #{sppf_improve_forward.1} parent=5 // pred_region
        %s491 = ssub.s32 %s27, 1
        // Predicated region
        $region61: #{sppf_improve_forward.1} parent=59 // pred_check
          %p492 = pneg %p60
        $region62: #{sppf_improve_forward.1} parent=59 // pred_check_branch
          %494 = sbr.rel (%p492) target = $region64
        $region63: #{sppf_improve_forward.1} parent=59 // pred_region
          %495 = dma.done [#allocation5], 4096
        $region64: #{sppf_improve_forward.1} parent=59 // pred_fallthru
          _
        %s496 = sand.u32 %s32, 1
        %s497 = scalar_lea.sflag [#allocation8], %s496
        %s498 = sand.u32 %s73, 1
        %s499 = smul.addr %s498, 128
        %s500 = scalar_lea.vmem [#allocation7], %s499
        // Predicated region
        $region65: #{sppf_improve_forward.1} parent=59 // pred_check
          %p501 = pneg %p86
        $region66: #{sppf_improve_forward.1} parent=59 // pred_check_branch
          %503 = sbr.rel (%p501) target = $region68
        $region67: #{sppf_improve_forward.1} parent=59 // pred_region
          %504 = dma.done %s497, 2048
        $region68: #{sppf_improve_forward.1} parent=59 // pred_fallthru
          _
        // Predicated region
        $region69: #{sppf_improve_forward.1} parent=59 // pred_check
          %p505 = pneg %p112
        $region70: #{sppf_improve_forward.1} parent=59 // pred_check_branch
          %507 = sbr.rel (%p505) target = $region72
        $region71: #{sppf_improve_forward.1} parent=59 // pred_region
          %508 = dma.done [#allocation8], 32
        $region72: #{sppf_improve_forward.1} parent=59 // pred_fallthru
          _
        // Predicated region
        $region73: #{sppf_improve_forward.1} parent=59 // pred_check
          %p509 = pneg %p138
        $region74: #{sppf_improve_forward.1} parent=59 // pred_check_branch
          %511 = sbr.rel (%p509) target = $region76
        $region75: #{sppf_improve_forward.1} parent=59 // pred_region
          %512 = dma.done [#allocation11], 16
        $region76: #{sppf_improve_forward.1} parent=59 // pred_fallthru
          _
        // Predicated region
        $region77: #{sppf_improve_forward.1} parent=59 // pred_check
          %p513 = pneg %p164
        $region78: #{sppf_improve_forward.1} parent=59 // pred_check_branch
          %515 = sbr.rel (%p513) target = $region80
        $region79: #{sppf_improve_forward.1} parent=59 // pred_region
          %516 = dma.done [#allocation11], 1024
        $region80: #{sppf_improve_forward.1} parent=59 // pred_fallthru
          _
        // Predicated region
        $region81: #{sppf_improve_forward.1} parent=59 // pred_check
          %p517 = pneg %p190
        $region82: #{sppf_improve_forward.1} parent=59 // pred_check_branch
          %519 = sbr.rel (%p517) target = $region84
        $region83: #{sppf_improve_forward.1} parent=59 // pred_region
          %520 = dma.done [#allocation14], 1024
        $region84: #{sppf_improve_forward.1} parent=59 // pred_fallthru
          _
        // Predicated region
        $region85: #{sppf_improve_forward.1} parent=59 // pred_check
          %p521 = pneg %p216
        $region86: #{sppf_improve_forward.1} parent=59 // pred_check_branch
          %523 = sbr.rel (%p521) target = $region88
        $region87: #{sppf_improve_forward.1} parent=59 // pred_region
          %524 = dma.done [#allocation14], 1024
        $region88: #{sppf_improve_forward.1} parent=59 // pred_fallthru
          _
        // Predicated region
        $region89: #{sppf_improve_forward.1} parent=59 // pred_check
          %p525 = pneg %p242
        $region90: #{sppf_improve_forward.1} parent=59 // pred_check_branch
          %527 = sbr.rel (%p525) target = $region92
        $region91: #{sppf_improve_forward.1} parent=59 // pred_region
          %528 = dma.done [#allocation17], 1024
        $region92: #{sppf_improve_forward.1} parent=59 // pred_fallthru
          _
        // Predicated region
        $region93: #{sppf_improve_forward.1} parent=59 // pred_check
          %p529 = pneg %p268
        $region94: #{sppf_improve_forward.1} parent=59 // pred_check_branch
          %531 = sbr.rel (%p529) target = $region96
        $region95: #{sppf_improve_forward.1} parent=59 // pred_region
          %532 = dma.done [#allocation17], 1024
        $region96: #{sppf_improve_forward.1} parent=59 // pred_fallthru
          _
        // Predicated region
        $region97: #{sppf_improve_forward.1} parent=59 // pred_check
          %p533 = pneg %p289
        $region98: #{sppf_improve_forward.1} parent=59 // pred_check_branch
          %535 = sbr.rel (%p533) target = $region100
        $region99: #{sppf_improve_forward.1} parent=59 // pred_region
          %536 = dma.done [#allocation20], 16
        $region100: #{sppf_improve_forward.1} parent=59 // pred_fallthru
          _
        %p537 = pneg %p60
        %p538 = pneg %p57
        %s539 = sand.u32 %s32, 1
        %s540 = scalar_lea.sflag [#allocation8], %s539
        %s541 = sand.u32 %s73, 1
        %s542 = smul.addr %s541, 128
        %s543 = scalar_lea.vmem [#allocation7], %s542
        %p544 = pneg %p86
        %p545 = pneg %p83
        %p546 = pneg %p112
        %p547 = pneg %p109
        %p548 = pneg %p138
        %p549 = pneg %p135
        %p550 = pneg %p164
        %p551 = pneg %p161
        %p552 = pneg %p190
        %p553 = pneg %p187
        %p554 = pneg %p216
        %p555 = pneg %p213
        %p556 = pneg %p242
        %p557 = pneg %p239
        %p558 = pneg %p268
        %p559 = pneg %p265
        %p560 = pneg %p289
        %p561 = pneg %p286
        %p562 = pneg %p315
        %p563 = pneg %p312
        %s564 = sand.u32 %s302, 1
        %s565 = scalar_lea.sflag [#allocation6], %s564
        %s566 = sand.u32 %s302, 1
        %s567 = smul.addr %s566, 256
        %s568 = scalar_lea.vmem [#allocation21], %s567
        %s569 = smul.u32 16, %s37
        %s570 = smul.u32 16, %s37
        %s571 = smul.u32 16, %s37
        %s572 = smul.u32 16, %s37
        %s573 = smul.u32 16, %s37
        %p575 = scmp.eq.s32.totalorder %s37, 0
        // Predicated region
        $region101: #{sppf_improve_forward.1} parent=59 // pred_check
          %p576 = pneg %p575
        $region102: #{sppf_improve_forward.1} parent=59 // pred_check_branch
          %578 = sbr.rel (%p576) target = $region104
        $region103: #{sppf_improve_forward.1} parent=59 // pred_region
          %579 = vst [vmem:[#allocation2] sm:$0xff] 0.0
          %580 = vst [vmem:[#allocation2 + $0x8] sm:$0xff] 0.0
          %581 = vst [vmem:[#allocation2 + $0x10] sm:$0xff] 0.0
          %582 = vst [vmem:[#allocation2 + $0x18] sm:$0xff] 0.0
          %583 = vst [vmem:[#allocation2 + $0x20] sm:$0xff] 0.0
          %584 = vst [vmem:[#allocation2 + $0x28] sm:$0xff] 0.0
          %585 = vst [vmem:[#allocation2 + $0x30] sm:$0xff] 0.0
          %586 = vst [vmem:[#allocation2 + $0x38] sm:$0xff] 0.0
          %587 = vst [vmem:[#allocation2 + $0x40] sm:$0xff] 0.0
          %588 = vst [vmem:[#allocation2 + $0x48] sm:$0xff] 0.0
          %589 = vst [vmem:[#allocation2 + $0x50] sm:$0xff] 0.0
          %590 = vst [vmem:[#allocation2 + $0x58] sm:$0xff] 0.0
          %591 = vst [vmem:[#allocation2 + $0x60] sm:$0xff] 0.0
          %592 = vst [vmem:[#allocation2 + $0x68] sm:$0xff] 0.0
          %593 = vst [vmem:[#allocation2 + $0x70] sm:$0xff] 0.0
          %594 = vst [vmem:[#allocation2 + $0x78] sm:$0xff] 0.0
          %595 = vst [vmem:[#allocation2 + $0x80] sm:$0xff] 0.0
          %596 = vst [vmem:[#allocation2 + $0x88] sm:$0xff] 0.0
          %597 = vst [vmem:[#allocation2 + $0x90] sm:$0xff] 0.0
          %598 = vst [vmem:[#allocation2 + $0x98] sm:$0xff] 0.0
          %599 = vst [vmem:[#allocation2 + $0xa0] sm:$0xff] 0.0
          %600 = vst [vmem:[#allocation2 + $0xa8] sm:$0xff] 0.0
          %601 = vst [vmem:[#allocation2 + $0xb0] sm:$0xff] 0.0
          %602 = vst [vmem:[#allocation2 + $0xb8] sm:$0xff] 0.0
          %603 = vst [vmem:[#allocation2 + $0xc0] sm:$0xff] 0.0
          %604 = vst [vmem:[#allocation2 + $0xc8] sm:$0xff] 0.0
          %605 = vst [vmem:[#allocation2 + $0xd0] sm:$0xff] 0.0
          %606 = vst [vmem:[#allocation2 + $0xd8] sm:$0xff] 0.0
          %607 = vst [vmem:[#allocation2 + $0xe0] sm:$0xff] 0.0
          %608 = vst [vmem:[#allocation2 + $0xe8] sm:$0xff] 0.0
          %609 = vst [vmem:[#allocation2 + $0xf0] sm:$0xff] 0.0
          %610 = vst [vmem:[#allocation2 + $0xf8] sm:$0xff] 0.0
          %611 = vst [vmem:[#allocation3] sm:$0xff] 0.0
        $region104: #{sppf_improve_forward.1} parent=59 // pred_fallthru
          _
        %v612 = vld [vmem:[%s500] sm:$0xf]
        %v613 = vld [vmem:[%s500 + $0x4] sm:$0xf]
        %v614 = vld [vmem:[%s500 + $0x8] sm:$0xf]
        %v615 = vld [vmem:[%s500 + $0xc] sm:$0xf]
        %v616 = vld [vmem:[%s500 + $0x10] sm:$0xf]
        %v617 = vld [vmem:[%s500 + $0x14] sm:$0xf]
        %v618 = vld [vmem:[%s500 + $0x18] sm:$0xf]
        %v619 = vld [vmem:[%s500 + $0x1c] sm:$0xf]
        %v620 = vld [vmem:[%s500 + $0x20] sm:$0xf]
        %v621 = vld [vmem:[%s500 + $0x24] sm:$0xf]
        %v622 = vld [vmem:[%s500 + $0x28] sm:$0xf]
        %v623 = vld [vmem:[%s500 + $0x2c] sm:$0xf]
        %v624 = vld [vmem:[%s500 + $0x30] sm:$0xf]
        %v625 = vld [vmem:[%s500 + $0x34] sm:$0xf]
        %v626 = vld [vmem:[%s500 + $0x38] sm:$0xf]
        %v627 = vld [vmem:[%s500 + $0x3c] sm:$0xf]
        %v628 = vld [vmem:[%s500 + $0x40] sm:$0xf]
        %v629 = vld [vmem:[%s500 + $0x44] sm:$0xf]
        %v630 = vld [vmem:[%s500 + $0x48] sm:$0xf]
        %v631 = vld [vmem:[%s500 + $0x4c] sm:$0xf]
        %v632 = vld [vmem:[%s500 + $0x50] sm:$0xf]
        %v633 = vld [vmem:[%s500 + $0x54] sm:$0xf]
        %v634 = vld [vmem:[%s500 + $0x58] sm:$0xf]
        %v635 = vld [vmem:[%s500 + $0x5c] sm:$0xf]
        %v636 = vld [vmem:[%s500 + $0x60] sm:$0xf]
        %v637 = vld [vmem:[%s500 + $0x64] sm:$0xf]
        %v638 = vld [vmem:[%s500 + $0x68] sm:$0xf]
        %v639 = vld [vmem:[%s500 + $0x6c] sm:$0xf]
        %v640 = vld [vmem:[%s500 + $0x70] sm:$0xf]
        %v641 = vld [vmem:[%s500 + $0x74] sm:$0xf]
        %v642 = vld [vmem:[%s500 + $0x78] sm:$0xf]
        %v643 = vld [vmem:[%s500 + $0x7c] sm:$0xf]
        %v644 = vld [vmem:[#allocation9] sm:$0x3]
        %v645 = vld [vmem:[#allocation10] sm:$0x1]
        %v647 = vlaneseq
        %v648 = vshrl.u32 %v647, 7
        %v649 = vsub.s32 0, %v648
        %v650 = vrot.slane %v645, %v649
        %v684 = vunpack.c.l.b16 %v612
        %v685 = vunpack.c.l.b16 %v613
        %v686 = vunpack.c.l.b16 %v614
        %v687 = vunpack.c.l.b16 %v615
        %v688 = vunpack.c.l.b16 %v616
        %v689 = vunpack.c.l.b16 %v617
        %v690 = vunpack.c.l.b16 %v618
        %v691 = vunpack.c.l.b16 %v619
        %v692 = vunpack.c.l.b16 %v620
        %v693 = vunpack.c.l.b16 %v621
        %v694 = vunpack.c.l.b16 %v622
        %v695 = vunpack.c.l.b16 %v623
        %v696 = vunpack.c.l.b16 %v624
        %v697 = vunpack.c.l.b16 %v625
        %v698 = vunpack.c.l.b16 %v626
        %v699 = vunpack.c.l.b16 %v627
        %v700 = vunpack.c.l.b16 %v628
        %v701 = vunpack.c.l.b16 %v629
        %v702 = vunpack.c.l.b16 %v630
        %v703 = vunpack.c.l.b16 %v631
        %v704 = vunpack.c.l.b16 %v632
        %v705 = vunpack.c.l.b16 %v633
        %v706 = vunpack.c.l.b16 %v634
        %v707 = vunpack.c.l.b16 %v635
        %v708 = vunpack.c.l.b16 %v636
        %v709 = vunpack.c.l.b16 %v637
        %v710 = vunpack.c.l.b16 %v638
        %v711 = vunpack.c.l.b16 %v639
        %v712 = vunpack.c.l.b16 %v640
        %v713 = vunpack.c.l.b16 %v641
        %v714 = vunpack.c.l.b16 %v642
        %v715 = vunpack.c.l.b16 %v643
        %v716 = vpack.c.b16 %v685, %v684
        %v717 = vpack.c.b16 %v687, %v686
        %v718 = vpack.c.b16 %v689, %v688
        %v719 = vpack.c.b16 %v691, %v690
        %v720 = vpack.c.b16 %v693, %v692
        %v721 = vpack.c.b16 %v695, %v694
        %v722 = vpack.c.b16 %v697, %v696
        %v723 = vpack.c.b16 %v699, %v698
        %v724 = vpack.c.b16 %v701, %v700
        %v725 = vpack.c.b16 %v703, %v702
        %v726 = vpack.c.b16 %v705, %v704
        %v727 = vpack.c.b16 %v707, %v706
        %v728 = vpack.c.b16 %v709, %v708
        %v729 = vpack.c.b16 %v711, %v710
        %v730 = vpack.c.b16 %v713, %v712
        %v731 = vpack.c.b16 %v715, %v714
        %vm732 = vcmask 31744
        %v734 = vsel %vm732, %v716, 0
        %v737 = vsel %vm732, %v717, 0
        %v740 = vsel %vm732, %v718, 0
        %v743 = vsel %vm732, %v719, 0
        %v746 = vsel %vm732, %v720, 0
        %v749 = vsel %vm732, %v721, 0
        %v752 = vsel %vm732, %v722, 0
        %v755 = vsel %vm732, %v723, 0
        %v758 = vsel %vm732, %v724, 0
        %v761 = vsel %vm732, %v725, 0
        %v764 = vsel %vm732, %v726, 0
        %v767 = vsel %vm732, %v727, 0
        %v770 = vsel %vm732, %v728, 0
        %v773 = vsel %vm732, %v729, 0
        %v776 = vsel %vm732, %v730, 0
        %v779 = vsel %vm732, %v731, 0
        %vm781 = vcmask 1041408
        %v783 = vsel %vm781, %v644, 0
        %785 = vmatprep.subr.bf16.mxu0 0
        %786 = vmatpush1.bf16.msra.mxu0 %v783
        %787 = vmatprep.subr.bf16.mxu0 0
        %788 = vmatpush1.bf16.msra.mxu0 0
        %789 = vmatprep.subr.bf16.mxu0 0
        %790 = vmatpush1.bf16.msra.mxu0 0
        %791 = vmatprep.subr.bf16.mxu0 0
        %792 = vmatpush1.bf16.msra.mxu0 0
        %793 = vmatprep.subr.bf16.mxu0 0
        %794 = vmatpush1.bf16.msra.mxu0 0
        %795 = vmatprep.subr.bf16.mxu0 0
        %796 = vmatpush1.bf16.msra.mxu0 0
        %797 = vmatprep.subr.bf16.mxu0 0
        %798 = vmatpush1.bf16.msra.mxu0 0
        %799 = vmatprep.subr.bf16.mxu0 0
        %800 = vmatpush1.bf16.msra.mxu0 0
        %801 = vmatprep.subr.bf16.mxu0 0
        %802 = vmatpush1.bf16.msra.mxu0 0
        %803 = vmatprep.subr.bf16.mxu0 0
        %804 = vmatpush1.bf16.msra.mxu0 0
        %805 = vmatprep.subr.bf16.mxu0 0
        %806 = vmatpush1.bf16.msra.mxu0 0
        %807 = vmatprep.subr.bf16.mxu0 0
        %808 = vmatpush1.bf16.msra.mxu0 0
        %809 = vmatprep.subr.bf16.mxu0 0
        %810 = vmatpush1.bf16.msra.mxu0 0
        %811 = vmatprep.subr.bf16.mxu0 0
        %812 = vmatpush1.bf16.msra.mxu0 0
        %813 = vmatprep.subr.bf16.mxu0 0
        %814 = vmatpush1.bf16.msra.mxu0 0
        %815 = vmatprep.subr.bf16.mxu0 0
        %816 = vmatpush1.bf16.msra.mxu0 0
        %817 = vmatprep.mubr.bf16.mxu0 0
        %818 = vmatmul.mubr.bf16.gmra.mrb[0].mxu0 %v734
        %v819 = vpop.f32.mrb[0].mxu0
        %v820 = vadd.f32 %v650, %v819
        %v821 = vpop.f32.mrb[0].mxu0
        %v822 = vpop.f32.mrb[0].mxu0
        %v823 = vadd.f32 %v650, %v822
        %v824 = vpop.f32.mrb[0].mxu0
        %825 = vmatprep.mubr.bf16.mxu0 0
        %826 = vmatmul.mubr.bf16.gmra.mrb[0].mxu0 %v737
        %v827 = vpop.f32.mrb[0].mxu0
        %v828 = vadd.f32 %v650, %v827
        %v829 = vpop.f32.mrb[0].mxu0
        %v830 = vpop.f32.mrb[0].mxu0
        %v831 = vadd.f32 %v650, %v830
        %v832 = vpop.f32.mrb[0].mxu0
        %833 = vmatprep.mubr.bf16.mxu0 0
        %834 = vmatmul.mubr.bf16.gmra.mrb[0].mxu0 %v740
        %v835 = vpop.f32.mrb[0].mxu0
        %v836 = vadd.f32 %v650, %v835
        %v837 = vpop.f32.mrb[0].mxu0
        %v838 = vpop.f32.mrb[0].mxu0
        %v839 = vadd.f32 %v650, %v838
        %v840 = vpop.f32.mrb[0].mxu0
        %841 = vmatprep.mubr.bf16.mxu0 0
        %842 = vmatmul.mubr.bf16.gmra.mrb[0].mxu0 %v743
        %v843 = vpop.f32.mrb[0].mxu0
        %v844 = vadd.f32 %v650, %v843
        %v845 = vpop.f32.mrb[0].mxu0
        %v846 = vpop.f32.mrb[0].mxu0
        %v847 = vadd.f32 %v650, %v846
        %v848 = vpop.f32.mrb[0].mxu0
        %849 = vmatprep.mubr.bf16.mxu0 0
        %850 = vmatmul.mubr.bf16.gmra.mrb[0].mxu0 %v746
        %v851 = vpop.f32.mrb[0].mxu0
        %v852 = vadd.f32 %v650, %v851
        %v853 = vpop.f32.mrb[0].mxu0
        %v854 = vpop.f32.mrb[0].mxu0
        %v855 = vadd.f32 %v650, %v854
        %v856 = vpop.f32.mrb[0].mxu0
        %857 = vmatprep.mubr.bf16.mxu0 0
        %858 = vmatmul.mubr.bf16.gmra.mrb[0].mxu0 %v749
        %v859 = vpop.f32.mrb[0].mxu0
        %v860 = vadd.f32 %v650, %v859
        %v861 = vpop.f32.mrb[0].mxu0
        %v862 = vpop.f32.mrb[0].mxu0
        %v863 = vadd.f32 %v650, %v862
        %v864 = vpop.f32.mrb[0].mxu0
        %865 = vmatprep.mubr.bf16.mxu0 0
        %866 = vmatmul.mubr.bf16.gmra.mrb[0].mxu0 %v752
        %v867 = vpop.f32.mrb[0].mxu0
        %v868 = vadd.f32 %v650, %v867
        %v869 = vpop.f32.mrb[0].mxu0
        %v870 = vpop.f32.mrb[0].mxu0
        %v871 = vadd.f32 %v650, %v870
        %v872 = vpop.f32.mrb[0].mxu0
        %873 = vmatprep.mubr.bf16.mxu0 0
        %874 = vmatmul.mubr.bf16.gmra.mrb[0].mxu0 %v755
        %v875 = vpop.f32.mrb[0].mxu0
        %v876 = vadd.f32 %v650, %v875
        %v877 = vpop.f32.mrb[0].mxu0
        %v878 = vpop.f32.mrb[0].mxu0
        %v879 = vadd.f32 %v650, %v878
        %v880 = vpop.f32.mrb[0].mxu0
        %881 = vmatprep.mubr.bf16.mxu0 0
        %882 = vmatmul.mubr.bf16.gmra.mrb[0].mxu0 %v758
        %v883 = vpop.f32.mrb[0].mxu0
        %v884 = vadd.f32 %v650, %v883
        %v885 = vpop.f32.mrb[0].mxu0
        %v886 = vpop.f32.mrb[0].mxu0
        %v887 = vadd.f32 %v650, %v886
        %v888 = vpop.f32.mrb[0].mxu0
        %889 = vmatprep.mubr.bf16.mxu0 0
        %890 = vmatmul.mubr.bf16.gmra.mrb[0].mxu0 %v761
        %v891 = vpop.f32.mrb[0].mxu0
        %v892 = vadd.f32 %v650, %v891
        %v893 = vpop.f32.mrb[0].mxu0
        %v894 = vpop.f32.mrb[0].mxu0
        %v895 = vadd.f32 %v650, %v894
        %v896 = vpop.f32.mrb[0].mxu0
        %897 = vmatprep.mubr.bf16.mxu0 0
        %898 = vmatmul.mubr.bf16.gmra.mrb[0].mxu0 %v764
        %v899 = vpop.f32.mrb[0].mxu0
        %v900 = vadd.f32 %v650, %v899
        %v901 = vpop.f32.mrb[0].mxu0
        %v902 = vpop.f32.mrb[0].mxu0
        %v903 = vadd.f32 %v650, %v902
        %v904 = vpop.f32.mrb[0].mxu0
        %905 = vmatprep.mubr.bf16.mxu0 0
        %906 = vmatmul.mubr.bf16.gmra.mrb[0].mxu0 %v767
        %v907 = vpop.f32.mrb[0].mxu0
        %v908 = vadd.f32 %v650, %v907
        %v909 = vpop.f32.mrb[0].mxu0
        %v910 = vpop.f32.mrb[0].mxu0
        %v911 = vadd.f32 %v650, %v910
        %v912 = vpop.f32.mrb[0].mxu0
        %913 = vmatprep.mubr.bf16.mxu0 0
        %914 = vmatmul.mubr.bf16.gmra.mrb[0].mxu0 %v770
        %v915 = vpop.f32.mrb[0].mxu0
        %v916 = vadd.f32 %v650, %v915
        %v917 = vpop.f32.mrb[0].mxu0
        %v918 = vpop.f32.mrb[0].mxu0
        %v919 = vadd.f32 %v650, %v918
        %v920 = vpop.f32.mrb[0].mxu0
        %921 = vmatprep.mubr.bf16.mxu0 0
        %922 = vmatmul.mubr.bf16.gmra.mrb[0].mxu0 %v773
        %v923 = vpop.f32.mrb[0].mxu0
        %v924 = vadd.f32 %v650, %v923
        %v925 = vpop.f32.mrb[0].mxu0
        %v926 = vpop.f32.mrb[0].mxu0
        %v927 = vadd.f32 %v650, %v926
        %v928 = vpop.f32.mrb[0].mxu0
        %929 = vmatprep.mubr.bf16.mxu0 0
        %930 = vmatmul.mubr.bf16.gmra.mrb[0].mxu0 %v776
        %v931 = vpop.f32.mrb[0].mxu0
        %v932 = vadd.f32 %v650, %v931
        %v933 = vpop.f32.mrb[0].mxu0
        %v934 = vpop.f32.mrb[0].mxu0
        %v935 = vadd.f32 %v650, %v934
        %v936 = vpop.f32.mrb[0].mxu0
        %937 = vmatprep.mubr.bf16.mxu0 0
        %938 = vmatmul.mubr.bf16.gmra.mrb[0].mxu0 %v779
        %v939 = vpop.f32.mrb[0].mxu0
        %v940 = vadd.f32 %v650, %v939
        %v941 = vpop.f32.mrb[0].mxu0
        %v942 = vpop.f32.mrb[0].mxu0
        %v943 = vadd.f32 %v650, %v942
        %v944 = vpop.f32.mrb[0].mxu0
        %945 = vdwg.mxu0
        %v946 = vxor.u32 %v820, 2147483648
        %v947 = vxor.u32 %v823, 2147483648
        %v948 = vxor.u32 %v828, 2147483648
        %v949 = vxor.u32 %v831, 2147483648
        %v950 = vxor.u32 %v836, 2147483648
        %v951 = vxor.u32 %v839, 2147483648
        %v952 = vxor.u32 %v844, 2147483648
        %v953 = vxor.u32 %v847, 2147483648
        %v954 = vxor.u32 %v852, 2147483648
        %v955 = vxor.u32 %v855, 2147483648
        %v956 = vxor.u32 %v860, 2147483648
        %v957 = vxor.u32 %v863, 2147483648
        %v958 = vxor.u32 %v868, 2147483648
        %v959 = vxor.u32 %v871, 2147483648
        %v960 = vxor.u32 %v876, 2147483648
        %v961 = vxor.u32 %v879, 2147483648
        %v962 = vxor.u32 %v884, 2147483648
        %v963 = vxor.u32 %v887, 2147483648
        %v964 = vxor.u32 %v892, 2147483648
        %v965 = vxor.u32 %v895, 2147483648
        %v966 = vxor.u32 %v900, 2147483648
        %v967 = vxor.u32 %v903, 2147483648
        %v968 = vxor.u32 %v908, 2147483648
        %v969 = vxor.u32 %v911, 2147483648
        %v970 = vxor.u32 %v916, 2147483648
        %v971 = vxor.u32 %v919, 2147483648
        %v972 = vxor.u32 %v924, 2147483648
        %v973 = vxor.u32 %v927, 2147483648
        %v974 = vxor.u32 %v932, 2147483648
        %v975 = vxor.u32 %v935, 2147483648
        %v976 = vxor.u32 %v940, 2147483648
        %v977 = vxor.u32 %v943, 2147483648
        %v978 = vmul.f32 %v946, 1.442695
        %v979 = vpow.pop %v978
        %v980 = vmul.f32 %v947, 1.442695
        %v981 = vpow.pop %v980
        %v982 = vmul.f32 %v948, 1.442695
        %v983 = vpow.pop %v982
        %v984 = vmul.f32 %v949, 1.442695
        %v985 = vpow.pop %v984
        %v986 = vmul.f32 %v950, 1.442695
        %v987 = vpow.pop %v986
        %v988 = vmul.f32 %v951, 1.442695
        %v989 = vpow.pop %v988
        %v990 = vmul.f32 %v952, 1.442695
        %v991 = vpow.pop %v990
        %v992 = vmul.f32 %v953, 1.442695
        %v993 = vpow.pop %v992
        %v994 = vmul.f32 %v954, 1.442695
        %v995 = vpow.pop %v994
        %v996 = vmul.f32 %v955, 1.442695
        %v997 = vpow.pop %v996
        %v998 = vmul.f32 %v956, 1.442695
        %v999 = vpow.pop %v998
        %v1000 = vmul.f32 %v957, 1.442695
        %v1001 = vpow.pop %v1000
        %v1002 = vmul.f32 %v958, 1.442695
        %v1003 = vpow.pop %v1002
        %v1004 = vmul.f32 %v959, 1.442695
        %v1005 = vpow.pop %v1004
        %v1006 = vmul.f32 %v960, 1.442695
        %v1007 = vpow.pop %v1006
        %v1008 = vmul.f32 %v961, 1.442695
        %v1009 = vpow.pop %v1008
        %v1010 = vmul.f32 %v962, 1.442695
        %v1011 = vpow.pop %v1010
        %v1012 = vmul.f32 %v963, 1.442695
        %v1013 = vpow.pop %v1012
        %v1014 = vmul.f32 %v964, 1.442695
        %v1015 = vpow.pop %v1014
        %v1016 = vmul.f32 %v965, 1.442695
        %v1017 = vpow.pop %v1016
        %v1018 = vmul.f32 %v966, 1.442695
        %v1019 = vpow.pop %v1018
        %v1020 = vmul.f32 %v967, 1.442695
        %v1021 = vpow.pop %v1020
        %v1022 = vmul.f32 %v968, 1.442695
        %v1023 = vpow.pop %v1022
        %v1024 = vmul.f32 %v969, 1.442695
        %v1025 = vpow.pop %v1024
        %v1026 = vmul.f32 %v970, 1.442695
        %v1027 = vpow.pop %v1026
        %v1028 = vmul.f32 %v971, 1.442695
        %v1029 = vpow.pop %v1028
        %v1030 = vmul.f32 %v972, 1.442695
        %v1031 = vpow.pop %v1030
        %v1032 = vmul.f32 %v973, 1.442695
        %v1033 = vpow.pop %v1032
        %v1034 = vmul.f32 %v974, 1.442695
        %v1035 = vpow.pop %v1034
        %v1036 = vmul.f32 %v975, 1.442695
        %v1037 = vpow.pop %v1036
        %v1038 = vmul.f32 %v976, 1.442695
        %v1039 = vpow.pop %v1038
        %v1040 = vmul.f32 %v977, 1.442695
        %v1041 = vpow.pop %v1040
        %v1042 = vadd.f32 %v979, 1.0
        %v1043 = vadd.f32 %v981, 1.0
        %v1044 = vadd.f32 %v983, 1.0
        %v1045 = vadd.f32 %v985, 1.0
        %v1046 = vadd.f32 %v987, 1.0
        %v1047 = vadd.f32 %v989, 1.0
        %v1048 = vadd.f32 %v991, 1.0
        %v1049 = vadd.f32 %v993, 1.0
        %v1050 = vadd.f32 %v995, 1.0
        %v1051 = vadd.f32 %v997, 1.0
        %v1052 = vadd.f32 %v999, 1.0
        %v1053 = vadd.f32 %v1001, 1.0
        %v1054 = vadd.f32 %v1003, 1.0
        %v1055 = vadd.f32 %v1005, 1.0
        %v1056 = vadd.f32 %v1007, 1.0
        %v1057 = vadd.f32 %v1009, 1.0
        %v1058 = vadd.f32 %v1011, 1.0
        %v1059 = vadd.f32 %v1013, 1.0
        %v1060 = vadd.f32 %v1015, 1.0
        %v1061 = vadd.f32 %v1017, 1.0
        %v1062 = vadd.f32 %v1019, 1.0
        %v1063 = vadd.f32 %v1021, 1.0
        %v1064 = vadd.f32 %v1023, 1.0
        %v1065 = vadd.f32 %v1025, 1.0
        %v1066 = vadd.f32 %v1027, 1.0
        %v1067 = vadd.f32 %v1029, 1.0
        %v1068 = vadd.f32 %v1031, 1.0
        %v1069 = vadd.f32 %v1033, 1.0
        %v1070 = vadd.f32 %v1035, 1.0
        %v1071 = vadd.f32 %v1037, 1.0
        %v1072 = vadd.f32 %v1039, 1.0
        %v1073 = vadd.f32 %v1041, 1.0
        %v1074 = vrcp.pop %v1042
        %v1075 = vmul.f32 1.0, %v1074
        %v1076 = vrcp.pop %v1043
        %v1077 = vmul.f32 1.0, %v1076
        %v1078 = vrcp.pop %v1044
        %v1079 = vmul.f32 1.0, %v1078
        %v1080 = vrcp.pop %v1045
        %v1081 = vmul.f32 1.0, %v1080
        %v1082 = vrcp.pop %v1046
        %v1083 = vmul.f32 1.0, %v1082
        %v1084 = vrcp.pop %v1047
        %v1085 = vmul.f32 1.0, %v1084
        %v1086 = vrcp.pop %v1048
        %v1087 = vmul.f32 1.0, %v1086
        %v1088 = vrcp.pop %v1049
        %v1089 = vmul.f32 1.0, %v1088
        %v1090 = vrcp.pop %v1050
        %v1091 = vmul.f32 1.0, %v1090
        %v1092 = vrcp.pop %v1051
        %v1093 = vmul.f32 1.0, %v1092
        %v1094 = vrcp.pop %v1052
        %v1095 = vmul.f32 1.0, %v1094
        %v1096 = vrcp.pop %v1053
        %v1097 = vmul.f32 1.0, %v1096
        %v1098 = vrcp.pop %v1054
        %v1099 = vmul.f32 1.0, %v1098
        %v1100 = vrcp.pop %v1055
        %v1101 = vmul.f32 1.0, %v1100
        %v1102 = vrcp.pop %v1056
        %v1103 = vmul.f32 1.0, %v1102
        %v1104 = vrcp.pop %v1057
        %v1105 = vmul.f32 1.0, %v1104
        %v1106 = vrcp.pop %v1058
        %v1107 = vmul.f32 1.0, %v1106
        %v1108 = vrcp.pop %v1059
        %v1109 = vmul.f32 1.0, %v1108
        %v1110 = vrcp.pop %v1060
        %v1111 = vmul.f32 1.0, %v1110
        %v1112 = vrcp.pop %v1061
        %v1113 = vmul.f32 1.0, %v1112
        %v1114 = vrcp.pop %v1062
        %v1115 = vmul.f32 1.0, %v1114
        %v1116 = vrcp.pop %v1063
        %v1117 = vmul.f32 1.0, %v1116
        %v1118 = vrcp.pop %v1064
        %v1119 = vmul.f32 1.0, %v1118
        %v1120 = vrcp.pop %v1065
        %v1121 = vmul.f32 1.0, %v1120
        %v1122 = vrcp.pop %v1066
        %v1123 = vmul.f32 1.0, %v1122
        %v1124 = vrcp.pop %v1067
        %v1125 = vmul.f32 1.0, %v1124
        %v1126 = vrcp.pop %v1068
        %v1127 = vmul.f32 1.0, %v1126
        %v1128 = vrcp.pop %v1069
        %v1129 = vmul.f32 1.0, %v1128
        %v1130 = vrcp.pop %v1070
        %v1131 = vmul.f32 1.0, %v1130
        %v1132 = vrcp.pop %v1071
        %v1133 = vmul.f32 1.0, %v1132
        %v1134 = vrcp.pop %v1072
        %v1135 = vmul.f32 1.0, %v1134
        %v1136 = vrcp.pop %v1073
        %v1137 = vmul.f32 1.0, %v1136
        %v1138 = vmul.f32 %v820, %v1075
        %v1139 = vmul.f32 %v823, %v1077
        %v1140 = vmul.f32 %v828, %v1079
        %v1141 = vmul.f32 %v831, %v1081
        %v1142 = vmul.f32 %v836, %v1083
        %v1143 = vmul.f32 %v839, %v1085
        %v1144 = vmul.f32 %v844, %v1087
        %v1145 = vmul.f32 %v847, %v1089
        %v1146 = vmul.f32 %v852, %v1091
        %v1147 = vmul.f32 %v855, %v1093
        %v1148 = vmul.f32 %v860, %v1095
        %v1149 = vmul.f32 %v863, %v1097
        %v1150 = vmul.f32 %v868, %v1099
        %v1151 = vmul.f32 %v871, %v1101
        %v1152 = vmul.f32 %v876, %v1103
        %v1153 = vmul.f32 %v879, %v1105
        %v1154 = vmul.f32 %v884, %v1107
        %v1155 = vmul.f32 %v887, %v1109
        %v1156 = vmul.f32 %v892, %v1111
        %v1157 = vmul.f32 %v895, %v1113
        %v1158 = vmul.f32 %v900, %v1115
        %v1159 = vmul.f32 %v903, %v1117
        %v1160 = vmul.f32 %v908, %v1119
        %v1161 = vmul.f32 %v911, %v1121
        %v1162 = vmul.f32 %v916, %v1123
        %v1163 = vmul.f32 %v919, %v1125
        %v1164 = vmul.f32 %v924, %v1127
        %v1165 = vmul.f32 %v927, %v1129
        %v1166 = vmul.f32 %v932, %v1131
        %v1167 = vmul.f32 %v935, %v1133
        %v1168 = vmul.f32 %v940, %v1135
        %v1169 = vmul.f32 %v943, %v1137
        %v1170 = vadd.f32 %v1138, %v1139
        %v1171 = vadd.f32 %v1170, %v1140
        %v1172 = vadd.f32 %v1171, %v1141
        %v1173 = vadd.f32 %v1172, %v1142
        %v1174 = vadd.f32 %v1173, %v1143
        %v1175 = vadd.f32 %v1174, %v1144
        %v1176 = vadd.f32 %v1175, %v1145
        %v1177 = vadd.f32 %v1176, %v1146
        %v1178 = vadd.f32 %v1177, %v1147
        %v1179 = vadd.f32 %v1178, %v1148
        %v1180 = vadd.f32 %v1179, %v1149
        %v1181 = vadd.f32 %v1180, %v1150
        %v1182 = vadd.f32 %v1181, %v1151
        %v1183 = vadd.f32 %v1182, %v1152
        %v1184 = vadd.f32 %v1183, %v1153
        %v1185 = vadd.f32 %v1184, %v1154
        %v1186 = vadd.f32 %v1185, %v1155
        %v1187 = vadd.f32 %v1186, %v1156
        %v1188 = vadd.f32 %v1187, %v1157
        %v1189 = vadd.f32 %v1188, %v1158
        %v1190 = vadd.f32 %v1189, %v1159
        %v1191 = vadd.f32 %v1190, %v1160
        %v1192 = vadd.f32 %v1191, %v1161
        %v1193 = vadd.f32 %v1192, %v1162
        %v1194 = vadd.f32 %v1193, %v1163
        %v1195 = vadd.f32 %v1194, %v1164
        %v1196 = vadd.f32 %v1195, %v1165
        %v1197 = vadd.f32 %v1196, %v1166
        %v1198 = vadd.f32 %v1197, %v1167
        %v1199 = vadd.f32 %v1198, %v1168
        %v1200 = vadd.f32 %v1199, %v1169
        %v1201 = vrot.slane %v1200, 4
        %v1202 = vadd.f32 %v1200, %v1201
        %v1203 = vrot.slane %v1202, 2
        %v1204 = vadd.f32 %v1202, %v1203
        %v1205 = vrot.slane %v1204, 1
        %v1206 = vadd.f32 %v1204, %v1205
        %v1207 = vmul.f32 %v1206, 0.00390625
        %v1208 = vpack.c.bf16 %v1207, %v1207
        %v1209 = vld [vmem:[#allocation3] sm:$0xff]
        %v1210 = vld [vmem:[#allocation18] sm:$0xf]
        %v1211 = vld [vmem:[#allocation18 + $0x4] sm:$0xf]
        %v1212 = vld [vmem:[#allocation18 + $0x8] sm:$0xf]
        %v1213 = vld [vmem:[#allocation18 + $0xc] sm:$0xf]
        %v1214 = vld [vmem:[#allocation18 + $0x10] sm:$0xf]
        %v1215 = vld [vmem:[#allocation18 + $0x14] sm:$0xf]
        %v1216 = vld [vmem:[#allocation18 + $0x18] sm:$0xf]
        %v1217 = vld [vmem:[#allocation18 + $0x1c] sm:$0xf]
        %v1218 = vld [vmem:[#allocation18 + $0x20] sm:$0xf]
        %v1219 = vld [vmem:[#allocation18 + $0x24] sm:$0xf]
        %v1220 = vld [vmem:[#allocation18 + $0x28] sm:$0xf]
        %v1221 = vld [vmem:[#allocation18 + $0x2c] sm:$0xf]
        %v1222 = vld [vmem:[#allocation18 + $0x30] sm:$0xf]
        %v1223 = vld [vmem:[#allocation18 + $0x34] sm:$0xf]
        %v1224 = vld [vmem:[#allocation18 + $0x38] sm:$0xf]
        %v1225 = vld [vmem:[#allocation18 + $0x3c] sm:$0xf]
        %v1242 = vunpack.c.l.b16 %v1210
        %v1243 = vunpack.c.l.b16 %v1211
        %v1244 = vunpack.c.l.b16 %v1212
        %v1245 = vunpack.c.l.b16 %v1213
        %v1246 = vunpack.c.l.b16 %v1214
        %v1247 = vunpack.c.l.b16 %v1215
        %v1248 = vunpack.c.l.b16 %v1216
        %v1249 = vunpack.c.l.b16 %v1217
        %v1250 = vunpack.c.l.b16 %v1218
        %v1251 = vunpack.c.l.b16 %v1219
        %v1252 = vunpack.c.l.b16 %v1220
        %v1253 = vunpack.c.l.b16 %v1221
        %v1254 = vunpack.c.l.b16 %v1222
        %v1255 = vunpack.c.l.b16 %v1223
        %v1256 = vunpack.c.l.b16 %v1224
        %v1257 = vunpack.c.l.b16 %v1225
        %v1258 = vpack.c.b16 %v1243, %v1242
        %v1259 = vpack.c.b16 %v1245, %v1244
        %v1260 = vpack.c.b16 %v1247, %v1246
        %v1261 = vpack.c.b16 %v1249, %v1248
        %v1262 = vpack.c.b16 %v1251, %v1250
        %v1263 = vpack.c.b16 %v1253, %v1252
        %v1264 = vpack.c.b16 %v1255, %v1254
        %v1265 = vpack.c.b16 %v1257, %v1256
        %1274 = vmatprep.subr.bf16.mxu0 0
        %1275 = vmatpush1.bf16.msra.mxu0 %v1258
        %1276 = vmatprep.subr.bf16.mxu0 0
        %1277 = vmatpush1.bf16.msra.mxu0 %v1259
        %1278 = vmatprep.subr.bf16.mxu0 0
        %1279 = vmatpush1.bf16.msra.mxu0 %v1260
        %1280 = vmatprep.subr.bf16.mxu0 0
        %1281 = vmatpush1.bf16.msra.mxu0 %v1261
        %1282 = vmatprep.subr.bf16.mxu0 0
        %1283 = vmatpush1.bf16.msra.mxu0 %v1262
        %1284 = vmatprep.subr.bf16.mxu0 0
        %1285 = vmatpush1.bf16.msra.mxu0 %v1263
        %1286 = vmatprep.subr.bf16.mxu0 0
        %1287 = vmatpush1.bf16.msra.mxu0 %v1264
        %1288 = vmatprep.subr.bf16.mxu0 0
        %1289 = vmatpush1.bf16.msra.mxu0 %v1265
        %1290 = vmatprep.subr.bf16.mxu0 0
        %1291 = vmatpush1.bf16.msra.mxu0 0
        %1292 = vmatprep.subr.bf16.mxu0 0
        %1293 = vmatpush1.bf16.msra.mxu0 0
        %1294 = vmatprep.subr.bf16.mxu0 0
        %1295 = vmatpush1.bf16.msra.mxu0 0
        %1296 = vmatprep.subr.bf16.mxu0 0
        %1297 = vmatpush1.bf16.msra.mxu0 0
        %1298 = vmatprep.subr.bf16.mxu0 0
        %1299 = vmatpush1.bf16.msra.mxu0 0
        %1300 = vmatprep.subr.bf16.mxu0 0
        %1301 = vmatpush1.bf16.msra.mxu0 0
        %1302 = vmatprep.subr.bf16.mxu0 0
        %1303 = vmatpush1.bf16.msra.mxu0 0
        %1304 = vmatprep.subr.bf16.mxu0 0
        %1305 = vmatpush1.bf16.msra.mxu0 0
        %1306 = vmatprep.mubr.bf16.mxu0 0
        %1307 = vmatmul.mubr.bf16.gmra.mrb[0].mxu0 %v1208
        %v1308 = vpop.f32.mrb[0].mxu0
        %v1309 = vadd.f32 0.0, %v1308
        %v1310 = vpop.f32.mrb[0].mxu0
        %v1311 = vpop.f32.mrb[0].mxu0
        %v1312 = vpop.f32.mrb[0].mxu0
        %1313 = vdwg.mxu0
        %v1314 = vadd.f32 %v1209, %v1309
        %1315 = vst [vmem:[#allocation3] sm:$0xff] %v1314
        %v1316 = vld [vmem:[#allocation4] sm:$0xff]
        %v1317 = vld [vmem:[#allocation4 + $0x8] sm:$0xff]
        %v1318 = vld [vmem:[#allocation4 + $0x10] sm:$0xff]
        %v1319 = vld [vmem:[#allocation4 + $0x18] sm:$0xff]
        %v1320 = vld [vmem:[#allocation4 + $0x20] sm:$0xff]
        %v1321 = vld [vmem:[#allocation4 + $0x28] sm:$0xff]
        %v1322 = vld [vmem:[#allocation4 + $0x30] sm:$0xff]
        %v1323 = vld [vmem:[#allocation4 + $0x38] sm:$0xff]
        %v1324 = vld [vmem:[#allocation4 + $0x40] sm:$0xff]
        %v1325 = vld [vmem:[#allocation4 + $0x48] sm:$0xff]
        %v1326 = vld [vmem:[#allocation4 + $0x50] sm:$0xff]
        %v1327 = vld [vmem:[#allocation4 + $0x58] sm:$0xff]
        %v1328 = vld [vmem:[#allocation4 + $0x60] sm:$0xff]
        %v1329 = vld [vmem:[#allocation4 + $0x68] sm:$0xff]
        %v1330 = vld [vmem:[#allocation4 + $0x70] sm:$0xff]
        %v1331 = vld [vmem:[#allocation4 + $0x78] sm:$0xff]
        %v1332 = vld [vmem:[#allocation4 + $0x80] sm:$0xff]
        %v1333 = vld [vmem:[#allocation4 + $0x88] sm:$0xff]
        %v1334 = vld [vmem:[#allocation4 + $0x90] sm:$0xff]
        %v1335 = vld [vmem:[#allocation4 + $0x98] sm:$0xff]
        %v1336 = vld [vmem:[#allocation4 + $0xa0] sm:$0xff]
        %v1337 = vld [vmem:[#allocation4 + $0xa8] sm:$0xff]
        %v1338 = vld [vmem:[#allocation4 + $0xb0] sm:$0xff]
        %v1339 = vld [vmem:[#allocation4 + $0xb8] sm:$0xff]
        %v1340 = vld [vmem:[#allocation4 + $0xc0] sm:$0xff]
        %v1341 = vld [vmem:[#allocation4 + $0xc8] sm:$0xff]
        %v1342 = vld [vmem:[#allocation4 + $0xd0] sm:$0xff]
        %v1343 = vld [vmem:[#allocation4 + $0xd8] sm:$0xff]
        %v1344 = vld [vmem:[#allocation4 + $0xe0] sm:$0xff]
        %v1345 = vld [vmem:[#allocation4 + $0xe8] sm:$0xff]
        %v1346 = vld [vmem:[#allocation4 + $0xf0] sm:$0xff]
        %v1347 = vld [vmem:[#allocation4 + $0xf8] sm:$0xff]
        %v1348 = vrot.slane %v1316, 7
        %v1349 = vrot.slane %v1317, 7
        %v1350 = vrot.slane %v1318, 7
        %v1351 = vrot.slane %v1319, 7
        %v1352 = vrot.slane %v1320, 7
        %v1353 = vrot.slane %v1321, 7
        %v1354 = vrot.slane %v1322, 7
        %v1355 = vrot.slane %v1323, 7
        %v1356 = vrot.slane %v1324, 7
        %v1357 = vrot.slane %v1325, 7
        %v1358 = vrot.slane %v1326, 7
        %v1359 = vrot.slane %v1327, 7
        %v1360 = vrot.slane %v1328, 7
        %v1361 = vrot.slane %v1329, 7
        %v1362 = vrot.slane %v1330, 7
        %v1363 = vrot.slane %v1331, 7
        %v1364 = vrot.slane %v1332, 7
        %v1365 = vrot.slane %v1333, 7
        %v1366 = vrot.slane %v1334, 7
        %v1367 = vrot.slane %v1335, 7
        %v1368 = vrot.slane %v1336, 7
        %v1369 = vrot.slane %v1337, 7
        %v1370 = vrot.slane %v1338, 7
        %v1371 = vrot.slane %v1339, 7
        %v1372 = vrot.slane %v1340, 7
        %v1373 = vrot.slane %v1341, 7
        %v1374 = vrot.slane %v1342, 7
        %v1375 = vrot.slane %v1343, 7
        %v1376 = vrot.slane %v1344, 7
        %v1377 = vrot.slane %v1345, 7
        %v1378 = vrot.slane %v1346, 7
        %v1379 = vrot.slane %v1347, 7
        %v1380 = vlaneseq
        %v1381 = vshrl.u32 %v1380, 7
        %vm1382 = vcmp.lt.s32.totalorder %v1381, 1
        %v1383 = vsel %vm1382, %v1378, %v1379
        %v1384 = vsel %vm1382, %v1377, %v1378
        %v1385 = vsel %vm1382, %v1376, %v1377
        %v1386 = vsel %vm1382, %v1375, %v1376
        %v1387 = vsel %vm1382, %v1374, %v1375
        %v1388 = vsel %vm1382, %v1373, %v1374
        %v1389 = vsel %vm1382, %v1372, %v1373
        %v1390 = vsel %vm1382, %v1371, %v1372
        %v1391 = vsel %vm1382, %v1370, %v1371
        %v1392 = vsel %vm1382, %v1369, %v1370
        %v1393 = vsel %vm1382, %v1368, %v1369
        %v1394 = vsel %vm1382, %v1367, %v1368
        %v1395 = vsel %vm1382, %v1366, %v1367
        %v1396 = vsel %vm1382, %v1365, %v1366
        %v1397 = vsel %vm1382, %v1364, %v1365
        %v1398 = vsel %vm1382, %v1363, %v1364
        %v1399 = vsel %vm1382, %v1362, %v1363
        %v1400 = vsel %vm1382, %v1361, %v1362
        %v1401 = vsel %vm1382, %v1360, %v1361
        %v1402 = vsel %vm1382, %v1359, %v1360
        %v1403 = vsel %vm1382, %v1358, %v1359
        %v1404 = vsel %vm1382, %v1357, %v1358
        %v1405 = vsel %vm1382, %v1356, %v1357
        %v1406 = vsel %vm1382, %v1355, %v1356
        %v1407 = vsel %vm1382, %v1354, %v1355
        %v1408 = vsel %vm1382, %v1353, %v1354
        %v1409 = vsel %vm1382, %v1352, %v1353
        %v1410 = vsel %vm1382, %v1351, %v1352
        %v1411 = vsel %vm1382, %v1350, %v1351
        %v1412 = vsel %vm1382, %v1349, %v1350
        %v1413 = vsel %vm1382, %v1348, %v1349
        %v1414 = vsel %vm1382, %v1379, %v1348
        %vm1415 = vcmp.eq.f32.partialorder %v1414, %v1316
        %vm1416 = vcmp.eq.f32.partialorder %v1413, %v1317
        %vm1417 = vcmp.eq.f32.partialorder %v1412, %v1318
        %vm1418 = vcmp.eq.f32.partialorder %v1411, %v1319
        %vm1419 = vcmp.eq.f32.partialorder %v1410, %v1320
        %vm1420 = vcmp.eq.f32.partialorder %v1409, %v1321
        %vm1421 = vcmp.eq.f32.partialorder %v1408, %v1322
        %vm1422 = vcmp.eq.f32.partialorder %v1407, %v1323
        %vm1423 = vcmp.eq.f32.partialorder %v1406, %v1324
        %vm1424 = vcmp.eq.f32.partialorder %v1405, %v1325
        %vm1425 = vcmp.eq.f32.partialorder %v1404, %v1326
        %vm1426 = vcmp.eq.f32.partialorder %v1403, %v1327
        %vm1427 = vcmp.eq.f32.partialorder %v1402, %v1328
        %vm1428 = vcmp.eq.f32.partialorder %v1401, %v1329
        %vm1429 = vcmp.eq.f32.partialorder %v1400, %v1330
        %vm1430 = vcmp.eq.f32.partialorder %v1399, %v1331
        %vm1431 = vcmp.eq.f32.partialorder %v1398, %v1332
        %vm1432 = vcmp.eq.f32.partialorder %v1397, %v1333
        %vm1433 = vcmp.eq.f32.partialorder %v1396, %v1334
        %vm1434 = vcmp.eq.f32.partialorder %v1395, %v1335
        %vm1435 = vcmp.eq.f32.partialorder %v1394, %v1336
        %vm1436 = vcmp.eq.f32.partialorder %v1393, %v1337
        %vm1437 = vcmp.eq.f32.partialorder %v1392, %v1338
        %vm1438 = vcmp.eq.f32.partialorder %v1391, %v1339
        %vm1439 = vcmp.eq.f32.partialorder %v1390, %v1340
        %vm1440 = vcmp.eq.f32.partialorder %v1389, %v1341
        %vm1441 = vcmp.eq.f32.partialorder %v1388, %v1342
        %vm1442 = vcmp.eq.f32.partialorder %v1387, %v1343
        %vm1443 = vcmp.eq.f32.partialorder %v1386, %v1344
        %vm1444 = vcmp.eq.f32.partialorder %v1385, %v1345
        %vm1445 = vcmp.eq.f32.partialorder %v1384, %v1346
        %vm1446 = vcmp.eq.f32.partialorder %v1383, %v1347
        %v1447 = vsel %vm1415, 0.0, -3.4028235e+38
        %v1448 = vsel %vm1416, 0.0, -3.4028235e+38
        %v1449 = vsel %vm1417, 0.0, -3.4028235e+38
        %v1450 = vsel %vm1418, 0.0, -3.4028235e+38
        %v1451 = vsel %vm1419, 0.0, -3.4028235e+38
        %v1452 = vsel %vm1420, 0.0, -3.4028235e+38
        %v1453 = vsel %vm1421, 0.0, -3.4028235e+38
        %v1454 = vsel %vm1422, 0.0, -3.4028235e+38
        %v1455 = vsel %vm1423, 0.0, -3.4028235e+38
        %v1456 = vsel %vm1424, 0.0, -3.4028235e+38
        %v1457 = vsel %vm1425, 0.0, -3.4028235e+38
        %v1458 = vsel %vm1426, 0.0, -3.4028235e+38
        %v1459 = vsel %vm1427, 0.0, -3.4028235e+38
        %v1460 = vsel %vm1428, 0.0, -3.4028235e+38
        %v1461 = vsel %vm1429, 0.0, -3.4028235e+38
        %v1462 = vsel %vm1430, 0.0, -3.4028235e+38
        %v1463 = vsel %vm1431, 0.0, -3.4028235e+38
        %v1464 = vsel %vm1432, 0.0, -3.4028235e+38
        %v1465 = vsel %vm1433, 0.0, -3.4028235e+38
        %v1466 = vsel %vm1434, 0.0, -3.4028235e+38
        %v1467 = vsel %vm1435, 0.0, -3.4028235e+38
        %v1468 = vsel %vm1436, 0.0, -3.4028235e+38
        %v1469 = vsel %vm1437, 0.0, -3.4028235e+38
        %v1470 = vsel %vm1438, 0.0, -3.4028235e+38
        %v1471 = vsel %vm1439, 0.0, -3.4028235e+38
        %v1472 = vsel %vm1440, 0.0, -3.4028235e+38
        %v1473 = vsel %vm1441, 0.0, -3.4028235e+38
        %v1474 = vsel %vm1442, 0.0, -3.4028235e+38
        %v1475 = vsel %vm1443, 0.0, -3.4028235e+38
        %v1476 = vsel %vm1444, 0.0, -3.4028235e+38
        %v1477 = vsel %vm1445, 0.0, -3.4028235e+38
        %v1478 = vsel %vm1446, 0.0, -3.4028235e+38
        %v1479 = vrot.slane %v1316, 1
        %v1480 = vrot.slane %v1317, 1
        %v1481 = vrot.slane %v1318, 1
        %v1482 = vrot.slane %v1319, 1
        %v1483 = vrot.slane %v1320, 1
        %v1484 = vrot.slane %v1321, 1
        %v1485 = vrot.slane %v1322, 1
        %v1486 = vrot.slane %v1323, 1
        %v1487 = vrot.slane %v1324, 1
        %v1488 = vrot.slane %v1325, 1
        %v1489 = vrot.slane %v1326, 1
        %v1490 = vrot.slane %v1327, 1
        %v1491 = vrot.slane %v1328, 1
        %v1492 = vrot.slane %v1329, 1
        %v1493 = vrot.slane %v1330, 1
        %v1494 = vrot.slane %v1331, 1
        %v1495 = vrot.slane %v1332, 1
        %v1496 = vrot.slane %v1333, 1
        %v1497 = vrot.slane %v1334, 1
        %v1498 = vrot.slane %v1335, 1
        %v1499 = vrot.slane %v1336, 1
        %v1500 = vrot.slane %v1337, 1
        %v1501 = vrot.slane %v1338, 1
        %v1502 = vrot.slane %v1339, 1
        %v1503 = vrot.slane %v1340, 1
        %v1504 = vrot.slane %v1341, 1
        %v1505 = vrot.slane %v1342, 1
        %v1506 = vrot.slane %v1343, 1
        %v1507 = vrot.slane %v1344, 1
        %v1508 = vrot.slane %v1345, 1
        %v1509 = vrot.slane %v1346, 1
        %v1510 = vrot.slane %v1347, 1
        %vm1511 = vcmp.lt.s32.totalorder %v1381, 7
        %v1512 = vsel %vm1511, %v1509, %v1510
        %v1513 = vsel %vm1511, %v1508, %v1509
        %v1514 = vsel %vm1511, %v1507, %v1508
        %v1515 = vsel %vm1511, %v1506, %v1507
        %v1516 = vsel %vm1511, %v1505, %v1506
        %v1517 = vsel %vm1511, %v1504, %v1505
        %v1518 = vsel %vm1511, %v1503, %v1504
        %v1519 = vsel %vm1511, %v1502, %v1503
        %v1520 = vsel %vm1511, %v1501, %v1502
        %v1521 = vsel %vm1511, %v1500, %v1501
        %v1522 = vsel %vm1511, %v1499, %v1500
        %v1523 = vsel %vm1511, %v1498, %v1499
        %v1524 = vsel %vm1511, %v1497, %v1498
        %v1525 = vsel %vm1511, %v1496, %v1497
        %v1526 = vsel %vm1511, %v1495, %v1496
        %v1527 = vsel %vm1511, %v1494, %v1495
        %v1528 = vsel %vm1511, %v1493, %v1494
        %v1529 = vsel %vm1511, %v1492, %v1493
        %v1530 = vsel %vm1511, %v1491, %v1492
        %v1531 = vsel %vm1511, %v1490, %v1491
        %v1532 = vsel %vm1511, %v1489, %v1490
        %v1533 = vsel %vm1511, %v1488, %v1489
        %v1534 = vsel %vm1511, %v1487, %v1488
        %v1535 = vsel %vm1511, %v1486, %v1487
        %v1536 = vsel %vm1511, %v1485, %v1486
        %v1537 = vsel %vm1511, %v1484, %v1485
        %v1538 = vsel %vm1511, %v1483, %v1484
        %v1539 = vsel %vm1511, %v1482, %v1483
        %v1540 = vsel %vm1511, %v1481, %v1482
        %v1541 = vsel %vm1511, %v1480, %v1481
        %v1542 = vsel %vm1511, %v1479, %v1480
        %v1543 = vsel %vm1511, %v1510, %v1479
        %vm1544 = vcmp.eq.f32.partialorder %v1542, %v1316
        %vm1545 = vcmp.eq.f32.partialorder %v1541, %v1317
        %vm1546 = vcmp.eq.f32.partialorder %v1540, %v1318
        %vm1547 = vcmp.eq.f32.partialorder %v1539, %v1319
        %vm1548 = vcmp.eq.f32.partialorder %v1538, %v1320
        %vm1549 = vcmp.eq.f32.partialorder %v1537, %v1321
        %vm1550 = vcmp.eq.f32.partialorder %v1536, %v1322
        %vm1551 = vcmp.eq.f32.partialorder %v1535, %v1323
        %vm1552 = vcmp.eq.f32.partialorder %v1534, %v1324
        %vm1553 = vcmp.eq.f32.partialorder %v1533, %v1325
        %vm1554 = vcmp.eq.f32.partialorder %v1532, %v1326
        %vm1555 = vcmp.eq.f32.partialorder %v1531, %v1327
        %vm1556 = vcmp.eq.f32.partialorder %v1530, %v1328
        %vm1557 = vcmp.eq.f32.partialorder %v1529, %v1329
        %vm1558 = vcmp.eq.f32.partialorder %v1528, %v1330
        %vm1559 = vcmp.eq.f32.partialorder %v1527, %v1331
        %vm1560 = vcmp.eq.f32.partialorder %v1526, %v1332
        %vm1561 = vcmp.eq.f32.partialorder %v1525, %v1333
        %vm1562 = vcmp.eq.f32.partialorder %v1524, %v1334
        %vm1563 = vcmp.eq.f32.partialorder %v1523, %v1335
        %vm1564 = vcmp.eq.f32.partialorder %v1522, %v1336
        %vm1565 = vcmp.eq.f32.partialorder %v1521, %v1337
        %vm1566 = vcmp.eq.f32.partialorder %v1520, %v1338
        %vm1567 = vcmp.eq.f32.partialorder %v1519, %v1339
        %vm1568 = vcmp.eq.f32.partialorder %v1518, %v1340
        %vm1569 = vcmp.eq.f32.partialorder %v1517, %v1341
        %vm1570 = vcmp.eq.f32.partialorder %v1516, %v1342
        %vm1571 = vcmp.eq.f32.partialorder %v1515, %v1343
        %vm1572 = vcmp.eq.f32.partialorder %v1514, %v1344
        %vm1573 = vcmp.eq.f32.partialorder %v1513, %v1345
        %vm1574 = vcmp.eq.f32.partialorder %v1512, %v1346
        %vm1575 = vcmp.eq.f32.partialorder %v1543, %v1347
        %v1576 = vsel %vm1544, 0.0, -3.4028235e+38
        %v1577 = vsel %vm1545, 0.0, -3.4028235e+38
        %v1578 = vsel %vm1546, 0.0, -3.4028235e+38
        %v1579 = vsel %vm1547, 0.0, -3.4028235e+38
        %v1580 = vsel %vm1548, 0.0, -3.4028235e+38
        %v1581 = vsel %vm1549, 0.0, -3.4028235e+38
        %v1582 = vsel %vm1550, 0.0, -3.4028235e+38
        %v1583 = vsel %vm1551, 0.0, -3.4028235e+38
        %v1584 = vsel %vm1552, 0.0, -3.4028235e+38
        %v1585 = vsel %vm1553, 0.0, -3.4028235e+38
        %v1586 = vsel %vm1554, 0.0, -3.4028235e+38
        %v1587 = vsel %vm1555, 0.0, -3.4028235e+38
        %v1588 = vsel %vm1556, 0.0, -3.4028235e+38
        %v1589 = vsel %vm1557, 0.0, -3.4028235e+38
        %v1590 = vsel %vm1558, 0.0, -3.4028235e+38
        %v1591 = vsel %vm1559, 0.0, -3.4028235e+38
        %v1592 = vsel %vm1560, 0.0, -3.4028235e+38
        %v1593 = vsel %vm1561, 0.0, -3.4028235e+38
        %v1594 = vsel %vm1562, 0.0, -3.4028235e+38
        %v1595 = vsel %vm1563, 0.0, -3.4028235e+38
        %v1596 = vsel %vm1564, 0.0, -3.4028235e+38
        %v1597 = vsel %vm1565, 0.0, -3.4028235e+38
        %v1598 = vsel %vm1566, 0.0, -3.4028235e+38
        %v1599 = vsel %vm1567, 0.0, -3.4028235e+38
        %v1600 = vsel %vm1568, 0.0, -3.4028235e+38
        %v1601 = vsel %vm1569, 0.0, -3.4028235e+38
        %v1602 = vsel %vm1570, 0.0, -3.4028235e+38
        %v1603 = vsel %vm1571, 0.0, -3.4028235e+38
        %v1604 = vsel %vm1572, 0.0, -3.4028235e+38
        %v1605 = vsel %vm1573, 0.0, -3.4028235e+38
        %v1606 = vsel %vm1574, 0.0, -3.4028235e+38
        %v1607 = vsel %vm1575, 0.0, -3.4028235e+38
        %v1608 = vsub.f32 %v1346, %v1316
        %v1609 = vsub.f32 %v1347, %v1317
        %v1610 = vsub.f32 %v1316, %v1318
        %v1611 = vsub.f32 %v1317, %v1319
        %v1612 = vsub.f32 %v1318, %v1320
        %v1613 = vsub.f32 %v1319, %v1321
        %v1614 = vsub.f32 %v1320, %v1322
        %v1615 = vsub.f32 %v1321, %v1323
        %v1616 = vsub.f32 %v1322, %v1324
        %v1617 = vsub.f32 %v1323, %v1325
        %v1618 = vsub.f32 %v1324, %v1326
        %v1619 = vsub.f32 %v1325, %v1327
        %v1620 = vsub.f32 %v1326, %v1328
        %v1621 = vsub.f32 %v1327, %v1329
        %v1622 = vsub.f32 %v1328, %v1330
        %v1623 = vsub.f32 %v1329, %v1331
        %v1624 = vsub.f32 %v1330, %v1332
        %v1625 = vsub.f32 %v1331, %v1333
        %v1626 = vsub.f32 %v1332, %v1334
        %v1627 = vsub.f32 %v1333, %v1335
        %v1628 = vsub.f32 %v1334, %v1336
        %v1629 = vsub.f32 %v1335, %v1337
        %v1630 = vsub.f32 %v1336, %v1338
        %v1631 = vsub.f32 %v1337, %v1339
        %v1632 = vsub.f32 %v1338, %v1340
        %v1633 = vsub.f32 %v1339, %v1341
        %v1634 = vsub.f32 %v1340, %v1342
        %v1635 = vsub.f32 %v1341, %v1343
        %v1636 = vsub.f32 %v1342, %v1344
        %v1637 = vsub.f32 %v1343, %v1345
        %v1638 = vsub.f32 %v1344, %v1346
        %v1639 = vsub.f32 %v1345, %v1347
        %v1640 = vand.u32 2147483647, %v1608
        %v1641 = vand.u32 2147483647, %v1609
        %v1642 = vand.u32 2147483647, %v1610
        %v1643 = vand.u32 2147483647, %v1611
        %v1644 = vand.u32 2147483647, %v1612
        %v1645 = vand.u32 2147483647, %v1613
        %v1646 = vand.u32 2147483647, %v1614
        %v1647 = vand.u32 2147483647, %v1615
        %v1648 = vand.u32 2147483647, %v1616
        %v1649 = vand.u32 2147483647, %v1617
        %v1650 = vand.u32 2147483647, %v1618
        %v1651 = vand.u32 2147483647, %v1619
        %v1652 = vand.u32 2147483647, %v1620
        %v1653 = vand.u32 2147483647, %v1621
        %v1654 = vand.u32 2147483647, %v1622
        %v1655 = vand.u32 2147483647, %v1623
        %v1656 = vand.u32 2147483647, %v1624
        %v1657 = vand.u32 2147483647, %v1625
        %v1658 = vand.u32 2147483647, %v1626
        %v1659 = vand.u32 2147483647, %v1627
        %v1660 = vand.u32 2147483647, %v1628
        %v1661 = vand.u32 2147483647, %v1629
        %v1662 = vand.u32 2147483647, %v1630
        %v1663 = vand.u32 2147483647, %v1631
        %v1664 = vand.u32 2147483647, %v1632
        %v1665 = vand.u32 2147483647, %v1633
        %v1666 = vand.u32 2147483647, %v1634
        %v1667 = vand.u32 2147483647, %v1635
        %v1668 = vand.u32 2147483647, %v1636
        %v1669 = vand.u32 2147483647, %v1637
        %v1670 = vand.u32 2147483647, %v1638
        %v1671 = vand.u32 2147483647, %v1639
        %vm1672 = vcmp.eq.f32.partialorder %v1640, 1.0
        %vm1673 = vcmp.eq.f32.partialorder %v1641, 1.0
        %vm1674 = vcmp.eq.f32.partialorder %v1642, 1.0
        %vm1675 = vcmp.eq.f32.partialorder %v1643, 1.0
        %vm1676 = vcmp.eq.f32.partialorder %v1644, 1.0
        %vm1677 = vcmp.eq.f32.partialorder %v1645, 1.0
        %vm1678 = vcmp.eq.f32.partialorder %v1646, 1.0
        %vm1679 = vcmp.eq.f32.partialorder %v1647, 1.0
        %vm1680 = vcmp.eq.f32.partialorder %v1648, 1.0
        %vm1681 = vcmp.eq.f32.partialorder %v1649, 1.0
        %vm1682 = vcmp.eq.f32.partialorder %v1650, 1.0
        %vm1683 = vcmp.eq.f32.partialorder %v1651, 1.0
        %vm1684 = vcmp.eq.f32.partialorder %v1652, 1.0
        %vm1685 = vcmp.eq.f32.partialorder %v1653, 1.0
        %vm1686 = vcmp.eq.f32.partialorder %v1654, 1.0
        %vm1687 = vcmp.eq.f32.partialorder %v1655, 1.0
        %vm1688 = vcmp.eq.f32.partialorder %v1656, 1.0
        %vm1689 = vcmp.eq.f32.partialorder %v1657, 1.0
        %vm1690 = vcmp.eq.f32.partialorder %v1658, 1.0
        %vm1691 = vcmp.eq.f32.partialorder %v1659, 1.0
        %vm1692 = vcmp.eq.f32.partialorder %v1660, 1.0
        %vm1693 = vcmp.eq.f32.partialorder %v1661, 1.0
        %vm1694 = vcmp.eq.f32.partialorder %v1662, 1.0
        %vm1695 = vcmp.eq.f32.partialorder %v1663, 1.0
        %vm1696 = vcmp.eq.f32.partialorder %v1664, 1.0
        %vm1697 = vcmp.eq.f32.partialorder %v1665, 1.0
        %vm1698 = vcmp.eq.f32.partialorder %v1666, 1.0
        %vm1699 = vcmp.eq.f32.partialorder %v1667, 1.0
        %vm1700 = vcmp.eq.f32.partialorder %v1668, 1.0
        %vm1701 = vcmp.eq.f32.partialorder %v1669, 1.0
        %vm1702 = vcmp.eq.f32.partialorder %v1670, 1.0
        %vm1703 = vcmp.eq.f32.partialorder %v1671, 1.0
        %v1704 = vsel %vm1672, 0.0, -3.4028235e+38
        %v1705 = vsel %vm1673, 0.0, -3.4028235e+38
        %v1706 = vsel %vm1674, 0.0, -3.4028235e+38
        %v1707 = vsel %vm1675, 0.0, -3.4028235e+38
        %v1708 = vsel %vm1676, 0.0, -3.4028235e+38
        %v1709 = vsel %vm1677, 0.0, -3.4028235e+38
        %v1710 = vsel %vm1678, 0.0, -3.4028235e+38
        %v1711 = vsel %vm1679, 0.0, -3.4028235e+38
        %v1712 = vsel %vm1680, 0.0, -3.4028235e+38
        %v1713 = vsel %vm1681, 0.0, -3.4028235e+38
        %v1714 = vsel %vm1682, 0.0, -3.4028235e+38
        %v1715 = vsel %vm1683, 0.0, -3.4028235e+38
        %v1716 = vsel %vm1684, 0.0, -3.4028235e+38
        %v1717 = vsel %vm1685, 0.0, -3.4028235e+38
        %v1718 = vsel %vm1686, 0.0, -3.4028235e+38
        %v1719 = vsel %vm1687, 0.0, -3.4028235e+38
        %v1720 = vsel %vm1688, 0.0, -3.4028235e+38
        %v1721 = vsel %vm1689, 0.0, -3.4028235e+38
        %v1722 = vsel %vm1690, 0.0, -3.4028235e+38
        %v1723 = vsel %vm1691, 0.0, -3.4028235e+38
        %v1724 = vsel %vm1692, 0.0, -3.4028235e+38
        %v1725 = vsel %vm1693, 0.0, -3.4028235e+38
        %v1726 = vsel %vm1694, 0.0, -3.4028235e+38
        %v1727 = vsel %vm1695, 0.0, -3.4028235e+38
        %v1728 = vsel %vm1696, 0.0, -3.4028235e+38
        %v1729 = vsel %vm1697, 0.0, -3.4028235e+38
        %v1730 = vsel %vm1698, 0.0, -3.4028235e+38
        %v1731 = vsel %vm1699, 0.0, -3.4028235e+38
        %v1732 = vsel %vm1700, 0.0, -3.4028235e+38
        %v1733 = vsel %vm1701, 0.0, -3.4028235e+38
        %v1734 = vsel %vm1702, 0.0, -3.4028235e+38
        %v1735 = vsel %vm1703, 0.0, -3.4028235e+38
        %v1736 = vsub.f32 %v1318, %v1316
        %v1737 = vsub.f32 %v1319, %v1317
        %v1738 = vsub.f32 %v1320, %v1318
        %v1739 = vsub.f32 %v1321, %v1319
        %v1740 = vsub.f32 %v1322, %v1320
        %v1741 = vsub.f32 %v1323, %v1321
        %v1742 = vsub.f32 %v1324, %v1322
        %v1743 = vsub.f32 %v1325, %v1323
        %v1744 = vsub.f32 %v1326, %v1324
        %v1745 = vsub.f32 %v1327, %v1325
        %v1746 = vsub.f32 %v1328, %v1326
        %v1747 = vsub.f32 %v1329, %v1327
        %v1748 = vsub.f32 %v1330, %v1328
        %v1749 = vsub.f32 %v1331, %v1329
        %v1750 = vsub.f32 %v1332, %v1330
        %v1751 = vsub.f32 %v1333, %v1331
        %v1752 = vsub.f32 %v1334, %v1332
        %v1753 = vsub.f32 %v1335, %v1333
        %v1754 = vsub.f32 %v1336, %v1334
        %v1755 = vsub.f32 %v1337, %v1335
        %v1756 = vsub.f32 %v1338, %v1336
        %v1757 = vsub.f32 %v1339, %v1337
        %v1758 = vsub.f32 %v1340, %v1338
        %v1759 = vsub.f32 %v1341, %v1339
        %v1760 = vsub.f32 %v1342, %v1340
        %v1761 = vsub.f32 %v1343, %v1341
        %v1762 = vsub.f32 %v1344, %v1342
        %v1763 = vsub.f32 %v1345, %v1343
        %v1764 = vsub.f32 %v1346, %v1344
        %v1765 = vsub.f32 %v1347, %v1345
        %v1766 = vsub.f32 %v1316, %v1346
        %v1767 = vsub.f32 %v1317, %v1347
        %v1768 = vand.u32 2147483647, %v1736
        %v1769 = vand.u32 2147483647, %v1737
        %v1770 = vand.u32 2147483647, %v1738
        %v1771 = vand.u32 2147483647, %v1739
        %v1772 = vand.u32 2147483647, %v1740
        %v1773 = vand.u32 2147483647, %v1741
        %v1774 = vand.u32 2147483647, %v1742
        %v1775 = vand.u32 2147483647, %v1743
        %v1776 = vand.u32 2147483647, %v1744
        %v1777 = vand.u32 2147483647, %v1745
        %v1778 = vand.u32 2147483647, %v1746
        %v1779 = vand.u32 2147483647, %v1747
        %v1780 = vand.u32 2147483647, %v1748
        %v1781 = vand.u32 2147483647, %v1749
        %v1782 = vand.u32 2147483647, %v1750
        %v1783 = vand.u32 2147483647, %v1751
        %v1784 = vand.u32 2147483647, %v1752
        %v1785 = vand.u32 2147483647, %v1753
        %v1786 = vand.u32 2147483647, %v1754
        %v1787 = vand.u32 2147483647, %v1755
        %v1788 = vand.u32 2147483647, %v1756
        %v1789 = vand.u32 2147483647, %v1757
        %v1790 = vand.u32 2147483647, %v1758
        %v1791 = vand.u32 2147483647, %v1759
        %v1792 = vand.u32 2147483647, %v1760
        %v1793 = vand.u32 2147483647, %v1761
        %v1794 = vand.u32 2147483647, %v1762
        %v1795 = vand.u32 2147483647, %v1763
        %v1796 = vand.u32 2147483647, %v1764
        %v1797 = vand.u32 2147483647, %v1765
        %v1798 = vand.u32 2147483647, %v1766
        %v1799 = vand.u32 2147483647, %v1767
        %vm1800 = vcmp.eq.f32.partialorder %v1768, 1.0
        %vm1801 = vcmp.eq.f32.partialorder %v1769, 1.0
        %vm1802 = vcmp.eq.f32.partialorder %v1770, 1.0
        %vm1803 = vcmp.eq.f32.partialorder %v1771, 1.0
        %vm1804 = vcmp.eq.f32.partialorder %v1772, 1.0
        %vm1805 = vcmp.eq.f32.partialorder %v1773, 1.0
        %vm1806 = vcmp.eq.f32.partialorder %v1774, 1.0
        %vm1807 = vcmp.eq.f32.partialorder %v1775, 1.0
        %vm1808 = vcmp.eq.f32.partialorder %v1776, 1.0
        %vm1809 = vcmp.eq.f32.partialorder %v1777, 1.0
        %vm1810 = vcmp.eq.f32.partialorder %v1778, 1.0
        %vm1811 = vcmp.eq.f32.partialorder %v1779, 1.0
        %vm1812 = vcmp.eq.f32.partialorder %v1780, 1.0
        %vm1813 = vcmp.eq.f32.partialorder %v1781, 1.0
        %vm1814 = vcmp.eq.f32.partialorder %v1782, 1.0
        %vm1815 = vcmp.eq.f32.partialorder %v1783, 1.0
        %vm1816 = vcmp.eq.f32.partialorder %v1784, 1.0
        %vm1817 = vcmp.eq.f32.partialorder %v1785, 1.0
        %vm1818 = vcmp.eq.f32.partialorder %v1786, 1.0
        %vm1819 = vcmp.eq.f32.partialorder %v1787, 1.0
        %vm1820 = vcmp.eq.f32.partialorder %v1788, 1.0
        %vm1821 = vcmp.eq.f32.partialorder %v1789, 1.0
        %vm1822 = vcmp.eq.f32.partialorder %v1790, 1.0
        %vm1823 = vcmp.eq.f32.partialorder %v1791, 1.0
        %vm1824 = vcmp.eq.f32.partialorder %v1792, 1.0
        %vm1825 = vcmp.eq.f32.partialorder %v1793, 1.0
        %vm1826 = vcmp.eq.f32.partialorder %v1794, 1.0
        %vm1827 = vcmp.eq.f32.partialorder %v1795, 1.0
        %vm1828 = vcmp.eq.f32.partialorder %v1796, 1.0
        %vm1829 = vcmp.eq.f32.partialorder %v1797, 1.0
        %vm1830 = vcmp.eq.f32.partialorder %v1798, 1.0
        %vm1831 = vcmp.eq.f32.partialorder %v1799, 1.0
        %v1832 = vsel %vm1800, 0.0, -3.4028235e+38
        %v1833 = vsel %vm1801, 0.0, -3.4028235e+38
        %v1834 = vsel %vm1802, 0.0, -3.4028235e+38
        %v1835 = vsel %vm1803, 0.0, -3.4028235e+38
        %v1836 = vsel %vm1804, 0.0, -3.4028235e+38
        %v1837 = vsel %vm1805, 0.0, -3.4028235e+38
        %v1838 = vsel %vm1806, 0.0, -3.4028235e+38
        %v1839 = vsel %vm1807, 0.0, -3.4028235e+38
        %v1840 = vsel %vm1808, 0.0, -3.4028235e+38
        %v1841 = vsel %vm1809, 0.0, -3.4028235e+38
        %v1842 = vsel %vm1810, 0.0, -3.4028235e+38
        %v1843 = vsel %vm1811, 0.0, -3.4028235e+38
        %v1844 = vsel %vm1812, 0.0, -3.4028235e+38
        %v1845 = vsel %vm1813, 0.0, -3.4028235e+38
        %v1846 = vsel %vm1814, 0.0, -3.4028235e+38
        %v1847 = vsel %vm1815, 0.0, -3.4028235e+38
        %v1848 = vsel %vm1816, 0.0, -3.4028235e+38
        %v1849 = vsel %vm1817, 0.0, -3.4028235e+38
        %v1850 = vsel %vm1818, 0.0, -3.4028235e+38
        %v1851 = vsel %vm1819, 0.0, -3.4028235e+38
        %v1852 = vsel %vm1820, 0.0, -3.4028235e+38
        %v1853 = vsel %vm1821, 0.0, -3.4028235e+38
        %v1854 = vsel %vm1822, 0.0, -3.4028235e+38
        %v1855 = vsel %vm1823, 0.0, -3.4028235e+38
        %v1856 = vsel %vm1824, 0.0, -3.4028235e+38
        %v1857 = vsel %vm1825, 0.0, -3.4028235e+38
        %v1858 = vsel %vm1826, 0.0, -3.4028235e+38
        %v1859 = vsel %vm1827, 0.0, -3.4028235e+38
        %v1860 = vsel %vm1828, 0.0, -3.4028235e+38
        %v1861 = vsel %vm1829, 0.0, -3.4028235e+38
        %v1862 = vsel %vm1830, 0.0, -3.4028235e+38
        %v1863 = vsel %vm1831, 0.0, -3.4028235e+38
        %v1864 = vrot.slane %v1316, 6
        %v1865 = vrot.slane %v1317, 6
        %v1866 = vrot.slane %v1318, 6
        %v1867 = vrot.slane %v1319, 6
        %v1868 = vrot.slane %v1320, 6
        %v1869 = vrot.slane %v1321, 6
        %v1870 = vrot.slane %v1322, 6
        %v1871 = vrot.slane %v1323, 6
        %v1872 = vrot.slane %v1324, 6
        %v1873 = vrot.slane %v1325, 6
        %v1874 = vrot.slane %v1326, 6
        %v1875 = vrot.slane %v1327, 6
        %v1876 = vrot.slane %v1328, 6
        %v1877 = vrot.slane %v1329, 6
        %v1878 = vrot.slane %v1330, 6
        %v1879 = vrot.slane %v1331, 6
        %v1880 = vrot.slane %v1332, 6
        %v1881 = vrot.slane %v1333, 6
        %v1882 = vrot.slane %v1334, 6
        %v1883 = vrot.slane %v1335, 6
        %v1884 = vrot.slane %v1336, 6
        %v1885 = vrot.slane %v1337, 6
        %v1886 = vrot.slane %v1338, 6
        %v1887 = vrot.slane %v1339, 6
        %v1888 = vrot.slane %v1340, 6
        %v1889 = vrot.slane %v1341, 6
        %v1890 = vrot.slane %v1342, 6
        %v1891 = vrot.slane %v1343, 6
        %v1892 = vrot.slane %v1344, 6
        %v1893 = vrot.slane %v1345, 6
        %v1894 = vrot.slane %v1346, 6
        %v1895 = vrot.slane %v1347, 6
        %vm1896 = vcmp.lt.s32.totalorder %v1381, 2
        %v1897 = vsel %vm1896, %v1894, %v1895
        %v1898 = vsel %vm1896, %v1893, %v1894
        %v1899 = vsel %vm1896, %v1892, %v1893
        %v1900 = vsel %vm1896, %v1891, %v1892
        %v1901 = vsel %vm1896, %v1890, %v1891
        %v1902 = vsel %vm1896, %v1889, %v1890
        %v1903 = vsel %vm1896, %v1888, %v1889
        %v1904 = vsel %vm1896, %v1887, %v1888
        %v1905 = vsel %vm1896, %v1886, %v1887
        %v1906 = vsel %vm1896, %v1885, %v1886
        %v1907 = vsel %vm1896, %v1884, %v1885
        %v1908 = vsel %vm1896, %v1883, %v1884
        %v1909 = vsel %vm1896, %v1882, %v1883
        %v1910 = vsel %vm1896, %v1881, %v1882
        %v1911 = vsel %vm1896, %v1880, %v1881
        %v1912 = vsel %vm1896, %v1879, %v1880
        %v1913 = vsel %vm1896, %v1878, %v1879
        %v1914 = vsel %vm1896, %v1877, %v1878
        %v1915 = vsel %vm1896, %v1876, %v1877
        %v1916 = vsel %vm1896, %v1875, %v1876
        %v1917 = vsel %vm1896, %v1874, %v1875
        %v1918 = vsel %vm1896, %v1873, %v1874
        %v1919 = vsel %vm1896, %v1872, %v1873
        %v1920 = vsel %vm1896, %v1871, %v1872
        %v1921 = vsel %vm1896, %v1870, %v1871
        %v1922 = vsel %vm1896, %v1869, %v1870
        %v1923 = vsel %vm1896, %v1868, %v1869
        %v1924 = vsel %vm1896, %v1867, %v1868
        %v1925 = vsel %vm1896, %v1866, %v1867
        %v1926 = vsel %vm1896, %v1865, %v1866
        %v1927 = vsel %vm1896, %v1864, %v1865
        %v1928 = vsel %vm1896, %v1895, %v1864
        %vm1929 = vcmp.eq.f32.partialorder %v1928, %v1316
        %vm1930 = vcmp.eq.f32.partialorder %v1927, %v1317
        %vm1931 = vcmp.eq.f32.partialorder %v1926, %v1318
        %vm1932 = vcmp.eq.f32.partialorder %v1925, %v1319
        %vm1933 = vcmp.eq.f32.partialorder %v1924, %v1320
        %vm1934 = vcmp.eq.f32.partialorder %v1923, %v1321
        %vm1935 = vcmp.eq.f32.partialorder %v1922, %v1322
        %vm1936 = vcmp.eq.f32.partialorder %v1921, %v1323
        %vm1937 = vcmp.eq.f32.partialorder %v1920, %v1324
        %vm1938 = vcmp.eq.f32.partialorder %v1919, %v1325
        %vm1939 = vcmp.eq.f32.partialorder %v1918, %v1326
        %vm1940 = vcmp.eq.f32.partialorder %v1917, %v1327
        %vm1941 = vcmp.eq.f32.partialorder %v1916, %v1328
        %vm1942 = vcmp.eq.f32.partialorder %v1915, %v1329
        %vm1943 = vcmp.eq.f32.partialorder %v1914, %v1330
        %vm1944 = vcmp.eq.f32.partialorder %v1913, %v1331
        %vm1945 = vcmp.eq.f32.partialorder %v1912, %v1332
        %vm1946 = vcmp.eq.f32.partialorder %v1911, %v1333
        %vm1947 = vcmp.eq.f32.partialorder %v1910, %v1334
        %vm1948 = vcmp.eq.f32.partialorder %v1909, %v1335
        %vm1949 = vcmp.eq.f32.partialorder %v1908, %v1336
        %vm1950 = vcmp.eq.f32.partialorder %v1907, %v1337
        %vm1951 = vcmp.eq.f32.partialorder %v1906, %v1338
        %vm1952 = vcmp.eq.f32.partialorder %v1905, %v1339
        %vm1953 = vcmp.eq.f32.partialorder %v1904, %v1340
        %vm1954 = vcmp.eq.f32.partialorder %v1903, %v1341
        %vm1955 = vcmp.eq.f32.partialorder %v1902, %v1342
        %vm1956 = vcmp.eq.f32.partialorder %v1901, %v1343
        %vm1957 = vcmp.eq.f32.partialorder %v1900, %v1344
        %vm1958 = vcmp.eq.f32.partialorder %v1899, %v1345
        %vm1959 = vcmp.eq.f32.partialorder %v1898, %v1346
        %vm1960 = vcmp.eq.f32.partialorder %v1897, %v1347
        %v1961 = vsel %vm1929, 0.0, -3.4028235e+38
        %v1962 = vsel %vm1930, 0.0, -3.4028235e+38
        %v1963 = vsel %vm1931, 0.0, -3.4028235e+38
        %v1964 = vsel %vm1932, 0.0, -3.4028235e+38
        %v1965 = vsel %vm1933, 0.0, -3.4028235e+38
        %v1966 = vsel %vm1934, 0.0, -3.4028235e+38
        %v1967 = vsel %vm1935, 0.0, -3.4028235e+38
        %v1968 = vsel %vm1936, 0.0, -3.4028235e+38
        %v1969 = vsel %vm1937, 0.0, -3.4028235e+38
        %v1970 = vsel %vm1938, 0.0, -3.4028235e+38
        %v1971 = vsel %vm1939, 0.0, -3.4028235e+38
        %v1972 = vsel %vm1940, 0.0, -3.4028235e+38
        %v1973 = vsel %vm1941, 0.0, -3.4028235e+38
        %v1974 = vsel %vm1942, 0.0, -3.4028235e+38
        %v1975 = vsel %vm1943, 0.0, -3.4028235e+38
        %v1976 = vsel %vm1944, 0.0, -3.4028235e+38
        %v1977 = vsel %vm1945, 0.0, -3.4028235e+38
        %v1978 = vsel %vm1946, 0.0, -3.4028235e+38
        %v1979 = vsel %vm1947, 0.0, -3.4028235e+38
        %v1980 = vsel %vm1948, 0.0, -3.4028235e+38
        %v1981 = vsel %vm1949, 0.0, -3.4028235e+38
        %v1982 = vsel %vm1950, 0.0, -3.4028235e+38
        %v1983 = vsel %vm1951, 0.0, -3.4028235e+38
        %v1984 = vsel %vm1952, 0.0, -3.4028235e+38
        %v1985 = vsel %vm1953, 0.0, -3.4028235e+38
        %v1986 = vsel %vm1954, 0.0, -3.4028235e+38
        %v1987 = vsel %vm1955, 0.0, -3.4028235e+38
        %v1988 = vsel %vm1956, 0.0, -3.4028235e+38
        %v1989 = vsel %vm1957, 0.0, -3.4028235e+38
        %v1990 = vsel %vm1958, 0.0, -3.4028235e+38
        %v1991 = vsel %vm1959, 0.0, -3.4028235e+38
        %v1992 = vsel %vm1960, 0.0, -3.4028235e+38
        %v1993 = vrot.slane %v1316, 2
        %v1994 = vrot.slane %v1317, 2
        %v1995 = vrot.slane %v1318, 2
        %v1996 = vrot.slane %v1319, 2
        %v1997 = vrot.slane %v1320, 2
        %v1998 = vrot.slane %v1321, 2
        %v1999 = vrot.slane %v1322, 2
        %v2000 = vrot.slane %v1323, 2
        %v2001 = vrot.slane %v1324, 2
        %v2002 = vrot.slane %v1325, 2
        %v2003 = vrot.slane %v1326, 2
        %v2004 = vrot.slane %v1327, 2
        %v2005 = vrot.slane %v1328, 2
        %v2006 = vrot.slane %v1329, 2
        %v2007 = vrot.slane %v1330, 2
        %v2008 = vrot.slane %v1331, 2
        %v2009 = vrot.slane %v1332, 2
        %v2010 = vrot.slane %v1333, 2
        %v2011 = vrot.slane %v1334, 2
        %v2012 = vrot.slane %v1335, 2
        %v2013 = vrot.slane %v1336, 2
        %v2014 = vrot.slane %v1337, 2
        %v2015 = vrot.slane %v1338, 2
        %v2016 = vrot.slane %v1339, 2
        %v2017 = vrot.slane %v1340, 2
        %v2018 = vrot.slane %v1341, 2
        %v2019 = vrot.slane %v1342, 2
        %v2020 = vrot.slane %v1343, 2
        %v2021 = vrot.slane %v1344, 2
        %v2022 = vrot.slane %v1345, 2
        %v2023 = vrot.slane %v1346, 2
        %v2024 = vrot.slane %v1347, 2
        %vm2025 = vcmp.lt.s32.totalorder %v1381, 6
        %v2026 = vsel %vm2025, %v2023, %v2024
        %v2027 = vsel %vm2025, %v2022, %v2023
        %v2028 = vsel %vm2025, %v2021, %v2022
        %v2029 = vsel %vm2025, %v2020, %v2021
        %v2030 = vsel %vm2025, %v2019, %v2020
        %v2031 = vsel %vm2025, %v2018, %v2019
        %v2032 = vsel %vm2025, %v2017, %v2018
        %v2033 = vsel %vm2025, %v2016, %v2017
        %v2034 = vsel %vm2025, %v2015, %v2016
        %v2035 = vsel %vm2025, %v2014, %v2015
        %v2036 = vsel %vm2025, %v2013, %v2014
        %v2037 = vsel %vm2025, %v2012, %v2013
        %v2038 = vsel %vm2025, %v2011, %v2012
        %v2039 = vsel %vm2025, %v2010, %v2011
        %v2040 = vsel %vm2025, %v2009, %v2010
        %v2041 = vsel %vm2025, %v2008, %v2009
        %v2042 = vsel %vm2025, %v2007, %v2008
        %v2043 = vsel %vm2025, %v2006, %v2007
        %v2044 = vsel %vm2025, %v2005, %v2006
        %v2045 = vsel %vm2025, %v2004, %v2005
        %v2046 = vsel %vm2025, %v2003, %v2004
        %v2047 = vsel %vm2025, %v2002, %v2003
        %v2048 = vsel %vm2025, %v2001, %v2002
        %v2049 = vsel %vm2025, %v2000, %v2001
        %v2050 = vsel %vm2025, %v1999, %v2000
        %v2051 = vsel %vm2025, %v1998, %v1999
        %v2052 = vsel %vm2025, %v1997, %v1998
        %v2053 = vsel %vm2025, %v1996, %v1997
        %v2054 = vsel %vm2025, %v1995, %v1996
        %v2055 = vsel %vm2025, %v1994, %v1995
        %v2056 = vsel %vm2025, %v1993, %v1994
        %v2057 = vsel %vm2025, %v2024, %v1993
        %vm2058 = vcmp.eq.f32.partialorder %v2056, %v1316
        %vm2059 = vcmp.eq.f32.partialorder %v2055, %v1317
        %vm2060 = vcmp.eq.f32.partialorder %v2054, %v1318
        %vm2061 = vcmp.eq.f32.partialorder %v2053, %v1319
        %vm2062 = vcmp.eq.f32.partialorder %v2052, %v1320
        %vm2063 = vcmp.eq.f32.partialorder %v2051, %v1321
        %vm2064 = vcmp.eq.f32.partialorder %v2050, %v1322
        %vm2065 = vcmp.eq.f32.partialorder %v2049, %v1323
        %vm2066 = vcmp.eq.f32.partialorder %v2048, %v1324
        %vm2067 = vcmp.eq.f32.partialorder %v2047, %v1325
        %vm2068 = vcmp.eq.f32.partialorder %v2046, %v1326
        %vm2069 = vcmp.eq.f32.partialorder %v2045, %v1327
        %vm2070 = vcmp.eq.f32.partialorder %v2044, %v1328
        %vm2071 = vcmp.eq.f32.partialorder %v2043, %v1329
        %vm2072 = vcmp.eq.f32.partialorder %v2042, %v1330
        %vm2073 = vcmp.eq.f32.partialorder %v2041, %v1331
        %vm2074 = vcmp.eq.f32.partialorder %v2040, %v1332
        %vm2075 = vcmp.eq.f32.partialorder %v2039, %v1333
        %vm2076 = vcmp.eq.f32.partialorder %v2038, %v1334
        %vm2077 = vcmp.eq.f32.partialorder %v2037, %v1335
        %vm2078 = vcmp.eq.f32.partialorder %v2036, %v1336
        %vm2079 = vcmp.eq.f32.partialorder %v2035, %v1337
        %vm2080 = vcmp.eq.f32.partialorder %v2034, %v1338
        %vm2081 = vcmp.eq.f32.partialorder %v2033, %v1339
        %vm2082 = vcmp.eq.f32.partialorder %v2032, %v1340
        %vm2083 = vcmp.eq.f32.partialorder %v2031, %v1341
        %vm2084 = vcmp.eq.f32.partialorder %v2030, %v1342
        %vm2085 = vcmp.eq.f32.partialorder %v2029, %v1343
        %vm2086 = vcmp.eq.f32.partialorder %v2028, %v1344
        %vm2087 = vcmp.eq.f32.partialorder %v2027, %v1345
        %vm2088 = vcmp.eq.f32.partialorder %v2026, %v1346
        %vm2089 = vcmp.eq.f32.partialorder %v2057, %v1347
        %v2090 = vsel %vm2058, 0.0, -3.4028235e+38
        %v2091 = vsel %vm2059, 0.0, -3.4028235e+38
        %v2092 = vsel %vm2060, 0.0, -3.4028235e+38
        %v2093 = vsel %vm2061, 0.0, -3.4028235e+38
        %v2094 = vsel %vm2062, 0.0, -3.4028235e+38
        %v2095 = vsel %vm2063, 0.0, -3.4028235e+38
        %v2096 = vsel %vm2064, 0.0, -3.4028235e+38
        %v2097 = vsel %vm2065, 0.0, -3.4028235e+38
        %v2098 = vsel %vm2066, 0.0, -3.4028235e+38
        %v2099 = vsel %vm2067, 0.0, -3.4028235e+38
        %v2100 = vsel %vm2068, 0.0, -3.4028235e+38
        %v2101 = vsel %vm2069, 0.0, -3.4028235e+38
        %v2102 = vsel %vm2070, 0.0, -3.4028235e+38
        %v2103 = vsel %vm2071, 0.0, -3.4028235e+38
        %v2104 = vsel %vm2072, 0.0, -3.4028235e+38
        %v2105 = vsel %vm2073, 0.0, -3.4028235e+38
        %v2106 = vsel %vm2074, 0.0, -3.4028235e+38
        %v2107 = vsel %vm2075, 0.0, -3.4028235e+38
        %v2108 = vsel %vm2076, 0.0, -3.4028235e+38
        %v2109 = vsel %vm2077, 0.0, -3.4028235e+38
        %v2110 = vsel %vm2078, 0.0, -3.4028235e+38
        %v2111 = vsel %vm2079, 0.0, -3.4028235e+38
        %v2112 = vsel %vm2080, 0.0, -3.4028235e+38
        %v2113 = vsel %vm2081, 0.0, -3.4028235e+38
        %v2114 = vsel %vm2082, 0.0, -3.4028235e+38
        %v2115 = vsel %vm2083, 0.0, -3.4028235e+38
        %v2116 = vsel %vm2084, 0.0, -3.4028235e+38
        %v2117 = vsel %vm2085, 0.0, -3.4028235e+38
        %v2118 = vsel %vm2086, 0.0, -3.4028235e+38
        %v2119 = vsel %vm2087, 0.0, -3.4028235e+38
        %v2120 = vsel %vm2088, 0.0, -3.4028235e+38
        %v2121 = vsel %vm2089, 0.0, -3.4028235e+38
        %v2122 = vsub.f32 %v1344, %v1316
        %v2123 = vsub.f32 %v1345, %v1317
        %v2124 = vsub.f32 %v1346, %v1318
        %v2125 = vsub.f32 %v1347, %v1319
        %v2126 = vsub.f32 %v1316, %v1320
        %v2127 = vsub.f32 %v1317, %v1321
        %v2128 = vsub.f32 %v1318, %v1322
        %v2129 = vsub.f32 %v1319, %v1323
        %v2130 = vsub.f32 %v1320, %v1324
        %v2131 = vsub.f32 %v1321, %v1325
        %v2132 = vsub.f32 %v1322, %v1326
        %v2133 = vsub.f32 %v1323, %v1327
        %v2134 = vsub.f32 %v1324, %v1328
        %v2135 = vsub.f32 %v1325, %v1329
        %v2136 = vsub.f32 %v1326, %v1330
        %v2137 = vsub.f32 %v1327, %v1331
        %v2138 = vsub.f32 %v1328, %v1332
        %v2139 = vsub.f32 %v1329, %v1333
        %v2140 = vsub.f32 %v1330, %v1334
        %v2141 = vsub.f32 %v1331, %v1335
        %v2142 = vsub.f32 %v1332, %v1336
        %v2143 = vsub.f32 %v1333, %v1337
        %v2144 = vsub.f32 %v1334, %v1338
        %v2145 = vsub.f32 %v1335, %v1339
        %v2146 = vsub.f32 %v1336, %v1340
        %v2147 = vsub.f32 %v1337, %v1341
        %v2148 = vsub.f32 %v1338, %v1342
        %v2149 = vsub.f32 %v1339, %v1343
        %v2150 = vsub.f32 %v1340, %v1344
        %v2151 = vsub.f32 %v1341, %v1345
        %v2152 = vsub.f32 %v1342, %v1346
        %v2153 = vsub.f32 %v1343, %v1347
        %v2154 = vand.u32 2147483647, %v2122
        %v2155 = vand.u32 2147483647, %v2123
        %v2156 = vand.u32 2147483647, %v2124
        %v2157 = vand.u32 2147483647, %v2125
        %v2158 = vand.u32 2147483647, %v2126
        %v2159 = vand.u32 2147483647, %v2127
        %v2160 = vand.u32 2147483647, %v2128
        %v2161 = vand.u32 2147483647, %v2129
        %v2162 = vand.u32 2147483647, %v2130
        %v2163 = vand.u32 2147483647, %v2131
        %v2164 = vand.u32 2147483647, %v2132
        %v2165 = vand.u32 2147483647, %v2133
        %v2166 = vand.u32 2147483647, %v2134
        %v2167 = vand.u32 2147483647, %v2135
        %v2168 = vand.u32 2147483647, %v2136
        %v2169 = vand.u32 2147483647, %v2137
        %v2170 = vand.u32 2147483647, %v2138
        %v2171 = vand.u32 2147483647, %v2139
        %v2172 = vand.u32 2147483647, %v2140
        %v2173 = vand.u32 2147483647, %v2141
        %v2174 = vand.u32 2147483647, %v2142
        %v2175 = vand.u32 2147483647, %v2143
        %v2176 = vand.u32 2147483647, %v2144
        %v2177 = vand.u32 2147483647, %v2145
        %v2178 = vand.u32 2147483647, %v2146
        %v2179 = vand.u32 2147483647, %v2147
        %v2180 = vand.u32 2147483647, %v2148
        %v2181 = vand.u32 2147483647, %v2149
        %v2182 = vand.u32 2147483647, %v2150
        %v2183 = vand.u32 2147483647, %v2151
        %v2184 = vand.u32 2147483647, %v2152
        %v2185 = vand.u32 2147483647, %v2153
        %vm2186 = vcmp.eq.f32.partialorder %v2154, 2.0
        %vm2187 = vcmp.eq.f32.partialorder %v2155, 2.0
        %vm2188 = vcmp.eq.f32.partialorder %v2156, 2.0
        %vm2189 = vcmp.eq.f32.partialorder %v2157, 2.0
        %vm2190 = vcmp.eq.f32.partialorder %v2158, 2.0
        %vm2191 = vcmp.eq.f32.partialorder %v2159, 2.0
        %vm2192 = vcmp.eq.f32.partialorder %v2160, 2.0
        %vm2193 = vcmp.eq.f32.partialorder %v2161, 2.0
        %vm2194 = vcmp.eq.f32.partialorder %v2162, 2.0
        %vm2195 = vcmp.eq.f32.partialorder %v2163, 2.0
        %vm2196 = vcmp.eq.f32.partialorder %v2164, 2.0
        %vm2197 = vcmp.eq.f32.partialorder %v2165, 2.0
        %vm2198 = vcmp.eq.f32.partialorder %v2166, 2.0
        %vm2199 = vcmp.eq.f32.partialorder %v2167, 2.0
        %vm2200 = vcmp.eq.f32.partialorder %v2168, 2.0
        %vm2201 = vcmp.eq.f32.partialorder %v2169, 2.0
        %vm2202 = vcmp.eq.f32.partialorder %v2170, 2.0
        %vm2203 = vcmp.eq.f32.partialorder %v2171, 2.0
        %vm2204 = vcmp.eq.f32.partialorder %v2172, 2.0
        %vm2205 = vcmp.eq.f32.partialorder %v2173, 2.0
        %vm2206 = vcmp.eq.f32.partialorder %v2174, 2.0
        %vm2207 = vcmp.eq.f32.partialorder %v2175, 2.0
        %vm2208 = vcmp.eq.f32.partialorder %v2176, 2.0
        %vm2209 = vcmp.eq.f32.partialorder %v2177, 2.0
        %vm2210 = vcmp.eq.f32.partialorder %v2178, 2.0
        %vm2211 = vcmp.eq.f32.partialorder %v2179, 2.0
        %vm2212 = vcmp.eq.f32.partialorder %v2180, 2.0
        %vm2213 = vcmp.eq.f32.partialorder %v2181, 2.0
        %vm2214 = vcmp.eq.f32.partialorder %v2182, 2.0
        %vm2215 = vcmp.eq.f32.partialorder %v2183, 2.0
        %vm2216 = vcmp.eq.f32.partialorder %v2184, 2.0
        %vm2217 = vcmp.eq.f32.partialorder %v2185, 2.0
        %v2218 = vsel %vm2186, 0.0, -3.4028235e+38
        %v2219 = vsel %vm2187, 0.0, -3.4028235e+38
        %v2220 = vsel %vm2188, 0.0, -3.4028235e+38
        %v2221 = vsel %vm2189, 0.0, -3.4028235e+38
        %v2222 = vsel %vm2190, 0.0, -3.4028235e+38
        %v2223 = vsel %vm2191, 0.0, -3.4028235e+38
        %v2224 = vsel %vm2192, 0.0, -3.4028235e+38
        %v2225 = vsel %vm2193, 0.0, -3.4028235e+38
        %v2226 = vsel %vm2194, 0.0, -3.4028235e+38
        %v2227 = vsel %vm2195, 0.0, -3.4028235e+38
        %v2228 = vsel %vm2196, 0.0, -3.4028235e+38
        %v2229 = vsel %vm2197, 0.0, -3.4028235e+38
        %v2230 = vsel %vm2198, 0.0, -3.4028235e+38
        %v2231 = vsel %vm2199, 0.0, -3.4028235e+38
        %v2232 = vsel %vm2200, 0.0, -3.4028235e+38
        %v2233 = vsel %vm2201, 0.0, -3.4028235e+38
        %v2234 = vsel %vm2202, 0.0, -3.4028235e+38
        %v2235 = vsel %vm2203, 0.0, -3.4028235e+38
        %v2236 = vsel %vm2204, 0.0, -3.4028235e+38
        %v2237 = vsel %vm2205, 0.0, -3.4028235e+38
        %v2238 = vsel %vm2206, 0.0, -3.4028235e+38
        %v2239 = vsel %vm2207, 0.0, -3.4028235e+38
        %v2240 = vsel %vm2208, 0.0, -3.4028235e+38
        %v2241 = vsel %vm2209, 0.0, -3.4028235e+38
        %v2242 = vsel %vm2210, 0.0, -3.4028235e+38
        %v2243 = vsel %vm2211, 0.0, -3.4028235e+38
        %v2244 = vsel %vm2212, 0.0, -3.4028235e+38
        %v2245 = vsel %vm2213, 0.0, -3.4028235e+38
        %v2246 = vsel %vm2214, 0.0, -3.4028235e+38
        %v2247 = vsel %vm2215, 0.0, -3.4028235e+38
        %v2248 = vsel %vm2216, 0.0, -3.4028235e+38
        %v2249 = vsel %vm2217, 0.0, -3.4028235e+38
        %v2250 = vsub.f32 %v1320, %v1316
        %v2251 = vsub.f32 %v1321, %v1317
        %v2252 = vsub.f32 %v1322, %v1318
        %v2253 = vsub.f32 %v1323, %v1319
        %v2254 = vsub.f32 %v1324, %v1320
        %v2255 = vsub.f32 %v1325, %v1321
        %v2256 = vsub.f32 %v1326, %v1322
        %v2257 = vsub.f32 %v1327, %v1323
        %v2258 = vsub.f32 %v1328, %v1324
        %v2259 = vsub.f32 %v1329, %v1325
        %v2260 = vsub.f32 %v1330, %v1326
        %v2261 = vsub.f32 %v1331, %v1327
        %v2262 = vsub.f32 %v1332, %v1328
        %v2263 = vsub.f32 %v1333, %v1329
        %v2264 = vsub.f32 %v1334, %v1330
        %v2265 = vsub.f32 %v1335, %v1331
        %v2266 = vsub.f32 %v1336, %v1332
        %v2267 = vsub.f32 %v1337, %v1333
        %v2268 = vsub.f32 %v1338, %v1334
        %v2269 = vsub.f32 %v1339, %v1335
        %v2270 = vsub.f32 %v1340, %v1336
        %v2271 = vsub.f32 %v1341, %v1337
        %v2272 = vsub.f32 %v1342, %v1338
        %v2273 = vsub.f32 %v1343, %v1339
        %v2274 = vsub.f32 %v1344, %v1340
        %v2275 = vsub.f32 %v1345, %v1341
        %v2276 = vsub.f32 %v1346, %v1342
        %v2277 = vsub.f32 %v1347, %v1343
        %v2278 = vsub.f32 %v1316, %v1344
        %v2279 = vsub.f32 %v1317, %v1345
        %v2280 = vsub.f32 %v1318, %v1346
        %v2281 = vsub.f32 %v1319, %v1347
        %v2282 = vand.u32 2147483647, %v2250
        %v2283 = vand.u32 2147483647, %v2251
        %v2284 = vand.u32 2147483647, %v2252
        %v2285 = vand.u32 2147483647, %v2253
        %v2286 = vand.u32 2147483647, %v2254
        %v2287 = vand.u32 2147483647, %v2255
        %v2288 = vand.u32 2147483647, %v2256
        %v2289 = vand.u32 2147483647, %v2257
        %v2290 = vand.u32 2147483647, %v2258
        %v2291 = vand.u32 2147483647, %v2259
        %v2292 = vand.u32 2147483647, %v2260
        %v2293 = vand.u32 2147483647, %v2261
        %v2294 = vand.u32 2147483647, %v2262
        %v2295 = vand.u32 2147483647, %v2263
        %v2296 = vand.u32 2147483647, %v2264
        %v2297 = vand.u32 2147483647, %v2265
        %v2298 = vand.u32 2147483647, %v2266
        %v2299 = vand.u32 2147483647, %v2267
        %v2300 = vand.u32 2147483647, %v2268
        %v2301 = vand.u32 2147483647, %v2269
        %v2302 = vand.u32 2147483647, %v2270
        %v2303 = vand.u32 2147483647, %v2271
        %v2304 = vand.u32 2147483647, %v2272
        %v2305 = vand.u32 2147483647, %v2273
        %v2306 = vand.u32 2147483647, %v2274
        %v2307 = vand.u32 2147483647, %v2275
        %v2308 = vand.u32 2147483647, %v2276
        %v2309 = vand.u32 2147483647, %v2277
        %v2310 = vand.u32 2147483647, %v2278
        %v2311 = vand.u32 2147483647, %v2279
        %v2312 = vand.u32 2147483647, %v2280
        %v2313 = vand.u32 2147483647, %v2281
        %vm2314 = vcmp.eq.f32.partialorder %v2282, 2.0
        %vm2315 = vcmp.eq.f32.partialorder %v2283, 2.0
        %vm2316 = vcmp.eq.f32.partialorder %v2284, 2.0
        %vm2317 = vcmp.eq.f32.partialorder %v2285, 2.0
        %vm2318 = vcmp.eq.f32.partialorder %v2286, 2.0
        %vm2319 = vcmp.eq.f32.partialorder %v2287, 2.0
        %vm2320 = vcmp.eq.f32.partialorder %v2288, 2.0
        %vm2321 = vcmp.eq.f32.partialorder %v2289, 2.0
        %vm2322 = vcmp.eq.f32.partialorder %v2290, 2.0
        %vm2323 = vcmp.eq.f32.partialorder %v2291, 2.0
        %vm2324 = vcmp.eq.f32.partialorder %v2292, 2.0
        %vm2325 = vcmp.eq.f32.partialorder %v2293, 2.0
        %vm2326 = vcmp.eq.f32.partialorder %v2294, 2.0
        %vm2327 = vcmp.eq.f32.partialorder %v2295, 2.0
        %vm2328 = vcmp.eq.f32.partialorder %v2296, 2.0
        %vm2329 = vcmp.eq.f32.partialorder %v2297, 2.0
        %vm2330 = vcmp.eq.f32.partialorder %v2298, 2.0
        %vm2331 = vcmp.eq.f32.partialorder %v2299, 2.0
        %vm2332 = vcmp.eq.f32.partialorder %v2300, 2.0
        %vm2333 = vcmp.eq.f32.partialorder %v2301, 2.0
        %vm2334 = vcmp.eq.f32.partialorder %v2302, 2.0
        %vm2335 = vcmp.eq.f32.partialorder %v2303, 2.0
        %vm2336 = vcmp.eq.f32.partialorder %v2304, 2.0
        %vm2337 = vcmp.eq.f32.partialorder %v2305, 2.0
        %vm2338 = vcmp.eq.f32.partialorder %v2306, 2.0
        %vm2339 = vcmp.eq.f32.partialorder %v2307, 2.0
        %vm2340 = vcmp.eq.f32.partialorder %v2308, 2.0
        %vm2341 = vcmp.eq.f32.partialorder %v2309, 2.0
        %vm2342 = vcmp.eq.f32.partialorder %v2310, 2.0
        %vm2343 = vcmp.eq.f32.partialorder %v2311, 2.0
        %vm2344 = vcmp.eq.f32.partialorder %v2312, 2.0
        %vm2345 = vcmp.eq.f32.partialorder %v2313, 2.0
        %v2346 = vsel %vm2314, 0.0, -3.4028235e+38
        %v2347 = vsel %vm2315, 0.0, -3.4028235e+38
        %v2348 = vsel %vm2316, 0.0, -3.4028235e+38
        %v2349 = vsel %vm2317, 0.0, -3.4028235e+38
        %v2350 = vsel %vm2318, 0.0, -3.4028235e+38
        %v2351 = vsel %vm2319, 0.0, -3.4028235e+38
        %v2352 = vsel %vm2320, 0.0, -3.4028235e+38
        %v2353 = vsel %vm2321, 0.0, -3.4028235e+38
        %v2354 = vsel %vm2322, 0.0, -3.4028235e+38
        %v2355 = vsel %vm2323, 0.0, -3.4028235e+38
        %v2356 = vsel %vm2324, 0.0, -3.4028235e+38
        %v2357 = vsel %vm2325, 0.0, -3.4028235e+38
        %v2358 = vsel %vm2326, 0.0, -3.4028235e+38
        %v2359 = vsel %vm2327, 0.0, -3.4028235e+38
        %v2360 = vsel %vm2328, 0.0, -3.4028235e+38
        %v2361 = vsel %vm2329, 0.0, -3.4028235e+38
        %v2362 = vsel %vm2330, 0.0, -3.4028235e+38
        %v2363 = vsel %vm2331, 0.0, -3.4028235e+38
        %v2364 = vsel %vm2332, 0.0, -3.4028235e+38
        %v2365 = vsel %vm2333, 0.0, -3.4028235e+38
        %v2366 = vsel %vm2334, 0.0, -3.4028235e+38
        %v2367 = vsel %vm2335, 0.0, -3.4028235e+38
        %v2368 = vsel %vm2336, 0.0, -3.4028235e+38
        %v2369 = vsel %vm2337, 0.0, -3.4028235e+38
        %v2370 = vsel %vm2338, 0.0, -3.4028235e+38
        %v2371 = vsel %vm2339, 0.0, -3.4028235e+38
        %v2372 = vsel %vm2340, 0.0, -3.4028235e+38
        %v2373 = vsel %vm2341, 0.0, -3.4028235e+38
        %v2374 = vsel %vm2342, 0.0, -3.4028235e+38
        %v2375 = vsel %vm2343, 0.0, -3.4028235e+38
        %v2376 = vsel %vm2344, 0.0, -3.4028235e+38
        %v2377 = vsel %vm2345, 0.0, -3.4028235e+38
        %v2378 = vld [vmem:[#allocation2] sm:$0xff]
        %v2379 = vld [vmem:[#allocation2 + $0x8] sm:$0xff]
        %v2380 = vld [vmem:[#allocation2 + $0x10] sm:$0xff]
        %v2381 = vld [vmem:[#allocation2 + $0x18] sm:$0xff]
        %v2382 = vld [vmem:[#allocation2 + $0x20] sm:$0xff]
        %v2383 = vld [vmem:[#allocation2 + $0x28] sm:$0xff]
        %v2384 = vld [vmem:[#allocation2 + $0x30] sm:$0xff]
        %v2385 = vld [vmem:[#allocation2 + $0x38] sm:$0xff]
        %v2386 = vld [vmem:[#allocation2 + $0x40] sm:$0xff]
        %v2387 = vld [vmem:[#allocation2 + $0x48] sm:$0xff]
        %v2388 = vld [vmem:[#allocation2 + $0x50] sm:$0xff]
        %v2389 = vld [vmem:[#allocation2 + $0x58] sm:$0xff]
        %v2390 = vld [vmem:[#allocation2 + $0x60] sm:$0xff]
        %v2391 = vld [vmem:[#allocation2 + $0x68] sm:$0xff]
        %v2392 = vld [vmem:[#allocation2 + $0x70] sm:$0xff]
        %v2393 = vld [vmem:[#allocation2 + $0x78] sm:$0xff]
        %v2394 = vld [vmem:[#allocation2 + $0x80] sm:$0xff]
        %v2395 = vld [vmem:[#allocation2 + $0x88] sm:$0xff]
        %v2396 = vld [vmem:[#allocation2 + $0x90] sm:$0xff]
        %v2397 = vld [vmem:[#allocation2 + $0x98] sm:$0xff]
        %v2398 = vld [vmem:[#allocation2 + $0xa0] sm:$0xff]
        %v2399 = vld [vmem:[#allocation2 + $0xa8] sm:$0xff]
        %v2400 = vld [vmem:[#allocation2 + $0xb0] sm:$0xff]
        %v2401 = vld [vmem:[#allocation2 + $0xb8] sm:$0xff]
        %v2402 = vld [vmem:[#allocation2 + $0xc0] sm:$0xff]
        %v2403 = vld [vmem:[#allocation2 + $0xc8] sm:$0xff]
        %v2404 = vld [vmem:[#allocation2 + $0xd0] sm:$0xff]
        %v2405 = vld [vmem:[#allocation2 + $0xd8] sm:$0xff]
        %v2406 = vld [vmem:[#allocation2 + $0xe0] sm:$0xff]
        %v2407 = vld [vmem:[#allocation2 + $0xe8] sm:$0xff]
        %v2408 = vld [vmem:[#allocation2 + $0xf0] sm:$0xff]
        %v2409 = vld [vmem:[#allocation2 + $0xf8] sm:$0xff]
        %v2410 = vpack.c.bf16 %v1139, %v1138
        %v2411 = vpack.c.bf16 %v1141, %v1140
        %v2412 = vpack.c.bf16 %v1143, %v1142
        %v2413 = vpack.c.bf16 %v1145, %v1144
        %v2414 = vpack.c.bf16 %v1147, %v1146
        %v2415 = vpack.c.bf16 %v1149, %v1148
        %v2416 = vpack.c.bf16 %v1151, %v1150
        %v2417 = vpack.c.bf16 %v1153, %v1152
        %v2418 = vpack.c.bf16 %v1155, %v1154
        %v2419 = vpack.c.bf16 %v1157, %v1156
        %v2420 = vpack.c.bf16 %v1159, %v1158
        %v2421 = vpack.c.bf16 %v1161, %v1160
        %v2422 = vpack.c.bf16 %v1163, %v1162
        %v2423 = vpack.c.bf16 %v1165, %v1164
        %v2424 = vpack.c.bf16 %v1167, %v1166
        %v2425 = vpack.c.bf16 %v1169, %v1168
        %v2426 = vld [vmem:[#allocation12] sm:$0xf]
        %v2427 = vld [vmem:[#allocation12 + $0x4] sm:$0xf]
        %v2428 = vld [vmem:[#allocation12 + $0x8] sm:$0xf]
        %v2429 = vld [vmem:[#allocation12 + $0xc] sm:$0xf]
        %v2430 = vld [vmem:[#allocation12 + $0x10] sm:$0xf]
        %v2431 = vld [vmem:[#allocation12 + $0x14] sm:$0xf]
        %v2432 = vld [vmem:[#allocation12 + $0x18] sm:$0xf]
        %v2433 = vld [vmem:[#allocation12 + $0x1c] sm:$0xf]
        %v2434 = vld [vmem:[#allocation12 + $0x20] sm:$0xf]
        %v2435 = vld [vmem:[#allocation12 + $0x24] sm:$0xf]
        %v2436 = vld [vmem:[#allocation12 + $0x28] sm:$0xf]
        %v2437 = vld [vmem:[#allocation12 + $0x2c] sm:$0xf]
        %v2438 = vld [vmem:[#allocation12 + $0x30] sm:$0xf]
        %v2439 = vld [vmem:[#allocation12 + $0x34] sm:$0xf]
        %v2440 = vld [vmem:[#allocation12 + $0x38] sm:$0xf]
        %v2441 = vld [vmem:[#allocation12 + $0x3c] sm:$0xf]
        %v2458 = vunpack.c.l.b16 %v2426
        %v2459 = vunpack.c.l.b16 %v2427
        %v2460 = vunpack.c.l.b16 %v2428
        %v2461 = vunpack.c.l.b16 %v2429
        %v2462 = vunpack.c.l.b16 %v2430
        %v2463 = vunpack.c.l.b16 %v2431
        %v2464 = vunpack.c.l.b16 %v2432
        %v2465 = vunpack.c.l.b16 %v2433
        %v2466 = vunpack.c.l.b16 %v2434
        %v2467 = vunpack.c.l.b16 %v2435
        %v2468 = vunpack.c.l.b16 %v2436
        %v2469 = vunpack.c.l.b16 %v2437
        %v2470 = vunpack.c.l.b16 %v2438
        %v2471 = vunpack.c.l.b16 %v2439
        %v2472 = vunpack.c.l.b16 %v2440
        %v2473 = vunpack.c.l.b16 %v2441
        %v2474 = vpack.c.b16 %v2459, %v2458
        %v2475 = vpack.c.b16 %v2461, %v2460
        %v2476 = vpack.c.b16 %v2463, %v2462
        %v2477 = vpack.c.b16 %v2465, %v2464
        %v2478 = vpack.c.b16 %v2467, %v2466
        %v2479 = vpack.c.b16 %v2469, %v2468
        %v2480 = vpack.c.b16 %v2471, %v2470
        %v2481 = vpack.c.b16 %v2473, %v2472
        %2490 = vmatprep.subr.bf16.mxu0 0
        %2491 = vmatpush1.bf16.msra.mxu0 %v2474
        %2492 = vmatprep.subr.bf16.mxu0 0
        %2493 = vmatpush1.bf16.msra.mxu0 %v2475
        %2494 = vmatprep.subr.bf16.mxu0 0
        %2495 = vmatpush1.bf16.msra.mxu0 %v2476
        %2496 = vmatprep.subr.bf16.mxu0 0
        %2497 = vmatpush1.bf16.msra.mxu0 %v2477
        %2498 = vmatprep.subr.bf16.mxu0 0
        %2499 = vmatpush1.bf16.msra.mxu0 %v2478
        %2500 = vmatprep.subr.bf16.mxu0 0
        %2501 = vmatpush1.bf16.msra.mxu0 %v2479
        %2502 = vmatprep.subr.bf16.mxu0 0
        %2503 = vmatpush1.bf16.msra.mxu0 %v2480
        %2504 = vmatprep.subr.bf16.mxu0 0
        %2505 = vmatpush1.bf16.msra.mxu0 %v2481
        %2506 = vmatprep.subr.bf16.mxu0 0
        %2507 = vmatpush1.bf16.msra.mxu0 0
        %2508 = vmatprep.subr.bf16.mxu0 0
        %2509 = vmatpush1.bf16.msra.mxu0 0
        %2510 = vmatprep.subr.bf16.mxu0 0
        %2511 = vmatpush1.bf16.msra.mxu0 0
        %2512 = vmatprep.subr.bf16.mxu0 0
        %2513 = vmatpush1.bf16.msra.mxu0 0
        %2514 = vmatprep.subr.bf16.mxu0 0
        %2515 = vmatpush1.bf16.msra.mxu0 0
        %2516 = vmatprep.subr.bf16.mxu0 0
        %2517 = vmatpush1.bf16.msra.mxu0 0
        %2518 = vmatprep.subr.bf16.mxu0 0
        %2519 = vmatpush1.bf16.msra.mxu0 0
        %2520 = vmatprep.subr.bf16.mxu0 0
        %2521 = vmatpush1.bf16.msra.mxu0 0
        %2522 = vmatprep.mubr.bf16.mxu0 0
        %2523 = vmatmul.mubr.bf16.gmra.mrb[0].mxu0 %v2410
        %v2524 = vpop.f32.mrb[0].mxu0
        %v2525 = vadd.f32 0.0, %v2524
        %v2526 = vpop.f32.mrb[0].mxu0
        %v2527 = vpop.f32.mrb[0].mxu0
        %v2528 = vadd.f32 0.0, %v2527
        %v2529 = vpop.f32.mrb[0].mxu0
        %2530 = vmatprep.mubr.bf16.mxu0 0
        %2531 = vmatmul.mubr.bf16.gmra.mrb[0].mxu0 %v2411
        %v2532 = vpop.f32.mrb[0].mxu0
        %v2533 = vadd.f32 0.0, %v2532
        %v2534 = vpop.f32.mrb[0].mxu0
        %v2535 = vpop.f32.mrb[0].mxu0
        %v2536 = vadd.f32 0.0, %v2535
        %v2537 = vpop.f32.mrb[0].mxu0
        %2538 = vmatprep.mubr.bf16.mxu0 0
        %2539 = vmatmul.mubr.bf16.gmra.mrb[0].mxu0 %v2412
        %v2540 = vpop.f32.mrb[0].mxu0
        %v2541 = vadd.f32 0.0, %v2540
        %v2542 = vpop.f32.mrb[0].mxu0
        %v2543 = vpop.f32.mrb[0].mxu0
        %v2544 = vadd.f32 0.0, %v2543
        %v2545 = vpop.f32.mrb[0].mxu0
        %2546 = vmatprep.mubr.bf16.mxu0 0
        %2547 = vmatmul.mubr.bf16.gmra.mrb[0].mxu0 %v2413
        %v2548 = vpop.f32.mrb[0].mxu0
        %v2549 = vadd.f32 0.0, %v2548
        %v2550 = vpop.f32.mrb[0].mxu0
        %v2551 = vpop.f32.mrb[0].mxu0
        %v2552 = vadd.f32 0.0, %v2551
        %v2553 = vpop.f32.mrb[0].mxu0
        %2554 = vmatprep.mubr.bf16.mxu0 0
        %2555 = vmatmul.mubr.bf16.gmra.mrb[0].mxu0 %v2414
        %v2556 = vpop.f32.mrb[0].mxu0
        %v2557 = vadd.f32 0.0, %v2556
        %v2558 = vpop.f32.mrb[0].mxu0
        %v2559 = vpop.f32.mrb[0].mxu0
        %v2560 = vadd.f32 0.0, %v2559
        %v2561 = vpop.f32.mrb[0].mxu0
        %2562 = vmatprep.mubr.bf16.mxu0 0
        %2563 = vmatmul.mubr.bf16.gmra.mrb[0].mxu0 %v2415
        %v2564 = vpop.f32.mrb[0].mxu0
        %v2565 = vadd.f32 0.0, %v2564
        %v2566 = vpop.f32.mrb[0].mxu0
        %v2567 = vpop.f32.mrb[0].mxu0
        %v2568 = vadd.f32 0.0, %v2567
        %v2569 = vpop.f32.mrb[0].mxu0
        %2570 = vmatprep.mubr.bf16.mxu0 0
        %2571 = vmatmul.mubr.bf16.gmra.mrb[0].mxu0 %v2416
        %v2572 = vpop.f32.mrb[0].mxu0
        %v2573 = vadd.f32 0.0, %v2572
        %v2574 = vpop.f32.mrb[0].mxu0
        %v2575 = vpop.f32.mrb[0].mxu0
        %v2576 = vadd.f32 0.0, %v2575
        %v2577 = vpop.f32.mrb[0].mxu0
        %2578 = vmatprep.mubr.bf16.mxu0 0
        %2579 = vmatmul.mubr.bf16.gmra.mrb[0].mxu0 %v2417
        %v2580 = vpop.f32.mrb[0].mxu0
        %v2581 = vadd.f32 0.0, %v2580
        %v2582 = vpop.f32.mrb[0].mxu0
        %v2583 = vpop.f32.mrb[0].mxu0
        %v2584 = vadd.f32 0.0, %v2583
        %v2585 = vpop.f32.mrb[0].mxu0
        %2586 = vmatprep.mubr.bf16.mxu0 0
        %2587 = vmatmul.mubr.bf16.gmra.mrb[0].mxu0 %v2418
        %v2588 = vpop.f32.mrb[0].mxu0
        %v2589 = vadd.f32 0.0, %v2588
        %v2590 = vpop.f32.mrb[0].mxu0
        %v2591 = vpop.f32.mrb[0].mxu0
        %v2592 = vadd.f32 0.0, %v2591
        %v2593 = vpop.f32.mrb[0].mxu0
        %2594 = vmatprep.mubr.bf16.mxu0 0
        %2595 = vmatmul.mubr.bf16.gmra.mrb[0].mxu0 %v2419
        %v2596 = vpop.f32.mrb[0].mxu0
        %v2597 = vadd.f32 0.0, %v2596
        %v2598 = vpop.f32.mrb[0].mxu0
        %v2599 = vpop.f32.mrb[0].mxu0
        %v2600 = vadd.f32 0.0, %v2599
        %v2601 = vpop.f32.mrb[0].mxu0
        %2602 = vmatprep.mubr.bf16.mxu0 0
        %2603 = vmatmul.mubr.bf16.gmra.mrb[0].mxu0 %v2420
        %v2604 = vpop.f32.mrb[0].mxu0
        %v2605 = vadd.f32 0.0, %v2604
        %v2606 = vpop.f32.mrb[0].mxu0
        %v2607 = vpop.f32.mrb[0].mxu0
        %v2608 = vadd.f32 0.0, %v2607
        %v2609 = vpop.f32.mrb[0].mxu0
        %2610 = vmatprep.mubr.bf16.mxu0 0
        %2611 = vmatmul.mubr.bf16.gmra.mrb[0].mxu0 %v2421
        %v2612 = vpop.f32.mrb[0].mxu0
        %v2613 = vadd.f32 0.0, %v2612
        %v2614 = vpop.f32.mrb[0].mxu0
        %v2615 = vpop.f32.mrb[0].mxu0
        %v2616 = vadd.f32 0.0, %v2615
        %v2617 = vpop.f32.mrb[0].mxu0
        %2618 = vmatprep.mubr.bf16.mxu0 0
        %2619 = vmatmul.mubr.bf16.gmra.mrb[0].mxu0 %v2422
        %v2620 = vpop.f32.mrb[0].mxu0
        %v2621 = vadd.f32 0.0, %v2620
        %v2622 = vpop.f32.mrb[0].mxu0
        %v2623 = vpop.f32.mrb[0].mxu0
        %v2624 = vadd.f32 0.0, %v2623
        %v2625 = vpop.f32.mrb[0].mxu0
        %2626 = vmatprep.mubr.bf16.mxu0 0
        %2627 = vmatmul.mubr.bf16.gmra.mrb[0].mxu0 %v2423
        %v2628 = vpop.f32.mrb[0].mxu0
        %v2629 = vadd.f32 0.0, %v2628
        %v2630 = vpop.f32.mrb[0].mxu0
        %v2631 = vpop.f32.mrb[0].mxu0
        %v2632 = vadd.f32 0.0, %v2631
        %v2633 = vpop.f32.mrb[0].mxu0
        %2634 = vmatprep.mubr.bf16.mxu0 0
        %2635 = vmatmul.mubr.bf16.gmra.mrb[0].mxu0 %v2424
        %v2636 = vpop.f32.mrb[0].mxu0
        %v2637 = vadd.f32 0.0, %v2636
        %v2638 = vpop.f32.mrb[0].mxu0
        %v2639 = vpop.f32.mrb[0].mxu0
        %v2640 = vadd.f32 0.0, %v2639
        %v2641 = vpop.f32.mrb[0].mxu0
        %2642 = vmatprep.mubr.bf16.mxu0 0
        %2643 = vmatmul.mubr.bf16.gmra.mrb[0].mxu0 %v2425
        %v2644 = vpop.f32.mrb[0].mxu0
        %v2645 = vadd.f32 0.0, %v2644
        %v2646 = vpop.f32.mrb[0].mxu0
        %v2647 = vpop.f32.mrb[0].mxu0
        %v2648 = vadd.f32 0.0, %v2647
        %v2649 = vpop.f32.mrb[0].mxu0
        %2650 = vdwg.mxu0
        %v2651 = vadd.f32 %v2378, %v2525
        %v2652 = vadd.f32 %v2379, %v2528
        %v2653 = vadd.f32 %v2380, %v2533
        %v2654 = vadd.f32 %v2381, %v2536
        %v2655 = vadd.f32 %v2382, %v2541
        %v2656 = vadd.f32 %v2383, %v2544
        %v2657 = vadd.f32 %v2384, %v2549
        %v2658 = vadd.f32 %v2385, %v2552
        %v2659 = vadd.f32 %v2386, %v2557
        %v2660 = vadd.f32 %v2387, %v2560
        %v2661 = vadd.f32 %v2388, %v2565
        %v2662 = vadd.f32 %v2389, %v2568
        %v2663 = vadd.f32 %v2390, %v2573
        %v2664 = vadd.f32 %v2391, %v2576
        %v2665 = vadd.f32 %v2392, %v2581
        %v2666 = vadd.f32 %v2393, %v2584
        %v2667 = vadd.f32 %v2394, %v2589
        %v2668 = vadd.f32 %v2395, %v2592
        %v2669 = vadd.f32 %v2396, %v2597
        %v2670 = vadd.f32 %v2397, %v2600
        %v2671 = vadd.f32 %v2398, %v2605
        %v2672 = vadd.f32 %v2399, %v2608
        %v2673 = vadd.f32 %v2400, %v2613
        %v2674 = vadd.f32 %v2401, %v2616
        %v2675 = vadd.f32 %v2402, %v2621
        %v2676 = vadd.f32 %v2403, %v2624
        %v2677 = vadd.f32 %v2404, %v2629
        %v2678 = vadd.f32 %v2405, %v2632
        %v2679 = vadd.f32 %v2406, %v2637
        %v2680 = vadd.f32 %v2407, %v2640
        %v2681 = vadd.f32 %v2408, %v2645
        %v2682 = vadd.f32 %v2409, %v2648
        %v2683 = vrot.slane %v1138, 7
        %v2684 = vrot.slane %v1139, 7
        %v2685 = vrot.slane %v1140, 7
        %v2686 = vrot.slane %v1141, 7
        %v2687 = vrot.slane %v1142, 7
        %v2688 = vrot.slane %v1143, 7
        %v2689 = vrot.slane %v1144, 7
        %v2690 = vrot.slane %v1145, 7
        %v2691 = vrot.slane %v1146, 7
        %v2692 = vrot.slane %v1147, 7
        %v2693 = vrot.slane %v1148, 7
        %v2694 = vrot.slane %v1149, 7
        %v2695 = vrot.slane %v1150, 7
        %v2696 = vrot.slane %v1151, 7
        %v2697 = vrot.slane %v1152, 7
        %v2698 = vrot.slane %v1153, 7
        %v2699 = vrot.slane %v1154, 7
        %v2700 = vrot.slane %v1155, 7
        %v2701 = vrot.slane %v1156, 7
        %v2702 = vrot.slane %v1157, 7
        %v2703 = vrot.slane %v1158, 7
        %v2704 = vrot.slane %v1159, 7
        %v2705 = vrot.slane %v1160, 7
        %v2706 = vrot.slane %v1161, 7
        %v2707 = vrot.slane %v1162, 7
        %v2708 = vrot.slane %v1163, 7
        %v2709 = vrot.slane %v1164, 7
        %v2710 = vrot.slane %v1165, 7
        %v2711 = vrot.slane %v1166, 7
        %v2712 = vrot.slane %v1167, 7
        %v2713 = vrot.slane %v1168, 7
        %v2714 = vrot.slane %v1169, 7
        %v2715 = vsel %vm1382, %v2713, %v2714
        %v2716 = vsel %vm1382, %v2712, %v2713
        %v2717 = vsel %vm1382, %v2711, %v2712
        %v2718 = vsel %vm1382, %v2710, %v2711
        %v2719 = vsel %vm1382, %v2709, %v2710
        %v2720 = vsel %vm1382, %v2708, %v2709
        %v2721 = vsel %vm1382, %v2707, %v2708
        %v2722 = vsel %vm1382, %v2706, %v2707
        %v2723 = vsel %vm1382, %v2705, %v2706
        %v2724 = vsel %vm1382, %v2704, %v2705
        %v2725 = vsel %vm1382, %v2703, %v2704
        %v2726 = vsel %vm1382, %v2702, %v2703
        %v2727 = vsel %vm1382, %v2701, %v2702
        %v2728 = vsel %vm1382, %v2700, %v2701
        %v2729 = vsel %vm1382, %v2699, %v2700
        %v2730 = vsel %vm1382, %v2698, %v2699
        %v2731 = vsel %vm1382, %v2697, %v2698
        %v2732 = vsel %vm1382, %v2696, %v2697
        %v2733 = vsel %vm1382, %v2695, %v2696
        %v2734 = vsel %vm1382, %v2694, %v2695
        %v2735 = vsel %vm1382, %v2693, %v2694
        %v2736 = vsel %vm1382, %v2692, %v2693
        %v2737 = vsel %vm1382, %v2691, %v2692
        %v2738 = vsel %vm1382, %v2690, %v2691
        %v2739 = vsel %vm1382, %v2689, %v2690
        %v2740 = vsel %vm1382, %v2688, %v2689
        %v2741 = vsel %vm1382, %v2687, %v2688
        %v2742 = vsel %vm1382, %v2686, %v2687
        %v2743 = vsel %vm1382, %v2685, %v2686
        %v2744 = vsel %vm1382, %v2684, %v2685
        %v2745 = vsel %vm1382, %v2683, %v2684
        %v2746 = vsel %vm1382, %v2714, %v2683
        %2748 = vset.pattern.permute.xlu0 0
        %2749 = vperm.xlu0 %2748, %v1447
        %v2750 = vpop.permute.xlu0 %2749
        %2753 = vset.pattern.permute.xlu0 0
        %2754 = vperm.xlu0 %2753, %v1448
        %v2755 = vpop.permute.xlu0 %2754
        %2758 = vset.pattern.permute.xlu0 0
        %2759 = vperm.xlu0 %2758, %v1449
        %v2760 = vpop.permute.xlu0 %2759
        %2763 = vset.pattern.permute.xlu0 0
        %2764 = vperm.xlu0 %2763, %v1450
        %v2765 = vpop.permute.xlu0 %2764
        %2768 = vset.pattern.permute.xlu0 0
        %2769 = vperm.xlu0 %2768, %v1451
        %v2770 = vpop.permute.xlu0 %2769
        %2773 = vset.pattern.permute.xlu0 0
        %2774 = vperm.xlu0 %2773, %v1452
        %v2775 = vpop.permute.xlu0 %2774
        %2778 = vset.pattern.permute.xlu0 0
        %2779 = vperm.xlu0 %2778, %v1453
        %v2780 = vpop.permute.xlu0 %2779
        %2783 = vset.pattern.permute.xlu0 0
        %2784 = vperm.xlu0 %2783, %v1454
        %v2785 = vpop.permute.xlu0 %2784
        %2788 = vset.pattern.permute.xlu0 0
        %2789 = vperm.xlu0 %2788, %v1455
        %v2790 = vpop.permute.xlu0 %2789
        %2793 = vset.pattern.permute.xlu0 0
        %2794 = vperm.xlu0 %2793, %v1456
        %v2795 = vpop.permute.xlu0 %2794
        %2798 = vset.pattern.permute.xlu0 0
        %2799 = vperm.xlu0 %2798, %v1457
        %v2800 = vpop.permute.xlu0 %2799
        %2803 = vset.pattern.permute.xlu0 0
        %2804 = vperm.xlu0 %2803, %v1458
        %v2805 = vpop.permute.xlu0 %2804
        %2808 = vset.pattern.permute.xlu0 0
        %2809 = vperm.xlu0 %2808, %v1459
        %v2810 = vpop.permute.xlu0 %2809
        %2813 = vset.pattern.permute.xlu0 0
        %2814 = vperm.xlu0 %2813, %v1460
        %v2815 = vpop.permute.xlu0 %2814
        %2818 = vset.pattern.permute.xlu0 0
        %2819 = vperm.xlu0 %2818, %v1461
        %v2820 = vpop.permute.xlu0 %2819
        %2823 = vset.pattern.permute.xlu0 0
        %2824 = vperm.xlu0 %2823, %v1462
        %v2825 = vpop.permute.xlu0 %2824
        %2828 = vset.pattern.permute.xlu0 0
        %2829 = vperm.xlu0 %2828, %v1463
        %v2830 = vpop.permute.xlu0 %2829
        %2833 = vset.pattern.permute.xlu0 0
        %2834 = vperm.xlu0 %2833, %v1464
        %v2835 = vpop.permute.xlu0 %2834
        %2838 = vset.pattern.permute.xlu0 0
        %2839 = vperm.xlu0 %2838, %v1465
        %v2840 = vpop.permute.xlu0 %2839
        %2843 = vset.pattern.permute.xlu0 0
        %2844 = vperm.xlu0 %2843, %v1466
        %v2845 = vpop.permute.xlu0 %2844
        %2848 = vset.pattern.permute.xlu0 0
        %2849 = vperm.xlu0 %2848, %v1467
        %v2850 = vpop.permute.xlu0 %2849
        %2853 = vset.pattern.permute.xlu0 0
        %2854 = vperm.xlu0 %2853, %v1468
        %v2855 = vpop.permute.xlu0 %2854
        %2858 = vset.pattern.permute.xlu0 0
        %2859 = vperm.xlu0 %2858, %v1469
        %v2860 = vpop.permute.xlu0 %2859
        %2863 = vset.pattern.permute.xlu0 0
        %2864 = vperm.xlu0 %2863, %v1470
        %v2865 = vpop.permute.xlu0 %2864
        %2868 = vset.pattern.permute.xlu0 0
        %2869 = vperm.xlu0 %2868, %v1471
        %v2870 = vpop.permute.xlu0 %2869
        %2873 = vset.pattern.permute.xlu0 0
        %2874 = vperm.xlu0 %2873, %v1472
        %v2875 = vpop.permute.xlu0 %2874
        %2878 = vset.pattern.permute.xlu0 0
        %2879 = vperm.xlu0 %2878, %v1473
        %v2880 = vpop.permute.xlu0 %2879
        %2883 = vset.pattern.permute.xlu0 0
        %2884 = vperm.xlu0 %2883, %v1474
        %v2885 = vpop.permute.xlu0 %2884
        %2888 = vset.pattern.permute.xlu0 0
        %2889 = vperm.xlu0 %2888, %v1475
        %v2890 = vpop.permute.xlu0 %2889
        %2893 = vset.pattern.permute.xlu0 0
        %2894 = vperm.xlu0 %2893, %v1476
        %v2895 = vpop.permute.xlu0 %2894
        %2898 = vset.pattern.permute.xlu0 0
        %2899 = vperm.xlu0 %2898, %v1477
        %v2900 = vpop.permute.xlu0 %2899
        %2903 = vset.pattern.permute.xlu0 0
        %2904 = vperm.xlu0 %2903, %v1478
        %v2905 = vpop.permute.xlu0 %2904
        %v2907 = vadd.f32 %v2746, %v2750
        %v2908 = vadd.f32 %v2745, %v2755
        %v2909 = vadd.f32 %v2744, %v2760
        %v2910 = vadd.f32 %v2743, %v2765
        %v2911 = vadd.f32 %v2742, %v2770
        %v2912 = vadd.f32 %v2741, %v2775
        %v2913 = vadd.f32 %v2740, %v2780
        %v2914 = vadd.f32 %v2739, %v2785
        %v2915 = vadd.f32 %v2738, %v2790
        %v2916 = vadd.f32 %v2737, %v2795
        %v2917 = vadd.f32 %v2736, %v2800
        %v2918 = vadd.f32 %v2735, %v2805
        %v2919 = vadd.f32 %v2734, %v2810
        %v2920 = vadd.f32 %v2733, %v2815
        %v2921 = vadd.f32 %v2732, %v2820
        %v2922 = vadd.f32 %v2731, %v2825
        %v2923 = vadd.f32 %v2730, %v2830
        %v2924 = vadd.f32 %v2729, %v2835
        %v2925 = vadd.f32 %v2728, %v2840
        %v2926 = vadd.f32 %v2727, %v2845
        %v2927 = vadd.f32 %v2726, %v2850
        %v2928 = vadd.f32 %v2725, %v2855
        %v2929 = vadd.f32 %v2724, %v2860
        %v2930 = vadd.f32 %v2723, %v2865
        %v2931 = vadd.f32 %v2722, %v2870
        %v2932 = vadd.f32 %v2721, %v2875
        %v2933 = vadd.f32 %v2720, %v2880
        %v2934 = vadd.f32 %v2719, %v2885
        %v2935 = vadd.f32 %v2718, %v2890
        %v2936 = vadd.f32 %v2717, %v2895
        %v2937 = vadd.f32 %v2716, %v2900
        %v2938 = vadd.f32 %v2715, %v2905
        %v2939 = vmax.f32 %v1138, %v2907
        %v2940 = vmax.f32 %v1139, %v2908
        %v2941 = vmax.f32 %v1140, %v2909
        %v2942 = vmax.f32 %v1141, %v2910
        %v2943 = vmax.f32 %v1142, %v2911
        %v2944 = vmax.f32 %v1143, %v2912
        %v2945 = vmax.f32 %v1144, %v2913
        %v2946 = vmax.f32 %v1145, %v2914
        %v2947 = vmax.f32 %v1146, %v2915
        %v2948 = vmax.f32 %v1147, %v2916
        %v2949 = vmax.f32 %v1148, %v2917
        %v2950 = vmax.f32 %v1149, %v2918
        %v2951 = vmax.f32 %v1150, %v2919
        %v2952 = vmax.f32 %v1151, %v2920
        %v2953 = vmax.f32 %v1152, %v2921
        %v2954 = vmax.f32 %v1153, %v2922
        %v2955 = vmax.f32 %v1154, %v2923
        %v2956 = vmax.f32 %v1155, %v2924
        %v2957 = vmax.f32 %v1156, %v2925
        %v2958 = vmax.f32 %v1157, %v2926
        %v2959 = vmax.f32 %v1158, %v2927
        %v2960 = vmax.f32 %v1159, %v2928
        %v2961 = vmax.f32 %v1160, %v2929
        %v2962 = vmax.f32 %v1161, %v2930
        %v2963 = vmax.f32 %v1162, %v2931
        %v2964 = vmax.f32 %v1163, %v2932
        %v2965 = vmax.f32 %v1164, %v2933
        %v2966 = vmax.f32 %v1165, %v2934
        %v2967 = vmax.f32 %v1166, %v2935
        %v2968 = vmax.f32 %v1167, %v2936
        %v2969 = vmax.f32 %v1168, %v2937
        %v2970 = vmax.f32 %v1169, %v2938
        %v2971 = vrot.slane %v1138, 1
        %v2972 = vrot.slane %v1139, 1
        %v2973 = vrot.slane %v1140, 1
        %v2974 = vrot.slane %v1141, 1
        %v2975 = vrot.slane %v1142, 1
        %v2976 = vrot.slane %v1143, 1
        %v2977 = vrot.slane %v1144, 1
        %v2978 = vrot.slane %v1145, 1
        %v2979 = vrot.slane %v1146, 1
        %v2980 = vrot.slane %v1147, 1
        %v2981 = vrot.slane %v1148, 1
        %v2982 = vrot.slane %v1149, 1
        %v2983 = vrot.slane %v1150, 1
        %v2984 = vrot.slane %v1151, 1
        %v2985 = vrot.slane %v1152, 1
        %v2986 = vrot.slane %v1153, 1
        %v2987 = vrot.slane %v1154, 1
        %v2988 = vrot.slane %v1155, 1
        %v2989 = vrot.slane %v1156, 1
        %v2990 = vrot.slane %v1157, 1
        %v2991 = vrot.slane %v1158, 1
        %v2992 = vrot.slane %v1159, 1
        %v2993 = vrot.slane %v1160, 1
        %v2994 = vrot.slane %v1161, 1
        %v2995 = vrot.slane %v1162, 1
        %v2996 = vrot.slane %v1163, 1
        %v2997 = vrot.slane %v1164, 1
        %v2998 = vrot.slane %v1165, 1
        %v2999 = vrot.slane %v1166, 1
        %v3000 = vrot.slane %v1167, 1
        %v3001 = vrot.slane %v1168, 1
        %v3002 = vrot.slane %v1169, 1
        %v3003 = vsel %vm1511, %v3001, %v3002
        %v3004 = vsel %vm1511, %v3000, %v3001
        %v3005 = vsel %vm1511, %v2999, %v3000
        %v3006 = vsel %vm1511, %v2998, %v2999
        %v3007 = vsel %vm1511, %v2997, %v2998
        %v3008 = vsel %vm1511, %v2996, %v2997
        %v3009 = vsel %vm1511, %v2995, %v2996
        %v3010 = vsel %vm1511, %v2994, %v2995
        %v3011 = vsel %vm1511, %v2993, %v2994
        %v3012 = vsel %vm1511, %v2992, %v2993
        %v3013 = vsel %vm1511, %v2991, %v2992
        %v3014 = vsel %vm1511, %v2990, %v2991
        %v3015 = vsel %vm1511, %v2989, %v2990
        %v3016 = vsel %vm1511, %v2988, %v2989
        %v3017 = vsel %vm1511, %v2987, %v2988
        %v3018 = vsel %vm1511, %v2986, %v2987
        %v3019 = vsel %vm1511, %v2985, %v2986
        %v3020 = vsel %vm1511, %v2984, %v2985
        %v3021 = vsel %vm1511, %v2983, %v2984
        %v3022 = vsel %vm1511, %v2982, %v2983
        %v3023 = vsel %vm1511, %v2981, %v2982
        %v3024 = vsel %vm1511, %v2980, %v2981
        %v3025 = vsel %vm1511, %v2979, %v2980
        %v3026 = vsel %vm1511, %v2978, %v2979
        %v3027 = vsel %vm1511, %v2977, %v2978
        %v3028 = vsel %vm1511, %v2976, %v2977
        %v3029 = vsel %vm1511, %v2975, %v2976
        %v3030 = vsel %vm1511, %v2974, %v2975
        %v3031 = vsel %vm1511, %v2973, %v2974
        %v3032 = vsel %vm1511, %v2972, %v2973
        %v3033 = vsel %vm1511, %v2971, %v2972
        %v3034 = vsel %vm1511, %v3002, %v2971
        %3036 = vset.pattern.permute.xlu0 0
        %3037 = vperm.xlu0 %3036, %v1576
        %v3038 = vpop.permute.xlu0 %3037
        %3041 = vset.pattern.permute.xlu0 0
        %3042 = vperm.xlu0 %3041, %v1577
        %v3043 = vpop.permute.xlu0 %3042
        %3046 = vset.pattern.permute.xlu0 0
        %3047 = vperm.xlu0 %3046, %v1578
        %v3048 = vpop.permute.xlu0 %3047
        %3051 = vset.pattern.permute.xlu0 0
        %3052 = vperm.xlu0 %3051, %v1579
        %v3053 = vpop.permute.xlu0 %3052
        %3056 = vset.pattern.permute.xlu0 0
        %3057 = vperm.xlu0 %3056, %v1580
        %v3058 = vpop.permute.xlu0 %3057
        %3061 = vset.pattern.permute.xlu0 0
        %3062 = vperm.xlu0 %3061, %v1581
        %v3063 = vpop.permute.xlu0 %3062
        %3066 = vset.pattern.permute.xlu0 0
        %3067 = vperm.xlu0 %3066, %v1582
        %v3068 = vpop.permute.xlu0 %3067
        %3071 = vset.pattern.permute.xlu0 0
        %3072 = vperm.xlu0 %3071, %v1583
        %v3073 = vpop.permute.xlu0 %3072
        %3076 = vset.pattern.permute.xlu0 0
        %3077 = vperm.xlu0 %3076, %v1584
        %v3078 = vpop.permute.xlu0 %3077
        %3081 = vset.pattern.permute.xlu0 0
        %3082 = vperm.xlu0 %3081, %v1585
        %v3083 = vpop.permute.xlu0 %3082
        %3086 = vset.pattern.permute.xlu0 0
        %3087 = vperm.xlu0 %3086, %v1586
        %v3088 = vpop.permute.xlu0 %3087
        %3091 = vset.pattern.permute.xlu0 0
        %3092 = vperm.xlu0 %3091, %v1587
        %v3093 = vpop.permute.xlu0 %3092
        %3096 = vset.pattern.permute.xlu0 0
        %3097 = vperm.xlu0 %3096, %v1588
        %v3098 = vpop.permute.xlu0 %3097
        %3101 = vset.pattern.permute.xlu0 0
        %3102 = vperm.xlu0 %3101, %v1589
        %v3103 = vpop.permute.xlu0 %3102
        %3106 = vset.pattern.permute.xlu0 0
        %3107 = vperm.xlu0 %3106, %v1590
        %v3108 = vpop.permute.xlu0 %3107
        %3111 = vset.pattern.permute.xlu0 0
        %3112 = vperm.xlu0 %3111, %v1591
        %v3113 = vpop.permute.xlu0 %3112
        %3116 = vset.pattern.permute.xlu0 0
        %3117 = vperm.xlu0 %3116, %v1592
        %v3118 = vpop.permute.xlu0 %3117
        %3121 = vset.pattern.permute.xlu0 0
        %3122 = vperm.xlu0 %3121, %v1593
        %v3123 = vpop.permute.xlu0 %3122
        %3126 = vset.pattern.permute.xlu0 0
        %3127 = vperm.xlu0 %3126, %v1594
        %v3128 = vpop.permute.xlu0 %3127
        %3131 = vset.pattern.permute.xlu0 0
        %3132 = vperm.xlu0 %3131, %v1595
        %v3133 = vpop.permute.xlu0 %3132
        %3136 = vset.pattern.permute.xlu0 0
        %3137 = vperm.xlu0 %3136, %v1596
        %v3138 = vpop.permute.xlu0 %3137
        %3141 = vset.pattern.permute.xlu0 0
        %3142 = vperm.xlu0 %3141, %v1597
        %v3143 = vpop.permute.xlu0 %3142
        %3146 = vset.pattern.permute.xlu0 0
        %3147 = vperm.xlu0 %3146, %v1598
        %v3148 = vpop.permute.xlu0 %3147
        %3151 = vset.pattern.permute.xlu0 0
        %3152 = vperm.xlu0 %3151, %v1599
        %v3153 = vpop.permute.xlu0 %3152
        %3156 = vset.pattern.permute.xlu0 0
        %3157 = vperm.xlu0 %3156, %v1600
        %v3158 = vpop.permute.xlu0 %3157
        %3161 = vset.pattern.permute.xlu0 0
        %3162 = vperm.xlu0 %3161, %v1601
        %v3163 = vpop.permute.xlu0 %3162
        %3166 = vset.pattern.permute.xlu0 0
        %3167 = vperm.xlu0 %3166, %v1602
        %v3168 = vpop.permute.xlu0 %3167
        %3171 = vset.pattern.permute.xlu0 0
        %3172 = vperm.xlu0 %3171, %v1603
        %v3173 = vpop.permute.xlu0 %3172
        %3176 = vset.pattern.permute.xlu0 0
        %3177 = vperm.xlu0 %3176, %v1604
        %v3178 = vpop.permute.xlu0 %3177
        %3181 = vset.pattern.permute.xlu0 0
        %3182 = vperm.xlu0 %3181, %v1605
        %v3183 = vpop.permute.xlu0 %3182
        %3186 = vset.pattern.permute.xlu0 0
        %3187 = vperm.xlu0 %3186, %v1606
        %v3188 = vpop.permute.xlu0 %3187
        %3191 = vset.pattern.permute.xlu0 0
        %3192 = vperm.xlu0 %3191, %v1607
        %v3193 = vpop.permute.xlu0 %3192
        %v3195 = vadd.f32 %v3033, %v3038
        %v3196 = vadd.f32 %v3032, %v3043
        %v3197 = vadd.f32 %v3031, %v3048
        %v3198 = vadd.f32 %v3030, %v3053
        %v3199 = vadd.f32 %v3029, %v3058
        %v3200 = vadd.f32 %v3028, %v3063
        %v3201 = vadd.f32 %v3027, %v3068
        %v3202 = vadd.f32 %v3026, %v3073
        %v3203 = vadd.f32 %v3025, %v3078
        %v3204 = vadd.f32 %v3024, %v3083
        %v3205 = vadd.f32 %v3023, %v3088
        %v3206 = vadd.f32 %v3022, %v3093
        %v3207 = vadd.f32 %v3021, %v3098
        %v3208 = vadd.f32 %v3020, %v3103
        %v3209 = vadd.f32 %v3019, %v3108
        %v3210 = vadd.f32 %v3018, %v3113
        %v3211 = vadd.f32 %v3017, %v3118
        %v3212 = vadd.f32 %v3016, %v3123
        %v3213 = vadd.f32 %v3015, %v3128
        %v3214 = vadd.f32 %v3014, %v3133
        %v3215 = vadd.f32 %v3013, %v3138
        %v3216 = vadd.f32 %v3012, %v3143
        %v3217 = vadd.f32 %v3011, %v3148
        %v3218 = vadd.f32 %v3010, %v3153
        %v3219 = vadd.f32 %v3009, %v3158
        %v3220 = vadd.f32 %v3008, %v3163
        %v3221 = vadd.f32 %v3007, %v3168
        %v3222 = vadd.f32 %v3006, %v3173
        %v3223 = vadd.f32 %v3005, %v3178
        %v3224 = vadd.f32 %v3004, %v3183
        %v3225 = vadd.f32 %v3003, %v3188
        %v3226 = vadd.f32 %v3034, %v3193
        %v3227 = vmax.f32 %v2939, %v3195
        %v3228 = vmax.f32 %v2940, %v3196
        %v3229 = vmax.f32 %v2941, %v3197
        %v3230 = vmax.f32 %v2942, %v3198
        %v3231 = vmax.f32 %v2943, %v3199
        %v3232 = vmax.f32 %v2944, %v3200
        %v3233 = vmax.f32 %v2945, %v3201
        %v3234 = vmax.f32 %v2946, %v3202
        %v3235 = vmax.f32 %v2947, %v3203
        %v3236 = vmax.f32 %v2948, %v3204
        %v3237 = vmax.f32 %v2949, %v3205
        %v3238 = vmax.f32 %v2950, %v3206
        %v3239 = vmax.f32 %v2951, %v3207
        %v3240 = vmax.f32 %v2952, %v3208
        %v3241 = vmax.f32 %v2953, %v3209
        %v3242 = vmax.f32 %v2954, %v3210
        %v3243 = vmax.f32 %v2955, %v3211
        %v3244 = vmax.f32 %v2956, %v3212
        %v3245 = vmax.f32 %v2957, %v3213
        %v3246 = vmax.f32 %v2958, %v3214
        %v3247 = vmax.f32 %v2959, %v3215
        %v3248 = vmax.f32 %v2960, %v3216
        %v3249 = vmax.f32 %v2961, %v3217
        %v3250 = vmax.f32 %v2962, %v3218
        %v3251 = vmax.f32 %v2963, %v3219
        %v3252 = vmax.f32 %v2964, %v3220
        %v3253 = vmax.f32 %v2965, %v3221
        %v3254 = vmax.f32 %v2966, %v3222
        %v3255 = vmax.f32 %v2967, %v3223
        %v3256 = vmax.f32 %v2968, %v3224
        %v3257 = vmax.f32 %v2969, %v3225
        %v3258 = vmax.f32 %v2970, %v3226
        %v3259 = vrot.slane %v1138, 6
        %v3260 = vrot.slane %v1139, 6
        %v3261 = vrot.slane %v1140, 6
        %v3262 = vrot.slane %v1141, 6
        %v3263 = vrot.slane %v1142, 6
        %v3264 = vrot.slane %v1143, 6
        %v3265 = vrot.slane %v1144, 6
        %v3266 = vrot.slane %v1145, 6
        %v3267 = vrot.slane %v1146, 6
        %v3268 = vrot.slane %v1147, 6
        %v3269 = vrot.slane %v1148, 6
        %v3270 = vrot.slane %v1149, 6
        %v3271 = vrot.slane %v1150, 6
        %v3272 = vrot.slane %v1151, 6
        %v3273 = vrot.slane %v1152, 6
        %v3274 = vrot.slane %v1153, 6
        %v3275 = vrot.slane %v1154, 6
        %v3276 = vrot.slane %v1155, 6
        %v3277 = vrot.slane %v1156, 6
        %v3278 = vrot.slane %v1157, 6
        %v3279 = vrot.slane %v1158, 6
        %v3280 = vrot.slane %v1159, 6
        %v3281 = vrot.slane %v1160, 6
        %v3282 = vrot.slane %v1161, 6
        %v3283 = vrot.slane %v1162, 6
        %v3284 = vrot.slane %v1163, 6
        %v3285 = vrot.slane %v1164, 6
        %v3286 = vrot.slane %v1165, 6
        %v3287 = vrot.slane %v1166, 6
        %v3288 = vrot.slane %v1167, 6
        %v3289 = vrot.slane %v1168, 6
        %v3290 = vrot.slane %v1169, 6
        %v3291 = vsel %vm1896, %v3289, %v3290
        %v3292 = vsel %vm1896, %v3288, %v3289
        %v3293 = vsel %vm1896, %v3287, %v3288
        %v3294 = vsel %vm1896, %v3286, %v3287
        %v3295 = vsel %vm1896, %v3285, %v3286
        %v3296 = vsel %vm1896, %v3284, %v3285
        %v3297 = vsel %vm1896, %v3283, %v3284
        %v3298 = vsel %vm1896, %v3282, %v3283
        %v3299 = vsel %vm1896, %v3281, %v3282
        %v3300 = vsel %vm1896, %v3280, %v3281
        %v3301 = vsel %vm1896, %v3279, %v3280
        %v3302 = vsel %vm1896, %v3278, %v3279
        %v3303 = vsel %vm1896, %v3277, %v3278
        %v3304 = vsel %vm1896, %v3276, %v3277
        %v3305 = vsel %vm1896, %v3275, %v3276
        %v3306 = vsel %vm1896, %v3274, %v3275
        %v3307 = vsel %vm1896, %v3273, %v3274
        %v3308 = vsel %vm1896, %v3272, %v3273
        %v3309 = vsel %vm1896, %v3271, %v3272
        %v3310 = vsel %vm1896, %v3270, %v3271
        %v3311 = vsel %vm1896, %v3269, %v3270
        %v3312 = vsel %vm1896, %v3268, %v3269
        %v3313 = vsel %vm1896, %v3267, %v3268
        %v3314 = vsel %vm1896, %v3266, %v3267
        %v3315 = vsel %vm1896, %v3265, %v3266
        %v3316 = vsel %vm1896, %v3264, %v3265
        %v3317 = vsel %vm1896, %v3263, %v3264
        %v3318 = vsel %vm1896, %v3262, %v3263
        %v3319 = vsel %vm1896, %v3261, %v3262
        %v3320 = vsel %vm1896, %v3260, %v3261
        %v3321 = vsel %vm1896, %v3259, %v3260
        %v3322 = vsel %vm1896, %v3290, %v3259
        %3324 = vset.pattern.permute.xlu0 0
        %3325 = vperm.xlu0 %3324, %v1961
        %v3326 = vpop.permute.xlu0 %3325
        %3329 = vset.pattern.permute.xlu0 0
        %3330 = vperm.xlu0 %3329, %v1962
        %v3331 = vpop.permute.xlu0 %3330
        %3334 = vset.pattern.permute.xlu0 0
        %3335 = vperm.xlu0 %3334, %v1963
        %v3336 = vpop.permute.xlu0 %3335
        %3339 = vset.pattern.permute.xlu0 0
        %3340 = vperm.xlu0 %3339, %v1964
        %v3341 = vpop.permute.xlu0 %3340
        %3344 = vset.pattern.permute.xlu0 0
        %3345 = vperm.xlu0 %3344, %v1965
        %v3346 = vpop.permute.xlu0 %3345
        %3349 = vset.pattern.permute.xlu0 0
        %3350 = vperm.xlu0 %3349, %v1966
        %v3351 = vpop.permute.xlu0 %3350
        %3354 = vset.pattern.permute.xlu0 0
        %3355 = vperm.xlu0 %3354, %v1967
        %v3356 = vpop.permute.xlu0 %3355
        %3359 = vset.pattern.permute.xlu0 0
        %3360 = vperm.xlu0 %3359, %v1968
        %v3361 = vpop.permute.xlu0 %3360
        %3364 = vset.pattern.permute.xlu0 0
        %3365 = vperm.xlu0 %3364, %v1969
        %v3366 = vpop.permute.xlu0 %3365
        %3369 = vset.pattern.permute.xlu0 0
        %3370 = vperm.xlu0 %3369, %v1970
        %v3371 = vpop.permute.xlu0 %3370
        %3374 = vset.pattern.permute.xlu0 0
        %3375 = vperm.xlu0 %3374, %v1971
        %v3376 = vpop.permute.xlu0 %3375
        %3379 = vset.pattern.permute.xlu0 0
        %3380 = vperm.xlu0 %3379, %v1972
        %v3381 = vpop.permute.xlu0 %3380
        %3384 = vset.pattern.permute.xlu0 0
        %3385 = vperm.xlu0 %3384, %v1973
        %v3386 = vpop.permute.xlu0 %3385
        %3389 = vset.pattern.permute.xlu0 0
        %3390 = vperm.xlu0 %3389, %v1974
        %v3391 = vpop.permute.xlu0 %3390
        %3394 = vset.pattern.permute.xlu0 0
        %3395 = vperm.xlu0 %3394, %v1975
        %v3396 = vpop.permute.xlu0 %3395
        %3399 = vset.pattern.permute.xlu0 0
        %3400 = vperm.xlu0 %3399, %v1976
        %v3401 = vpop.permute.xlu0 %3400
        %3404 = vset.pattern.permute.xlu0 0
        %3405 = vperm.xlu0 %3404, %v1977
        %v3406 = vpop.permute.xlu0 %3405
        %3409 = vset.pattern.permute.xlu0 0
        %3410 = vperm.xlu0 %3409, %v1978
        %v3411 = vpop.permute.xlu0 %3410
        %3414 = vset.pattern.permute.xlu0 0
        %3415 = vperm.xlu0 %3414, %v1979
        %v3416 = vpop.permute.xlu0 %3415
        %3419 = vset.pattern.permute.xlu0 0
        %3420 = vperm.xlu0 %3419, %v1980
        %v3421 = vpop.permute.xlu0 %3420
        %3424 = vset.pattern.permute.xlu0 0
        %3425 = vperm.xlu0 %3424, %v1981
        %v3426 = vpop.permute.xlu0 %3425
        %3429 = vset.pattern.permute.xlu0 0
        %3430 = vperm.xlu0 %3429, %v1982
        %v3431 = vpop.permute.xlu0 %3430
        %3434 = vset.pattern.permute.xlu0 0
        %3435 = vperm.xlu0 %3434, %v1983
        %v3436 = vpop.permute.xlu0 %3435
        %3439 = vset.pattern.permute.xlu0 0
        %3440 = vperm.xlu0 %3439, %v1984
        %v3441 = vpop.permute.xlu0 %3440
        %3444 = vset.pattern.permute.xlu0 0
        %3445 = vperm.xlu0 %3444, %v1985
        %v3446 = vpop.permute.xlu0 %3445
        %3449 = vset.pattern.permute.xlu0 0
        %3450 = vperm.xlu0 %3449, %v1986
        %v3451 = vpop.permute.xlu0 %3450
        %3454 = vset.pattern.permute.xlu0 0
        %3455 = vperm.xlu0 %3454, %v1987
        %v3456 = vpop.permute.xlu0 %3455
        %3459 = vset.pattern.permute.xlu0 0
        %3460 = vperm.xlu0 %3459, %v1988
        %v3461 = vpop.permute.xlu0 %3460
        %3464 = vset.pattern.permute.xlu0 0
        %3465 = vperm.xlu0 %3464, %v1989
        %v3466 = vpop.permute.xlu0 %3465
        %3469 = vset.pattern.permute.xlu0 0
        %3470 = vperm.xlu0 %3469, %v1990
        %v3471 = vpop.permute.xlu0 %3470
        %3474 = vset.pattern.permute.xlu0 0
        %3475 = vperm.xlu0 %3474, %v1991
        %v3476 = vpop.permute.xlu0 %3475
        %3479 = vset.pattern.permute.xlu0 0
        %3480 = vperm.xlu0 %3479, %v1992
        %v3481 = vpop.permute.xlu0 %3480
        %v3483 = vadd.f32 %v3322, %v3326
        %v3484 = vadd.f32 %v3321, %v3331
        %v3485 = vadd.f32 %v3320, %v3336
        %v3486 = vadd.f32 %v3319, %v3341
        %v3487 = vadd.f32 %v3318, %v3346
        %v3488 = vadd.f32 %v3317, %v3351
        %v3489 = vadd.f32 %v3316, %v3356
        %v3490 = vadd.f32 %v3315, %v3361
        %v3491 = vadd.f32 %v3314, %v3366
        %v3492 = vadd.f32 %v3313, %v3371
        %v3493 = vadd.f32 %v3312, %v3376
        %v3494 = vadd.f32 %v3311, %v3381
        %v3495 = vadd.f32 %v3310, %v3386
        %v3496 = vadd.f32 %v3309, %v3391
        %v3497 = vadd.f32 %v3308, %v3396
        %v3498 = vadd.f32 %v3307, %v3401
        %v3499 = vadd.f32 %v3306, %v3406
        %v3500 = vadd.f32 %v3305, %v3411
        %v3501 = vadd.f32 %v3304, %v3416
        %v3502 = vadd.f32 %v3303, %v3421
        %v3503 = vadd.f32 %v3302, %v3426
        %v3504 = vadd.f32 %v3301, %v3431
        %v3505 = vadd.f32 %v3300, %v3436
        %v3506 = vadd.f32 %v3299, %v3441
        %v3507 = vadd.f32 %v3298, %v3446
        %v3508 = vadd.f32 %v3297, %v3451
        %v3509 = vadd.f32 %v3296, %v3456
        %v3510 = vadd.f32 %v3295, %v3461
        %v3511 = vadd.f32 %v3294, %v3466
        %v3512 = vadd.f32 %v3293, %v3471
        %v3513 = vadd.f32 %v3292, %v3476
        %v3514 = vadd.f32 %v3291, %v3481
        %v3515 = vmax.f32 %v3227, %v3483
        %v3516 = vmax.f32 %v3228, %v3484
        %v3517 = vmax.f32 %v3229, %v3485
        %v3518 = vmax.f32 %v3230, %v3486
        %v3519 = vmax.f32 %v3231, %v3487
        %v3520 = vmax.f32 %v3232, %v3488
        %v3521 = vmax.f32 %v3233, %v3489
        %v3522 = vmax.f32 %v3234, %v3490
        %v3523 = vmax.f32 %v3235, %v3491
        %v3524 = vmax.f32 %v3236, %v3492
        %v3525 = vmax.f32 %v3237, %v3493
        %v3526 = vmax.f32 %v3238, %v3494
        %v3527 = vmax.f32 %v3239, %v3495
        %v3528 = vmax.f32 %v3240, %v3496
        %v3529 = vmax.f32 %v3241, %v3497
        %v3530 = vmax.f32 %v3242, %v3498
        %v3531 = vmax.f32 %v3243, %v3499
        %v3532 = vmax.f32 %v3244, %v3500
        %v3533 = vmax.f32 %v3245, %v3501
        %v3534 = vmax.f32 %v3246, %v3502
        %v3535 = vmax.f32 %v3247, %v3503
        %v3536 = vmax.f32 %v3248, %v3504
        %v3537 = vmax.f32 %v3249, %v3505
        %v3538 = vmax.f32 %v3250, %v3506
        %v3539 = vmax.f32 %v3251, %v3507
        %v3540 = vmax.f32 %v3252, %v3508
        %v3541 = vmax.f32 %v3253, %v3509
        %v3542 = vmax.f32 %v3254, %v3510
        %v3543 = vmax.f32 %v3255, %v3511
        %v3544 = vmax.f32 %v3256, %v3512
        %v3545 = vmax.f32 %v3257, %v3513
        %v3546 = vmax.f32 %v3258, %v3514
        %v3547 = vrot.slane %v1138, 2
        %v3548 = vrot.slane %v1139, 2
        %v3549 = vrot.slane %v1140, 2
        %v3550 = vrot.slane %v1141, 2
        %v3551 = vrot.slane %v1142, 2
        %v3552 = vrot.slane %v1143, 2
        %v3553 = vrot.slane %v1144, 2
        %v3554 = vrot.slane %v1145, 2
        %v3555 = vrot.slane %v1146, 2
        %v3556 = vrot.slane %v1147, 2
        %v3557 = vrot.slane %v1148, 2
        %v3558 = vrot.slane %v1149, 2
        %v3559 = vrot.slane %v1150, 2
        %v3560 = vrot.slane %v1151, 2
        %v3561 = vrot.slane %v1152, 2
        %v3562 = vrot.slane %v1153, 2
        %v3563 = vrot.slane %v1154, 2
        %v3564 = vrot.slane %v1155, 2
        %v3565 = vrot.slane %v1156, 2
        %v3566 = vrot.slane %v1157, 2
        %v3567 = vrot.slane %v1158, 2
        %v3568 = vrot.slane %v1159, 2
        %v3569 = vrot.slane %v1160, 2
        %v3570 = vrot.slane %v1161, 2
        %v3571 = vrot.slane %v1162, 2
        %v3572 = vrot.slane %v1163, 2
        %v3573 = vrot.slane %v1164, 2
        %v3574 = vrot.slane %v1165, 2
        %v3575 = vrot.slane %v1166, 2
        %v3576 = vrot.slane %v1167, 2
        %v3577 = vrot.slane %v1168, 2
        %v3578 = vrot.slane %v1169, 2
        %v3579 = vsel %vm2025, %v3577, %v3578
        %v3580 = vsel %vm2025, %v3576, %v3577
        %v3581 = vsel %vm2025, %v3575, %v3576
        %v3582 = vsel %vm2025, %v3574, %v3575
        %v3583 = vsel %vm2025, %v3573, %v3574
        %v3584 = vsel %vm2025, %v3572, %v3573
        %v3585 = vsel %vm2025, %v3571, %v3572
        %v3586 = vsel %vm2025, %v3570, %v3571
        %v3587 = vsel %vm2025, %v3569, %v3570
        %v3588 = vsel %vm2025, %v3568, %v3569
        %v3589 = vsel %vm2025, %v3567, %v3568
        %v3590 = vsel %vm2025, %v3566, %v3567
        %v3591 = vsel %vm2025, %v3565, %v3566
        %v3592 = vsel %vm2025, %v3564, %v3565
        %v3593 = vsel %vm2025, %v3563, %v3564
        %v3594 = vsel %vm2025, %v3562, %v3563
        %v3595 = vsel %vm2025, %v3561, %v3562
        %v3596 = vsel %vm2025, %v3560, %v3561
        %v3597 = vsel %vm2025, %v3559, %v3560
        %v3598 = vsel %vm2025, %v3558, %v3559
        %v3599 = vsel %vm2025, %v3557, %v3558
        %v3600 = vsel %vm2025, %v3556, %v3557
        %v3601 = vsel %vm2025, %v3555, %v3556
        %v3602 = vsel %vm2025, %v3554, %v3555
        %v3603 = vsel %vm2025, %v3553, %v3554
        %v3604 = vsel %vm2025, %v3552, %v3553
        %v3605 = vsel %vm2025, %v3551, %v3552
        %v3606 = vsel %vm2025, %v3550, %v3551
        %v3607 = vsel %vm2025, %v3549, %v3550
        %v3608 = vsel %vm2025, %v3548, %v3549
        %v3609 = vsel %vm2025, %v3547, %v3548
        %v3610 = vsel %vm2025, %v3578, %v3547
        %3612 = vset.pattern.permute.xlu0 0
        %3613 = vperm.xlu0 %3612, %v2090
        %v3614 = vpop.permute.xlu0 %3613
        %3617 = vset.pattern.permute.xlu0 0
        %3618 = vperm.xlu0 %3617, %v2091
        %v3619 = vpop.permute.xlu0 %3618
        %3622 = vset.pattern.permute.xlu0 0
        %3623 = vperm.xlu0 %3622, %v2092
        %v3624 = vpop.permute.xlu0 %3623
        %3627 = vset.pattern.permute.xlu0 0
        %3628 = vperm.xlu0 %3627, %v2093
        %v3629 = vpop.permute.xlu0 %3628
        %3632 = vset.pattern.permute.xlu0 0
        %3633 = vperm.xlu0 %3632, %v2094
        %v3634 = vpop.permute.xlu0 %3633
        %3637 = vset.pattern.permute.xlu0 0
        %3638 = vperm.xlu0 %3637, %v2095
        %v3639 = vpop.permute.xlu0 %3638
        %3642 = vset.pattern.permute.xlu0 0
        %3643 = vperm.xlu0 %3642, %v2096
        %v3644 = vpop.permute.xlu0 %3643
        %3647 = vset.pattern.permute.xlu0 0
        %3648 = vperm.xlu0 %3647, %v2097
        %v3649 = vpop.permute.xlu0 %3648
        %3652 = vset.pattern.permute.xlu0 0
        %3653 = vperm.xlu0 %3652, %v2098
        %v3654 = vpop.permute.xlu0 %3653
        %3657 = vset.pattern.permute.xlu0 0
        %3658 = vperm.xlu0 %3657, %v2099
        %v3659 = vpop.permute.xlu0 %3658
        %3662 = vset.pattern.permute.xlu0 0
        %3663 = vperm.xlu0 %3662, %v2100
        %v3664 = vpop.permute.xlu0 %3663
        %3667 = vset.pattern.permute.xlu0 0
        %3668 = vperm.xlu0 %3667, %v2101
        %v3669 = vpop.permute.xlu0 %3668
        %3672 = vset.pattern.permute.xlu0 0
        %3673 = vperm.xlu0 %3672, %v2102
        %v3674 = vpop.permute.xlu0 %3673
        %3677 = vset.pattern.permute.xlu0 0
        %3678 = vperm.xlu0 %3677, %v2103
        %v3679 = vpop.permute.xlu0 %3678
        %3682 = vset.pattern.permute.xlu0 0
        %3683 = vperm.xlu0 %3682, %v2104
        %v3684 = vpop.permute.xlu0 %3683
        %3687 = vset.pattern.permute.xlu0 0
        %3688 = vperm.xlu0 %3687, %v2105
        %v3689 = vpop.permute.xlu0 %3688
        %3692 = vset.pattern.permute.xlu0 0
        %3693 = vperm.xlu0 %3692, %v2106
        %v3694 = vpop.permute.xlu0 %3693
        %3697 = vset.pattern.permute.xlu0 0
        %3698 = vperm.xlu0 %3697, %v2107
        %v3699 = vpop.permute.xlu0 %3698
        %3702 = vset.pattern.permute.xlu0 0
        %3703 = vperm.xlu0 %3702, %v2108
        %v3704 = vpop.permute.xlu0 %3703
        %3707 = vset.pattern.permute.xlu0 0
        %3708 = vperm.xlu0 %3707, %v2109
        %v3709 = vpop.permute.xlu0 %3708
        %3712 = vset.pattern.permute.xlu0 0
        %3713 = vperm.xlu0 %3712, %v2110
        %v3714 = vpop.permute.xlu0 %3713
        %3717 = vset.pattern.permute.xlu0 0
        %3718 = vperm.xlu0 %3717, %v2111
        %v3719 = vpop.permute.xlu0 %3718
        %3722 = vset.pattern.permute.xlu0 0
        %3723 = vperm.xlu0 %3722, %v2112
        %v3724 = vpop.permute.xlu0 %3723
        %3727 = vset.pattern.permute.xlu0 0
        %3728 = vperm.xlu0 %3727, %v2113
        %v3729 = vpop.permute.xlu0 %3728
        %3732 = vset.pattern.permute.xlu0 0
        %3733 = vperm.xlu0 %3732, %v2114
        %v3734 = vpop.permute.xlu0 %3733
        %3737 = vset.pattern.permute.xlu0 0
        %3738 = vperm.xlu0 %3737, %v2115
        %v3739 = vpop.permute.xlu0 %3738
        %3742 = vset.pattern.permute.xlu0 0
        %3743 = vperm.xlu0 %3742, %v2116
        %v3744 = vpop.permute.xlu0 %3743
        %3747 = vset.pattern.permute.xlu0 0
        %3748 = vperm.xlu0 %3747, %v2117
        %v3749 = vpop.permute.xlu0 %3748
        %3752 = vset.pattern.permute.xlu0 0
        %3753 = vperm.xlu0 %3752, %v2118
        %v3754 = vpop.permute.xlu0 %3753
        %3757 = vset.pattern.permute.xlu0 0
        %3758 = vperm.xlu0 %3757, %v2119
        %v3759 = vpop.permute.xlu0 %3758
        %3762 = vset.pattern.permute.xlu0 0
        %3763 = vperm.xlu0 %3762, %v2120
        %v3764 = vpop.permute.xlu0 %3763
        %3767 = vset.pattern.permute.xlu0 0
        %3768 = vperm.xlu0 %3767, %v2121
        %v3769 = vpop.permute.xlu0 %3768
        %v3771 = vadd.f32 %v3609, %v3614
        %v3772 = vadd.f32 %v3608, %v3619
        %v3773 = vadd.f32 %v3607, %v3624
        %v3774 = vadd.f32 %v3606, %v3629
        %v3775 = vadd.f32 %v3605, %v3634
        %v3776 = vadd.f32 %v3604, %v3639
        %v3777 = vadd.f32 %v3603, %v3644
        %v3778 = vadd.f32 %v3602, %v3649
        %v3779 = vadd.f32 %v3601, %v3654
        %v3780 = vadd.f32 %v3600, %v3659
        %v3781 = vadd.f32 %v3599, %v3664
        %v3782 = vadd.f32 %v3598, %v3669
        %v3783 = vadd.f32 %v3597, %v3674
        %v3784 = vadd.f32 %v3596, %v3679
        %v3785 = vadd.f32 %v3595, %v3684
        %v3786 = vadd.f32 %v3594, %v3689
        %v3787 = vadd.f32 %v3593, %v3694
        %v3788 = vadd.f32 %v3592, %v3699
        %v3789 = vadd.f32 %v3591, %v3704
        %v3790 = vadd.f32 %v3590, %v3709
        %v3791 = vadd.f32 %v3589, %v3714
        %v3792 = vadd.f32 %v3588, %v3719
        %v3793 = vadd.f32 %v3587, %v3724
        %v3794 = vadd.f32 %v3586, %v3729
        %v3795 = vadd.f32 %v3585, %v3734
        %v3796 = vadd.f32 %v3584, %v3739
        %v3797 = vadd.f32 %v3583, %v3744
        %v3798 = vadd.f32 %v3582, %v3749
        %v3799 = vadd.f32 %v3581, %v3754
        %v3800 = vadd.f32 %v3580, %v3759
        %v3801 = vadd.f32 %v3579, %v3764
        %v3802 = vadd.f32 %v3610, %v3769
        %v3803 = vmax.f32 %v3515, %v3771
        %v3804 = vmax.f32 %v3516, %v3772
        %v3805 = vmax.f32 %v3517, %v3773
        %v3806 = vmax.f32 %v3518, %v3774
        %v3807 = vmax.f32 %v3519, %v3775
        %v3808 = vmax.f32 %v3520, %v3776
        %v3809 = vmax.f32 %v3521, %v3777
        %v3810 = vmax.f32 %v3522, %v3778
        %v3811 = vmax.f32 %v3523, %v3779
        %v3812 = vmax.f32 %v3524, %v3780
        %v3813 = vmax.f32 %v3525, %v3781
        %v3814 = vmax.f32 %v3526, %v3782
        %v3815 = vmax.f32 %v3527, %v3783
        %v3816 = vmax.f32 %v3528, %v3784
        %v3817 = vmax.f32 %v3529, %v3785
        %v3818 = vmax.f32 %v3530, %v3786
        %v3819 = vmax.f32 %v3531, %v3787
        %v3820 = vmax.f32 %v3532, %v3788
        %v3821 = vmax.f32 %v3533, %v3789
        %v3822 = vmax.f32 %v3534, %v3790
        %v3823 = vmax.f32 %v3535, %v3791
        %v3824 = vmax.f32 %v3536, %v3792
        %v3825 = vmax.f32 %v3537, %v3793
        %v3826 = vmax.f32 %v3538, %v3794
        %v3827 = vmax.f32 %v3539, %v3795
        %v3828 = vmax.f32 %v3540, %v3796
        %v3829 = vmax.f32 %v3541, %v3797
        %v3830 = vmax.f32 %v3542, %v3798
        %v3831 = vmax.f32 %v3543, %v3799
        %v3832 = vmax.f32 %v3544, %v3800
        %v3833 = vmax.f32 %v3545, %v3801
        %v3834 = vmax.f32 %v3546, %v3802
        %3836 = vset.pattern.permute.xlu0 0
        %3837 = vperm.xlu0 %3836, %v1704
        %v3838 = vpop.permute.xlu0 %3837
        %3841 = vset.pattern.permute.xlu0 0
        %3842 = vperm.xlu0 %3841, %v1705
        %v3843 = vpop.permute.xlu0 %3842
        %3846 = vset.pattern.permute.xlu0 0
        %3847 = vperm.xlu0 %3846, %v1706
        %v3848 = vpop.permute.xlu0 %3847
        %3851 = vset.pattern.permute.xlu0 0
        %3852 = vperm.xlu0 %3851, %v1707
        %v3853 = vpop.permute.xlu0 %3852
        %3856 = vset.pattern.permute.xlu0 0
        %3857 = vperm.xlu0 %3856, %v1708
        %v3858 = vpop.permute.xlu0 %3857
        %3861 = vset.pattern.permute.xlu0 0
        %3862 = vperm.xlu0 %3861, %v1709
        %v3863 = vpop.permute.xlu0 %3862
        %3866 = vset.pattern.permute.xlu0 0
        %3867 = vperm.xlu0 %3866, %v1710
        %v3868 = vpop.permute.xlu0 %3867
        %3871 = vset.pattern.permute.xlu0 0
        %3872 = vperm.xlu0 %3871, %v1711
        %v3873 = vpop.permute.xlu0 %3872
        %3876 = vset.pattern.permute.xlu0 0
        %3877 = vperm.xlu0 %3876, %v1712
        %v3878 = vpop.permute.xlu0 %3877
        %3881 = vset.pattern.permute.xlu0 0
        %3882 = vperm.xlu0 %3881, %v1713
        %v3883 = vpop.permute.xlu0 %3882
        %3886 = vset.pattern.permute.xlu0 0
        %3887 = vperm.xlu0 %3886, %v1714
        %v3888 = vpop.permute.xlu0 %3887
        %3891 = vset.pattern.permute.xlu0 0
        %3892 = vperm.xlu0 %3891, %v1715
        %v3893 = vpop.permute.xlu0 %3892
        %3896 = vset.pattern.permute.xlu0 0
        %3897 = vperm.xlu0 %3896, %v1716
        %v3898 = vpop.permute.xlu0 %3897
        %3901 = vset.pattern.permute.xlu0 0
        %3902 = vperm.xlu0 %3901, %v1717
        %v3903 = vpop.permute.xlu0 %3902
        %3906 = vset.pattern.permute.xlu0 0
        %3907 = vperm.xlu0 %3906, %v1718
        %v3908 = vpop.permute.xlu0 %3907
        %3911 = vset.pattern.permute.xlu0 0
        %3912 = vperm.xlu0 %3911, %v1719
        %v3913 = vpop.permute.xlu0 %3912
        %3916 = vset.pattern.permute.xlu0 0
        %3917 = vperm.xlu0 %3916, %v1720
        %v3918 = vpop.permute.xlu0 %3917
        %3921 = vset.pattern.permute.xlu0 0
        %3922 = vperm.xlu0 %3921, %v1721
        %v3923 = vpop.permute.xlu0 %3922
        %3926 = vset.pattern.permute.xlu0 0
        %3927 = vperm.xlu0 %3926, %v1722
        %v3928 = vpop.permute.xlu0 %3927
        %3931 = vset.pattern.permute.xlu0 0
        %3932 = vperm.xlu0 %3931, %v1723
        %v3933 = vpop.permute.xlu0 %3932
        %3936 = vset.pattern.permute.xlu0 0
        %3937 = vperm.xlu0 %3936, %v1724
        %v3938 = vpop.permute.xlu0 %3937
        %3941 = vset.pattern.permute.xlu0 0
        %3942 = vperm.xlu0 %3941, %v1725
        %v3943 = vpop.permute.xlu0 %3942
        %3946 = vset.pattern.permute.xlu0 0
        %3947 = vperm.xlu0 %3946, %v1726
        %v3948 = vpop.permute.xlu0 %3947
        %3951 = vset.pattern.permute.xlu0 0
        %3952 = vperm.xlu0 %3951, %v1727
        %v3953 = vpop.permute.xlu0 %3952
        %3956 = vset.pattern.permute.xlu0 0
        %3957 = vperm.xlu0 %3956, %v1728
        %v3958 = vpop.permute.xlu0 %3957
        %3961 = vset.pattern.permute.xlu0 0
        %3962 = vperm.xlu0 %3961, %v1729
        %v3963 = vpop.permute.xlu0 %3962
        %3966 = vset.pattern.permute.xlu0 0
        %3967 = vperm.xlu0 %3966, %v1730
        %v3968 = vpop.permute.xlu0 %3967
        %3971 = vset.pattern.permute.xlu0 0
        %3972 = vperm.xlu0 %3971, %v1731
        %v3973 = vpop.permute.xlu0 %3972
        %3976 = vset.pattern.permute.xlu0 0
        %3977 = vperm.xlu0 %3976, %v1732
        %v3978 = vpop.permute.xlu0 %3977
        %3981 = vset.pattern.permute.xlu0 0
        %3982 = vperm.xlu0 %3981, %v1733
        %v3983 = vpop.permute.xlu0 %3982
        %3986 = vset.pattern.permute.xlu0 0
        %3987 = vperm.xlu0 %3986, %v1734
        %v3988 = vpop.permute.xlu0 %3987
        %3991 = vset.pattern.permute.xlu0 0
        %3992 = vperm.xlu0 %3991, %v1735
        %v3993 = vpop.permute.xlu0 %3992
        %v3995 = vadd.f32 %v3833, %v3838
        %v3996 = vadd.f32 %v3834, %v3843
        %v3997 = vadd.f32 %v3803, %v3848
        %v3998 = vadd.f32 %v3804, %v3853
        %v3999 = vadd.f32 %v3805, %v3858
        %v4000 = vadd.f32 %v3806, %v3863
        %v4001 = vadd.f32 %v3807, %v3868
        %v4002 = vadd.f32 %v3808, %v3873
        %v4003 = vadd.f32 %v3809, %v3878
        %v4004 = vadd.f32 %v3810, %v3883
        %v4005 = vadd.f32 %v3811, %v3888
        %v4006 = vadd.f32 %v3812, %v3893
        %v4007 = vadd.f32 %v3813, %v3898
        %v4008 = vadd.f32 %v3814, %v3903
        %v4009 = vadd.f32 %v3815, %v3908
        %v4010 = vadd.f32 %v3816, %v3913
        %v4011 = vadd.f32 %v3817, %v3918
        %v4012 = vadd.f32 %v3818, %v3923
        %v4013 = vadd.f32 %v3819, %v3928
        %v4014 = vadd.f32 %v3820, %v3933
        %v4015 = vadd.f32 %v3821, %v3938
        %v4016 = vadd.f32 %v3822, %v3943
        %v4017 = vadd.f32 %v3823, %v3948
        %v4018 = vadd.f32 %v3824, %v3953
        %v4019 = vadd.f32 %v3825, %v3958
        %v4020 = vadd.f32 %v3826, %v3963
        %v4021 = vadd.f32 %v3827, %v3968
        %v4022 = vadd.f32 %v3828, %v3973
        %v4023 = vadd.f32 %v3829, %v3978
        %v4024 = vadd.f32 %v3830, %v3983
        %v4025 = vadd.f32 %v3831, %v3988
        %v4026 = vadd.f32 %v3832, %v3993
        %v4027 = vmax.f32 %v3803, %v3995
        %v4028 = vmax.f32 %v3804, %v3996
        %v4029 = vmax.f32 %v3805, %v3997
        %v4030 = vmax.f32 %v3806, %v3998
        %v4031 = vmax.f32 %v3807, %v3999
        %v4032 = vmax.f32 %v3808, %v4000
        %v4033 = vmax.f32 %v3809, %v4001
        %v4034 = vmax.f32 %v3810, %v4002
        %v4035 = vmax.f32 %v3811, %v4003
        %v4036 = vmax.f32 %v3812, %v4004
        %v4037 = vmax.f32 %v3813, %v4005
        %v4038 = vmax.f32 %v3814, %v4006
        %v4039 = vmax.f32 %v3815, %v4007
        %v4040 = vmax.f32 %v3816, %v4008
        %v4041 = vmax.f32 %v3817, %v4009
        %v4042 = vmax.f32 %v3818, %v4010
        %v4043 = vmax.f32 %v3819, %v4011
        %v4044 = vmax.f32 %v3820, %v4012
        %v4045 = vmax.f32 %v3821, %v4013
        %v4046 = vmax.f32 %v3822, %v4014
        %v4047 = vmax.f32 %v3823, %v4015
        %v4048 = vmax.f32 %v3824, %v4016
        %v4049 = vmax.f32 %v3825, %v4017
        %v4050 = vmax.f32 %v3826, %v4018
        %v4051 = vmax.f32 %v3827, %v4019
        %v4052 = vmax.f32 %v3828, %v4020
        %v4053 = vmax.f32 %v3829, %v4021
        %v4054 = vmax.f32 %v3830, %v4022
        %v4055 = vmax.f32 %v3831, %v4023
        %v4056 = vmax.f32 %v3832, %v4024
        %v4057 = vmax.f32 %v3833, %v4025
        %v4058 = vmax.f32 %v3834, %v4026
        %4060 = vset.pattern.permute.xlu0 0
        %4061 = vperm.xlu0 %4060, %v1832
        %v4062 = vpop.permute.xlu0 %4061
        %4065 = vset.pattern.permute.xlu0 0
        %4066 = vperm.xlu0 %4065, %v1833
        %v4067 = vpop.permute.xlu0 %4066
        %4070 = vset.pattern.permute.xlu0 0
        %4071 = vperm.xlu0 %4070, %v1834
        %v4072 = vpop.permute.xlu0 %4071
        %4075 = vset.pattern.permute.xlu0 0
        %4076 = vperm.xlu0 %4075, %v1835
        %v4077 = vpop.permute.xlu0 %4076
        %4080 = vset.pattern.permute.xlu0 0
        %4081 = vperm.xlu0 %4080, %v1836
        %v4082 = vpop.permute.xlu0 %4081
        %4085 = vset.pattern.permute.xlu0 0
        %4086 = vperm.xlu0 %4085, %v1837
        %v4087 = vpop.permute.xlu0 %4086
        %4090 = vset.pattern.permute.xlu0 0
        %4091 = vperm.xlu0 %4090, %v1838
        %v4092 = vpop.permute.xlu0 %4091
        %4095 = vset.pattern.permute.xlu0 0
        %4096 = vperm.xlu0 %4095, %v1839
        %v4097 = vpop.permute.xlu0 %4096
        %4100 = vset.pattern.permute.xlu0 0
        %4101 = vperm.xlu0 %4100, %v1840
        %v4102 = vpop.permute.xlu0 %4101
        %4105 = vset.pattern.permute.xlu0 0
        %4106 = vperm.xlu0 %4105, %v1841
        %v4107 = vpop.permute.xlu0 %4106
        %4110 = vset.pattern.permute.xlu0 0
        %4111 = vperm.xlu0 %4110, %v1842
        %v4112 = vpop.permute.xlu0 %4111
        %4115 = vset.pattern.permute.xlu0 0
        %4116 = vperm.xlu0 %4115, %v1843
        %v4117 = vpop.permute.xlu0 %4116
        %4120 = vset.pattern.permute.xlu0 0
        %4121 = vperm.xlu0 %4120, %v1844
        %v4122 = vpop.permute.xlu0 %4121
        %4125 = vset.pattern.permute.xlu0 0
        %4126 = vperm.xlu0 %4125, %v1845
        %v4127 = vpop.permute.xlu0 %4126
        %4130 = vset.pattern.permute.xlu0 0
        %4131 = vperm.xlu0 %4130, %v1846
        %v4132 = vpop.permute.xlu0 %4131
        %4135 = vset.pattern.permute.xlu0 0
        %4136 = vperm.xlu0 %4135, %v1847
        %v4137 = vpop.permute.xlu0 %4136
        %4140 = vset.pattern.permute.xlu0 0
        %4141 = vperm.xlu0 %4140, %v1848
        %v4142 = vpop.permute.xlu0 %4141
        %4145 = vset.pattern.permute.xlu0 0
        %4146 = vperm.xlu0 %4145, %v1849
        %v4147 = vpop.permute.xlu0 %4146
        %4150 = vset.pattern.permute.xlu0 0
        %4151 = vperm.xlu0 %4150, %v1850
        %v4152 = vpop.permute.xlu0 %4151
        %4155 = vset.pattern.permute.xlu0 0
        %4156 = vperm.xlu0 %4155, %v1851
        %v4157 = vpop.permute.xlu0 %4156
        %4160 = vset.pattern.permute.xlu0 0
        %4161 = vperm.xlu0 %4160, %v1852
        %v4162 = vpop.permute.xlu0 %4161
        %4165 = vset.pattern.permute.xlu0 0
        %4166 = vperm.xlu0 %4165, %v1853
        %v4167 = vpop.permute.xlu0 %4166
        %4170 = vset.pattern.permute.xlu0 0
        %4171 = vperm.xlu0 %4170, %v1854
        %v4172 = vpop.permute.xlu0 %4171
        %4175 = vset.pattern.permute.xlu0 0
        %4176 = vperm.xlu0 %4175, %v1855
        %v4177 = vpop.permute.xlu0 %4176
        %4180 = vset.pattern.permute.xlu0 0
        %4181 = vperm.xlu0 %4180, %v1856
        %v4182 = vpop.permute.xlu0 %4181
        %4185 = vset.pattern.permute.xlu0 0
        %4186 = vperm.xlu0 %4185, %v1857
        %v4187 = vpop.permute.xlu0 %4186
        %4190 = vset.pattern.permute.xlu0 0
        %4191 = vperm.xlu0 %4190, %v1858
        %v4192 = vpop.permute.xlu0 %4191
        %4195 = vset.pattern.permute.xlu0 0
        %4196 = vperm.xlu0 %4195, %v1859
        %v4197 = vpop.permute.xlu0 %4196
        %4200 = vset.pattern.permute.xlu0 0
        %4201 = vperm.xlu0 %4200, %v1860
        %v4202 = vpop.permute.xlu0 %4201
        %4205 = vset.pattern.permute.xlu0 0
        %4206 = vperm.xlu0 %4205, %v1861
        %v4207 = vpop.permute.xlu0 %4206
        %4210 = vset.pattern.permute.xlu0 0
        %4211 = vperm.xlu0 %4210, %v1862
        %v4212 = vpop.permute.xlu0 %4211
        %4215 = vset.pattern.permute.xlu0 0
        %4216 = vperm.xlu0 %4215, %v1863
        %v4217 = vpop.permute.xlu0 %4216
        %v4219 = vadd.f32 %v3805, %v4062
        %v4220 = vadd.f32 %v3806, %v4067
        %v4221 = vadd.f32 %v3807, %v4072
        %v4222 = vadd.f32 %v3808, %v4077
        %v4223 = vadd.f32 %v3809, %v4082
        %v4224 = vadd.f32 %v3810, %v4087
        %v4225 = vadd.f32 %v3811, %v4092
        %v4226 = vadd.f32 %v3812, %v4097
        %v4227 = vadd.f32 %v3813, %v4102
        %v4228 = vadd.f32 %v3814, %v4107
        %v4229 = vadd.f32 %v3815, %v4112
        %v4230 = vadd.f32 %v3816, %v4117
        %v4231 = vadd.f32 %v3817, %v4122
        %v4232 = vadd.f32 %v3818, %v4127
        %v4233 = vadd.f32 %v3819, %v4132
        %v4234 = vadd.f32 %v3820, %v4137
        %v4235 = vadd.f32 %v3821, %v4142
        %v4236 = vadd.f32 %v3822, %v4147
        %v4237 = vadd.f32 %v3823, %v4152
        %v4238 = vadd.f32 %v3824, %v4157
        %v4239 = vadd.f32 %v3825, %v4162
        %v4240 = vadd.f32 %v3826, %v4167
        %v4241 = vadd.f32 %v3827, %v4172
        %v4242 = vadd.f32 %v3828, %v4177
        %v4243 = vadd.f32 %v3829, %v4182
        %v4244 = vadd.f32 %v3830, %v4187
        %v4245 = vadd.f32 %v3831, %v4192
        %v4246 = vadd.f32 %v3832, %v4197
        %v4247 = vadd.f32 %v3833, %v4202
        %v4248 = vadd.f32 %v3834, %v4207
        %v4249 = vadd.f32 %v3803, %v4212
        %v4250 = vadd.f32 %v3804, %v4217
        %v4251 = vmax.f32 %v4027, %v4219
        %v4252 = vmax.f32 %v4028, %v4220
        %v4253 = vmax.f32 %v4029, %v4221
        %v4254 = vmax.f32 %v4030, %v4222
        %v4255 = vmax.f32 %v4031, %v4223
        %v4256 = vmax.f32 %v4032, %v4224
        %v4257 = vmax.f32 %v4033, %v4225
        %v4258 = vmax.f32 %v4034, %v4226
        %v4259 = vmax.f32 %v4035, %v4227
        %v4260 = vmax.f32 %v4036, %v4228
        %v4261 = vmax.f32 %v4037, %v4229
        %v4262 = vmax.f32 %v4038, %v4230
        %v4263 = vmax.f32 %v4039, %v4231
        %v4264 = vmax.f32 %v4040, %v4232
        %v4265 = vmax.f32 %v4041, %v4233
        %v4266 = vmax.f32 %v4042, %v4234
        %v4267 = vmax.f32 %v4043, %v4235
        %v4268 = vmax.f32 %v4044, %v4236
        %v4269 = vmax.f32 %v4045, %v4237
        %v4270 = vmax.f32 %v4046, %v4238
        %v4271 = vmax.f32 %v4047, %v4239
        %v4272 = vmax.f32 %v4048, %v4240
        %v4273 = vmax.f32 %v4049, %v4241
        %v4274 = vmax.f32 %v4050, %v4242
        %v4275 = vmax.f32 %v4051, %v4243
        %v4276 = vmax.f32 %v4052, %v4244
        %v4277 = vmax.f32 %v4053, %v4245
        %v4278 = vmax.f32 %v4054, %v4246
        %v4279 = vmax.f32 %v4055, %v4247
        %v4280 = vmax.f32 %v4056, %v4248
        %v4281 = vmax.f32 %v4057, %v4249
        %v4282 = vmax.f32 %v4058, %v4250
        %4284 = vset.pattern.permute.xlu0 0
        %4285 = vperm.xlu0 %4284, %v2218
        %v4286 = vpop.permute.xlu0 %4285
        %4289 = vset.pattern.permute.xlu0 0
        %4290 = vperm.xlu0 %4289, %v2219
        %v4291 = vpop.permute.xlu0 %4290
        %4294 = vset.pattern.permute.xlu0 0
        %4295 = vperm.xlu0 %4294, %v2220
        %v4296 = vpop.permute.xlu0 %4295
        %4299 = vset.pattern.permute.xlu0 0
        %4300 = vperm.xlu0 %4299, %v2221
        %v4301 = vpop.permute.xlu0 %4300
        %4304 = vset.pattern.permute.xlu0 0
        %4305 = vperm.xlu0 %4304, %v2222
        %v4306 = vpop.permute.xlu0 %4305
        %4309 = vset.pattern.permute.xlu0 0
        %4310 = vperm.xlu0 %4309, %v2223
        %v4311 = vpop.permute.xlu0 %4310
        %4314 = vset.pattern.permute.xlu0 0
        %4315 = vperm.xlu0 %4314, %v2224
        %v4316 = vpop.permute.xlu0 %4315
        %4319 = vset.pattern.permute.xlu0 0
        %4320 = vperm.xlu0 %4319, %v2225
        %v4321 = vpop.permute.xlu0 %4320
        %4324 = vset.pattern.permute.xlu0 0
        %4325 = vperm.xlu0 %4324, %v2226
        %v4326 = vpop.permute.xlu0 %4325
        %4329 = vset.pattern.permute.xlu0 0
        %4330 = vperm.xlu0 %4329, %v2227
        %v4331 = vpop.permute.xlu0 %4330
        %4334 = vset.pattern.permute.xlu0 0
        %4335 = vperm.xlu0 %4334, %v2228
        %v4336 = vpop.permute.xlu0 %4335
        %4339 = vset.pattern.permute.xlu0 0
        %4340 = vperm.xlu0 %4339, %v2229
        %v4341 = vpop.permute.xlu0 %4340
        %4344 = vset.pattern.permute.xlu0 0
        %4345 = vperm.xlu0 %4344, %v2230
        %v4346 = vpop.permute.xlu0 %4345
        %4349 = vset.pattern.permute.xlu0 0
        %4350 = vperm.xlu0 %4349, %v2231
        %v4351 = vpop.permute.xlu0 %4350
        %4354 = vset.pattern.permute.xlu0 0
        %4355 = vperm.xlu0 %4354, %v2232
        %v4356 = vpop.permute.xlu0 %4355
        %4359 = vset.pattern.permute.xlu0 0
        %4360 = vperm.xlu0 %4359, %v2233
        %v4361 = vpop.permute.xlu0 %4360
        %4364 = vset.pattern.permute.xlu0 0
        %4365 = vperm.xlu0 %4364, %v2234
        %v4366 = vpop.permute.xlu0 %4365
        %4369 = vset.pattern.permute.xlu0 0
        %4370 = vperm.xlu0 %4369, %v2235
        %v4371 = vpop.permute.xlu0 %4370
        %4374 = vset.pattern.permute.xlu0 0
        %4375 = vperm.xlu0 %4374, %v2236
        %v4376 = vpop.permute.xlu0 %4375
        %4379 = vset.pattern.permute.xlu0 0
        %4380 = vperm.xlu0 %4379, %v2237
        %v4381 = vpop.permute.xlu0 %4380
        %4384 = vset.pattern.permute.xlu0 0
        %4385 = vperm.xlu0 %4384, %v2238
        %v4386 = vpop.permute.xlu0 %4385
        %4389 = vset.pattern.permute.xlu0 0
        %4390 = vperm.xlu0 %4389, %v2239
        %v4391 = vpop.permute.xlu0 %4390
        %4394 = vset.pattern.permute.xlu0 0
        %4395 = vperm.xlu0 %4394, %v2240
        %v4396 = vpop.permute.xlu0 %4395
        %4399 = vset.pattern.permute.xlu0 0
        %4400 = vperm.xlu0 %4399, %v2241
        %v4401 = vpop.permute.xlu0 %4400
        %4404 = vset.pattern.permute.xlu0 0
        %4405 = vperm.xlu0 %4404, %v2242
        %v4406 = vpop.permute.xlu0 %4405
        %4409 = vset.pattern.permute.xlu0 0
        %4410 = vperm.xlu0 %4409, %v2243
        %v4411 = vpop.permute.xlu0 %4410
        %4414 = vset.pattern.permute.xlu0 0
        %4415 = vperm.xlu0 %4414, %v2244
        %v4416 = vpop.permute.xlu0 %4415
        %4419 = vset.pattern.permute.xlu0 0
        %4420 = vperm.xlu0 %4419, %v2245
        %v4421 = vpop.permute.xlu0 %4420
        %4424 = vset.pattern.permute.xlu0 0
        %4425 = vperm.xlu0 %4424, %v2246
        %v4426 = vpop.permute.xlu0 %4425
        %4429 = vset.pattern.permute.xlu0 0
        %4430 = vperm.xlu0 %4429, %v2247
        %v4431 = vpop.permute.xlu0 %4430
        %4434 = vset.pattern.permute.xlu0 0
        %4435 = vperm.xlu0 %4434, %v2248
        %v4436 = vpop.permute.xlu0 %4435
        %4439 = vset.pattern.permute.xlu0 0
        %4440 = vperm.xlu0 %4439, %v2249
        %v4441 = vpop.permute.xlu0 %4440
        %v4443 = vadd.f32 %v3831, %v4286
        %v4444 = vadd.f32 %v3832, %v4291
        %v4445 = vadd.f32 %v3833, %v4296
        %v4446 = vadd.f32 %v3834, %v4301
        %v4447 = vadd.f32 %v3803, %v4306
        %v4448 = vadd.f32 %v3804, %v4311
        %v4449 = vadd.f32 %v3805, %v4316
        %v4450 = vadd.f32 %v3806, %v4321
        %v4451 = vadd.f32 %v3807, %v4326
        %v4452 = vadd.f32 %v3808, %v4331
        %v4453 = vadd.f32 %v3809, %v4336
        %v4454 = vadd.f32 %v3810, %v4341
        %v4455 = vadd.f32 %v3811, %v4346
        %v4456 = vadd.f32 %v3812, %v4351
        %v4457 = vadd.f32 %v3813, %v4356
        %v4458 = vadd.f32 %v3814, %v4361
        %v4459 = vadd.f32 %v3815, %v4366
        %v4460 = vadd.f32 %v3816, %v4371
        %v4461 = vadd.f32 %v3817, %v4376
        %v4462 = vadd.f32 %v3818, %v4381
        %v4463 = vadd.f32 %v3819, %v4386
        %v4464 = vadd.f32 %v3820, %v4391
        %v4465 = vadd.f32 %v3821, %v4396
        %v4466 = vadd.f32 %v3822, %v4401
        %v4467 = vadd.f32 %v3823, %v4406
        %v4468 = vadd.f32 %v3824, %v4411
        %v4469 = vadd.f32 %v3825, %v4416
        %v4470 = vadd.f32 %v3826, %v4421
        %v4471 = vadd.f32 %v3827, %v4426
        %v4472 = vadd.f32 %v3828, %v4431
        %v4473 = vadd.f32 %v3829, %v4436
        %v4474 = vadd.f32 %v3830, %v4441
        %v4475 = vmax.f32 %v4251, %v4443
        %v4476 = vmax.f32 %v4252, %v4444
        %v4477 = vmax.f32 %v4253, %v4445
        %v4478 = vmax.f32 %v4254, %v4446
        %v4479 = vmax.f32 %v4255, %v4447
        %v4480 = vmax.f32 %v4256, %v4448
        %v4481 = vmax.f32 %v4257, %v4449
        %v4482 = vmax.f32 %v4258, %v4450
        %v4483 = vmax.f32 %v4259, %v4451
        %v4484 = vmax.f32 %v4260, %v4452
        %v4485 = vmax.f32 %v4261, %v4453
        %v4486 = vmax.f32 %v4262, %v4454
        %v4487 = vmax.f32 %v4263, %v4455
        %v4488 = vmax.f32 %v4264, %v4456
        %v4489 = vmax.f32 %v4265, %v4457
        %v4490 = vmax.f32 %v4266, %v4458
        %v4491 = vmax.f32 %v4267, %v4459
        %v4492 = vmax.f32 %v4268, %v4460
        %v4493 = vmax.f32 %v4269, %v4461
        %v4494 = vmax.f32 %v4270, %v4462
        %v4495 = vmax.f32 %v4271, %v4463
        %v4496 = vmax.f32 %v4272, %v4464
        %v4497 = vmax.f32 %v4273, %v4465
        %v4498 = vmax.f32 %v4274, %v4466
        %v4499 = vmax.f32 %v4275, %v4467
        %v4500 = vmax.f32 %v4276, %v4468
        %v4501 = vmax.f32 %v4277, %v4469
        %v4502 = vmax.f32 %v4278, %v4470
        %v4503 = vmax.f32 %v4279, %v4471
        %v4504 = vmax.f32 %v4280, %v4472
        %v4505 = vmax.f32 %v4281, %v4473
        %v4506 = vmax.f32 %v4282, %v4474
        %4508 = vset.pattern.permute.xlu0 0
        %4509 = vperm.xlu0 %4508, %v2346
        %v4510 = vpop.permute.xlu0 %4509
        %4513 = vset.pattern.permute.xlu0 0
        %4514 = vperm.xlu0 %4513, %v2347
        %v4515 = vpop.permute.xlu0 %4514
        %4518 = vset.pattern.permute.xlu0 0
        %4519 = vperm.xlu0 %4518, %v2348
        %v4520 = vpop.permute.xlu0 %4519
        %4523 = vset.pattern.permute.xlu0 0
        %4524 = vperm.xlu0 %4523, %v2349
        %v4525 = vpop.permute.xlu0 %4524
        %4528 = vset.pattern.permute.xlu0 0
        %4529 = vperm.xlu0 %4528, %v2350
        %v4530 = vpop.permute.xlu0 %4529
        %4533 = vset.pattern.permute.xlu0 0
        %4534 = vperm.xlu0 %4533, %v2351
        %v4535 = vpop.permute.xlu0 %4534
        %4538 = vset.pattern.permute.xlu0 0
        %4539 = vperm.xlu0 %4538, %v2352
        %v4540 = vpop.permute.xlu0 %4539
        %4543 = vset.pattern.permute.xlu0 0
        %4544 = vperm.xlu0 %4543, %v2353
        %v4545 = vpop.permute.xlu0 %4544
        %4548 = vset.pattern.permute.xlu0 0
        %4549 = vperm.xlu0 %4548, %v2354
        %v4550 = vpop.permute.xlu0 %4549
        %4553 = vset.pattern.permute.xlu0 0
        %4554 = vperm.xlu0 %4553, %v2355
        %v4555 = vpop.permute.xlu0 %4554
        %4558 = vset.pattern.permute.xlu0 0
        %4559 = vperm.xlu0 %4558, %v2356
        %v4560 = vpop.permute.xlu0 %4559
        %4563 = vset.pattern.permute.xlu0 0
        %4564 = vperm.xlu0 %4563, %v2357
        %v4565 = vpop.permute.xlu0 %4564
        %4568 = vset.pattern.permute.xlu0 0
        %4569 = vperm.xlu0 %4568, %v2358
        %v4570 = vpop.permute.xlu0 %4569
        %4573 = vset.pattern.permute.xlu0 0
        %4574 = vperm.xlu0 %4573, %v2359
        %v4575 = vpop.permute.xlu0 %4574
        %4578 = vset.pattern.permute.xlu0 0
        %4579 = vperm.xlu0 %4578, %v2360
        %v4580 = vpop.permute.xlu0 %4579
        %4583 = vset.pattern.permute.xlu0 0
        %4584 = vperm.xlu0 %4583, %v2361
        %v4585 = vpop.permute.xlu0 %4584
        %4588 = vset.pattern.permute.xlu0 0
        %4589 = vperm.xlu0 %4588, %v2362
        %v4590 = vpop.permute.xlu0 %4589
        %4593 = vset.pattern.permute.xlu0 0
        %4594 = vperm.xlu0 %4593, %v2363
        %v4595 = vpop.permute.xlu0 %4594
        %4598 = vset.pattern.permute.xlu0 0
        %4599 = vperm.xlu0 %4598, %v2364
        %v4600 = vpop.permute.xlu0 %4599
        %4603 = vset.pattern.permute.xlu0 0
        %4604 = vperm.xlu0 %4603, %v2365
        %v4605 = vpop.permute.xlu0 %4604
        %4608 = vset.pattern.permute.xlu0 0
        %4609 = vperm.xlu0 %4608, %v2366
        %v4610 = vpop.permute.xlu0 %4609
        %4613 = vset.pattern.permute.xlu0 0
        %4614 = vperm.xlu0 %4613, %v2367
        %v4615 = vpop.permute.xlu0 %4614
        %4618 = vset.pattern.permute.xlu0 0
        %4619 = vperm.xlu0 %4618, %v2368
        %v4620 = vpop.permute.xlu0 %4619
        %4623 = vset.pattern.permute.xlu0 0
        %4624 = vperm.xlu0 %4623, %v2369
        %v4625 = vpop.permute.xlu0 %4624
        %4628 = vset.pattern.permute.xlu0 0
        %4629 = vperm.xlu0 %4628, %v2370
        %v4630 = vpop.permute.xlu0 %4629
        %4633 = vset.pattern.permute.xlu0 0
        %4634 = vperm.xlu0 %4633, %v2371
        %v4635 = vpop.permute.xlu0 %4634
        %4638 = vset.pattern.permute.xlu0 0
        %4639 = vperm.xlu0 %4638, %v2372
        %v4640 = vpop.permute.xlu0 %4639
        %4643 = vset.pattern.permute.xlu0 0
        %4644 = vperm.xlu0 %4643, %v2373
        %v4645 = vpop.permute.xlu0 %4644
        %4648 = vset.pattern.permute.xlu0 0
        %4649 = vperm.xlu0 %4648, %v2374
        %v4650 = vpop.permute.xlu0 %4649
        %4653 = vset.pattern.permute.xlu0 0
        %4654 = vperm.xlu0 %4653, %v2375
        %v4655 = vpop.permute.xlu0 %4654
        %4658 = vset.pattern.permute.xlu0 0
        %4659 = vperm.xlu0 %4658, %v2376
        %v4660 = vpop.permute.xlu0 %4659
        %4663 = vset.pattern.permute.xlu0 0
        %4664 = vperm.xlu0 %4663, %v2377
        %v4665 = vpop.permute.xlu0 %4664
        %v4667 = vadd.f32 %v3807, %v4510
        %v4668 = vadd.f32 %v3808, %v4515
        %v4669 = vadd.f32 %v3809, %v4520
        %v4670 = vadd.f32 %v3810, %v4525
        %v4671 = vadd.f32 %v3811, %v4530
        %v4672 = vadd.f32 %v3812, %v4535
        %v4673 = vadd.f32 %v3813, %v4540
        %v4674 = vadd.f32 %v3814, %v4545
        %v4675 = vadd.f32 %v3815, %v4550
        %v4676 = vadd.f32 %v3816, %v4555
        %v4677 = vadd.f32 %v3817, %v4560
        %v4678 = vadd.f32 %v3818, %v4565
        %v4679 = vadd.f32 %v3819, %v4570
        %v4680 = vadd.f32 %v3820, %v4575
        %v4681 = vadd.f32 %v3821, %v4580
        %v4682 = vadd.f32 %v3822, %v4585
        %v4683 = vadd.f32 %v3823, %v4590
        %v4684 = vadd.f32 %v3824, %v4595
        %v4685 = vadd.f32 %v3825, %v4600
        %v4686 = vadd.f32 %v3826, %v4605
        %v4687 = vadd.f32 %v3827, %v4610
        %v4688 = vadd.f32 %v3828, %v4615
        %v4689 = vadd.f32 %v3829, %v4620
        %v4690 = vadd.f32 %v3830, %v4625
        %v4691 = vadd.f32 %v3831, %v4630
        %v4692 = vadd.f32 %v3832, %v4635
        %v4693 = vadd.f32 %v3833, %v4640
        %v4694 = vadd.f32 %v3834, %v4645
        %v4695 = vadd.f32 %v3803, %v4650
        %v4696 = vadd.f32 %v3804, %v4655
        %v4697 = vadd.f32 %v3805, %v4660
        %v4698 = vadd.f32 %v3806, %v4665
        %v4699 = vmax.f32 %v4475, %v4667
        %v4700 = vmax.f32 %v4476, %v4668
        %v4701 = vmax.f32 %v4477, %v4669
        %v4702 = vmax.f32 %v4478, %v4670
        %v4703 = vmax.f32 %v4479, %v4671
        %v4704 = vmax.f32 %v4480, %v4672
        %v4705 = vmax.f32 %v4481, %v4673
        %v4706 = vmax.f32 %v4482, %v4674
        %v4707 = vmax.f32 %v4483, %v4675
        %v4708 = vmax.f32 %v4484, %v4676
        %v4709 = vmax.f32 %v4485, %v4677
        %v4710 = vmax.f32 %v4486, %v4678
        %v4711 = vmax.f32 %v4487, %v4679
        %v4712 = vmax.f32 %v4488, %v4680
        %v4713 = vmax.f32 %v4489, %v4681
        %v4714 = vmax.f32 %v4490, %v4682
        %v4715 = vmax.f32 %v4491, %v4683
        %v4716 = vmax.f32 %v4492, %v4684
        %v4717 = vmax.f32 %v4493, %v4685
        %v4718 = vmax.f32 %v4494, %v4686
        %v4719 = vmax.f32 %v4495, %v4687
        %v4720 = vmax.f32 %v4496, %v4688
        %v4721 = vmax.f32 %v4497, %v4689
        %v4722 = vmax.f32 %v4498, %v4690
        %v4723 = vmax.f32 %v4499, %v4691
        %v4724 = vmax.f32 %v4500, %v4692
        %v4725 = vmax.f32 %v4501, %v4693
        %v4726 = vmax.f32 %v4502, %v4694
        %v4727 = vmax.f32 %v4503, %v4695
        %v4728 = vmax.f32 %v4504, %v4696
        %v4729 = vmax.f32 %v4505, %v4697
        %v4730 = vmax.f32 %v4506, %v4698
        %v4731 = vpack.c.bf16 %v4700, %v4699
        %v4732 = vpack.c.bf16 %v4702, %v4701
        %v4733 = vpack.c.bf16 %v4704, %v4703
        %v4734 = vpack.c.bf16 %v4706, %v4705
        %v4735 = vpack.c.bf16 %v4708, %v4707
        %v4736 = vpack.c.bf16 %v4710, %v4709
        %v4737 = vpack.c.bf16 %v4712, %v4711
        %v4738 = vpack.c.bf16 %v4714, %v4713
        %v4739 = vpack.c.bf16 %v4716, %v4715
        %v4740 = vpack.c.bf16 %v4718, %v4717
        %v4741 = vpack.c.bf16 %v4720, %v4719
        %v4742 = vpack.c.bf16 %v4722, %v4721
        %v4743 = vpack.c.bf16 %v4724, %v4723
        %v4744 = vpack.c.bf16 %v4726, %v4725
        %v4745 = vpack.c.bf16 %v4728, %v4727
        %v4746 = vpack.c.bf16 %v4730, %v4729
        %v4747 = vld [vmem:[#allocation13] sm:$0xf]
        %v4748 = vld [vmem:[#allocation13 + $0x4] sm:$0xf]
        %v4749 = vld [vmem:[#allocation13 + $0x8] sm:$0xf]
        %v4750 = vld [vmem:[#allocation13 + $0xc] sm:$0xf]
        %v4751 = vld [vmem:[#allocation13 + $0x10] sm:$0xf]
        %v4752 = vld [vmem:[#allocation13 + $0x14] sm:$0xf]
        %v4753 = vld [vmem:[#allocation13 + $0x18] sm:$0xf]
        %v4754 = vld [vmem:[#allocation13 + $0x1c] sm:$0xf]
        %v4755 = vld [vmem:[#allocation13 + $0x20] sm:$0xf]
        %v4756 = vld [vmem:[#allocation13 + $0x24] sm:$0xf]
        %v4757 = vld [vmem:[#allocation13 + $0x28] sm:$0xf]
        %v4758 = vld [vmem:[#allocation13 + $0x2c] sm:$0xf]
        %v4759 = vld [vmem:[#allocation13 + $0x30] sm:$0xf]
        %v4760 = vld [vmem:[#allocation13 + $0x34] sm:$0xf]
        %v4761 = vld [vmem:[#allocation13 + $0x38] sm:$0xf]
        %v4762 = vld [vmem:[#allocation13 + $0x3c] sm:$0xf]
        %v4779 = vunpack.c.l.b16 %v4747
        %v4780 = vunpack.c.l.b16 %v4748
        %v4781 = vunpack.c.l.b16 %v4749
        %v4782 = vunpack.c.l.b16 %v4750
        %v4783 = vunpack.c.l.b16 %v4751
        %v4784 = vunpack.c.l.b16 %v4752
        %v4785 = vunpack.c.l.b16 %v4753
        %v4786 = vunpack.c.l.b16 %v4754
        %v4787 = vunpack.c.l.b16 %v4755
        %v4788 = vunpack.c.l.b16 %v4756
        %v4789 = vunpack.c.l.b16 %v4757
        %v4790 = vunpack.c.l.b16 %v4758
        %v4791 = vunpack.c.l.b16 %v4759
        %v4792 = vunpack.c.l.b16 %v4760
        %v4793 = vunpack.c.l.b16 %v4761
        %v4794 = vunpack.c.l.b16 %v4762
        %v4795 = vpack.c.b16 %v4780, %v4779
        %v4796 = vpack.c.b16 %v4782, %v4781
        %v4797 = vpack.c.b16 %v4784, %v4783
        %v4798 = vpack.c.b16 %v4786, %v4785
        %v4799 = vpack.c.b16 %v4788, %v4787
        %v4800 = vpack.c.b16 %v4790, %v4789
        %v4801 = vpack.c.b16 %v4792, %v4791
        %v4802 = vpack.c.b16 %v4794, %v4793
        %4811 = vmatprep.subr.bf16.mxu0 0
        %4812 = vmatpush1.bf16.msra.mxu0 %v4795
        %4813 = vmatprep.subr.bf16.mxu0 0
        %4814 = vmatpush1.bf16.msra.mxu0 %v4796
        %4815 = vmatprep.subr.bf16.mxu0 0
        %4816 = vmatpush1.bf16.msra.mxu0 %v4797
        %4817 = vmatprep.subr.bf16.mxu0 0
        %4818 = vmatpush1.bf16.msra.mxu0 %v4798
        %4819 = vmatprep.subr.bf16.mxu0 0
        %4820 = vmatpush1.bf16.msra.mxu0 %v4799
        %4821 = vmatprep.subr.bf16.mxu0 0
        %4822 = vmatpush1.bf16.msra.mxu0 %v4800
        %4823 = vmatprep.subr.bf16.mxu0 0
        %4824 = vmatpush1.bf16.msra.mxu0 %v4801
        %4825 = vmatprep.subr.bf16.mxu0 0
        %4826 = vmatpush1.bf16.msra.mxu0 %v4802
        %4827 = vmatprep.subr.bf16.mxu0 0
        %4828 = vmatpush1.bf16.msra.mxu0 0
        %4829 = vmatprep.subr.bf16.mxu0 0
        %4830 = vmatpush1.bf16.msra.mxu0 0
        %4831 = vmatprep.subr.bf16.mxu0 0
        %4832 = vmatpush1.bf16.msra.mxu0 0
        %4833 = vmatprep.subr.bf16.mxu0 0
        %4834 = vmatpush1.bf16.msra.mxu0 0
        %4835 = vmatprep.subr.bf16.mxu0 0
        %4836 = vmatpush1.bf16.msra.mxu0 0
        %4837 = vmatprep.subr.bf16.mxu0 0
        %4838 = vmatpush1.bf16.msra.mxu0 0
        %4839 = vmatprep.subr.bf16.mxu0 0
        %4840 = vmatpush1.bf16.msra.mxu0 0
        %4841 = vmatprep.subr.bf16.mxu0 0
        %4842 = vmatpush1.bf16.msra.mxu0 0
        %4843 = vmatprep.mubr.bf16.mxu0 0
        %4844 = vmatmul.mubr.bf16.gmra.mrb[0].mxu0 %v4731
        %v4845 = vpop.f32.mrb[0].mxu0
        %v4846 = vadd.f32 0.0, %v4845
        %v4847 = vpop.f32.mrb[0].mxu0
        %v4848 = vpop.f32.mrb[0].mxu0
        %v4849 = vadd.f32 0.0, %v4848
        %v4850 = vpop.f32.mrb[0].mxu0
        %4851 = vmatprep.mubr.bf16.mxu0 0
        %4852 = vmatmul.mubr.bf16.gmra.mrb[0].mxu0 %v4732
        %v4853 = vpop.f32.mrb[0].mxu0
        %v4854 = vadd.f32 0.0, %v4853
        %v4855 = vpop.f32.mrb[0].mxu0
        %v4856 = vpop.f32.mrb[0].mxu0
        %v4857 = vadd.f32 0.0, %v4856
        %v4858 = vpop.f32.mrb[0].mxu0
        %4859 = vmatprep.mubr.bf16.mxu0 0
        %4860 = vmatmul.mubr.bf16.gmra.mrb[0].mxu0 %v4733
        %v4861 = vpop.f32.mrb[0].mxu0
        %v4862 = vadd.f32 0.0, %v4861
        %v4863 = vpop.f32.mrb[0].mxu0
        %v4864 = vpop.f32.mrb[0].mxu0
        %v4865 = vadd.f32 0.0, %v4864
        %v4866 = vpop.f32.mrb[0].mxu0
        %4867 = vmatprep.mubr.bf16.mxu0 0
        %4868 = vmatmul.mubr.bf16.gmra.mrb[0].mxu0 %v4734
        %v4869 = vpop.f32.mrb[0].mxu0
        %v4870 = vadd.f32 0.0, %v4869
        %v4871 = vpop.f32.mrb[0].mxu0
        %v4872 = vpop.f32.mrb[0].mxu0
        %v4873 = vadd.f32 0.0, %v4872
        %v4874 = vpop.f32.mrb[0].mxu0
        %4875 = vmatprep.mubr.bf16.mxu0 0
        %4876 = vmatmul.mubr.bf16.gmra.mrb[0].mxu0 %v4735
        %v4877 = vpop.f32.mrb[0].mxu0
        %v4878 = vadd.f32 0.0, %v4877
        %v4879 = vpop.f32.mrb[0].mxu0
        %v4880 = vpop.f32.mrb[0].mxu0
        %v4881 = vadd.f32 0.0, %v4880
        %v4882 = vpop.f32.mrb[0].mxu0
        %4883 = vmatprep.mubr.bf16.mxu0 0
        %4884 = vmatmul.mubr.bf16.gmra.mrb[0].mxu0 %v4736
        %v4885 = vpop.f32.mrb[0].mxu0
        %v4886 = vadd.f32 0.0, %v4885
        %v4887 = vpop.f32.mrb[0].mxu0
        %v4888 = vpop.f32.mrb[0].mxu0
        %v4889 = vadd.f32 0.0, %v4888
        %v4890 = vpop.f32.mrb[0].mxu0
        %4891 = vmatprep.mubr.bf16.mxu0 0
        %4892 = vmatmul.mubr.bf16.gmra.mrb[0].mxu0 %v4737
        %v4893 = vpop.f32.mrb[0].mxu0
        %v4894 = vadd.f32 0.0, %v4893
        %v4895 = vpop.f32.mrb[0].mxu0
        %v4896 = vpop.f32.mrb[0].mxu0
        %v4897 = vadd.f32 0.0, %v4896
        %v4898 = vpop.f32.mrb[0].mxu0
        %4899 = vmatprep.mubr.bf16.mxu0 0
        %4900 = vmatmul.mubr.bf16.gmra.mrb[0].mxu0 %v4738
        %v4901 = vpop.f32.mrb[0].mxu0
        %v4902 = vadd.f32 0.0, %v4901
        %v4903 = vpop.f32.mrb[0].mxu0
        %v4904 = vpop.f32.mrb[0].mxu0
        %v4905 = vadd.f32 0.0, %v4904
        %v4906 = vpop.f32.mrb[0].mxu0
        %4907 = vmatprep.mubr.bf16.mxu0 0
        %4908 = vmatmul.mubr.bf16.gmra.mrb[0].mxu0 %v4739
        %v4909 = vpop.f32.mrb[0].mxu0
        %v4910 = vadd.f32 0.0, %v4909
        %v4911 = vpop.f32.mrb[0].mxu0
        %v4912 = vpop.f32.mrb[0].mxu0
        %v4913 = vadd.f32 0.0, %v4912
        %v4914 = vpop.f32.mrb[0].mxu0
        %4915 = vmatprep.mubr.bf16.mxu0 0
        %4916 = vmatmul.mubr.bf16.gmra.mrb[0].mxu0 %v4740
        %v4917 = vpop.f32.mrb[0].mxu0
        %v4918 = vadd.f32 0.0, %v4917
        %v4919 = vpop.f32.mrb[0].mxu0
        %v4920 = vpop.f32.mrb[0].mxu0
        %v4921 = vadd.f32 0.0, %v4920
        %v4922 = vpop.f32.mrb[0].mxu0
        %4923 = vmatprep.mubr.bf16.mxu0 0
        %4924 = vmatmul.mubr.bf16.gmra.mrb[0].mxu0 %v4741
        %v4925 = vpop.f32.mrb[0].mxu0
        %v4926 = vadd.f32 0.0, %v4925
        %v4927 = vpop.f32.mrb[0].mxu0
        %v4928 = vpop.f32.mrb[0].mxu0
        %v4929 = vadd.f32 0.0, %v4928
        %v4930 = vpop.f32.mrb[0].mxu0
        %4931 = vmatprep.mubr.bf16.mxu0 0
        %4932 = vmatmul.mubr.bf16.gmra.mrb[0].mxu0 %v4742
        %v4933 = vpop.f32.mrb[0].mxu0
        %v4934 = vadd.f32 0.0, %v4933
        %v4935 = vpop.f32.mrb[0].mxu0
        %v4936 = vpop.f32.mrb[0].mxu0
        %v4937 = vadd.f32 0.0, %v4936
        %v4938 = vpop.f32.mrb[0].mxu0
        %4939 = vmatprep.mubr.bf16.mxu0 0
        %4940 = vmatmul.mubr.bf16.gmra.mrb[0].mxu0 %v4743
        %v4941 = vpop.f32.mrb[0].mxu0
        %v4942 = vadd.f32 0.0, %v4941
        %v4943 = vpop.f32.mrb[0].mxu0
        %v4944 = vpop.f32.mrb[0].mxu0
        %v4945 = vadd.f32 0.0, %v4944
        %v4946 = vpop.f32.mrb[0].mxu0
        %4947 = vmatprep.mubr.bf16.mxu0 0
        %4948 = vmatmul.mubr.bf16.gmra.mrb[0].mxu0 %v4744
        %v4949 = vpop.f32.mrb[0].mxu0
        %v4950 = vadd.f32 0.0, %v4949
        %v4951 = vpop.f32.mrb[0].mxu0
        %v4952 = vpop.f32.mrb[0].mxu0
        %v4953 = vadd.f32 0.0, %v4952
        %v4954 = vpop.f32.mrb[0].mxu0
        %4955 = vmatprep.mubr.bf16.mxu0 0
        %4956 = vmatmul.mubr.bf16.gmra.mrb[0].mxu0 %v4745
        %v4957 = vpop.f32.mrb[0].mxu0
        %v4958 = vadd.f32 0.0, %v4957
        %v4959 = vpop.f32.mrb[0].mxu0
        %v4960 = vpop.f32.mrb[0].mxu0
        %v4961 = vadd.f32 0.0, %v4960
        %v4962 = vpop.f32.mrb[0].mxu0
        %4963 = vmatprep.mubr.bf16.mxu0 0
        %4964 = vmatmul.mubr.bf16.gmra.mrb[0].mxu0 %v4746
        %v4965 = vpop.f32.mrb[0].mxu0
        %v4966 = vadd.f32 0.0, %v4965
        %v4967 = vpop.f32.mrb[0].mxu0
        %v4968 = vpop.f32.mrb[0].mxu0
        %v4969 = vadd.f32 0.0, %v4968
        %v4970 = vpop.f32.mrb[0].mxu0
        %4971 = vdwg.mxu0
        %v4972 = vadd.f32 %v2651, %v4846
        %v4973 = vadd.f32 %v2652, %v4849
        %v4974 = vadd.f32 %v2653, %v4854
        %v4975 = vadd.f32 %v2654, %v4857
        %v4976 = vadd.f32 %v2655, %v4862
        %v4977 = vadd.f32 %v2656, %v4865
        %v4978 = vadd.f32 %v2657, %v4870
        %v4979 = vadd.f32 %v2658, %v4873
        %v4980 = vadd.f32 %v2659, %v4878
        %v4981 = vadd.f32 %v2660, %v4881
        %v4982 = vadd.f32 %v2661, %v4886
        %v4983 = vadd.f32 %v2662, %v4889
        %v4984 = vadd.f32 %v2663, %v4894
        %v4985 = vadd.f32 %v2664, %v4897
        %v4986 = vadd.f32 %v2665, %v4902
        %v4987 = vadd.f32 %v2666, %v4905
        %v4988 = vadd.f32 %v2667, %v4910
        %v4989 = vadd.f32 %v2668, %v4913
        %v4990 = vadd.f32 %v2669, %v4918
        %v4991 = vadd.f32 %v2670, %v4921
        %v4992 = vadd.f32 %v2671, %v4926
        %v4993 = vadd.f32 %v2672, %v4929
        %v4994 = vadd.f32 %v2673, %v4934
        %v4995 = vadd.f32 %v2674, %v4937
        %v4996 = vadd.f32 %v2675, %v4942
        %v4997 = vadd.f32 %v2676, %v4945
        %v4998 = vadd.f32 %v2677, %v4950
        %v4999 = vadd.f32 %v2678, %v4953
        %v5000 = vadd.f32 %v2679, %v4958
        %v5001 = vadd.f32 %v2680, %v4961
        %v5002 = vadd.f32 %v2681, %v4966
        %v5003 = vadd.f32 %v2682, %v4969
        %v5004 = vrot.slane %v4699, 7
        %v5005 = vrot.slane %v4700, 7
        %v5006 = vrot.slane %v4701, 7
        %v5007 = vrot.slane %v4702, 7
        %v5008 = vrot.slane %v4703, 7
        %v5009 = vrot.slane %v4704, 7
        %v5010 = vrot.slane %v4705, 7
        %v5011 = vrot.slane %v4706, 7
        %v5012 = vrot.slane %v4707, 7
        %v5013 = vrot.slane %v4708, 7
        %v5014 = vrot.slane %v4709, 7
        %v5015 = vrot.slane %v4710, 7
        %v5016 = vrot.slane %v4711, 7
        %v5017 = vrot.slane %v4712, 7
        %v5018 = vrot.slane %v4713, 7
        %v5019 = vrot.slane %v4714, 7
        %v5020 = vrot.slane %v4715, 7
        %v5021 = vrot.slane %v4716, 7
        %v5022 = vrot.slane %v4717, 7
        %v5023 = vrot.slane %v4718, 7
        %v5024 = vrot.slane %v4719, 7
        %v5025 = vrot.slane %v4720, 7
        %v5026 = vrot.slane %v4721, 7
        %v5027 = vrot.slane %v4722, 7
        %v5028 = vrot.slane %v4723, 7
        %v5029 = vrot.slane %v4724, 7
        %v5030 = vrot.slane %v4725, 7
        %v5031 = vrot.slane %v4726, 7
        %v5032 = vrot.slane %v4727, 7
        %v5033 = vrot.slane %v4728, 7
        %v5034 = vrot.slane %v4729, 7
        %v5035 = vrot.slane %v4730, 7
        %v5036 = vsel %vm1382, %v5034, %v5035
        %v5037 = vsel %vm1382, %v5033, %v5034
        %v5038 = vsel %vm1382, %v5032, %v5033
        %v5039 = vsel %vm1382, %v5031, %v5032
        %v5040 = vsel %vm1382, %v5030, %v5031
        %v5041 = vsel %vm1382, %v5029, %v5030
        %v5042 = vsel %vm1382, %v5028, %v5029
        %v5043 = vsel %vm1382, %v5027, %v5028
        %v5044 = vsel %vm1382, %v5026, %v5027
        %v5045 = vsel %vm1382, %v5025, %v5026
        %v5046 = vsel %vm1382, %v5024, %v5025
        %v5047 = vsel %vm1382, %v5023, %v5024
        %v5048 = vsel %vm1382, %v5022, %v5023
        %v5049 = vsel %vm1382, %v5021, %v5022
        %v5050 = vsel %vm1382, %v5020, %v5021
        %v5051 = vsel %vm1382, %v5019, %v5020
        %v5052 = vsel %vm1382, %v5018, %v5019
        %v5053 = vsel %vm1382, %v5017, %v5018
        %v5054 = vsel %vm1382, %v5016, %v5017
        %v5055 = vsel %vm1382, %v5015, %v5016
        %v5056 = vsel %vm1382, %v5014, %v5015
        %v5057 = vsel %vm1382, %v5013, %v5014
        %v5058 = vsel %vm1382, %v5012, %v5013
        %v5059 = vsel %vm1382, %v5011, %v5012
        %v5060 = vsel %vm1382, %v5010, %v5011
        %v5061 = vsel %vm1382, %v5009, %v5010
        %v5062 = vsel %vm1382, %v5008, %v5009
        %v5063 = vsel %vm1382, %v5007, %v5008
        %v5064 = vsel %vm1382, %v5006, %v5007
        %v5065 = vsel %vm1382, %v5005, %v5006
        %v5066 = vsel %vm1382, %v5004, %v5005
        %v5067 = vsel %vm1382, %v5035, %v5004
        %v5068 = vadd.f32 %v5067, %v2750
        %v5069 = vadd.f32 %v5066, %v2755
        %v5070 = vadd.f32 %v5065, %v2760
        %v5071 = vadd.f32 %v5064, %v2765
        %v5072 = vadd.f32 %v5063, %v2770
        %v5073 = vadd.f32 %v5062, %v2775
        %v5074 = vadd.f32 %v5061, %v2780
        %v5075 = vadd.f32 %v5060, %v2785
        %v5076 = vadd.f32 %v5059, %v2790
        %v5077 = vadd.f32 %v5058, %v2795
        %v5078 = vadd.f32 %v5057, %v2800
        %v5079 = vadd.f32 %v5056, %v2805
        %v5080 = vadd.f32 %v5055, %v2810
        %v5081 = vadd.f32 %v5054, %v2815
        %v5082 = vadd.f32 %v5053, %v2820
        %v5083 = vadd.f32 %v5052, %v2825
        %v5084 = vadd.f32 %v5051, %v2830
        %v5085 = vadd.f32 %v5050, %v2835
        %v5086 = vadd.f32 %v5049, %v2840
        %v5087 = vadd.f32 %v5048, %v2845
        %v5088 = vadd.f32 %v5047, %v2850
        %v5089 = vadd.f32 %v5046, %v2855
        %v5090 = vadd.f32 %v5045, %v2860
        %v5091 = vadd.f32 %v5044, %v2865
        %v5092 = vadd.f32 %v5043, %v2870
        %v5093 = vadd.f32 %v5042, %v2875
        %v5094 = vadd.f32 %v5041, %v2880
        %v5095 = vadd.f32 %v5040, %v2885
        %v5096 = vadd.f32 %v5039, %v2890
        %v5097 = vadd.f32 %v5038, %v2895
        %v5098 = vadd.f32 %v5037, %v2900
        %v5099 = vadd.f32 %v5036, %v2905
        %v5100 = vmax.f32 %v4699, %v5068
        %v5101 = vmax.f32 %v4700, %v5069
        %v5102 = vmax.f32 %v4701, %v5070
        %v5103 = vmax.f32 %v4702, %v5071
        %v5104 = vmax.f32 %v4703, %v5072
        %v5105 = vmax.f32 %v4704, %v5073
        %v5106 = vmax.f32 %v4705, %v5074
        %v5107 = vmax.f32 %v4706, %v5075
        %v5108 = vmax.f32 %v4707, %v5076
        %v5109 = vmax.f32 %v4708, %v5077
        %v5110 = vmax.f32 %v4709, %v5078
        %v5111 = vmax.f32 %v4710, %v5079
        %v5112 = vmax.f32 %v4711, %v5080
        %v5113 = vmax.f32 %v4712, %v5081
        %v5114 = vmax.f32 %v4713, %v5082
        %v5115 = vmax.f32 %v4714, %v5083
        %v5116 = vmax.f32 %v4715, %v5084
        %v5117 = vmax.f32 %v4716, %v5085
        %v5118 = vmax.f32 %v4717, %v5086
        %v5119 = vmax.f32 %v4718, %v5087
        %v5120 = vmax.f32 %v4719, %v5088
        %v5121 = vmax.f32 %v4720, %v5089
        %v5122 = vmax.f32 %v4721, %v5090
        %v5123 = vmax.f32 %v4722, %v5091
        %v5124 = vmax.f32 %v4723, %v5092
        %v5125 = vmax.f32 %v4724, %v5093
        %v5126 = vmax.f32 %v4725, %v5094
        %v5127 = vmax.f32 %v4726, %v5095
        %v5128 = vmax.f32 %v4727, %v5096
        %v5129 = vmax.f32 %v4728, %v5097
        %v5130 = vmax.f32 %v4729, %v5098
        %v5131 = vmax.f32 %v4730, %v5099
        %v5132 = vrot.slane %v4699, 1
        %v5133 = vrot.slane %v4700, 1
        %v5134 = vrot.slane %v4701, 1
        %v5135 = vrot.slane %v4702, 1
        %v5136 = vrot.slane %v4703, 1
        %v5137 = vrot.slane %v4704, 1
        %v5138 = vrot.slane %v4705, 1
        %v5139 = vrot.slane %v4706, 1
        %v5140 = vrot.slane %v4707, 1
        %v5141 = vrot.slane %v4708, 1
        %v5142 = vrot.slane %v4709, 1
        %v5143 = vrot.slane %v4710, 1
        %v5144 = vrot.slane %v4711, 1
        %v5145 = vrot.slane %v4712, 1
        %v5146 = vrot.slane %v4713, 1
        %v5147 = vrot.slane %v4714, 1
        %v5148 = vrot.slane %v4715, 1
        %v5149 = vrot.slane %v4716, 1
        %v5150 = vrot.slane %v4717, 1
        %v5151 = vrot.slane %v4718, 1
        %v5152 = vrot.slane %v4719, 1
        %v5153 = vrot.slane %v4720, 1
        %v5154 = vrot.slane %v4721, 1
        %v5155 = vrot.slane %v4722, 1
        %v5156 = vrot.slane %v4723, 1
        %v5157 = vrot.slane %v4724, 1
        %v5158 = vrot.slane %v4725, 1
        %v5159 = vrot.slane %v4726, 1
        %v5160 = vrot.slane %v4727, 1
        %v5161 = vrot.slane %v4728, 1
        %v5162 = vrot.slane %v4729, 1
        %v5163 = vrot.slane %v4730, 1
        %v5164 = vsel %vm1511, %v5162, %v5163
        %v5165 = vsel %vm1511, %v5161, %v5162
        %v5166 = vsel %vm1511, %v5160, %v5161
        %v5167 = vsel %vm1511, %v5159, %v5160
        %v5168 = vsel %vm1511, %v5158, %v5159
        %v5169 = vsel %vm1511, %v5157, %v5158
        %v5170 = vsel %vm1511, %v5156, %v5157
        %v5171 = vsel %vm1511, %v5155, %v5156
        %v5172 = vsel %vm1511, %v5154, %v5155
        %v5173 = vsel %vm1511, %v5153, %v5154
        %v5174 = vsel %vm1511, %v5152, %v5153
        %v5175 = vsel %vm1511, %v5151, %v5152
        %v5176 = vsel %vm1511, %v5150, %v5151
        %v5177 = vsel %vm1511, %v5149, %v5150
        %v5178 = vsel %vm1511, %v5148, %v5149
        %v5179 = vsel %vm1511, %v5147, %v5148
        %v5180 = vsel %vm1511, %v5146, %v5147
        %v5181 = vsel %vm1511, %v5145, %v5146
        %v5182 = vsel %vm1511, %v5144, %v5145
        %v5183 = vsel %vm1511, %v5143, %v5144
        %v5184 = vsel %vm1511, %v5142, %v5143
        %v5185 = vsel %vm1511, %v5141, %v5142
        %v5186 = vsel %vm1511, %v5140, %v5141
        %v5187 = vsel %vm1511, %v5139, %v5140
        %v5188 = vsel %vm1511, %v5138, %v5139
        %v5189 = vsel %vm1511, %v5137, %v5138
        %v5190 = vsel %vm1511, %v5136, %v5137
        %v5191 = vsel %vm1511, %v5135, %v5136
        %v5192 = vsel %vm1511, %v5134, %v5135
        %v5193 = vsel %vm1511, %v5133, %v5134
        %v5194 = vsel %vm1511, %v5132, %v5133
        %v5195 = vsel %vm1511, %v5163, %v5132
        %v5196 = vadd.f32 %v5194, %v3038
        %v5197 = vadd.f32 %v5193, %v3043
        %v5198 = vadd.f32 %v5192, %v3048
        %v5199 = vadd.f32 %v5191, %v3053
        %v5200 = vadd.f32 %v5190, %v3058
        %v5201 = vadd.f32 %v5189, %v3063
        %v5202 = vadd.f32 %v5188, %v3068
        %v5203 = vadd.f32 %v5187, %v3073
        %v5204 = vadd.f32 %v5186, %v3078
        %v5205 = vadd.f32 %v5185, %v3083
        %v5206 = vadd.f32 %v5184, %v3088
        %v5207 = vadd.f32 %v5183, %v3093
        %v5208 = vadd.f32 %v5182, %v3098
        %v5209 = vadd.f32 %v5181, %v3103
        %v5210 = vadd.f32 %v5180, %v3108
        %v5211 = vadd.f32 %v5179, %v3113
        %v5212 = vadd.f32 %v5178, %v3118
        %v5213 = vadd.f32 %v5177, %v3123
        %v5214 = vadd.f32 %v5176, %v3128
        %v5215 = vadd.f32 %v5175, %v3133
        %v5216 = vadd.f32 %v5174, %v3138
        %v5217 = vadd.f32 %v5173, %v3143
        %v5218 = vadd.f32 %v5172, %v3148
        %v5219 = vadd.f32 %v5171, %v3153
        %v5220 = vadd.f32 %v5170, %v3158
        %v5221 = vadd.f32 %v5169, %v3163
        %v5222 = vadd.f32 %v5168, %v3168
        %v5223 = vadd.f32 %v5167, %v3173
        %v5224 = vadd.f32 %v5166, %v3178
        %v5225 = vadd.f32 %v5165, %v3183
        %v5226 = vadd.f32 %v5164, %v3188
        %v5227 = vadd.f32 %v5195, %v3193
        %v5228 = vmax.f32 %v5100, %v5196
        %v5229 = vmax.f32 %v5101, %v5197
        %v5230 = vmax.f32 %v5102, %v5198
        %v5231 = vmax.f32 %v5103, %v5199
        %v5232 = vmax.f32 %v5104, %v5200
        %v5233 = vmax.f32 %v5105, %v5201
        %v5234 = vmax.f32 %v5106, %v5202
        %v5235 = vmax.f32 %v5107, %v5203
        %v5236 = vmax.f32 %v5108, %v5204
        %v5237 = vmax.f32 %v5109, %v5205
        %v5238 = vmax.f32 %v5110, %v5206
        %v5239 = vmax.f32 %v5111, %v5207
        %v5240 = vmax.f32 %v5112, %v5208
        %v5241 = vmax.f32 %v5113, %v5209
        %v5242 = vmax.f32 %v5114, %v5210
        %v5243 = vmax.f32 %v5115, %v5211
        %v5244 = vmax.f32 %v5116, %v5212
        %v5245 = vmax.f32 %v5117, %v5213
        %v5246 = vmax.f32 %v5118, %v5214
        %v5247 = vmax.f32 %v5119, %v5215
        %v5248 = vmax.f32 %v5120, %v5216
        %v5249 = vmax.f32 %v5121, %v5217
        %v5250 = vmax.f32 %v5122, %v5218
        %v5251 = vmax.f32 %v5123, %v5219
        %v5252 = vmax.f32 %v5124, %v5220
        %v5253 = vmax.f32 %v5125, %v5221
        %v5254 = vmax.f32 %v5126, %v5222
        %v5255 = vmax.f32 %v5127, %v5223
        %v5256 = vmax.f32 %v5128, %v5224
        %v5257 = vmax.f32 %v5129, %v5225
        %v5258 = vmax.f32 %v5130, %v5226
        %v5259 = vmax.f32 %v5131, %v5227
        %v5260 = vrot.slane %v4699, 6
        %v5261 = vrot.slane %v4700, 6
        %v5262 = vrot.slane %v4701, 6
        %v5263 = vrot.slane %v4702, 6
        %v5264 = vrot.slane %v4703, 6
        %v5265 = vrot.slane %v4704, 6
        %v5266 = vrot.slane %v4705, 6
        %v5267 = vrot.slane %v4706, 6
        %v5268 = vrot.slane %v4707, 6
        %v5269 = vrot.slane %v4708, 6
        %v5270 = vrot.slane %v4709, 6
        %v5271 = vrot.slane %v4710, 6
        %v5272 = vrot.slane %v4711, 6
        %v5273 = vrot.slane %v4712, 6
        %v5274 = vrot.slane %v4713, 6
        %v5275 = vrot.slane %v4714, 6
        %v5276 = vrot.slane %v4715, 6
        %v5277 = vrot.slane %v4716, 6
        %v5278 = vrot.slane %v4717, 6
        %v5279 = vrot.slane %v4718, 6
        %v5280 = vrot.slane %v4719, 6
        %v5281 = vrot.slane %v4720, 6
        %v5282 = vrot.slane %v4721, 6
        %v5283 = vrot.slane %v4722, 6
        %v5284 = vrot.slane %v4723, 6
        %v5285 = vrot.slane %v4724, 6
        %v5286 = vrot.slane %v4725, 6
        %v5287 = vrot.slane %v4726, 6
        %v5288 = vrot.slane %v4727, 6
        %v5289 = vrot.slane %v4728, 6
        %v5290 = vrot.slane %v4729, 6
        %v5291 = vrot.slane %v4730, 6
        %v5292 = vsel %vm1896, %v5290, %v5291
        %v5293 = vsel %vm1896, %v5289, %v5290
        %v5294 = vsel %vm1896, %v5288, %v5289
        %v5295 = vsel %vm1896, %v5287, %v5288
        %v5296 = vsel %vm1896, %v5286, %v5287
        %v5297 = vsel %vm1896, %v5285, %v5286
        %v5298 = vsel %vm1896, %v5284, %v5285
        %v5299 = vsel %vm1896, %v5283, %v5284
        %v5300 = vsel %vm1896, %v5282, %v5283
        %v5301 = vsel %vm1896, %v5281, %v5282
        %v5302 = vsel %vm1896, %v5280, %v5281
        %v5303 = vsel %vm1896, %v5279, %v5280
        %v5304 = vsel %vm1896, %v5278, %v5279
        %v5305 = vsel %vm1896, %v5277, %v5278
        %v5306 = vsel %vm1896, %v5276, %v5277
        %v5307 = vsel %vm1896, %v5275, %v5276
        %v5308 = vsel %vm1896, %v5274, %v5275
        %v5309 = vsel %vm1896, %v5273, %v5274
        %v5310 = vsel %vm1896, %v5272, %v5273
        %v5311 = vsel %vm1896, %v5271, %v5272
        %v5312 = vsel %vm1896, %v5270, %v5271
        %v5313 = vsel %vm1896, %v5269, %v5270
        %v5314 = vsel %vm1896, %v5268, %v5269
        %v5315 = vsel %vm1896, %v5267, %v5268
        %v5316 = vsel %vm1896, %v5266, %v5267
        %v5317 = vsel %vm1896, %v5265, %v5266
        %v5318 = vsel %vm1896, %v5264, %v5265
        %v5319 = vsel %vm1896, %v5263, %v5264
        %v5320 = vsel %vm1896, %v5262, %v5263
        %v5321 = vsel %vm1896, %v5261, %v5262
        %v5322 = vsel %vm1896, %v5260, %v5261
        %v5323 = vsel %vm1896, %v5291, %v5260
        %v5324 = vadd.f32 %v5323, %v3326
        %v5325 = vadd.f32 %v5322, %v3331
        %v5326 = vadd.f32 %v5321, %v3336
        %v5327 = vadd.f32 %v5320, %v3341
        %v5328 = vadd.f32 %v5319, %v3346
        %v5329 = vadd.f32 %v5318, %v3351
        %v5330 = vadd.f32 %v5317, %v3356
        %v5331 = vadd.f32 %v5316, %v3361
        %v5332 = vadd.f32 %v5315, %v3366
        %v5333 = vadd.f32 %v5314, %v3371
        %v5334 = vadd.f32 %v5313, %v3376
        %v5335 = vadd.f32 %v5312, %v3381
        %v5336 = vadd.f32 %v5311, %v3386
        %v5337 = vadd.f32 %v5310, %v3391
        %v5338 = vadd.f32 %v5309, %v3396
        %v5339 = vadd.f32 %v5308, %v3401
        %v5340 = vadd.f32 %v5307, %v3406
        %v5341 = vadd.f32 %v5306, %v3411
        %v5342 = vadd.f32 %v5305, %v3416
        %v5343 = vadd.f32 %v5304, %v3421
        %v5344 = vadd.f32 %v5303, %v3426
        %v5345 = vadd.f32 %v5302, %v3431
        %v5346 = vadd.f32 %v5301, %v3436
        %v5347 = vadd.f32 %v5300, %v3441
        %v5348 = vadd.f32 %v5299, %v3446
        %v5349 = vadd.f32 %v5298, %v3451
        %v5350 = vadd.f32 %v5297, %v3456
        %v5351 = vadd.f32 %v5296, %v3461
        %v5352 = vadd.f32 %v5295, %v3466
        %v5353 = vadd.f32 %v5294, %v3471
        %v5354 = vadd.f32 %v5293, %v3476
        %v5355 = vadd.f32 %v5292, %v3481
        %v5356 = vmax.f32 %v5228, %v5324
        %v5357 = vmax.f32 %v5229, %v5325
        %v5358 = vmax.f32 %v5230, %v5326
        %v5359 = vmax.f32 %v5231, %v5327
        %v5360 = vmax.f32 %v5232, %v5328
        %v5361 = vmax.f32 %v5233, %v5329
        %v5362 = vmax.f32 %v5234, %v5330
        %v5363 = vmax.f32 %v5235, %v5331
        %v5364 = vmax.f32 %v5236, %v5332
        %v5365 = vmax.f32 %v5237, %v5333
        %v5366 = vmax.f32 %v5238, %v5334
        %v5367 = vmax.f32 %v5239, %v5335
        %v5368 = vmax.f32 %v5240, %v5336
        %v5369 = vmax.f32 %v5241, %v5337
        %v5370 = vmax.f32 %v5242, %v5338
        %v5371 = vmax.f32 %v5243, %v5339
        %v5372 = vmax.f32 %v5244, %v5340
        %v5373 = vmax.f32 %v5245, %v5341
        %v5374 = vmax.f32 %v5246, %v5342
        %v5375 = vmax.f32 %v5247, %v5343
        %v5376 = vmax.f32 %v5248, %v5344
        %v5377 = vmax.f32 %v5249, %v5345
        %v5378 = vmax.f32 %v5250, %v5346
        %v5379 = vmax.f32 %v5251, %v5347
        %v5380 = vmax.f32 %v5252, %v5348
        %v5381 = vmax.f32 %v5253, %v5349
        %v5382 = vmax.f32 %v5254, %v5350
        %v5383 = vmax.f32 %v5255, %v5351
        %v5384 = vmax.f32 %v5256, %v5352
        %v5385 = vmax.f32 %v5257, %v5353
        %v5386 = vmax.f32 %v5258, %v5354
        %v5387 = vmax.f32 %v5259, %v5355
        %v5388 = vrot.slane %v4699, 2
        %v5389 = vrot.slane %v4700, 2
        %v5390 = vrot.slane %v4701, 2
        %v5391 = vrot.slane %v4702, 2
        %v5392 = vrot.slane %v4703, 2
        %v5393 = vrot.slane %v4704, 2
        %v5394 = vrot.slane %v4705, 2
        %v5395 = vrot.slane %v4706, 2
        %v5396 = vrot.slane %v4707, 2
        %v5397 = vrot.slane %v4708, 2
        %v5398 = vrot.slane %v4709, 2
        %v5399 = vrot.slane %v4710, 2
        %v5400 = vrot.slane %v4711, 2
        %v5401 = vrot.slane %v4712, 2
        %v5402 = vrot.slane %v4713, 2
        %v5403 = vrot.slane %v4714, 2
        %v5404 = vrot.slane %v4715, 2
        %v5405 = vrot.slane %v4716, 2
        %v5406 = vrot.slane %v4717, 2
        %v5407 = vrot.slane %v4718, 2
        %v5408 = vrot.slane %v4719, 2
        %v5409 = vrot.slane %v4720, 2
        %v5410 = vrot.slane %v4721, 2
        %v5411 = vrot.slane %v4722, 2
        %v5412 = vrot.slane %v4723, 2
        %v5413 = vrot.slane %v4724, 2
        %v5414 = vrot.slane %v4725, 2
        %v5415 = vrot.slane %v4726, 2
        %v5416 = vrot.slane %v4727, 2
        %v5417 = vrot.slane %v4728, 2
        %v5418 = vrot.slane %v4729, 2
        %v5419 = vrot.slane %v4730, 2
        %v5420 = vsel %vm2025, %v5418, %v5419
        %v5421 = vsel %vm2025, %v5417, %v5418
        %v5422 = vsel %vm2025, %v5416, %v5417
        %v5423 = vsel %vm2025, %v5415, %v5416
        %v5424 = vsel %vm2025, %v5414, %v5415
        %v5425 = vsel %vm2025, %v5413, %v5414
        %v5426 = vsel %vm2025, %v5412, %v5413
        %v5427 = vsel %vm2025, %v5411, %v5412
        %v5428 = vsel %vm2025, %v5410, %v5411
        %v5429 = vsel %vm2025, %v5409, %v5410
        %v5430 = vsel %vm2025, %v5408, %v5409
        %v5431 = vsel %vm2025, %v5407, %v5408
        %v5432 = vsel %vm2025, %v5406, %v5407
        %v5433 = vsel %vm2025, %v5405, %v5406
        %v5434 = vsel %vm2025, %v5404, %v5405
        %v5435 = vsel %vm2025, %v5403, %v5404
        %v5436 = vsel %vm2025, %v5402, %v5403
        %v5437 = vsel %vm2025, %v5401, %v5402
        %v5438 = vsel %vm2025, %v5400, %v5401
        %v5439 = vsel %vm2025, %v5399, %v5400
        %v5440 = vsel %vm2025, %v5398, %v5399
        %v5441 = vsel %vm2025, %v5397, %v5398
        %v5442 = vsel %vm2025, %v5396, %v5397
        %v5443 = vsel %vm2025, %v5395, %v5396
        %v5444 = vsel %vm2025, %v5394, %v5395
        %v5445 = vsel %vm2025, %v5393, %v5394
        %v5446 = vsel %vm2025, %v5392, %v5393
        %v5447 = vsel %vm2025, %v5391, %v5392
        %v5448 = vsel %vm2025, %v5390, %v5391
        %v5449 = vsel %vm2025, %v5389, %v5390
        %v5450 = vsel %vm2025, %v5388, %v5389
        %v5451 = vsel %vm2025, %v5419, %v5388
        %v5452 = vadd.f32 %v5450, %v3614
        %v5453 = vadd.f32 %v5449, %v3619
        %v5454 = vadd.f32 %v5448, %v3624
        %v5455 = vadd.f32 %v5447, %v3629
        %v5456 = vadd.f32 %v5446, %v3634
        %v5457 = vadd.f32 %v5445, %v3639
        %v5458 = vadd.f32 %v5444, %v3644
        %v5459 = vadd.f32 %v5443, %v3649
        %v5460 = vadd.f32 %v5442, %v3654
        %v5461 = vadd.f32 %v5441, %v3659
        %v5462 = vadd.f32 %v5440, %v3664
        %v5463 = vadd.f32 %v5439, %v3669
        %v5464 = vadd.f32 %v5438, %v3674
        %v5465 = vadd.f32 %v5437, %v3679
        %v5466 = vadd.f32 %v5436, %v3684
        %v5467 = vadd.f32 %v5435, %v3689
        %v5468 = vadd.f32 %v5434, %v3694
        %v5469 = vadd.f32 %v5433, %v3699
        %v5470 = vadd.f32 %v5432, %v3704
        %v5471 = vadd.f32 %v5431, %v3709
        %v5472 = vadd.f32 %v5430, %v3714
        %v5473 = vadd.f32 %v5429, %v3719
        %v5474 = vadd.f32 %v5428, %v3724
        %v5475 = vadd.f32 %v5427, %v3729
        %v5476 = vadd.f32 %v5426, %v3734
        %v5477 = vadd.f32 %v5425, %v3739
        %v5478 = vadd.f32 %v5424, %v3744
        %v5479 = vadd.f32 %v5423, %v3749
        %v5480 = vadd.f32 %v5422, %v3754
        %v5481 = vadd.f32 %v5421, %v3759
        %v5482 = vadd.f32 %v5420, %v3764
        %v5483 = vadd.f32 %v5451, %v3769
        %v5484 = vmax.f32 %v5356, %v5452
        %v5485 = vmax.f32 %v5357, %v5453
        %v5486 = vmax.f32 %v5358, %v5454
        %v5487 = vmax.f32 %v5359, %v5455
        %v5488 = vmax.f32 %v5360, %v5456
        %v5489 = vmax.f32 %v5361, %v5457
        %v5490 = vmax.f32 %v5362, %v5458
        %v5491 = vmax.f32 %v5363, %v5459
        %v5492 = vmax.f32 %v5364, %v5460
        %v5493 = vmax.f32 %v5365, %v5461
        %v5494 = vmax.f32 %v5366, %v5462
        %v5495 = vmax.f32 %v5367, %v5463
        %v5496 = vmax.f32 %v5368, %v5464
        %v5497 = vmax.f32 %v5369, %v5465
        %v5498 = vmax.f32 %v5370, %v5466
        %v5499 = vmax.f32 %v5371, %v5467
        %v5500 = vmax.f32 %v5372, %v5468
        %v5501 = vmax.f32 %v5373, %v5469
        %v5502 = vmax.f32 %v5374, %v5470
        %v5503 = vmax.f32 %v5375, %v5471
        %v5504 = vmax.f32 %v5376, %v5472
        %v5505 = vmax.f32 %v5377, %v5473
        %v5506 = vmax.f32 %v5378, %v5474
        %v5507 = vmax.f32 %v5379, %v5475
        %v5508 = vmax.f32 %v5380, %v5476
        %v5509 = vmax.f32 %v5381, %v5477
        %v5510 = vmax.f32 %v5382, %v5478
        %v5511 = vmax.f32 %v5383, %v5479
        %v5512 = vmax.f32 %v5384, %v5480
        %v5513 = vmax.f32 %v5385, %v5481
        %v5514 = vmax.f32 %v5386, %v5482
        %v5515 = vmax.f32 %v5387, %v5483
        %v5516 = vadd.f32 %v5514, %v3838
        %v5517 = vadd.f32 %v5515, %v3843
        %v5518 = vadd.f32 %v5484, %v3848
        %v5519 = vadd.f32 %v5485, %v3853
        %v5520 = vadd.f32 %v5486, %v3858
        %v5521 = vadd.f32 %v5487, %v3863
        %v5522 = vadd.f32 %v5488, %v3868
        %v5523 = vadd.f32 %v5489, %v3873
        %v5524 = vadd.f32 %v5490, %v3878
        %v5525 = vadd.f32 %v5491, %v3883
        %v5526 = vadd.f32 %v5492, %v3888
        %v5527 = vadd.f32 %v5493, %v3893
        %v5528 = vadd.f32 %v5494, %v3898
        %v5529 = vadd.f32 %v5495, %v3903
        %v5530 = vadd.f32 %v5496, %v3908
        %v5531 = vadd.f32 %v5497, %v3913
        %v5532 = vadd.f32 %v5498, %v3918
        %v5533 = vadd.f32 %v5499, %v3923
        %v5534 = vadd.f32 %v5500, %v3928
        %v5535 = vadd.f32 %v5501, %v3933
        %v5536 = vadd.f32 %v5502, %v3938
        %v5537 = vadd.f32 %v5503, %v3943
        %v5538 = vadd.f32 %v5504, %v3948
        %v5539 = vadd.f32 %v5505, %v3953
        %v5540 = vadd.f32 %v5506, %v3958
        %v5541 = vadd.f32 %v5507, %v3963
        %v5542 = vadd.f32 %v5508, %v3968
        %v5543 = vadd.f32 %v5509, %v3973
        %v5544 = vadd.f32 %v5510, %v3978
        %v5545 = vadd.f32 %v5511, %v3983
        %v5546 = vadd.f32 %v5512, %v3988
        %v5547 = vadd.f32 %v5513, %v3993
        %v5548 = vmax.f32 %v5484, %v5516
        %v5549 = vmax.f32 %v5485, %v5517
        %v5550 = vmax.f32 %v5486, %v5518
        %v5551 = vmax.f32 %v5487, %v5519
        %v5552 = vmax.f32 %v5488, %v5520
        %v5553 = vmax.f32 %v5489, %v5521
        %v5554 = vmax.f32 %v5490, %v5522
        %v5555 = vmax.f32 %v5491, %v5523
        %v5556 = vmax.f32 %v5492, %v5524
        %v5557 = vmax.f32 %v5493, %v5525
        %v5558 = vmax.f32 %v5494, %v5526
        %v5559 = vmax.f32 %v5495, %v5527
        %v5560 = vmax.f32 %v5496, %v5528
        %v5561 = vmax.f32 %v5497, %v5529
        %v5562 = vmax.f32 %v5498, %v5530
        %v5563 = vmax.f32 %v5499, %v5531
        %v5564 = vmax.f32 %v5500, %v5532
        %v5565 = vmax.f32 %v5501, %v5533
        %v5566 = vmax.f32 %v5502, %v5534
        %v5567 = vmax.f32 %v5503, %v5535
        %v5568 = vmax.f32 %v5504, %v5536
        %v5569 = vmax.f32 %v5505, %v5537
        %v5570 = vmax.f32 %v5506, %v5538
        %v5571 = vmax.f32 %v5507, %v5539
        %v5572 = vmax.f32 %v5508, %v5540
        %v5573 = vmax.f32 %v5509, %v5541
        %v5574 = vmax.f32 %v5510, %v5542
        %v5575 = vmax.f32 %v5511, %v5543
        %v5576 = vmax.f32 %v5512, %v5544
        %v5577 = vmax.f32 %v5513, %v5545
        %v5578 = vmax.f32 %v5514, %v5546
        %v5579 = vmax.f32 %v5515, %v5547
        %v5580 = vadd.f32 %v5486, %v4062
        %v5581 = vadd.f32 %v5487, %v4067
        %v5582 = vadd.f32 %v5488, %v4072
        %v5583 = vadd.f32 %v5489, %v4077
        %v5584 = vadd.f32 %v5490, %v4082
        %v5585 = vadd.f32 %v5491, %v4087
        %v5586 = vadd.f32 %v5492, %v4092
        %v5587 = vadd.f32 %v5493, %v4097
        %v5588 = vadd.f32 %v5494, %v4102
        %v5589 = vadd.f32 %v5495, %v4107
        %v5590 = vadd.f32 %v5496, %v4112
        %v5591 = vadd.f32 %v5497, %v4117
        %v5592 = vadd.f32 %v5498, %v4122
        %v5593 = vadd.f32 %v5499, %v4127
        %v5594 = vadd.f32 %v5500, %v4132
        %v5595 = vadd.f32 %v5501, %v4137
        %v5596 = vadd.f32 %v5502, %v4142
        %v5597 = vadd.f32 %v5503, %v4147
        %v5598 = vadd.f32 %v5504, %v4152
        %v5599 = vadd.f32 %v5505, %v4157
        %v5600 = vadd.f32 %v5506, %v4162
        %v5601 = vadd.f32 %v5507, %v4167
        %v5602 = vadd.f32 %v5508, %v4172
        %v5603 = vadd.f32 %v5509, %v4177
        %v5604 = vadd.f32 %v5510, %v4182
        %v5605 = vadd.f32 %v5511, %v4187
        %v5606 = vadd.f32 %v5512, %v4192
        %v5607 = vadd.f32 %v5513, %v4197
        %v5608 = vadd.f32 %v5514, %v4202
        %v5609 = vadd.f32 %v5515, %v4207
        %v5610 = vadd.f32 %v5484, %v4212
        %v5611 = vadd.f32 %v5485, %v4217
        %v5612 = vmax.f32 %v5548, %v5580
        %v5613 = vmax.f32 %v5549, %v5581
        %v5614 = vmax.f32 %v5550, %v5582
        %v5615 = vmax.f32 %v5551, %v5583
        %v5616 = vmax.f32 %v5552, %v5584
        %v5617 = vmax.f32 %v5553, %v5585
        %v5618 = vmax.f32 %v5554, %v5586
        %v5619 = vmax.f32 %v5555, %v5587
        %v5620 = vmax.f32 %v5556, %v5588
        %v5621 = vmax.f32 %v5557, %v5589
        %v5622 = vmax.f32 %v5558, %v5590
        %v5623 = vmax.f32 %v5559, %v5591
        %v5624 = vmax.f32 %v5560, %v5592
        %v5625 = vmax.f32 %v5561, %v5593
        %v5626 = vmax.f32 %v5562, %v5594
        %v5627 = vmax.f32 %v5563, %v5595
        %v5628 = vmax.f32 %v5564, %v5596
        %v5629 = vmax.f32 %v5565, %v5597
        %v5630 = vmax.f32 %v5566, %v5598
        %v5631 = vmax.f32 %v5567, %v5599
        %v5632 = vmax.f32 %v5568, %v5600
        %v5633 = vmax.f32 %v5569, %v5601
        %v5634 = vmax.f32 %v5570, %v5602
        %v5635 = vmax.f32 %v5571, %v5603
        %v5636 = vmax.f32 %v5572, %v5604
        %v5637 = vmax.f32 %v5573, %v5605
        %v5638 = vmax.f32 %v5574, %v5606
        %v5639 = vmax.f32 %v5575, %v5607
        %v5640 = vmax.f32 %v5576, %v5608
        %v5641 = vmax.f32 %v5577, %v5609
        %v5642 = vmax.f32 %v5578, %v5610
        %v5643 = vmax.f32 %v5579, %v5611
        %v5644 = vadd.f32 %v5512, %v4286
        %v5645 = vadd.f32 %v5513, %v4291
        %v5646 = vadd.f32 %v5514, %v4296
        %v5647 = vadd.f32 %v5515, %v4301
        %v5648 = vadd.f32 %v5484, %v4306
        %v5649 = vadd.f32 %v5485, %v4311
        %v5650 = vadd.f32 %v5486, %v4316
        %v5651 = vadd.f32 %v5487, %v4321
        %v5652 = vadd.f32 %v5488, %v4326
        %v5653 = vadd.f32 %v5489, %v4331
        %v5654 = vadd.f32 %v5490, %v4336
        %v5655 = vadd.f32 %v5491, %v4341
        %v5656 = vadd.f32 %v5492, %v4346
        %v5657 = vadd.f32 %v5493, %v4351
        %v5658 = vadd.f32 %v5494, %v4356
        %v5659 = vadd.f32 %v5495, %v4361
        %v5660 = vadd.f32 %v5496, %v4366
        %v5661 = vadd.f32 %v5497, %v4371
        %v5662 = vadd.f32 %v5498, %v4376
        %v5663 = vadd.f32 %v5499, %v4381
        %v5664 = vadd.f32 %v5500, %v4386
        %v5665 = vadd.f32 %v5501, %v4391
        %v5666 = vadd.f32 %v5502, %v4396
        %v5667 = vadd.f32 %v5503, %v4401
        %v5668 = vadd.f32 %v5504, %v4406
        %v5669 = vadd.f32 %v5505, %v4411
        %v5670 = vadd.f32 %v5506, %v4416
        %v5671 = vadd.f32 %v5507, %v4421
        %v5672 = vadd.f32 %v5508, %v4426
        %v5673 = vadd.f32 %v5509, %v4431
        %v5674 = vadd.f32 %v5510, %v4436
        %v5675 = vadd.f32 %v5511, %v4441
        %v5676 = vmax.f32 %v5612, %v5644
        %v5677 = vmax.f32 %v5613, %v5645
        %v5678 = vmax.f32 %v5614, %v5646
        %v5679 = vmax.f32 %v5615, %v5647
        %v5680 = vmax.f32 %v5616, %v5648
        %v5681 = vmax.f32 %v5617, %v5649
        %v5682 = vmax.f32 %v5618, %v5650
        %v5683 = vmax.f32 %v5619, %v5651
        %v5684 = vmax.f32 %v5620, %v5652
        %v5685 = vmax.f32 %v5621, %v5653
        %v5686 = vmax.f32 %v5622, %v5654
        %v5687 = vmax.f32 %v5623, %v5655
        %v5688 = vmax.f32 %v5624, %v5656
        %v5689 = vmax.f32 %v5625, %v5657
        %v5690 = vmax.f32 %v5626, %v5658
        %v5691 = vmax.f32 %v5627, %v5659
        %v5692 = vmax.f32 %v5628, %v5660
        %v5693 = vmax.f32 %v5629, %v5661
        %v5694 = vmax.f32 %v5630, %v5662
        %v5695 = vmax.f32 %v5631, %v5663
        %v5696 = vmax.f32 %v5632, %v5664
        %v5697 = vmax.f32 %v5633, %v5665
        %v5698 = vmax.f32 %v5634, %v5666
        %v5699 = vmax.f32 %v5635, %v5667
        %v5700 = vmax.f32 %v5636, %v5668
        %v5701 = vmax.f32 %v5637, %v5669
        %v5702 = vmax.f32 %v5638, %v5670
        %v5703 = vmax.f32 %v5639, %v5671
        %v5704 = vmax.f32 %v5640, %v5672
        %v5705 = vmax.f32 %v5641, %v5673
        %v5706 = vmax.f32 %v5642, %v5674
        %v5707 = vmax.f32 %v5643, %v5675
        %v5708 = vadd.f32 %v5488, %v4510
        %v5709 = vadd.f32 %v5489, %v4515
        %v5710 = vadd.f32 %v5490, %v4520
        %v5711 = vadd.f32 %v5491, %v4525
        %v5712 = vadd.f32 %v5492, %v4530
        %v5713 = vadd.f32 %v5493, %v4535
        %v5714 = vadd.f32 %v5494, %v4540
        %v5715 = vadd.f32 %v5495, %v4545
        %v5716 = vadd.f32 %v5496, %v4550
        %v5717 = vadd.f32 %v5497, %v4555
        %v5718 = vadd.f32 %v5498, %v4560
        %v5719 = vadd.f32 %v5499, %v4565
        %v5720 = vadd.f32 %v5500, %v4570
        %v5721 = vadd.f32 %v5501, %v4575
        %v5722 = vadd.f32 %v5502, %v4580
        %v5723 = vadd.f32 %v5503, %v4585
        %v5724 = vadd.f32 %v5504, %v4590
        %v5725 = vadd.f32 %v5505, %v4595
        %v5726 = vadd.f32 %v5506, %v4600
        %v5727 = vadd.f32 %v5507, %v4605
        %v5728 = vadd.f32 %v5508, %v4610
        %v5729 = vadd.f32 %v5509, %v4615
        %v5730 = vadd.f32 %v5510, %v4620
        %v5731 = vadd.f32 %v5511, %v4625
        %v5732 = vadd.f32 %v5512, %v4630
        %v5733 = vadd.f32 %v5513, %v4635
        %v5734 = vadd.f32 %v5514, %v4640
        %v5735 = vadd.f32 %v5515, %v4645
        %v5736 = vadd.f32 %v5484, %v4650
        %v5737 = vadd.f32 %v5485, %v4655
        %v5738 = vadd.f32 %v5486, %v4660
        %v5739 = vadd.f32 %v5487, %v4665
        %v5740 = vmax.f32 %v5676, %v5708
        %v5741 = vmax.f32 %v5677, %v5709
        %v5742 = vmax.f32 %v5678, %v5710
        %v5743 = vmax.f32 %v5679, %v5711
        %v5744 = vmax.f32 %v5680, %v5712
        %v5745 = vmax.f32 %v5681, %v5713
        %v5746 = vmax.f32 %v5682, %v5714
        %v5747 = vmax.f32 %v5683, %v5715
        %v5748 = vmax.f32 %v5684, %v5716
        %v5749 = vmax.f32 %v5685, %v5717
        %v5750 = vmax.f32 %v5686, %v5718
        %v5751 = vmax.f32 %v5687, %v5719
        %v5752 = vmax.f32 %v5688, %v5720
        %v5753 = vmax.f32 %v5689, %v5721
        %v5754 = vmax.f32 %v5690, %v5722
        %v5755 = vmax.f32 %v5691, %v5723
        %v5756 = vmax.f32 %v5692, %v5724
        %v5757 = vmax.f32 %v5693, %v5725
        %v5758 = vmax.f32 %v5694, %v5726
        %v5759 = vmax.f32 %v5695, %v5727
        %v5760 = vmax.f32 %v5696, %v5728
        %v5761 = vmax.f32 %v5697, %v5729
        %v5762 = vmax.f32 %v5698, %v5730
        %v5763 = vmax.f32 %v5699, %v5731
        %v5764 = vmax.f32 %v5700, %v5732
        %v5765 = vmax.f32 %v5701, %v5733
        %v5766 = vmax.f32 %v5702, %v5734
        %v5767 = vmax.f32 %v5703, %v5735
        %v5768 = vmax.f32 %v5704, %v5736
        %v5769 = vmax.f32 %v5705, %v5737
        %v5770 = vmax.f32 %v5706, %v5738
        %v5771 = vmax.f32 %v5707, %v5739
        %v5772 = vpack.c.bf16 %v5741, %v5740
        %v5773 = vpack.c.bf16 %v5743, %v5742
        %v5774 = vpack.c.bf16 %v5745, %v5744
        %v5775 = vpack.c.bf16 %v5747, %v5746
        %v5776 = vpack.c.bf16 %v5749, %v5748
        %v5777 = vpack.c.bf16 %v5751, %v5750
        %v5778 = vpack.c.bf16 %v5753, %v5752
        %v5779 = vpack.c.bf16 %v5755, %v5754
        %v5780 = vpack.c.bf16 %v5757, %v5756
        %v5781 = vpack.c.bf16 %v5759, %v5758
        %v5782 = vpack.c.bf16 %v5761, %v5760
        %v5783 = vpack.c.bf16 %v5763, %v5762
        %v5784 = vpack.c.bf16 %v5765, %v5764
        %v5785 = vpack.c.bf16 %v5767, %v5766
        %v5786 = vpack.c.bf16 %v5769, %v5768
        %v5787 = vpack.c.bf16 %v5771, %v5770
        %v5788 = vld [vmem:[#allocation15] sm:$0xf]
        %v5789 = vld [vmem:[#allocation15 + $0x4] sm:$0xf]
        %v5790 = vld [vmem:[#allocation15 + $0x8] sm:$0xf]
        %v5791 = vld [vmem:[#allocation15 + $0xc] sm:$0xf]
        %v5792 = vld [vmem:[#allocation15 + $0x10] sm:$0xf]
        %v5793 = vld [vmem:[#allocation15 + $0x14] sm:$0xf]
        %v5794 = vld [vmem:[#allocation15 + $0x18] sm:$0xf]
        %v5795 = vld [vmem:[#allocation15 + $0x1c] sm:$0xf]
        %v5796 = vld [vmem:[#allocation15 + $0x20] sm:$0xf]
        %v5797 = vld [vmem:[#allocation15 + $0x24] sm:$0xf]
        %v5798 = vld [vmem:[#allocation15 + $0x28] sm:$0xf]
        %v5799 = vld [vmem:[#allocation15 + $0x2c] sm:$0xf]
        %v5800 = vld [vmem:[#allocation15 + $0x30] sm:$0xf]
        %v5801 = vld [vmem:[#allocation15 + $0x34] sm:$0xf]
        %v5802 = vld [vmem:[#allocation15 + $0x38] sm:$0xf]
        %v5803 = vld [vmem:[#allocation15 + $0x3c] sm:$0xf]
        %v5820 = vunpack.c.l.b16 %v5788
        %v5821 = vunpack.c.l.b16 %v5789
        %v5822 = vunpack.c.l.b16 %v5790
        %v5823 = vunpack.c.l.b16 %v5791
        %v5824 = vunpack.c.l.b16 %v5792
        %v5825 = vunpack.c.l.b16 %v5793
        %v5826 = vunpack.c.l.b16 %v5794
        %v5827 = vunpack.c.l.b16 %v5795
        %v5828 = vunpack.c.l.b16 %v5796
        %v5829 = vunpack.c.l.b16 %v5797
        %v5830 = vunpack.c.l.b16 %v5798
        %v5831 = vunpack.c.l.b16 %v5799
        %v5832 = vunpack.c.l.b16 %v5800
        %v5833 = vunpack.c.l.b16 %v5801
        %v5834 = vunpack.c.l.b16 %v5802
        %v5835 = vunpack.c.l.b16 %v5803
        %v5836 = vpack.c.b16 %v5821, %v5820
        %v5837 = vpack.c.b16 %v5823, %v5822
        %v5838 = vpack.c.b16 %v5825, %v5824
        %v5839 = vpack.c.b16 %v5827, %v5826
        %v5840 = vpack.c.b16 %v5829, %v5828
        %v5841 = vpack.c.b16 %v5831, %v5830
        %v5842 = vpack.c.b16 %v5833, %v5832
        %v5843 = vpack.c.b16 %v5835, %v5834
        %5852 = vmatprep.subr.bf16.mxu0 0
        %5853 = vmatpush1.bf16.msra.mxu0 %v5836
        %5854 = vmatprep.subr.bf16.mxu0 0
        %5855 = vmatpush1.bf16.msra.mxu0 %v5837
        %5856 = vmatprep.subr.bf16.mxu0 0
        %5857 = vmatpush1.bf16.msra.mxu0 %v5838
        %5858 = vmatprep.subr.bf16.mxu0 0
        %5859 = vmatpush1.bf16.msra.mxu0 %v5839
        %5860 = vmatprep.subr.bf16.mxu0 0
        %5861 = vmatpush1.bf16.msra.mxu0 %v5840
        %5862 = vmatprep.subr.bf16.mxu0 0
        %5863 = vmatpush1.bf16.msra.mxu0 %v5841
        %5864 = vmatprep.subr.bf16.mxu0 0
        %5865 = vmatpush1.bf16.msra.mxu0 %v5842
        %5866 = vmatprep.subr.bf16.mxu0 0
        %5867 = vmatpush1.bf16.msra.mxu0 %v5843
        %5868 = vmatprep.subr.bf16.mxu0 0
        %5869 = vmatpush1.bf16.msra.mxu0 0
        %5870 = vmatprep.subr.bf16.mxu0 0
        %5871 = vmatpush1.bf16.msra.mxu0 0
        %5872 = vmatprep.subr.bf16.mxu0 0
        %5873 = vmatpush1.bf16.msra.mxu0 0
        %5874 = vmatprep.subr.bf16.mxu0 0
        %5875 = vmatpush1.bf16.msra.mxu0 0
        %5876 = vmatprep.subr.bf16.mxu0 0
        %5877 = vmatpush1.bf16.msra.mxu0 0
        %5878 = vmatprep.subr.bf16.mxu0 0
        %5879 = vmatpush1.bf16.msra.mxu0 0
        %5880 = vmatprep.subr.bf16.mxu0 0
        %5881 = vmatpush1.bf16.msra.mxu0 0
        %5882 = vmatprep.subr.bf16.mxu0 0
        %5883 = vmatpush1.bf16.msra.mxu0 0
        %5884 = vmatprep.mubr.bf16.mxu0 0
        %5885 = vmatmul.mubr.bf16.gmra.mrb[0].mxu0 %v5772
        %v5886 = vpop.f32.mrb[0].mxu0
        %v5887 = vadd.f32 0.0, %v5886
        %v5888 = vpop.f32.mrb[0].mxu0
        %v5889 = vpop.f32.mrb[0].mxu0
        %v5890 = vadd.f32 0.0, %v5889
        %v5891 = vpop.f32.mrb[0].mxu0
        %5892 = vmatprep.mubr.bf16.mxu0 0
        %5893 = vmatmul.mubr.bf16.gmra.mrb[0].mxu0 %v5773
        %v5894 = vpop.f32.mrb[0].mxu0
        %v5895 = vadd.f32 0.0, %v5894
        %v5896 = vpop.f32.mrb[0].mxu0
        %v5897 = vpop.f32.mrb[0].mxu0
        %v5898 = vadd.f32 0.0, %v5897
        %v5899 = vpop.f32.mrb[0].mxu0
        %5900 = vmatprep.mubr.bf16.mxu0 0
        %5901 = vmatmul.mubr.bf16.gmra.mrb[0].mxu0 %v5774
        %v5902 = vpop.f32.mrb[0].mxu0
        %v5903 = vadd.f32 0.0, %v5902
        %v5904 = vpop.f32.mrb[0].mxu0
        %v5905 = vpop.f32.mrb[0].mxu0
        %v5906 = vadd.f32 0.0, %v5905
        %v5907 = vpop.f32.mrb[0].mxu0
        %5908 = vmatprep.mubr.bf16.mxu0 0
        %5909 = vmatmul.mubr.bf16.gmra.mrb[0].mxu0 %v5775
        %v5910 = vpop.f32.mrb[0].mxu0
        %v5911 = vadd.f32 0.0, %v5910
        %v5912 = vpop.f32.mrb[0].mxu0
        %v5913 = vpop.f32.mrb[0].mxu0
        %v5914 = vadd.f32 0.0, %v5913
        %v5915 = vpop.f32.mrb[0].mxu0
        %5916 = vmatprep.mubr.bf16.mxu0 0
        %5917 = vmatmul.mubr.bf16.gmra.mrb[0].mxu0 %v5776
        %v5918 = vpop.f32.mrb[0].mxu0
        %v5919 = vadd.f32 0.0, %v5918
        %v5920 = vpop.f32.mrb[0].mxu0
        %v5921 = vpop.f32.mrb[0].mxu0
        %v5922 = vadd.f32 0.0, %v5921
        %v5923 = vpop.f32.mrb[0].mxu0
        %5924 = vmatprep.mubr.bf16.mxu0 0
        %5925 = vmatmul.mubr.bf16.gmra.mrb[0].mxu0 %v5777
        %v5926 = vpop.f32.mrb[0].mxu0
        %v5927 = vadd.f32 0.0, %v5926
        %v5928 = vpop.f32.mrb[0].mxu0
        %v5929 = vpop.f32.mrb[0].mxu0
        %v5930 = vadd.f32 0.0, %v5929
        %v5931 = vpop.f32.mrb[0].mxu0
        %5932 = vmatprep.mubr.bf16.mxu0 0
        %5933 = vmatmul.mubr.bf16.gmra.mrb[0].mxu0 %v5778
        %v5934 = vpop.f32.mrb[0].mxu0
        %v5935 = vadd.f32 0.0, %v5934
        %v5936 = vpop.f32.mrb[0].mxu0
        %v5937 = vpop.f32.mrb[0].mxu0
        %v5938 = vadd.f32 0.0, %v5937
        %v5939 = vpop.f32.mrb[0].mxu0
        %5940 = vmatprep.mubr.bf16.mxu0 0
        %5941 = vmatmul.mubr.bf16.gmra.mrb[0].mxu0 %v5779
        %v5942 = vpop.f32.mrb[0].mxu0
        %v5943 = vadd.f32 0.0, %v5942
        %v5944 = vpop.f32.mrb[0].mxu0
        %v5945 = vpop.f32.mrb[0].mxu0
        %v5946 = vadd.f32 0.0, %v5945
        %v5947 = vpop.f32.mrb[0].mxu0
        %5948 = vmatprep.mubr.bf16.mxu0 0
        %5949 = vmatmul.mubr.bf16.gmra.mrb[0].mxu0 %v5780
        %v5950 = vpop.f32.mrb[0].mxu0
        %v5951 = vadd.f32 0.0, %v5950
        %v5952 = vpop.f32.mrb[0].mxu0
        %v5953 = vpop.f32.mrb[0].mxu0
        %v5954 = vadd.f32 0.0, %v5953
        %v5955 = vpop.f32.mrb[0].mxu0
        %5956 = vmatprep.mubr.bf16.mxu0 0
        %5957 = vmatmul.mubr.bf16.gmra.mrb[0].mxu0 %v5781
        %v5958 = vpop.f32.mrb[0].mxu0
        %v5959 = vadd.f32 0.0, %v5958
        %v5960 = vpop.f32.mrb[0].mxu0
        %v5961 = vpop.f32.mrb[0].mxu0
        %v5962 = vadd.f32 0.0, %v5961
        %v5963 = vpop.f32.mrb[0].mxu0
        %5964 = vmatprep.mubr.bf16.mxu0 0
        %5965 = vmatmul.mubr.bf16.gmra.mrb[0].mxu0 %v5782
        %v5966 = vpop.f32.mrb[0].mxu0
        %v5967 = vadd.f32 0.0, %v5966
        %v5968 = vpop.f32.mrb[0].mxu0
        %v5969 = vpop.f32.mrb[0].mxu0
        %v5970 = vadd.f32 0.0, %v5969
        %v5971 = vpop.f32.mrb[0].mxu0
        %5972 = vmatprep.mubr.bf16.mxu0 0
        %5973 = vmatmul.mubr.bf16.gmra.mrb[0].mxu0 %v5783
        %v5974 = vpop.f32.mrb[0].mxu0
        %v5975 = vadd.f32 0.0, %v5974
        %v5976 = vpop.f32.mrb[0].mxu0
        %v5977 = vpop.f32.mrb[0].mxu0
        %v5978 = vadd.f32 0.0, %v5977
        %v5979 = vpop.f32.mrb[0].mxu0
        %5980 = vmatprep.mubr.bf16.mxu0 0
        %5981 = vmatmul.mubr.bf16.gmra.mrb[0].mxu0 %v5784
        %v5982 = vpop.f32.mrb[0].mxu0
        %v5983 = vadd.f32 0.0, %v5982
        %v5984 = vpop.f32.mrb[0].mxu0
        %v5985 = vpop.f32.mrb[0].mxu0
        %v5986 = vadd.f32 0.0, %v5985
        %v5987 = vpop.f32.mrb[0].mxu0
        %5988 = vmatprep.mubr.bf16.mxu0 0
        %5989 = vmatmul.mubr.bf16.gmra.mrb[0].mxu0 %v5785
        %v5990 = vpop.f32.mrb[0].mxu0
        %v5991 = vadd.f32 0.0, %v5990
        %v5992 = vpop.f32.mrb[0].mxu0
        %v5993 = vpop.f32.mrb[0].mxu0
        %v5994 = vadd.f32 0.0, %v5993
        %v5995 = vpop.f32.mrb[0].mxu0
        %5996 = vmatprep.mubr.bf16.mxu0 0
        %5997 = vmatmul.mubr.bf16.gmra.mrb[0].mxu0 %v5786
        %v5998 = vpop.f32.mrb[0].mxu0
        %v5999 = vadd.f32 0.0, %v5998
        %v6000 = vpop.f32.mrb[0].mxu0
        %v6001 = vpop.f32.mrb[0].mxu0
        %v6002 = vadd.f32 0.0, %v6001
        %v6003 = vpop.f32.mrb[0].mxu0
        %6004 = vmatprep.mubr.bf16.mxu0 0
        %6005 = vmatmul.mubr.bf16.gmra.mrb[0].mxu0 %v5787
        %v6006 = vpop.f32.mrb[0].mxu0
        %v6007 = vadd.f32 0.0, %v6006
        %v6008 = vpop.f32.mrb[0].mxu0
        %v6009 = vpop.f32.mrb[0].mxu0
        %v6010 = vadd.f32 0.0, %v6009
        %v6011 = vpop.f32.mrb[0].mxu0
        %6012 = vdwg.mxu0
        %v6013 = vadd.f32 %v4972, %v5887
        %v6014 = vadd.f32 %v4973, %v5890
        %v6015 = vadd.f32 %v4974, %v5895
        %v6016 = vadd.f32 %v4975, %v5898
        %v6017 = vadd.f32 %v4976, %v5903
        %v6018 = vadd.f32 %v4977, %v5906
        %v6019 = vadd.f32 %v4978, %v5911
        %v6020 = vadd.f32 %v4979, %v5914
        %v6021 = vadd.f32 %v4980, %v5919
        %v6022 = vadd.f32 %v4981, %v5922
        %v6023 = vadd.f32 %v4982, %v5927
        %v6024 = vadd.f32 %v4983, %v5930
        %v6025 = vadd.f32 %v4984, %v5935
        %v6026 = vadd.f32 %v4985, %v5938
        %v6027 = vadd.f32 %v4986, %v5943
        %v6028 = vadd.f32 %v4987, %v5946
        %v6029 = vadd.f32 %v4988, %v5951
        %v6030 = vadd.f32 %v4989, %v5954
        %v6031 = vadd.f32 %v4990, %v5959
        %v6032 = vadd.f32 %v4991, %v5962
        %v6033 = vadd.f32 %v4992, %v5967
        %v6034 = vadd.f32 %v4993, %v5970
        %v6035 = vadd.f32 %v4994, %v5975
        %v6036 = vadd.f32 %v4995, %v5978
        %v6037 = vadd.f32 %v4996, %v5983
        %v6038 = vadd.f32 %v4997, %v5986
        %v6039 = vadd.f32 %v4998, %v5991
        %v6040 = vadd.f32 %v4999, %v5994
        %v6041 = vadd.f32 %v5000, %v5999
        %v6042 = vadd.f32 %v5001, %v6002
        %v6043 = vadd.f32 %v5002, %v6007
        %v6044 = vadd.f32 %v5003, %v6010
        %v6045 = vrot.slane %v5740, 7
        %v6046 = vrot.slane %v5741, 7
        %v6047 = vrot.slane %v5742, 7
        %v6048 = vrot.slane %v5743, 7
        %v6049 = vrot.slane %v5744, 7
        %v6050 = vrot.slane %v5745, 7
        %v6051 = vrot.slane %v5746, 7
        %v6052 = vrot.slane %v5747, 7
        %v6053 = vrot.slane %v5748, 7
        %v6054 = vrot.slane %v5749, 7
        %v6055 = vrot.slane %v5750, 7
        %v6056 = vrot.slane %v5751, 7
        %v6057 = vrot.slane %v5752, 7
        %v6058 = vrot.slane %v5753, 7
        %v6059 = vrot.slane %v5754, 7
        %v6060 = vrot.slane %v5755, 7
        %v6061 = vrot.slane %v5756, 7
        %v6062 = vrot.slane %v5757, 7
        %v6063 = vrot.slane %v5758, 7
        %v6064 = vrot.slane %v5759, 7
        %v6065 = vrot.slane %v5760, 7
        %v6066 = vrot.slane %v5761, 7
        %v6067 = vrot.slane %v5762, 7
        %v6068 = vrot.slane %v5763, 7
        %v6069 = vrot.slane %v5764, 7
        %v6070 = vrot.slane %v5765, 7
        %v6071 = vrot.slane %v5766, 7
        %v6072 = vrot.slane %v5767, 7
        %v6073 = vrot.slane %v5768, 7
        %v6074 = vrot.slane %v5769, 7
        %v6075 = vrot.slane %v5770, 7
        %v6076 = vrot.slane %v5771, 7
        %v6077 = vsel %vm1382, %v6075, %v6076
        %v6078 = vsel %vm1382, %v6074, %v6075
        %v6079 = vsel %vm1382, %v6073, %v6074
        %v6080 = vsel %vm1382, %v6072, %v6073
        %v6081 = vsel %vm1382, %v6071, %v6072
        %v6082 = vsel %vm1382, %v6070, %v6071
        %v6083 = vsel %vm1382, %v6069, %v6070
        %v6084 = vsel %vm1382, %v6068, %v6069
        %v6085 = vsel %vm1382, %v6067, %v6068
        %v6086 = vsel %vm1382, %v6066, %v6067
        %v6087 = vsel %vm1382, %v6065, %v6066
        %v6088 = vsel %vm1382, %v6064, %v6065
        %v6089 = vsel %vm1382, %v6063, %v6064
        %v6090 = vsel %vm1382, %v6062, %v6063
        %v6091 = vsel %vm1382, %v6061, %v6062
        %v6092 = vsel %vm1382, %v6060, %v6061
        %v6093 = vsel %vm1382, %v6059, %v6060
        %v6094 = vsel %vm1382, %v6058, %v6059
        %v6095 = vsel %vm1382, %v6057, %v6058
        %v6096 = vsel %vm1382, %v6056, %v6057
        %v6097 = vsel %vm1382, %v6055, %v6056
        %v6098 = vsel %vm1382, %v6054, %v6055
        %v6099 = vsel %vm1382, %v6053, %v6054
        %v6100 = vsel %vm1382, %v6052, %v6053
        %v6101 = vsel %vm1382, %v6051, %v6052
        %v6102 = vsel %vm1382, %v6050, %v6051
        %v6103 = vsel %vm1382, %v6049, %v6050
        %v6104 = vsel %vm1382, %v6048, %v6049
        %v6105 = vsel %vm1382, %v6047, %v6048
        %v6106 = vsel %vm1382, %v6046, %v6047
        %v6107 = vsel %vm1382, %v6045, %v6046
        %v6108 = vsel %vm1382, %v6076, %v6045
        %v6109 = vadd.f32 %v6108, %v2750
        %v6110 = vadd.f32 %v6107, %v2755
        %v6111 = vadd.f32 %v6106, %v2760
        %v6112 = vadd.f32 %v6105, %v2765
        %v6113 = vadd.f32 %v6104, %v2770
        %v6114 = vadd.f32 %v6103, %v2775
        %v6115 = vadd.f32 %v6102, %v2780
        %v6116 = vadd.f32 %v6101, %v2785
        %v6117 = vadd.f32 %v6100, %v2790
        %v6118 = vadd.f32 %v6099, %v2795
        %v6119 = vadd.f32 %v6098, %v2800
        %v6120 = vadd.f32 %v6097, %v2805
        %v6121 = vadd.f32 %v6096, %v2810
        %v6122 = vadd.f32 %v6095, %v2815
        %v6123 = vadd.f32 %v6094, %v2820
        %v6124 = vadd.f32 %v6093, %v2825
        %v6125 = vadd.f32 %v6092, %v2830
        %v6126 = vadd.f32 %v6091, %v2835
        %v6127 = vadd.f32 %v6090, %v2840
        %v6128 = vadd.f32 %v6089, %v2845
        %v6129 = vadd.f32 %v6088, %v2850
        %v6130 = vadd.f32 %v6087, %v2855
        %v6131 = vadd.f32 %v6086, %v2860
        %v6132 = vadd.f32 %v6085, %v2865
        %v6133 = vadd.f32 %v6084, %v2870
        %v6134 = vadd.f32 %v6083, %v2875
        %v6135 = vadd.f32 %v6082, %v2880
        %v6136 = vadd.f32 %v6081, %v2885
        %v6137 = vadd.f32 %v6080, %v2890
        %v6138 = vadd.f32 %v6079, %v2895
        %v6139 = vadd.f32 %v6078, %v2900
        %v6140 = vadd.f32 %v6077, %v2905
        %v6141 = vmax.f32 %v5740, %v6109
        %v6142 = vmax.f32 %v5741, %v6110
        %v6143 = vmax.f32 %v5742, %v6111
        %v6144 = vmax.f32 %v5743, %v6112
        %v6145 = vmax.f32 %v5744, %v6113
        %v6146 = vmax.f32 %v5745, %v6114
        %v6147 = vmax.f32 %v5746, %v6115
        %v6148 = vmax.f32 %v5747, %v6116
        %v6149 = vmax.f32 %v5748, %v6117
        %v6150 = vmax.f32 %v5749, %v6118
        %v6151 = vmax.f32 %v5750, %v6119
        %v6152 = vmax.f32 %v5751, %v6120
        %v6153 = vmax.f32 %v5752, %v6121
        %v6154 = vmax.f32 %v5753, %v6122
        %v6155 = vmax.f32 %v5754, %v6123
        %v6156 = vmax.f32 %v5755, %v6124
        %v6157 = vmax.f32 %v5756, %v6125
        %v6158 = vmax.f32 %v5757, %v6126
        %v6159 = vmax.f32 %v5758, %v6127
        %v6160 = vmax.f32 %v5759, %v6128
        %v6161 = vmax.f32 %v5760, %v6129
        %v6162 = vmax.f32 %v5761, %v6130
        %v6163 = vmax.f32 %v5762, %v6131
        %v6164 = vmax.f32 %v5763, %v6132
        %v6165 = vmax.f32 %v5764, %v6133
        %v6166 = vmax.f32 %v5765, %v6134
        %v6167 = vmax.f32 %v5766, %v6135
        %v6168 = vmax.f32 %v5767, %v6136
        %v6169 = vmax.f32 %v5768, %v6137
        %v6170 = vmax.f32 %v5769, %v6138
        %v6171 = vmax.f32 %v5770, %v6139
        %v6172 = vmax.f32 %v5771, %v6140
        %v6173 = vrot.slane %v5740, 1
        %v6174 = vrot.slane %v5741, 1
        %v6175 = vrot.slane %v5742, 1
        %v6176 = vrot.slane %v5743, 1
        %v6177 = vrot.slane %v5744, 1
        %v6178 = vrot.slane %v5745, 1
        %v6179 = vrot.slane %v5746, 1
        %v6180 = vrot.slane %v5747, 1
        %v6181 = vrot.slane %v5748, 1
        %v6182 = vrot.slane %v5749, 1
        %v6183 = vrot.slane %v5750, 1
        %v6184 = vrot.slane %v5751, 1
        %v6185 = vrot.slane %v5752, 1
        %v6186 = vrot.slane %v5753, 1
        %v6187 = vrot.slane %v5754, 1
        %v6188 = vrot.slane %v5755, 1
        %v6189 = vrot.slane %v5756, 1
        %v6190 = vrot.slane %v5757, 1
        %v6191 = vrot.slane %v5758, 1
        %v6192 = vrot.slane %v5759, 1
        %v6193 = vrot.slane %v5760, 1
        %v6194 = vrot.slane %v5761, 1
        %v6195 = vrot.slane %v5762, 1
        %v6196 = vrot.slane %v5763, 1
        %v6197 = vrot.slane %v5764, 1
        %v6198 = vrot.slane %v5765, 1
        %v6199 = vrot.slane %v5766, 1
        %v6200 = vrot.slane %v5767, 1
        %v6201 = vrot.slane %v5768, 1
        %v6202 = vrot.slane %v5769, 1
        %v6203 = vrot.slane %v5770, 1
        %v6204 = vrot.slane %v5771, 1
        %v6205 = vsel %vm1511, %v6203, %v6204
        %v6206 = vsel %vm1511, %v6202, %v6203
        %v6207 = vsel %vm1511, %v6201, %v6202
        %v6208 = vsel %vm1511, %v6200, %v6201
        %v6209 = vsel %vm1511, %v6199, %v6200
        %v6210 = vsel %vm1511, %v6198, %v6199
        %v6211 = vsel %vm1511, %v6197, %v6198
        %v6212 = vsel %vm1511, %v6196, %v6197
        %v6213 = vsel %vm1511, %v6195, %v6196
        %v6214 = vsel %vm1511, %v6194, %v6195
        %v6215 = vsel %vm1511, %v6193, %v6194
        %v6216 = vsel %vm1511, %v6192, %v6193
        %v6217 = vsel %vm1511, %v6191, %v6192
        %v6218 = vsel %vm1511, %v6190, %v6191
        %v6219 = vsel %vm1511, %v6189, %v6190
        %v6220 = vsel %vm1511, %v6188, %v6189
        %v6221 = vsel %vm1511, %v6187, %v6188
        %v6222 = vsel %vm1511, %v6186, %v6187
        %v6223 = vsel %vm1511, %v6185, %v6186
        %v6224 = vsel %vm1511, %v6184, %v6185
        %v6225 = vsel %vm1511, %v6183, %v6184
        %v6226 = vsel %vm1511, %v6182, %v6183
        %v6227 = vsel %vm1511, %v6181, %v6182
        %v6228 = vsel %vm1511, %v6180, %v6181
        %v6229 = vsel %vm1511, %v6179, %v6180
        %v6230 = vsel %vm1511, %v6178, %v6179
        %v6231 = vsel %vm1511, %v6177, %v6178
        %v6232 = vsel %vm1511, %v6176, %v6177
        %v6233 = vsel %vm1511, %v6175, %v6176
        %v6234 = vsel %vm1511, %v6174, %v6175
        %v6235 = vsel %vm1511, %v6173, %v6174
        %v6236 = vsel %vm1511, %v6204, %v6173
        %v6237 = vadd.f32 %v6235, %v3038
        %v6238 = vadd.f32 %v6234, %v3043
        %v6239 = vadd.f32 %v6233, %v3048
        %v6240 = vadd.f32 %v6232, %v3053
        %v6241 = vadd.f32 %v6231, %v3058
        %v6242 = vadd.f32 %v6230, %v3063
        %v6243 = vadd.f32 %v6229, %v3068
        %v6244 = vadd.f32 %v6228, %v3073
        %v6245 = vadd.f32 %v6227, %v3078
        %v6246 = vadd.f32 %v6226, %v3083
        %v6247 = vadd.f32 %v6225, %v3088
        %v6248 = vadd.f32 %v6224, %v3093
        %v6249 = vadd.f32 %v6223, %v3098
        %v6250 = vadd.f32 %v6222, %v3103
        %v6251 = vadd.f32 %v6221, %v3108
        %v6252 = vadd.f32 %v6220, %v3113
        %v6253 = vadd.f32 %v6219, %v3118
        %v6254 = vadd.f32 %v6218, %v3123
        %v6255 = vadd.f32 %v6217, %v3128
        %v6256 = vadd.f32 %v6216, %v3133
        %v6257 = vadd.f32 %v6215, %v3138
        %v6258 = vadd.f32 %v6214, %v3143
        %v6259 = vadd.f32 %v6213, %v3148
        %v6260 = vadd.f32 %v6212, %v3153
        %v6261 = vadd.f32 %v6211, %v3158
        %v6262 = vadd.f32 %v6210, %v3163
        %v6263 = vadd.f32 %v6209, %v3168
        %v6264 = vadd.f32 %v6208, %v3173
        %v6265 = vadd.f32 %v6207, %v3178
        %v6266 = vadd.f32 %v6206, %v3183
        %v6267 = vadd.f32 %v6205, %v3188
        %v6268 = vadd.f32 %v6236, %v3193
        %v6269 = vmax.f32 %v6141, %v6237
        %v6270 = vmax.f32 %v6142, %v6238
        %v6271 = vmax.f32 %v6143, %v6239
        %v6272 = vmax.f32 %v6144, %v6240
        %v6273 = vmax.f32 %v6145, %v6241
        %v6274 = vmax.f32 %v6146, %v6242
        %v6275 = vmax.f32 %v6147, %v6243
        %v6276 = vmax.f32 %v6148, %v6244
        %v6277 = vmax.f32 %v6149, %v6245
        %v6278 = vmax.f32 %v6150, %v6246
        %v6279 = vmax.f32 %v6151, %v6247
        %v6280 = vmax.f32 %v6152, %v6248
        %v6281 = vmax.f32 %v6153, %v6249
        %v6282 = vmax.f32 %v6154, %v6250
        %v6283 = vmax.f32 %v6155, %v6251
        %v6284 = vmax.f32 %v6156, %v6252
        %v6285 = vmax.f32 %v6157, %v6253
        %v6286 = vmax.f32 %v6158, %v6254
        %v6287 = vmax.f32 %v6159, %v6255
        %v6288 = vmax.f32 %v6160, %v6256
        %v6289 = vmax.f32 %v6161, %v6257
        %v6290 = vmax.f32 %v6162, %v6258
        %v6291 = vmax.f32 %v6163, %v6259
        %v6292 = vmax.f32 %v6164, %v6260
        %v6293 = vmax.f32 %v6165, %v6261
        %v6294 = vmax.f32 %v6166, %v6262
        %v6295 = vmax.f32 %v6167, %v6263
        %v6296 = vmax.f32 %v6168, %v6264
        %v6297 = vmax.f32 %v6169, %v6265
        %v6298 = vmax.f32 %v6170, %v6266
        %v6299 = vmax.f32 %v6171, %v6267
        %v6300 = vmax.f32 %v6172, %v6268
        %v6301 = vrot.slane %v5740, 6
        %v6302 = vrot.slane %v5741, 6
        %v6303 = vrot.slane %v5742, 6
        %v6304 = vrot.slane %v5743, 6
        %v6305 = vrot.slane %v5744, 6
        %v6306 = vrot.slane %v5745, 6
        %v6307 = vrot.slane %v5746, 6
        %v6308 = vrot.slane %v5747, 6
        %v6309 = vrot.slane %v5748, 6
        %v6310 = vrot.slane %v5749, 6
        %v6311 = vrot.slane %v5750, 6
        %v6312 = vrot.slane %v5751, 6
        %v6313 = vrot.slane %v5752, 6
        %v6314 = vrot.slane %v5753, 6
        %v6315 = vrot.slane %v5754, 6
        %v6316 = vrot.slane %v5755, 6
        %v6317 = vrot.slane %v5756, 6
        %v6318 = vrot.slane %v5757, 6
        %v6319 = vrot.slane %v5758, 6
        %v6320 = vrot.slane %v5759, 6
        %v6321 = vrot.slane %v5760, 6
        %v6322 = vrot.slane %v5761, 6
        %v6323 = vrot.slane %v5762, 6
        %v6324 = vrot.slane %v5763, 6
        %v6325 = vrot.slane %v5764, 6
        %v6326 = vrot.slane %v5765, 6
        %v6327 = vrot.slane %v5766, 6
        %v6328 = vrot.slane %v5767, 6
        %v6329 = vrot.slane %v5768, 6
        %v6330 = vrot.slane %v5769, 6
        %v6331 = vrot.slane %v5770, 6
        %v6332 = vrot.slane %v5771, 6
        %v6333 = vsel %vm1896, %v6331, %v6332
        %v6334 = vsel %vm1896, %v6330, %v6331
        %v6335 = vsel %vm1896, %v6329, %v6330
        %v6336 = vsel %vm1896, %v6328, %v6329
        %v6337 = vsel %vm1896, %v6327, %v6328
        %v6338 = vsel %vm1896, %v6326, %v6327
        %v6339 = vsel %vm1896, %v6325, %v6326
        %v6340 = vsel %vm1896, %v6324, %v6325
        %v6341 = vsel %vm1896, %v6323, %v6324
        %v6342 = vsel %vm1896, %v6322, %v6323
        %v6343 = vsel %vm1896, %v6321, %v6322
        %v6344 = vsel %vm1896, %v6320, %v6321
        %v6345 = vsel %vm1896, %v6319, %v6320
        %v6346 = vsel %vm1896, %v6318, %v6319
        %v6347 = vsel %vm1896, %v6317, %v6318
        %v6348 = vsel %vm1896, %v6316, %v6317
        %v6349 = vsel %vm1896, %v6315, %v6316
        %v6350 = vsel %vm1896, %v6314, %v6315
        %v6351 = vsel %vm1896, %v6313, %v6314
        %v6352 = vsel %vm1896, %v6312, %v6313
        %v6353 = vsel %vm1896, %v6311, %v6312
        %v6354 = vsel %vm1896, %v6310, %v6311
        %v6355 = vsel %vm1896, %v6309, %v6310
        %v6356 = vsel %vm1896, %v6308, %v6309
        %v6357 = vsel %vm1896, %v6307, %v6308
        %v6358 = vsel %vm1896, %v6306, %v6307
        %v6359 = vsel %vm1896, %v6305, %v6306
        %v6360 = vsel %vm1896, %v6304, %v6305
        %v6361 = vsel %vm1896, %v6303, %v6304
        %v6362 = vsel %vm1896, %v6302, %v6303
        %v6363 = vsel %vm1896, %v6301, %v6302
        %v6364 = vsel %vm1896, %v6332, %v6301
        %v6365 = vadd.f32 %v6364, %v3326
        %v6366 = vadd.f32 %v6363, %v3331
        %v6367 = vadd.f32 %v6362, %v3336
        %v6368 = vadd.f32 %v6361, %v3341
        %v6369 = vadd.f32 %v6360, %v3346
        %v6370 = vadd.f32 %v6359, %v3351
        %v6371 = vadd.f32 %v6358, %v3356
        %v6372 = vadd.f32 %v6357, %v3361
        %v6373 = vadd.f32 %v6356, %v3366
        %v6374 = vadd.f32 %v6355, %v3371
        %v6375 = vadd.f32 %v6354, %v3376
        %v6376 = vadd.f32 %v6353, %v3381
        %v6377 = vadd.f32 %v6352, %v3386
        %v6378 = vadd.f32 %v6351, %v3391
        %v6379 = vadd.f32 %v6350, %v3396
        %v6380 = vadd.f32 %v6349, %v3401
        %v6381 = vadd.f32 %v6348, %v3406
        %v6382 = vadd.f32 %v6347, %v3411
        %v6383 = vadd.f32 %v6346, %v3416
        %v6384 = vadd.f32 %v6345, %v3421
        %v6385 = vadd.f32 %v6344, %v3426
        %v6386 = vadd.f32 %v6343, %v3431
        %v6387 = vadd.f32 %v6342, %v3436
        %v6388 = vadd.f32 %v6341, %v3441
        %v6389 = vadd.f32 %v6340, %v3446
        %v6390 = vadd.f32 %v6339, %v3451
        %v6391 = vadd.f32 %v6338, %v3456
        %v6392 = vadd.f32 %v6337, %v3461
        %v6393 = vadd.f32 %v6336, %v3466
        %v6394 = vadd.f32 %v6335, %v3471
        %v6395 = vadd.f32 %v6334, %v3476
        %v6396 = vadd.f32 %v6333, %v3481
        %v6397 = vmax.f32 %v6269, %v6365
        %v6398 = vmax.f32 %v6270, %v6366
        %v6399 = vmax.f32 %v6271, %v6367
        %v6400 = vmax.f32 %v6272, %v6368
        %v6401 = vmax.f32 %v6273, %v6369
        %v6402 = vmax.f32 %v6274, %v6370
        %v6403 = vmax.f32 %v6275, %v6371
        %v6404 = vmax.f32 %v6276, %v6372
        %v6405 = vmax.f32 %v6277, %v6373
        %v6406 = vmax.f32 %v6278, %v6374
        %v6407 = vmax.f32 %v6279, %v6375
        %v6408 = vmax.f32 %v6280, %v6376
        %v6409 = vmax.f32 %v6281, %v6377
        %v6410 = vmax.f32 %v6282, %v6378
        %v6411 = vmax.f32 %v6283, %v6379
        %v6412 = vmax.f32 %v6284, %v6380
        %v6413 = vmax.f32 %v6285, %v6381
        %v6414 = vmax.f32 %v6286, %v6382
        %v6415 = vmax.f32 %v6287, %v6383
        %v6416 = vmax.f32 %v6288, %v6384
        %v6417 = vmax.f32 %v6289, %v6385
        %v6418 = vmax.f32 %v6290, %v6386
        %v6419 = vmax.f32 %v6291, %v6387
        %v6420 = vmax.f32 %v6292, %v6388
        %v6421 = vmax.f32 %v6293, %v6389
        %v6422 = vmax.f32 %v6294, %v6390
        %v6423 = vmax.f32 %v6295, %v6391
        %v6424 = vmax.f32 %v6296, %v6392
        %v6425 = vmax.f32 %v6297, %v6393
        %v6426 = vmax.f32 %v6298, %v6394
        %v6427 = vmax.f32 %v6299, %v6395
        %v6428 = vmax.f32 %v6300, %v6396
        %v6429 = vrot.slane %v5740, 2
        %v6430 = vrot.slane %v5741, 2
        %v6431 = vrot.slane %v5742, 2
        %v6432 = vrot.slane %v5743, 2
        %v6433 = vrot.slane %v5744, 2
        %v6434 = vrot.slane %v5745, 2
        %v6435 = vrot.slane %v5746, 2
        %v6436 = vrot.slane %v5747, 2
        %v6437 = vrot.slane %v5748, 2
        %v6438 = vrot.slane %v5749, 2
        %v6439 = vrot.slane %v5750, 2
        %v6440 = vrot.slane %v5751, 2
        %v6441 = vrot.slane %v5752, 2
        %v6442 = vrot.slane %v5753, 2
        %v6443 = vrot.slane %v5754, 2
        %v6444 = vrot.slane %v5755, 2
        %v6445 = vrot.slane %v5756, 2
        %v6446 = vrot.slane %v5757, 2
        %v6447 = vrot.slane %v5758, 2
        %v6448 = vrot.slane %v5759, 2
        %v6449 = vrot.slane %v5760, 2
        %v6450 = vrot.slane %v5761, 2
        %v6451 = vrot.slane %v5762, 2
        %v6452 = vrot.slane %v5763, 2
        %v6453 = vrot.slane %v5764, 2
        %v6454 = vrot.slane %v5765, 2
        %v6455 = vrot.slane %v5766, 2
        %v6456 = vrot.slane %v5767, 2
        %v6457 = vrot.slane %v5768, 2
        %v6458 = vrot.slane %v5769, 2
        %v6459 = vrot.slane %v5770, 2
        %v6460 = vrot.slane %v5771, 2
        %v6461 = vsel %vm2025, %v6459, %v6460
        %v6462 = vsel %vm2025, %v6458, %v6459
        %v6463 = vsel %vm2025, %v6457, %v6458
        %v6464 = vsel %vm2025, %v6456, %v6457
        %v6465 = vsel %vm2025, %v6455, %v6456
        %v6466 = vsel %vm2025, %v6454, %v6455
        %v6467 = vsel %vm2025, %v6453, %v6454
        %v6468 = vsel %vm2025, %v6452, %v6453
        %v6469 = vsel %vm2025, %v6451, %v6452
        %v6470 = vsel %vm2025, %v6450, %v6451
        %v6471 = vsel %vm2025, %v6449, %v6450
        %v6472 = vsel %vm2025, %v6448, %v6449
        %v6473 = vsel %vm2025, %v6447, %v6448
        %v6474 = vsel %vm2025, %v6446, %v6447
        %v6475 = vsel %vm2025, %v6445, %v6446
        %v6476 = vsel %vm2025, %v6444, %v6445
        %v6477 = vsel %vm2025, %v6443, %v6444
        %v6478 = vsel %vm2025, %v6442, %v6443
        %v6479 = vsel %vm2025, %v6441, %v6442
        %v6480 = vsel %vm2025, %v6440, %v6441
        %v6481 = vsel %vm2025, %v6439, %v6440
        %v6482 = vsel %vm2025, %v6438, %v6439
        %v6483 = vsel %vm2025, %v6437, %v6438
        %v6484 = vsel %vm2025, %v6436, %v6437
        %v6485 = vsel %vm2025, %v6435, %v6436
        %v6486 = vsel %vm2025, %v6434, %v6435
        %v6487 = vsel %vm2025, %v6433, %v6434
        %v6488 = vsel %vm2025, %v6432, %v6433
        %v6489 = vsel %vm2025, %v6431, %v6432
        %v6490 = vsel %vm2025, %v6430, %v6431
        %v6491 = vsel %vm2025, %v6429, %v6430
        %v6492 = vsel %vm2025, %v6460, %v6429
        %v6493 = vadd.f32 %v6491, %v3614
        %v6494 = vadd.f32 %v6490, %v3619
        %v6495 = vadd.f32 %v6489, %v3624
        %v6496 = vadd.f32 %v6488, %v3629
        %v6497 = vadd.f32 %v6487, %v3634
        %v6498 = vadd.f32 %v6486, %v3639
        %v6499 = vadd.f32 %v6485, %v3644
        %v6500 = vadd.f32 %v6484, %v3649
        %v6501 = vadd.f32 %v6483, %v3654
        %v6502 = vadd.f32 %v6482, %v3659
        %v6503 = vadd.f32 %v6481, %v3664
        %v6504 = vadd.f32 %v6480, %v3669
        %v6505 = vadd.f32 %v6479, %v3674
        %v6506 = vadd.f32 %v6478, %v3679
        %v6507 = vadd.f32 %v6477, %v3684
        %v6508 = vadd.f32 %v6476, %v3689
        %v6509 = vadd.f32 %v6475, %v3694
        %v6510 = vadd.f32 %v6474, %v3699
        %v6511 = vadd.f32 %v6473, %v3704
        %v6512 = vadd.f32 %v6472, %v3709
        %v6513 = vadd.f32 %v6471, %v3714
        %v6514 = vadd.f32 %v6470, %v3719
        %v6515 = vadd.f32 %v6469, %v3724
        %v6516 = vadd.f32 %v6468, %v3729
        %v6517 = vadd.f32 %v6467, %v3734
        %v6518 = vadd.f32 %v6466, %v3739
        %v6519 = vadd.f32 %v6465, %v3744
        %v6520 = vadd.f32 %v6464, %v3749
        %v6521 = vadd.f32 %v6463, %v3754
        %v6522 = vadd.f32 %v6462, %v3759
        %v6523 = vadd.f32 %v6461, %v3764
        %v6524 = vadd.f32 %v6492, %v3769
        %v6525 = vmax.f32 %v6397, %v6493
        %v6526 = vmax.f32 %v6398, %v6494
        %v6527 = vmax.f32 %v6399, %v6495
        %v6528 = vmax.f32 %v6400, %v6496
        %v6529 = vmax.f32 %v6401, %v6497
        %v6530 = vmax.f32 %v6402, %v6498
        %v6531 = vmax.f32 %v6403, %v6499
        %v6532 = vmax.f32 %v6404, %v6500
        %v6533 = vmax.f32 %v6405, %v6501
        %v6534 = vmax.f32 %v6406, %v6502
        %v6535 = vmax.f32 %v6407, %v6503
        %v6536 = vmax.f32 %v6408, %v6504
        %v6537 = vmax.f32 %v6409, %v6505
        %v6538 = vmax.f32 %v6410, %v6506
        %v6539 = vmax.f32 %v6411, %v6507
        %v6540 = vmax.f32 %v6412, %v6508
        %v6541 = vmax.f32 %v6413, %v6509
        %v6542 = vmax.f32 %v6414, %v6510
        %v6543 = vmax.f32 %v6415, %v6511
        %v6544 = vmax.f32 %v6416, %v6512
        %v6545 = vmax.f32 %v6417, %v6513
        %v6546 = vmax.f32 %v6418, %v6514
        %v6547 = vmax.f32 %v6419, %v6515
        %v6548 = vmax.f32 %v6420, %v6516
        %v6549 = vmax.f32 %v6421, %v6517
        %v6550 = vmax.f32 %v6422, %v6518
        %v6551 = vmax.f32 %v6423, %v6519
        %v6552 = vmax.f32 %v6424, %v6520
        %v6553 = vmax.f32 %v6425, %v6521
        %v6554 = vmax.f32 %v6426, %v6522
        %v6555 = vmax.f32 %v6427, %v6523
        %v6556 = vmax.f32 %v6428, %v6524
        %v6557 = vadd.f32 %v6555, %v3838
        %v6558 = vadd.f32 %v6556, %v3843
        %v6559 = vadd.f32 %v6525, %v3848
        %v6560 = vadd.f32 %v6526, %v3853
        %v6561 = vadd.f32 %v6527, %v3858
        %v6562 = vadd.f32 %v6528, %v3863
        %v6563 = vadd.f32 %v6529, %v3868
        %v6564 = vadd.f32 %v6530, %v3873
        %v6565 = vadd.f32 %v6531, %v3878
        %v6566 = vadd.f32 %v6532, %v3883
        %v6567 = vadd.f32 %v6533, %v3888
        %v6568 = vadd.f32 %v6534, %v3893
        %v6569 = vadd.f32 %v6535, %v3898
        %v6570 = vadd.f32 %v6536, %v3903
        %v6571 = vadd.f32 %v6537, %v3908
        %v6572 = vadd.f32 %v6538, %v3913
        %v6573 = vadd.f32 %v6539, %v3918
        %v6574 = vadd.f32 %v6540, %v3923
        %v6575 = vadd.f32 %v6541, %v3928
        %v6576 = vadd.f32 %v6542, %v3933
        %v6577 = vadd.f32 %v6543, %v3938
        %v6578 = vadd.f32 %v6544, %v3943
        %v6579 = vadd.f32 %v6545, %v3948
        %v6580 = vadd.f32 %v6546, %v3953
        %v6581 = vadd.f32 %v6547, %v3958
        %v6582 = vadd.f32 %v6548, %v3963
        %v6583 = vadd.f32 %v6549, %v3968
        %v6584 = vadd.f32 %v6550, %v3973
        %v6585 = vadd.f32 %v6551, %v3978
        %v6586 = vadd.f32 %v6552, %v3983
        %v6587 = vadd.f32 %v6553, %v3988
        %v6588 = vadd.f32 %v6554, %v3993
        %v6589 = vmax.f32 %v6525, %v6557
        %v6590 = vmax.f32 %v6526, %v6558
        %v6591 = vmax.f32 %v6527, %v6559
        %v6592 = vmax.f32 %v6528, %v6560
        %v6593 = vmax.f32 %v6529, %v6561
        %v6594 = vmax.f32 %v6530, %v6562
        %v6595 = vmax.f32 %v6531, %v6563
        %v6596 = vmax.f32 %v6532, %v6564
        %v6597 = vmax.f32 %v6533, %v6565
        %v6598 = vmax.f32 %v6534, %v6566
        %v6599 = vmax.f32 %v6535, %v6567
        %v6600 = vmax.f32 %v6536, %v6568
        %v6601 = vmax.f32 %v6537, %v6569
        %v6602 = vmax.f32 %v6538, %v6570
        %v6603 = vmax.f32 %v6539, %v6571
        %v6604 = vmax.f32 %v6540, %v6572
        %v6605 = vmax.f32 %v6541, %v6573
        %v6606 = vmax.f32 %v6542, %v6574
        %v6607 = vmax.f32 %v6543, %v6575
        %v6608 = vmax.f32 %v6544, %v6576
        %v6609 = vmax.f32 %v6545, %v6577
        %v6610 = vmax.f32 %v6546, %v6578
        %v6611 = vmax.f32 %v6547, %v6579
        %v6612 = vmax.f32 %v6548, %v6580
        %v6613 = vmax.f32 %v6549, %v6581
        %v6614 = vmax.f32 %v6550, %v6582
        %v6615 = vmax.f32 %v6551, %v6583
        %v6616 = vmax.f32 %v6552, %v6584
        %v6617 = vmax.f32 %v6553, %v6585
        %v6618 = vmax.f32 %v6554, %v6586
        %v6619 = vmax.f32 %v6555, %v6587
        %v6620 = vmax.f32 %v6556, %v6588
        %v6621 = vadd.f32 %v6527, %v4062
        %v6622 = vadd.f32 %v6528, %v4067
        %v6623 = vadd.f32 %v6529, %v4072
        %v6624 = vadd.f32 %v6530, %v4077
        %v6625 = vadd.f32 %v6531, %v4082
        %v6626 = vadd.f32 %v6532, %v4087
        %v6627 = vadd.f32 %v6533, %v4092
        %v6628 = vadd.f32 %v6534, %v4097
        %v6629 = vadd.f32 %v6535, %v4102
        %v6630 = vadd.f32 %v6536, %v4107
        %v6631 = vadd.f32 %v6537, %v4112
        %v6632 = vadd.f32 %v6538, %v4117
        %v6633 = vadd.f32 %v6539, %v4122
        %v6634 = vadd.f32 %v6540, %v4127
        %v6635 = vadd.f32 %v6541, %v4132
        %v6636 = vadd.f32 %v6542, %v4137
        %v6637 = vadd.f32 %v6543, %v4142
        %v6638 = vadd.f32 %v6544, %v4147
        %v6639 = vadd.f32 %v6545, %v4152
        %v6640 = vadd.f32 %v6546, %v4157
        %v6641 = vadd.f32 %v6547, %v4162
        %v6642 = vadd.f32 %v6548, %v4167
        %v6643 = vadd.f32 %v6549, %v4172
        %v6644 = vadd.f32 %v6550, %v4177
        %v6645 = vadd.f32 %v6551, %v4182
        %v6646 = vadd.f32 %v6552, %v4187
        %v6647 = vadd.f32 %v6553, %v4192
        %v6648 = vadd.f32 %v6554, %v4197
        %v6649 = vadd.f32 %v6555, %v4202
        %v6650 = vadd.f32 %v6556, %v4207
        %v6651 = vadd.f32 %v6525, %v4212
        %v6652 = vadd.f32 %v6526, %v4217
        %v6653 = vmax.f32 %v6589, %v6621
        %v6654 = vmax.f32 %v6590, %v6622
        %v6655 = vmax.f32 %v6591, %v6623
        %v6656 = vmax.f32 %v6592, %v6624
        %v6657 = vmax.f32 %v6593, %v6625
        %v6658 = vmax.f32 %v6594, %v6626
        %v6659 = vmax.f32 %v6595, %v6627
        %v6660 = vmax.f32 %v6596, %v6628
        %v6661 = vmax.f32 %v6597, %v6629
        %v6662 = vmax.f32 %v6598, %v6630
        %v6663 = vmax.f32 %v6599, %v6631
        %v6664 = vmax.f32 %v6600, %v6632
        %v6665 = vmax.f32 %v6601, %v6633
        %v6666 = vmax.f32 %v6602, %v6634
        %v6667 = vmax.f32 %v6603, %v6635
        %v6668 = vmax.f32 %v6604, %v6636
        %v6669 = vmax.f32 %v6605, %v6637
        %v6670 = vmax.f32 %v6606, %v6638
        %v6671 = vmax.f32 %v6607, %v6639
        %v6672 = vmax.f32 %v6608, %v6640
        %v6673 = vmax.f32 %v6609, %v6641
        %v6674 = vmax.f32 %v6610, %v6642
        %v6675 = vmax.f32 %v6611, %v6643
        %v6676 = vmax.f32 %v6612, %v6644
        %v6677 = vmax.f32 %v6613, %v6645
        %v6678 = vmax.f32 %v6614, %v6646
        %v6679 = vmax.f32 %v6615, %v6647
        %v6680 = vmax.f32 %v6616, %v6648
        %v6681 = vmax.f32 %v6617, %v6649
        %v6682 = vmax.f32 %v6618, %v6650
        %v6683 = vmax.f32 %v6619, %v6651
        %v6684 = vmax.f32 %v6620, %v6652
        %v6685 = vadd.f32 %v6553, %v4286
        %v6686 = vadd.f32 %v6554, %v4291
        %v6687 = vadd.f32 %v6555, %v4296
        %v6688 = vadd.f32 %v6556, %v4301
        %v6689 = vadd.f32 %v6525, %v4306
        %v6690 = vadd.f32 %v6526, %v4311
        %v6691 = vadd.f32 %v6527, %v4316
        %v6692 = vadd.f32 %v6528, %v4321
        %v6693 = vadd.f32 %v6529, %v4326
        %v6694 = vadd.f32 %v6530, %v4331
        %v6695 = vadd.f32 %v6531, %v4336
        %v6696 = vadd.f32 %v6532, %v4341
        %v6697 = vadd.f32 %v6533, %v4346
        %v6698 = vadd.f32 %v6534, %v4351
        %v6699 = vadd.f32 %v6535, %v4356
        %v6700 = vadd.f32 %v6536, %v4361
        %v6701 = vadd.f32 %v6537, %v4366
        %v6702 = vadd.f32 %v6538, %v4371
        %v6703 = vadd.f32 %v6539, %v4376
        %v6704 = vadd.f32 %v6540, %v4381
        %v6705 = vadd.f32 %v6541, %v4386
        %v6706 = vadd.f32 %v6542, %v4391
        %v6707 = vadd.f32 %v6543, %v4396
        %v6708 = vadd.f32 %v6544, %v4401
        %v6709 = vadd.f32 %v6545, %v4406
        %v6710 = vadd.f32 %v6546, %v4411
        %v6711 = vadd.f32 %v6547, %v4416
        %v6712 = vadd.f32 %v6548, %v4421
        %v6713 = vadd.f32 %v6549, %v4426
        %v6714 = vadd.f32 %v6550, %v4431
        %v6715 = vadd.f32 %v6551, %v4436
        %v6716 = vadd.f32 %v6552, %v4441
        %v6717 = vmax.f32 %v6653, %v6685
        %v6718 = vmax.f32 %v6654, %v6686
        %v6719 = vmax.f32 %v6655, %v6687
        %v6720 = vmax.f32 %v6656, %v6688
        %v6721 = vmax.f32 %v6657, %v6689
        %v6722 = vmax.f32 %v6658, %v6690
        %v6723 = vmax.f32 %v6659, %v6691
        %v6724 = vmax.f32 %v6660, %v6692
        %v6725 = vmax.f32 %v6661, %v6693
        %v6726 = vmax.f32 %v6662, %v6694
        %v6727 = vmax.f32 %v6663, %v6695
        %v6728 = vmax.f32 %v6664, %v6696
        %v6729 = vmax.f32 %v6665, %v6697
        %v6730 = vmax.f32 %v6666, %v6698
        %v6731 = vmax.f32 %v6667, %v6699
        %v6732 = vmax.f32 %v6668, %v6700
        %v6733 = vmax.f32 %v6669, %v6701
        %v6734 = vmax.f32 %v6670, %v6702
        %v6735 = vmax.f32 %v6671, %v6703
        %v6736 = vmax.f32 %v6672, %v6704
        %v6737 = vmax.f32 %v6673, %v6705
        %v6738 = vmax.f32 %v6674, %v6706
        %v6739 = vmax.f32 %v6675, %v6707
        %v6740 = vmax.f32 %v6676, %v6708
        %v6741 = vmax.f32 %v6677, %v6709
        %v6742 = vmax.f32 %v6678, %v6710
        %v6743 = vmax.f32 %v6679, %v6711
        %v6744 = vmax.f32 %v6680, %v6712
        %v6745 = vmax.f32 %v6681, %v6713
        %v6746 = vmax.f32 %v6682, %v6714
        %v6747 = vmax.f32 %v6683, %v6715
        %v6748 = vmax.f32 %v6684, %v6716
        %v6749 = vadd.f32 %v6529, %v4510
        %v6750 = vadd.f32 %v6530, %v4515
        %v6751 = vadd.f32 %v6531, %v4520
        %v6752 = vadd.f32 %v6532, %v4525
        %v6753 = vadd.f32 %v6533, %v4530
        %v6754 = vadd.f32 %v6534, %v4535
        %v6755 = vadd.f32 %v6535, %v4540
        %v6756 = vadd.f32 %v6536, %v4545
        %v6757 = vadd.f32 %v6537, %v4550
        %v6758 = vadd.f32 %v6538, %v4555
        %v6759 = vadd.f32 %v6539, %v4560
        %v6760 = vadd.f32 %v6540, %v4565
        %v6761 = vadd.f32 %v6541, %v4570
        %v6762 = vadd.f32 %v6542, %v4575
        %v6763 = vadd.f32 %v6543, %v4580
        %v6764 = vadd.f32 %v6544, %v4585
        %v6765 = vadd.f32 %v6545, %v4590
        %v6766 = vadd.f32 %v6546, %v4595
        %v6767 = vadd.f32 %v6547, %v4600
        %v6768 = vadd.f32 %v6548, %v4605
        %v6769 = vadd.f32 %v6549, %v4610
        %v6770 = vadd.f32 %v6550, %v4615
        %v6771 = vadd.f32 %v6551, %v4620
        %v6772 = vadd.f32 %v6552, %v4625
        %v6773 = vadd.f32 %v6553, %v4630
        %v6774 = vadd.f32 %v6554, %v4635
        %v6775 = vadd.f32 %v6555, %v4640
        %v6776 = vadd.f32 %v6556, %v4645
        %v6777 = vadd.f32 %v6525, %v4650
        %v6778 = vadd.f32 %v6526, %v4655
        %v6779 = vadd.f32 %v6527, %v4660
        %v6780 = vadd.f32 %v6528, %v4665
        %v6781 = vmax.f32 %v6717, %v6749
        %v6782 = vmax.f32 %v6718, %v6750
        %v6783 = vmax.f32 %v6719, %v6751
        %v6784 = vmax.f32 %v6720, %v6752
        %v6785 = vmax.f32 %v6721, %v6753
        %v6786 = vmax.f32 %v6722, %v6754
        %v6787 = vmax.f32 %v6723, %v6755
        %v6788 = vmax.f32 %v6724, %v6756
        %v6789 = vmax.f32 %v6725, %v6757
        %v6790 = vmax.f32 %v6726, %v6758
        %v6791 = vmax.f32 %v6727, %v6759
        %v6792 = vmax.f32 %v6728, %v6760
        %v6793 = vmax.f32 %v6729, %v6761
        %v6794 = vmax.f32 %v6730, %v6762
        %v6795 = vmax.f32 %v6731, %v6763
        %v6796 = vmax.f32 %v6732, %v6764
        %v6797 = vmax.f32 %v6733, %v6765
        %v6798 = vmax.f32 %v6734, %v6766
        %v6799 = vmax.f32 %v6735, %v6767
        %v6800 = vmax.f32 %v6736, %v6768
        %v6801 = vmax.f32 %v6737, %v6769
        %v6802 = vmax.f32 %v6738, %v6770
        %v6803 = vmax.f32 %v6739, %v6771
        %v6804 = vmax.f32 %v6740, %v6772
        %v6805 = vmax.f32 %v6741, %v6773
        %v6806 = vmax.f32 %v6742, %v6774
        %v6807 = vmax.f32 %v6743, %v6775
        %v6808 = vmax.f32 %v6744, %v6776
        %v6809 = vmax.f32 %v6745, %v6777
        %v6810 = vmax.f32 %v6746, %v6778
        %v6811 = vmax.f32 %v6747, %v6779
        %v6812 = vmax.f32 %v6748, %v6780
        %v6813 = vpack.c.bf16 %v6782, %v6781
        %v6814 = vpack.c.bf16 %v6784, %v6783
        %v6815 = vpack.c.bf16 %v6786, %v6785
        %v6816 = vpack.c.bf16 %v6788, %v6787
        %v6817 = vpack.c.bf16 %v6790, %v6789
        %v6818 = vpack.c.bf16 %v6792, %v6791
        %v6819 = vpack.c.bf16 %v6794, %v6793
        %v6820 = vpack.c.bf16 %v6796, %v6795
        %v6821 = vpack.c.bf16 %v6798, %v6797
        %v6822 = vpack.c.bf16 %v6800, %v6799
        %v6823 = vpack.c.bf16 %v6802, %v6801
        %v6824 = vpack.c.bf16 %v6804, %v6803
        %v6825 = vpack.c.bf16 %v6806, %v6805
        %v6826 = vpack.c.bf16 %v6808, %v6807
        %v6827 = vpack.c.bf16 %v6810, %v6809
        %v6828 = vpack.c.bf16 %v6812, %v6811
        %v6829 = vld [vmem:[#allocation16] sm:$0xf]
        %v6830 = vld [vmem:[#allocation16 + $0x4] sm:$0xf]
        %v6831 = vld [vmem:[#allocation16 + $0x8] sm:$0xf]
        %v6832 = vld [vmem:[#allocation16 + $0xc] sm:$0xf]
        %v6833 = vld [vmem:[#allocation16 + $0x10] sm:$0xf]
        %v6834 = vld [vmem:[#allocation16 + $0x14] sm:$0xf]
        %v6835 = vld [vmem:[#allocation16 + $0x18] sm:$0xf]
        %v6836 = vld [vmem:[#allocation16 + $0x1c] sm:$0xf]
        %v6837 = vld [vmem:[#allocation16 + $0x20] sm:$0xf]
        %v6838 = vld [vmem:[#allocation16 + $0x24] sm:$0xf]
        %v6839 = vld [vmem:[#allocation16 + $0x28] sm:$0xf]
        %v6840 = vld [vmem:[#allocation16 + $0x2c] sm:$0xf]
        %v6841 = vld [vmem:[#allocation16 + $0x30] sm:$0xf]
        %v6842 = vld [vmem:[#allocation16 + $0x34] sm:$0xf]
        %v6843 = vld [vmem:[#allocation16 + $0x38] sm:$0xf]
        %v6844 = vld [vmem:[#allocation16 + $0x3c] sm:$0xf]
        %v6861 = vunpack.c.l.b16 %v6829
        %v6862 = vunpack.c.l.b16 %v6830
        %v6863 = vunpack.c.l.b16 %v6831
        %v6864 = vunpack.c.l.b16 %v6832
        %v6865 = vunpack.c.l.b16 %v6833
        %v6866 = vunpack.c.l.b16 %v6834
        %v6867 = vunpack.c.l.b16 %v6835
        %v6868 = vunpack.c.l.b16 %v6836
        %v6869 = vunpack.c.l.b16 %v6837
        %v6870 = vunpack.c.l.b16 %v6838
        %v6871 = vunpack.c.l.b16 %v6839
        %v6872 = vunpack.c.l.b16 %v6840
        %v6873 = vunpack.c.l.b16 %v6841
        %v6874 = vunpack.c.l.b16 %v6842
        %v6875 = vunpack.c.l.b16 %v6843
        %v6876 = vunpack.c.l.b16 %v6844
        %v6877 = vpack.c.b16 %v6862, %v6861
        %v6878 = vpack.c.b16 %v6864, %v6863
        %v6879 = vpack.c.b16 %v6866, %v6865
        %v6880 = vpack.c.b16 %v6868, %v6867
        %v6881 = vpack.c.b16 %v6870, %v6869
        %v6882 = vpack.c.b16 %v6872, %v6871
        %v6883 = vpack.c.b16 %v6874, %v6873
        %v6884 = vpack.c.b16 %v6876, %v6875
        %6893 = vmatprep.subr.bf16.mxu0 0
        %6894 = vmatpush1.bf16.msra.mxu0 %v6877
        %6895 = vmatprep.subr.bf16.mxu0 0
        %6896 = vmatpush1.bf16.msra.mxu0 %v6878
        %6897 = vmatprep.subr.bf16.mxu0 0
        %6898 = vmatpush1.bf16.msra.mxu0 %v6879
        %6899 = vmatprep.subr.bf16.mxu0 0
        %6900 = vmatpush1.bf16.msra.mxu0 %v6880
        %6901 = vmatprep.subr.bf16.mxu0 0
        %6902 = vmatpush1.bf16.msra.mxu0 %v6881
        %6903 = vmatprep.subr.bf16.mxu0 0
        %6904 = vmatpush1.bf16.msra.mxu0 %v6882
        %6905 = vmatprep.subr.bf16.mxu0 0
        %6906 = vmatpush1.bf16.msra.mxu0 %v6883
        %6907 = vmatprep.subr.bf16.mxu0 0
        %6908 = vmatpush1.bf16.msra.mxu0 %v6884
        %6909 = vmatprep.subr.bf16.mxu0 0
        %6910 = vmatpush1.bf16.msra.mxu0 0
        %6911 = vmatprep.subr.bf16.mxu0 0
        %6912 = vmatpush1.bf16.msra.mxu0 0
        %6913 = vmatprep.subr.bf16.mxu0 0
        %6914 = vmatpush1.bf16.msra.mxu0 0
        %6915 = vmatprep.subr.bf16.mxu0 0
        %6916 = vmatpush1.bf16.msra.mxu0 0
        %6917 = vmatprep.subr.bf16.mxu0 0
        %6918 = vmatpush1.bf16.msra.mxu0 0
        %6919 = vmatprep.subr.bf16.mxu0 0
        %6920 = vmatpush1.bf16.msra.mxu0 0
        %6921 = vmatprep.subr.bf16.mxu0 0
        %6922 = vmatpush1.bf16.msra.mxu0 0
        %6923 = vmatprep.subr.bf16.mxu0 0
        %6924 = vmatpush1.bf16.msra.mxu0 0
        %6925 = vmatprep.mubr.bf16.mxu0 0
        %6926 = vmatmul.mubr.bf16.gmra.mrb[0].mxu0 %v6813
        %v6927 = vpop.f32.mrb[0].mxu0
        %v6928 = vadd.f32 0.0, %v6927
        %v6929 = vpop.f32.mrb[0].mxu0
        %v6930 = vpop.f32.mrb[0].mxu0
        %v6931 = vadd.f32 0.0, %v6930
        %v6932 = vpop.f32.mrb[0].mxu0
        %6933 = vmatprep.mubr.bf16.mxu0 0
        %6934 = vmatmul.mubr.bf16.gmra.mrb[0].mxu0 %v6814
        %v6935 = vpop.f32.mrb[0].mxu0
        %v6936 = vadd.f32 0.0, %v6935
        %v6937 = vpop.f32.mrb[0].mxu0
        %v6938 = vpop.f32.mrb[0].mxu0
        %v6939 = vadd.f32 0.0, %v6938
        %v6940 = vpop.f32.mrb[0].mxu0
        %6941 = vmatprep.mubr.bf16.mxu0 0
        %6942 = vmatmul.mubr.bf16.gmra.mrb[0].mxu0 %v6815
        %v6943 = vpop.f32.mrb[0].mxu0
        %v6944 = vadd.f32 0.0, %v6943
        %v6945 = vpop.f32.mrb[0].mxu0
        %v6946 = vpop.f32.mrb[0].mxu0
        %v6947 = vadd.f32 0.0, %v6946
        %v6948 = vpop.f32.mrb[0].mxu0
        %6949 = vmatprep.mubr.bf16.mxu0 0
        %6950 = vmatmul.mubr.bf16.gmra.mrb[0].mxu0 %v6816
        %v6951 = vpop.f32.mrb[0].mxu0
        %v6952 = vadd.f32 0.0, %v6951
        %v6953 = vpop.f32.mrb[0].mxu0
        %v6954 = vpop.f32.mrb[0].mxu0
        %v6955 = vadd.f32 0.0, %v6954
        %v6956 = vpop.f32.mrb[0].mxu0
        %6957 = vmatprep.mubr.bf16.mxu0 0
        %6958 = vmatmul.mubr.bf16.gmra.mrb[0].mxu0 %v6817
        %v6959 = vpop.f32.mrb[0].mxu0
        %v6960 = vadd.f32 0.0, %v6959
        %v6961 = vpop.f32.mrb[0].mxu0
        %v6962 = vpop.f32.mrb[0].mxu0
        %v6963 = vadd.f32 0.0, %v6962
        %v6964 = vpop.f32.mrb[0].mxu0
        %6965 = vmatprep.mubr.bf16.mxu0 0
        %6966 = vmatmul.mubr.bf16.gmra.mrb[0].mxu0 %v6818
        %v6967 = vpop.f32.mrb[0].mxu0
        %v6968 = vadd.f32 0.0, %v6967
        %v6969 = vpop.f32.mrb[0].mxu0
        %v6970 = vpop.f32.mrb[0].mxu0
        %v6971 = vadd.f32 0.0, %v6970
        %v6972 = vpop.f32.mrb[0].mxu0
        %6973 = vmatprep.mubr.bf16.mxu0 0
        %6974 = vmatmul.mubr.bf16.gmra.mrb[0].mxu0 %v6819
        %v6975 = vpop.f32.mrb[0].mxu0
        %v6976 = vadd.f32 0.0, %v6975
        %v6977 = vpop.f32.mrb[0].mxu0
        %v6978 = vpop.f32.mrb[0].mxu0
        %v6979 = vadd.f32 0.0, %v6978
        %v6980 = vpop.f32.mrb[0].mxu0
        %6981 = vmatprep.mubr.bf16.mxu0 0
        %6982 = vmatmul.mubr.bf16.gmra.mrb[0].mxu0 %v6820
        %v6983 = vpop.f32.mrb[0].mxu0
        %v6984 = vadd.f32 0.0, %v6983
        %v6985 = vpop.f32.mrb[0].mxu0
        %v6986 = vpop.f32.mrb[0].mxu0
        %v6987 = vadd.f32 0.0, %v6986
        %v6988 = vpop.f32.mrb[0].mxu0
        %6989 = vmatprep.mubr.bf16.mxu0 0
        %6990 = vmatmul.mubr.bf16.gmra.mrb[0].mxu0 %v6821
        %v6991 = vpop.f32.mrb[0].mxu0
        %v6992 = vadd.f32 0.0, %v6991
        %v6993 = vpop.f32.mrb[0].mxu0
        %v6994 = vpop.f32.mrb[0].mxu0
        %v6995 = vadd.f32 0.0, %v6994
        %v6996 = vpop.f32.mrb[0].mxu0
        %6997 = vmatprep.mubr.bf16.mxu0 0
        %6998 = vmatmul.mubr.bf16.gmra.mrb[0].mxu0 %v6822
        %v6999 = vpop.f32.mrb[0].mxu0
        %v7000 = vadd.f32 0.0, %v6999
        %v7001 = vpop.f32.mrb[0].mxu0
        %v7002 = vpop.f32.mrb[0].mxu0
        %v7003 = vadd.f32 0.0, %v7002
        %v7004 = vpop.f32.mrb[0].mxu0
        %7005 = vmatprep.mubr.bf16.mxu0 0
        %7006 = vmatmul.mubr.bf16.gmra.mrb[0].mxu0 %v6823
        %v7007 = vpop.f32.mrb[0].mxu0
        %v7008 = vadd.f32 0.0, %v7007
        %v7009 = vpop.f32.mrb[0].mxu0
        %v7010 = vpop.f32.mrb[0].mxu0
        %v7011 = vadd.f32 0.0, %v7010
        %v7012 = vpop.f32.mrb[0].mxu0
        %7013 = vmatprep.mubr.bf16.mxu0 0
        %7014 = vmatmul.mubr.bf16.gmra.mrb[0].mxu0 %v6824
        %v7015 = vpop.f32.mrb[0].mxu0
        %v7016 = vadd.f32 0.0, %v7015
        %v7017 = vpop.f32.mrb[0].mxu0
        %v7018 = vpop.f32.mrb[0].mxu0
        %v7019 = vadd.f32 0.0, %v7018
        %v7020 = vpop.f32.mrb[0].mxu0
        %7021 = vmatprep.mubr.bf16.mxu0 0
        %7022 = vmatmul.mubr.bf16.gmra.mrb[0].mxu0 %v6825
        %v7023 = vpop.f32.mrb[0].mxu0
        %v7024 = vadd.f32 0.0, %v7023
        %v7025 = vpop.f32.mrb[0].mxu0
        %v7026 = vpop.f32.mrb[0].mxu0
        %v7027 = vadd.f32 0.0, %v7026
        %v7028 = vpop.f32.mrb[0].mxu0
        %7029 = vmatprep.mubr.bf16.mxu0 0
        %7030 = vmatmul.mubr.bf16.gmra.mrb[0].mxu0 %v6826
        %v7031 = vpop.f32.mrb[0].mxu0
        %v7032 = vadd.f32 0.0, %v7031
        %v7033 = vpop.f32.mrb[0].mxu0
        %v7034 = vpop.f32.mrb[0].mxu0
        %v7035 = vadd.f32 0.0, %v7034
        %v7036 = vpop.f32.mrb[0].mxu0
        %7037 = vmatprep.mubr.bf16.mxu0 0
        %7038 = vmatmul.mubr.bf16.gmra.mrb[0].mxu0 %v6827
        %v7039 = vpop.f32.mrb[0].mxu0
        %v7040 = vadd.f32 0.0, %v7039
        %v7041 = vpop.f32.mrb[0].mxu0
        %v7042 = vpop.f32.mrb[0].mxu0
        %v7043 = vadd.f32 0.0, %v7042
        %v7044 = vpop.f32.mrb[0].mxu0
        %7045 = vmatprep.mubr.bf16.mxu0 0
        %7046 = vmatmul.mubr.bf16.gmra.mrb[0].mxu0 %v6828
        %v7047 = vpop.f32.mrb[0].mxu0
        %v7048 = vadd.f32 0.0, %v7047
        %v7049 = vpop.f32.mrb[0].mxu0
        %v7050 = vpop.f32.mrb[0].mxu0
        %v7051 = vadd.f32 0.0, %v7050
        %v7052 = vpop.f32.mrb[0].mxu0
        %7053 = vdwg.mxu0
        %v7054 = vadd.f32 %v6013, %v6928
        %v7055 = vadd.f32 %v6014, %v6931
        %v7056 = vadd.f32 %v6015, %v6936
        %v7057 = vadd.f32 %v6016, %v6939
        %v7058 = vadd.f32 %v6017, %v6944
        %v7059 = vadd.f32 %v6018, %v6947
        %v7060 = vadd.f32 %v6019, %v6952
        %v7061 = vadd.f32 %v6020, %v6955
        %v7062 = vadd.f32 %v6021, %v6960
        %v7063 = vadd.f32 %v6022, %v6963
        %v7064 = vadd.f32 %v6023, %v6968
        %v7065 = vadd.f32 %v6024, %v6971
        %v7066 = vadd.f32 %v6025, %v6976
        %v7067 = vadd.f32 %v6026, %v6979
        %v7068 = vadd.f32 %v6027, %v6984
        %v7069 = vadd.f32 %v6028, %v6987
        %v7070 = vadd.f32 %v6029, %v6992
        %v7071 = vadd.f32 %v6030, %v6995
        %v7072 = vadd.f32 %v6031, %v7000
        %v7073 = vadd.f32 %v6032, %v7003
        %v7074 = vadd.f32 %v6033, %v7008
        %v7075 = vadd.f32 %v6034, %v7011
        %v7076 = vadd.f32 %v6035, %v7016
        %v7077 = vadd.f32 %v6036, %v7019
        %v7078 = vadd.f32 %v6037, %v7024
        %v7079 = vadd.f32 %v6038, %v7027
        %v7080 = vadd.f32 %v6039, %v7032
        %v7081 = vadd.f32 %v6040, %v7035
        %v7082 = vadd.f32 %v6041, %v7040
        %v7083 = vadd.f32 %v6042, %v7043
        %v7084 = vadd.f32 %v6043, %v7048
        %v7085 = vadd.f32 %v6044, %v7051
        %7086 = vst [vmem:[#allocation2] sm:$0xff] %v7054
        %7087 = vst [vmem:[#allocation2 + $0x8] sm:$0xff] %v7055
        %7088 = vst [vmem:[#allocation2 + $0x10] sm:$0xff] %v7056
        %7089 = vst [vmem:[#allocation2 + $0x18] sm:$0xff] %v7057
        %7090 = vst [vmem:[#allocation2 + $0x20] sm:$0xff] %v7058
        %7091 = vst [vmem:[#allocation2 + $0x28] sm:$0xff] %v7059
        %7092 = vst [vmem:[#allocation2 + $0x30] sm:$0xff] %v7060
        %7093 = vst [vmem:[#allocation2 + $0x38] sm:$0xff] %v7061
        %7094 = vst [vmem:[#allocation2 + $0x40] sm:$0xff] %v7062
        %7095 = vst [vmem:[#allocation2 + $0x48] sm:$0xff] %v7063
        %7096 = vst [vmem:[#allocation2 + $0x50] sm:$0xff] %v7064
        %7097 = vst [vmem:[#allocation2 + $0x58] sm:$0xff] %v7065
        %7098 = vst [vmem:[#allocation2 + $0x60] sm:$0xff] %v7066
        %7099 = vst [vmem:[#allocation2 + $0x68] sm:$0xff] %v7067
        %7100 = vst [vmem:[#allocation2 + $0x70] sm:$0xff] %v7068
        %7101 = vst [vmem:[#allocation2 + $0x78] sm:$0xff] %v7069
        %7102 = vst [vmem:[#allocation2 + $0x80] sm:$0xff] %v7070
        %7103 = vst [vmem:[#allocation2 + $0x88] sm:$0xff] %v7071
        %7104 = vst [vmem:[#allocation2 + $0x90] sm:$0xff] %v7072
        %7105 = vst [vmem:[#allocation2 + $0x98] sm:$0xff] %v7073
        %7106 = vst [vmem:[#allocation2 + $0xa0] sm:$0xff] %v7074
        %7107 = vst [vmem:[#allocation2 + $0xa8] sm:$0xff] %v7075
        %7108 = vst [vmem:[#allocation2 + $0xb0] sm:$0xff] %v7076
        %7109 = vst [vmem:[#allocation2 + $0xb8] sm:$0xff] %v7077
        %7110 = vst [vmem:[#allocation2 + $0xc0] sm:$0xff] %v7078
        %7111 = vst [vmem:[#allocation2 + $0xc8] sm:$0xff] %v7079
        %7112 = vst [vmem:[#allocation2 + $0xd0] sm:$0xff] %v7080
        %7113 = vst [vmem:[#allocation2 + $0xd8] sm:$0xff] %v7081
        %7114 = vst [vmem:[#allocation2 + $0xe0] sm:$0xff] %v7082
        %7115 = vst [vmem:[#allocation2 + $0xe8] sm:$0xff] %v7083
        %7116 = vst [vmem:[#allocation2 + $0xf0] sm:$0xff] %v7084
        %7117 = vst [vmem:[#allocation2 + $0xf8] sm:$0xff] %v7085
        // Predicated region
        $region105: #{sppf_improve_forward.1} parent=59 // pred_check
          %p7118 = pneg %p575
        $region106: #{sppf_improve_forward.1} parent=59 // pred_check_branch
          %7120 = sbr.rel (%p7118) target = $region108
        $region107: #{sppf_improve_forward.1} parent=59 // pred_region
          %v7121 = vld [vmem:[#allocation2] sm:$0xff]
          %v7122 = vld [vmem:[#allocation2 + $0x8] sm:$0xff]
          %v7123 = vld [vmem:[#allocation2 + $0x10] sm:$0xff]
          %v7124 = vld [vmem:[#allocation2 + $0x18] sm:$0xff]
          %v7125 = vld [vmem:[#allocation2 + $0x20] sm:$0xff]
          %v7126 = vld [vmem:[#allocation2 + $0x28] sm:$0xff]
          %v7127 = vld [vmem:[#allocation2 + $0x30] sm:$0xff]
          %v7128 = vld [vmem:[#allocation2 + $0x38] sm:$0xff]
          %v7129 = vld [vmem:[#allocation2 + $0x40] sm:$0xff]
          %v7130 = vld [vmem:[#allocation2 + $0x48] sm:$0xff]
          %v7131 = vld [vmem:[#allocation2 + $0x50] sm:$0xff]
          %v7132 = vld [vmem:[#allocation2 + $0x58] sm:$0xff]
          %v7133 = vld [vmem:[#allocation2 + $0x60] sm:$0xff]
          %v7134 = vld [vmem:[#allocation2 + $0x68] sm:$0xff]
          %v7135 = vld [vmem:[#allocation2 + $0x70] sm:$0xff]
          %v7136 = vld [vmem:[#allocation2 + $0x78] sm:$0xff]
          %v7137 = vld [vmem:[#allocation2 + $0x80] sm:$0xff]
          %v7138 = vld [vmem:[#allocation2 + $0x88] sm:$0xff]
          %v7139 = vld [vmem:[#allocation2 + $0x90] sm:$0xff]
          %v7140 = vld [vmem:[#allocation2 + $0x98] sm:$0xff]
          %v7141 = vld [vmem:[#allocation2 + $0xa0] sm:$0xff]
          %v7142 = vld [vmem:[#allocation2 + $0xa8] sm:$0xff]
          %v7143 = vld [vmem:[#allocation2 + $0xb0] sm:$0xff]
          %v7144 = vld [vmem:[#allocation2 + $0xb8] sm:$0xff]
          %v7145 = vld [vmem:[#allocation2 + $0xc0] sm:$0xff]
          %v7146 = vld [vmem:[#allocation2 + $0xc8] sm:$0xff]
          %v7147 = vld [vmem:[#allocation2 + $0xd0] sm:$0xff]
          %v7148 = vld [vmem:[#allocation2 + $0xd8] sm:$0xff]
          %v7149 = vld [vmem:[#allocation2 + $0xe0] sm:$0xff]
          %v7150 = vld [vmem:[#allocation2 + $0xe8] sm:$0xff]
          %v7151 = vld [vmem:[#allocation2 + $0xf0] sm:$0xff]
          %v7152 = vld [vmem:[#allocation2 + $0xf8] sm:$0xff]
          %v7153 = vld [vmem:[#allocation3] sm:$0x1]
          %v7154 = vlaneseq
          %v7155 = vshrl.u32 %v7154, 7
          %v7156 = vsub.s32 0, %v7155
          %v7157 = vrot.slane %v7153, %v7156
          %v7158 = vadd.f32 %v7121, %v7157
          %v7159 = vadd.f32 %v7122, %v7157
          %v7160 = vadd.f32 %v7123, %v7157
          %v7161 = vadd.f32 %v7124, %v7157
          %v7162 = vadd.f32 %v7125, %v7157
          %v7163 = vadd.f32 %v7126, %v7157
          %v7164 = vadd.f32 %v7127, %v7157
          %v7165 = vadd.f32 %v7128, %v7157
          %v7166 = vadd.f32 %v7129, %v7157
          %v7167 = vadd.f32 %v7130, %v7157
          %v7168 = vadd.f32 %v7131, %v7157
          %v7169 = vadd.f32 %v7132, %v7157
          %v7170 = vadd.f32 %v7133, %v7157
          %v7171 = vadd.f32 %v7134, %v7157
          %v7172 = vadd.f32 %v7135, %v7157
          %v7173 = vadd.f32 %v7136, %v7157
          %v7174 = vadd.f32 %v7137, %v7157
          %v7175 = vadd.f32 %v7138, %v7157
          %v7176 = vadd.f32 %v7139, %v7157
          %v7177 = vadd.f32 %v7140, %v7157
          %v7178 = vadd.f32 %v7141, %v7157
          %v7179 = vadd.f32 %v7142, %v7157
          %v7180 = vadd.f32 %v7143, %v7157
          %v7181 = vadd.f32 %v7144, %v7157
          %v7182 = vadd.f32 %v7145, %v7157
          %v7183 = vadd.f32 %v7146, %v7157
          %v7184 = vadd.f32 %v7147, %v7157
          %v7185 = vadd.f32 %v7148, %v7157
          %v7186 = vadd.f32 %v7149, %v7157
          %v7187 = vadd.f32 %v7150, %v7157
          %v7188 = vadd.f32 %v7151, %v7157
          %v7189 = vadd.f32 %v7152, %v7157
          %v7190 = vld [vmem:[#allocation19] sm:$0x1]
          %v7192 = vlaneseq
          %v7193 = vshrl.u32 %v7192, 7
          %v7194 = vsub.s32 0, %v7193
          %v7195 = vrot.slane %v7190, %v7194
          %v7197 = vadd.f32 %v7158, %v7195
          %v7198 = vadd.f32 %v7159, %v7195
          %v7199 = vadd.f32 %v7160, %v7195
          %v7200 = vadd.f32 %v7161, %v7195
          %v7201 = vadd.f32 %v7162, %v7195
          %v7202 = vadd.f32 %v7163, %v7195
          %v7203 = vadd.f32 %v7164, %v7195
          %v7204 = vadd.f32 %v7165, %v7195
          %v7205 = vadd.f32 %v7166, %v7195
          %v7206 = vadd.f32 %v7167, %v7195
          %v7207 = vadd.f32 %v7168, %v7195
          %v7208 = vadd.f32 %v7169, %v7195
          %v7209 = vadd.f32 %v7170, %v7195
          %v7210 = vadd.f32 %v7171, %v7195
          %v7211 = vadd.f32 %v7172, %v7195
          %v7212 = vadd.f32 %v7173, %v7195
          %v7213 = vadd.f32 %v7174, %v7195
          %v7214 = vadd.f32 %v7175, %v7195
          %v7215 = vadd.f32 %v7176, %v7195
          %v7216 = vadd.f32 %v7177, %v7195
          %v7217 = vadd.f32 %v7178, %v7195
          %v7218 = vadd.f32 %v7179, %v7195
          %v7219 = vadd.f32 %v7180, %v7195
          %v7220 = vadd.f32 %v7181, %v7195
          %v7221 = vadd.f32 %v7182, %v7195
          %v7222 = vadd.f32 %v7183, %v7195
          %v7223 = vadd.f32 %v7184, %v7195
          %v7224 = vadd.f32 %v7185, %v7195
          %v7225 = vadd.f32 %v7186, %v7195
          %v7226 = vadd.f32 %v7187, %v7195
          %v7227 = vadd.f32 %v7188, %v7195
          %v7228 = vadd.f32 %v7189, %v7195
          %v7229 = vxor.u32 %v7197, 2147483648
          %v7230 = vxor.u32 %v7198, 2147483648
          %v7231 = vxor.u32 %v7199, 2147483648
          %v7232 = vxor.u32 %v7200, 2147483648
          %v7233 = vxor.u32 %v7201, 2147483648
          %v7234 = vxor.u32 %v7202, 2147483648
          %v7235 = vxor.u32 %v7203, 2147483648
          %v7236 = vxor.u32 %v7204, 2147483648
          %v7237 = vxor.u32 %v7205, 2147483648
          %v7238 = vxor.u32 %v7206, 2147483648
          %v7239 = vxor.u32 %v7207, 2147483648
          %v7240 = vxor.u32 %v7208, 2147483648
          %v7241 = vxor.u32 %v7209, 2147483648
          %v7242 = vxor.u32 %v7210, 2147483648
          %v7243 = vxor.u32 %v7211, 2147483648
          %v7244 = vxor.u32 %v7212, 2147483648
          %v7245 = vxor.u32 %v7213, 2147483648
          %v7246 = vxor.u32 %v7214, 2147483648
          %v7247 = vxor.u32 %v7215, 2147483648
          %v7248 = vxor.u32 %v7216, 2147483648
          %v7249 = vxor.u32 %v7217, 2147483648
          %v7250 = vxor.u32 %v7218, 2147483648
          %v7251 = vxor.u32 %v7219, 2147483648
          %v7252 = vxor.u32 %v7220, 2147483648
          %v7253 = vxor.u32 %v7221, 2147483648
          %v7254 = vxor.u32 %v7222, 2147483648
          %v7255 = vxor.u32 %v7223, 2147483648
          %v7256 = vxor.u32 %v7224, 2147483648
          %v7257 = vxor.u32 %v7225, 2147483648
          %v7258 = vxor.u32 %v7226, 2147483648
          %v7259 = vxor.u32 %v7227, 2147483648
          %v7260 = vxor.u32 %v7228, 2147483648
          %v7261 = vmul.f32 %v7229, 1.442695
          %v7262 = vpow.pop %v7261
          %v7263 = vmul.f32 %v7230, 1.442695
          %v7264 = vpow.pop %v7263
          %v7265 = vmul.f32 %v7231, 1.442695
          %v7266 = vpow.pop %v7265
          %v7267 = vmul.f32 %v7232, 1.442695
          %v7268 = vpow.pop %v7267
          %v7269 = vmul.f32 %v7233, 1.442695
          %v7270 = vpow.pop %v7269
          %v7271 = vmul.f32 %v7234, 1.442695
          %v7272 = vpow.pop %v7271
          %v7273 = vmul.f32 %v7235, 1.442695
          %v7274 = vpow.pop %v7273
          %v7275 = vmul.f32 %v7236, 1.442695
          %v7276 = vpow.pop %v7275
          %v7277 = vmul.f32 %v7237, 1.442695
          %v7278 = vpow.pop %v7277
          %v7279 = vmul.f32 %v7238, 1.442695
          %v7280 = vpow.pop %v7279
          %v7281 = vmul.f32 %v7239, 1.442695
          %v7282 = vpow.pop %v7281
          %v7283 = vmul.f32 %v7240, 1.442695
          %v7284 = vpow.pop %v7283
          %v7285 = vmul.f32 %v7241, 1.442695
          %v7286 = vpow.pop %v7285
          %v7287 = vmul.f32 %v7242, 1.442695
          %v7288 = vpow.pop %v7287
          %v7289 = vmul.f32 %v7243, 1.442695
          %v7290 = vpow.pop %v7289
          %v7291 = vmul.f32 %v7244, 1.442695
          %v7292 = vpow.pop %v7291
          %v7293 = vmul.f32 %v7245, 1.442695
          %v7294 = vpow.pop %v7293
          %v7295 = vmul.f32 %v7246, 1.442695
          %v7296 = vpow.pop %v7295
          %v7297 = vmul.f32 %v7247, 1.442695
          %v7298 = vpow.pop %v7297
          %v7299 = vmul.f32 %v7248, 1.442695
          %v7300 = vpow.pop %v7299
          %v7301 = vmul.f32 %v7249, 1.442695
          %v7302 = vpow.pop %v7301
          %v7303 = vmul.f32 %v7250, 1.442695
          %v7304 = vpow.pop %v7303
          %v7305 = vmul.f32 %v7251, 1.442695
          %v7306 = vpow.pop %v7305
          %v7307 = vmul.f32 %v7252, 1.442695
          %v7308 = vpow.pop %v7307
          %v7309 = vmul.f32 %v7253, 1.442695
          %v7310 = vpow.pop %v7309
          %v7311 = vmul.f32 %v7254, 1.442695
          %v7312 = vpow.pop %v7311
          %v7313 = vmul.f32 %v7255, 1.442695
          %v7314 = vpow.pop %v7313
          %v7315 = vmul.f32 %v7256, 1.442695
          %v7316 = vpow.pop %v7315
          %v7317 = vmul.f32 %v7257, 1.442695
          %v7318 = vpow.pop %v7317
          %v7319 = vmul.f32 %v7258, 1.442695
          %v7320 = vpow.pop %v7319
          %v7321 = vmul.f32 %v7259, 1.442695
          %v7322 = vpow.pop %v7321
          %v7323 = vmul.f32 %v7260, 1.442695
          %v7324 = vpow.pop %v7323
          %v7325 = vadd.f32 %v7262, 1.0
          %v7326 = vadd.f32 %v7264, 1.0
          %v7327 = vadd.f32 %v7266, 1.0
          %v7328 = vadd.f32 %v7268, 1.0
          %v7329 = vadd.f32 %v7270, 1.0
          %v7330 = vadd.f32 %v7272, 1.0
          %v7331 = vadd.f32 %v7274, 1.0
          %v7332 = vadd.f32 %v7276, 1.0
          %v7333 = vadd.f32 %v7278, 1.0
          %v7334 = vadd.f32 %v7280, 1.0
          %v7335 = vadd.f32 %v7282, 1.0
          %v7336 = vadd.f32 %v7284, 1.0
          %v7337 = vadd.f32 %v7286, 1.0
          %v7338 = vadd.f32 %v7288, 1.0
          %v7339 = vadd.f32 %v7290, 1.0
          %v7340 = vadd.f32 %v7292, 1.0
          %v7341 = vadd.f32 %v7294, 1.0
          %v7342 = vadd.f32 %v7296, 1.0
          %v7343 = vadd.f32 %v7298, 1.0
          %v7344 = vadd.f32 %v7300, 1.0
          %v7345 = vadd.f32 %v7302, 1.0
          %v7346 = vadd.f32 %v7304, 1.0
          %v7347 = vadd.f32 %v7306, 1.0
          %v7348 = vadd.f32 %v7308, 1.0
          %v7349 = vadd.f32 %v7310, 1.0
          %v7350 = vadd.f32 %v7312, 1.0
          %v7351 = vadd.f32 %v7314, 1.0
          %v7352 = vadd.f32 %v7316, 1.0
          %v7353 = vadd.f32 %v7318, 1.0
          %v7354 = vadd.f32 %v7320, 1.0
          %v7355 = vadd.f32 %v7322, 1.0
          %v7356 = vadd.f32 %v7324, 1.0
          %v7357 = vrcp.pop %v7325
          %v7358 = vmul.f32 1.0, %v7357
          %v7359 = vrcp.pop %v7326
          %v7360 = vmul.f32 1.0, %v7359
          %v7361 = vrcp.pop %v7327
          %v7362 = vmul.f32 1.0, %v7361
          %v7363 = vrcp.pop %v7328
          %v7364 = vmul.f32 1.0, %v7363
          %v7365 = vrcp.pop %v7329
          %v7366 = vmul.f32 1.0, %v7365
          %v7367 = vrcp.pop %v7330
          %v7368 = vmul.f32 1.0, %v7367
          %v7369 = vrcp.pop %v7331
          %v7370 = vmul.f32 1.0, %v7369
          %v7371 = vrcp.pop %v7332
          %v7372 = vmul.f32 1.0, %v7371
          %v7373 = vrcp.pop %v7333
          %v7374 = vmul.f32 1.0, %v7373
          %v7375 = vrcp.pop %v7334
          %v7376 = vmul.f32 1.0, %v7375
          %v7377 = vrcp.pop %v7335
          %v7378 = vmul.f32 1.0, %v7377
          %v7379 = vrcp.pop %v7336
          %v7380 = vmul.f32 1.0, %v7379
          %v7381 = vrcp.pop %v7337
          %v7382 = vmul.f32 1.0, %v7381
          %v7383 = vrcp.pop %v7338
          %v7384 = vmul.f32 1.0, %v7383
          %v7385 = vrcp.pop %v7339
          %v7386 = vmul.f32 1.0, %v7385
          %v7387 = vrcp.pop %v7340
          %v7388 = vmul.f32 1.0, %v7387
          %v7389 = vrcp.pop %v7341
          %v7390 = vmul.f32 1.0, %v7389
          %v7391 = vrcp.pop %v7342
          %v7392 = vmul.f32 1.0, %v7391
          %v7393 = vrcp.pop %v7343
          %v7394 = vmul.f32 1.0, %v7393
          %v7395 = vrcp.pop %v7344
          %v7396 = vmul.f32 1.0, %v7395
          %v7397 = vrcp.pop %v7345
          %v7398 = vmul.f32 1.0, %v7397
          %v7399 = vrcp.pop %v7346
          %v7400 = vmul.f32 1.0, %v7399
          %v7401 = vrcp.pop %v7347
          %v7402 = vmul.f32 1.0, %v7401
          %v7403 = vrcp.pop %v7348
          %v7404 = vmul.f32 1.0, %v7403
          %v7405 = vrcp.pop %v7349
          %v7406 = vmul.f32 1.0, %v7405
          %v7407 = vrcp.pop %v7350
          %v7408 = vmul.f32 1.0, %v7407
          %v7409 = vrcp.pop %v7351
          %v7410 = vmul.f32 1.0, %v7409
          %v7411 = vrcp.pop %v7352
          %v7412 = vmul.f32 1.0, %v7411
          %v7413 = vrcp.pop %v7353
          %v7414 = vmul.f32 1.0, %v7413
          %v7415 = vrcp.pop %v7354
          %v7416 = vmul.f32 1.0, %v7415
          %v7417 = vrcp.pop %v7355
          %v7418 = vmul.f32 1.0, %v7417
          %v7419 = vrcp.pop %v7356
          %v7420 = vmul.f32 1.0, %v7419
          %v7421 = vmul.f32 %v7197, %v7358
          %v7422 = vmul.f32 %v7198, %v7360
          %v7423 = vmul.f32 %v7199, %v7362
          %v7424 = vmul.f32 %v7200, %v7364
          %v7425 = vmul.f32 %v7201, %v7366
          %v7426 = vmul.f32 %v7202, %v7368
          %v7427 = vmul.f32 %v7203, %v7370
          %v7428 = vmul.f32 %v7204, %v7372
          %v7429 = vmul.f32 %v7205, %v7374
          %v7430 = vmul.f32 %v7206, %v7376
          %v7431 = vmul.f32 %v7207, %v7378
          %v7432 = vmul.f32 %v7208, %v7380
          %v7433 = vmul.f32 %v7209, %v7382
          %v7434 = vmul.f32 %v7210, %v7384
          %v7435 = vmul.f32 %v7211, %v7386
          %v7436 = vmul.f32 %v7212, %v7388
          %v7437 = vmul.f32 %v7213, %v7390
          %v7438 = vmul.f32 %v7214, %v7392
          %v7439 = vmul.f32 %v7215, %v7394
          %v7440 = vmul.f32 %v7216, %v7396
          %v7441 = vmul.f32 %v7217, %v7398
          %v7442 = vmul.f32 %v7218, %v7400
          %v7443 = vmul.f32 %v7219, %v7402
          %v7444 = vmul.f32 %v7220, %v7404
          %v7445 = vmul.f32 %v7221, %v7406
          %v7446 = vmul.f32 %v7222, %v7408
          %v7447 = vmul.f32 %v7223, %v7410
          %v7448 = vmul.f32 %v7224, %v7412
          %v7449 = vmul.f32 %v7225, %v7414
          %v7450 = vmul.f32 %v7226, %v7416
          %v7451 = vmul.f32 %v7227, %v7418
          %v7452 = vmul.f32 %v7228, %v7420
          %7453 = vst [vmem:[%s568] sm:$0xff] %v7421
          %7454 = vst [vmem:[%s568 + $0x8] sm:$0xff] %v7422
          %7455 = vst [vmem:[%s568 + $0x10] sm:$0xff] %v7423
          %7456 = vst [vmem:[%s568 + $0x18] sm:$0xff] %v7424
          %7457 = vst [vmem:[%s568 + $0x20] sm:$0xff] %v7425
          %7458 = vst [vmem:[%s568 + $0x28] sm:$0xff] %v7426
          %7459 = vst [vmem:[%s568 + $0x30] sm:$0xff] %v7427
          %7460 = vst [vmem:[%s568 + $0x38] sm:$0xff] %v7428
          %7461 = vst [vmem:[%s568 + $0x40] sm:$0xff] %v7429
          %7462 = vst [vmem:[%s568 + $0x48] sm:$0xff] %v7430
          %7463 = vst [vmem:[%s568 + $0x50] sm:$0xff] %v7431
          %7464 = vst [vmem:[%s568 + $0x58] sm:$0xff] %v7432
          %7465 = vst [vmem:[%s568 + $0x60] sm:$0xff] %v7433
          %7466 = vst [vmem:[%s568 + $0x68] sm:$0xff] %v7434
          %7467 = vst [vmem:[%s568 + $0x70] sm:$0xff] %v7435
          %7468 = vst [vmem:[%s568 + $0x78] sm:$0xff] %v7436
          %7469 = vst [vmem:[%s568 + $0x80] sm:$0xff] %v7437
          %7470 = vst [vmem:[%s568 + $0x88] sm:$0xff] %v7438
          %7471 = vst [vmem:[%s568 + $0x90] sm:$0xff] %v7439
          %7472 = vst [vmem:[%s568 + $0x98] sm:$0xff] %v7440
          %7473 = vst [vmem:[%s568 + $0xa0] sm:$0xff] %v7441
          %7474 = vst [vmem:[%s568 + $0xa8] sm:$0xff] %v7442
          %7475 = vst [vmem:[%s568 + $0xb0] sm:$0xff] %v7443
          %7476 = vst [vmem:[%s568 + $0xb8] sm:$0xff] %v7444
          %7477 = vst [vmem:[%s568 + $0xc0] sm:$0xff] %v7445
          %7478 = vst [vmem:[%s568 + $0xc8] sm:$0xff] %v7446
          %7479 = vst [vmem:[%s568 + $0xd0] sm:$0xff] %v7447
          %7480 = vst [vmem:[%s568 + $0xd8] sm:$0xff] %v7448
          %7481 = vst [vmem:[%s568 + $0xe0] sm:$0xff] %v7449
          %7482 = vst [vmem:[%s568 + $0xe8] sm:$0xff] %v7450
          %7483 = vst [vmem:[%s568 + $0xf0] sm:$0xff] %v7451
          %7484 = vst [vmem:[%s568 + $0xf8] sm:$0xff] %v7452
        $region108: #{sppf_improve_forward.1} parent=59 // pred_fallthru
          _
        %s7485 = sand.u32 %s302, 1
        %s7486 = scalar_lea.sflag [#allocation6], %s7485
        %s7487 = sand.u32 %s302, 1
        %s7488 = smul.addr %s7487, 256
        %s7489 = scalar_lea.vmem [#allocation21], %s7488
        // Predicated region
        $region109: #{sppf_improve_forward.1} parent=59 // pred_check
          %p7490 = pneg %p312
        $region110: #{sppf_improve_forward.1} parent=59 // pred_check_branch
          %7492 = sbr.rel (%p7490) target = $region112
        $region111: #{sppf_improve_forward.1} parent=59 // pred_region
          %s7494 = ssub.s32 4096, 4096
          %7495 = vsyncadd %s7486, %s7494
          %s7496 = smul.addr %s36, 32
          %s7497 = smul.addr %s7496, 128
          %s7498 = scalar_lea.hbm %s10, %s7497
          %s7499 = sshll.u32 %s7489, 4
          %s7500 = int_to_ptr.vmem [resolvable:$true] %s7499
          %7505 = dma.vmem_to_hbm [thread:$0]  %s7500, 4096, %s7498, %s7486, 128, 128, 8
        $region112: #{sppf_improve_forward.1} parent=59 // pred_fallthru
          _
      $region60: #{sppf_improve_forward.1} parent=5 // pred_fallthru
        _
      %p7506 = scmp.le.s32.totalorder 2, %s27
      // Predicated region
      $region113: #{sppf_improve_forward.1} parent=5 // pred_check
        %p7507 = pneg %p7506
      $region114: #{sppf_improve_forward.1} parent=5 // pred_check_branch
        %7509 = sbr.rel (%p7507) target = $region116
      $region115: #{sppf_improve_forward.1} parent=5 // pred_region
        %s7510 = ssub.s32 %s27, 2
        // Predicated region
        $region117: #{sppf_improve_forward.1} parent=115 // pred_check
          %p7511 = pneg %p318
        $region118: #{sppf_improve_forward.1} parent=115 // pred_check_branch
          %7513 = sbr.rel (%p7511) target = $region120
        $region119: #{sppf_improve_forward.1} parent=115 // pred_region
          %s7514 = sand.u32 %s303, 1
          %s7515 = scalar_lea.sflag [#allocation6], %s7514
          %s7516 = sand.u32 %s303, 1
          %s7517 = smul.addr %s7516, 256
          %s7518 = scalar_lea.vmem [#allocation21], %s7517
          %7519 = dma.done %s7515, 4096
        $region120: #{sppf_improve_forward.1} parent=115 // pred_fallthru
          _
      $region116: #{sppf_improve_forward.1} parent=5 // pred_fallthru
        _
    $region6: #{sppf_improve_forward.1} parent=1 // loop_footer
      %s31 = sadd.s32 1, %s27
    $region7: #{sppf_improve_forward.1} parent=1 // loop_footer_branch
      %26 = sbr.rel target = $region3
    $region8: #{sppf_improve_forward.1} parent=1 // loop_exit
      _
    %7520 = vsyncpa [#allocation5], 1
    %s7521 = scalar_lea.sflag [#allocation5], 1
    %7522 = vsyncpa %s7521, 1
    %7523 = vsyncpa [#allocation8], 1
    %s7524 = scalar_lea.sflag [#allocation8], 1
    %7525 = vsyncpa %s7524, 1
    %7526 = vsyncpa [#allocation11], 1
    %7527 = vsyncpa [#allocation14], 1
    %7528 = vsyncpa [#allocation17], 1
    %7529 = vsyncpa [#allocation20], 1
    %7530 = vsyncpa [#allocation6], 1
    %s7531 = scalar_lea.sflag [#allocation6], 1
    %7532 = vsyncpa %s7531, 1

</llo_original>
